<compile_context>
chip_gen: v7x
topology: tpu7x:2x2x1
jax: 0.10.0
libtpu: 0.0.40
codegen_flags: <defaults>
</compile_context>

<pallas_src>
import math

import jax
import jax.numpy as jnp
from jax.experimental import pallas as pl
from jax.experimental.pallas import tpu as pltpu

KSIZE = 7
PAD = KSIZE // 2
EPS = 1e-6
APPROX_GELU = False  # True -> tanh GELU (EUP transcendental slot; useful on v5e)


def _gelu(h):
    if APPROX_GELU:
        c = math.sqrt(2.0 / math.pi)
        return 0.5 * h * (1.0 + jnp.tanh(c * (h + 0.044715 * h * h * h)))
    # exact GELU, matching torch nn.GELU()
    return 0.5 * h * (1.0 + jax.lax.erf(h * (1.0 / math.sqrt(2.0))))


def _block_body(xpad_ref, dww_ref, dwb_ref, o_ref, mlp):
    """Shared body. xpad_ref block: (1, TH+2*PAD, W+2*PAD, C); o_ref: (1, TH, W, C)."""
    TH, W, C = o_ref.shape[1], o_ref.shape[2], o_ref.shape[3]

    xp = xpad_ref[0].astype(jnp.float32)        # (TH+2P, W+2P, C)
    dww = dww_ref[...].astype(jnp.float32)      # (7, 7, C)

    # ---- depthwise 7x7 conv (groups=C) -----------------------------------
    # Hoist the width (sublane) shift out of the tap loop: 7 misaligned
    # W-slices total; the row offset (i) indexes whole vregs and is cheap.
    acc = jnp.zeros((TH, W, C), jnp.float32)
    center = None
    for j in range(KSIZE):
        xw = xp[:, j:j + W, :]                  # (TH+2P, W, C)
        if j == PAD:
            center = xw                         # reused below for the residual
        for i in range(KSIZE):
            acc = acc + xw[i:i + TH, :, :] * dww[i, j, :][None, None, :]
    acc = acc + dwb_ref[...].astype(jnp.float32)

    # ---- LayerNorm over channels (single-pass stats) ----------------------
    # The affine (ln_w, ln_b) is folded into W1/b1 in the wrapper.
    xh = acc.reshape(TH * W, C)
    inv_c = 1.0 / C
    mean = jnp.sum(xh, axis=-1, keepdims=True) * inv_c
    ex2 = jnp.sum(xh * xh, axis=-1, keepdims=True) * inv_c
    var = ex2 - mean * mean
    xn = (xh - mean) * jax.lax.rsqrt(var + EPS)

    # ---- pointwise MLP (bf16 MXU matmuls, f32 acc); gamma folded in W2/b2 --
    y = mlp(xn.astype(jnp.bfloat16))

    # ---- residual (residual = interior of the padded tile, already in VMEM)
    resid = center[PAD:PAD + TH, :, :]
    o_ref[0] = (y.reshape(TH, W, C) + resid).astype(o_ref.dtype)


def _kernel_folded(xpad_ref, dww_ref, dwb_ref,
                   w1_ref, b1_ref, w2_ref, b2_ref, o_ref):
    """LoRA pairs pre-folded to dense (C,4C)/(4C,C) bf16 weights in the wrapper."""
    def mlp(xn):
        h = jnp.dot(xn, w1_ref[...], preferred_element_type=jnp.float32)
        h = _gelu(h + b1_ref[...].astype(jnp.float32))
        y = jnp.dot(h.astype(jnp.bfloat16), w2_ref[...],
                    preferred_element_type=jnp.float32)
        return y + b2_ref[...].astype(jnp.float32)
    _block_body(xpad_ref, dww_ref, dwb_ref, o_ref, mlp)


def _kernel_lora(xpad_ref, dww_ref, dwb_ref,
                 w1a_ref, w1b_ref, b1_ref, w2a_ref, w2b_ref, b2_ref, o_ref):
    """Low-rank split kept in-kernel (used for large C where folding wastes MXU)."""
    def mlp(xn):
        h = jnp.dot(xn, w1a_ref[...], preferred_element_type=jnp.float32)
        h = jnp.dot(h.astype(jnp.bfloat16), w1b_ref[...],
                    preferred_element_type=jnp.float32)
        h = _gelu(h + b1_ref[...].astype(jnp.float32))
        y = jnp.dot(h.astype(jnp.bfloat16), w2a_ref[...],
                    preferred_element_type=jnp.float32)
        y = jnp.dot(y.astype(jnp.bfloat16), w2b_ref[...],
                    preferred_element_type=jnp.float32)
        return y + b2_ref[...].astype(jnp.float32)
    _block_body(xpad_ref, dww_ref, dwb_ref, o_ref, mlp)


def _choose_tile_h(H, W, C, hidden, in_itemsize, out_itemsize,
                   budget_bytes=12 * 1024 * 1024, cap=64):
    """Largest row-tile (divisor of H, <= cap) whose VMEM footprint fits the budget.

    Budget is sized for v7x (64 MiB physical VMEM) with double-buffered I/O.
    """
    Wp = W + 2 * PAD
    best = 1
    for th in range(1, min(H, cap) + 1):
        if H % th:
            continue
        inp = 2 * (th + 2 * PAD) * Wp * C * in_itemsize   # double-buffered input tile
        outp = 2 * th * W * C * out_itemsize              # double-buffered output tile
        accb = 2 * th * W * C * 4                         # f32 conv acc + xn
        hbuf = th * W * hidden * (4 + 2)                  # f32 + bf16 GELU intermediate
        if inp + outp + accb + hbuf <= budget_bytes:
            best = th
    return best


def _fold_params(params, C, fold_dense):
    """Fold LN affine into W1/b1 and gamma into W2/b2 (exact in f32)."""
    ln_w = params["ln_w"].reshape(-1).astype(jnp.float32)
    ln_b = params["ln_b"].reshape(-1).astype(jnp.float32)
    gamma = params.get("gamma")
    gamma = (jnp.ones((C,), jnp.float32) if gamma is None
             else gamma.reshape(-1).astype(jnp.float32))
    b1 = params["b1"].reshape(1, -1).astype(jnp.float32)
    b2 = params["b2"].reshape(1, -1).astype(jnp.float32)
    w1a = params["w1a"].astype(jnp.float32)
    w1b = params["w1b"].astype(jnp.float32)
    w2a = params["w2a"].astype(jnp.float32)
    w2b = params["w2b"].astype(jnp.float32)

    if fold_dense:
        w1d = w1a @ w1b                                   # (C, 4C)
        w2d = w2a @ w2b                                   # (4C, C)
        w1 = (ln_w[:, None] * w1d).astype(jnp.bfloat16)
        b1f = b1 + ln_b[None, :] @ w1d
        w2 = (w2d * gamma[None, :]).astype(jnp.bfloat16)
        b2f = b2 * gamma[None, :]
        return (w1, b1f, w2, b2f), _kernel_folded
    else:
        w1a_f = (ln_w[:, None] * w1a).astype(jnp.bfloat16)
        b1f = b1 + (ln_b[None, :] @ w1a) @ w1b
        w2b_f = (w2b * gamma[None, :]).astype(jnp.bfloat16)
        b2f = b2 * gamma[None, :]
        return (w1a_f, w1b.astype(jnp.bfloat16), b1f,
                w2a.astype(jnp.bfloat16), w2b_f, b2f), _kernel_lora


def conv_encoder_forward_nhwc(x, params, *, tile_h=None, fold_lora_max_dim=256):
    """x: (B, H, W, C) channels-last -> (B, H, W, C)."""
    B, H, W, C = x.shape
    hidden = params["b1"].shape[-1]

    # TODO(synk): fold the zero-padding into the kernel (boundary masking) to
    # remove this extra HBM pass; kept in the wrapper for simplicity.
    xpad = jnp.pad(x, ((0, 0), (PAD, PAD), (PAD, PAD), (0, 0)))
    Hp, Wp = H + 2 * PAD, W + 2 * PAD

    consts = (params["dw_w"], params["dw_b"])
    weights, kernel = _fold_params(params, C, fold_dense=(C <= fold_lora_max_dim))

    if tile_h is None:
        tile_h = _choose_tile_h(H, W, C, hidden,
                                xpad.dtype.itemsize, x.dtype.itemsize)
    tile_h = max(1, min(int(tile_h), H))
    if H % tile_h:
        tile_h = H
    n_tiles = H // tile_h

    def run(th, nt):
        if nt > 1:
            # Overlapping (halo) windows along H: element-indexed block dim.
            in_h_dim = pl.Element(th + 2 * PAD)
            in_idx = lambda b, t: (b, t * th, 0, 0)
        else:
            in_h_dim = Hp
            in_idx = lambda b, t: (b, 0, 0, 0)

        def const_spec(a):
            n = a.ndim
            return pl.BlockSpec(a.shape, lambda b, t: (0,) * n)

        grid_spec = pltpu.PrefetchScalarGridSpec(
            num_scalar_prefetch=0,
            grid=(B, nt),
            in_specs=[pl.BlockSpec((1, in_h_dim, Wp, C), in_idx)]
                     + [const_spec(a) for a in consts]
                     + [const_spec(a) for a in weights],
            out_specs=pl.BlockSpec((1, th, W, C), lambda b, t: (b, t, 0, 0)),
        )
        return pl.pallas_call(
            kernel,
            out_shape=jax.ShapeDtypeStruct((B, H, W, C), x.dtype),
            grid_spec=grid_spec,
            compiler_params=pltpu.CompilerParams(
                dimension_semantics=("parallel", "parallel"),
                vmem_limit_bytes=48 * 1024 * 1024),
        )(xpad, *consts, *weights)

    if n_tiles > 1:
        try:
            # Eager pallas_call compiles synchronously, so any lowering issue
            # with overlapping Element-indexed windows surfaces here.
            out = run(tile_h, n_tiles)
        except Exception:
            # Fallback: whole-image tile if halo windows are unsupported on
            # this jax/libtpu version.
            out = run(H, 1)
    else:
        out = run(H, 1)
    return out


def conv_encoder_forward(x_nchw, params, **kw):
    """NCHW wrapper matching the PyTorch module interface."""
    # TODO(synk): NHWC end-to-end callers should use conv_encoder_forward_nhwc
    # directly and skip these two transpose passes over HBM.
    x = jnp.transpose(x_nchw, (0, 2, 3, 1))
    out = conv_encoder_forward_nhwc(x, params, **kw)
    return jnp.transpose(out, (0, 3, 1, 2))


def make_params(key, dim, rank_ratio=0.25, expan_ratio=4,
                layer_scale_init_value=1e-6):
    hidden = expan_ratio * dim
    r1 = max(2, int(min(dim, hidden) * rank_ratio))
    r2 = max(2, int(min(hidden, dim) * rank_ratio))
    ks = jax.random.split(key, 8)
    s = 0.05
    return {
        "dw_w": s * jax.random.normal(ks[0], (KSIZE, KSIZE, dim), jnp.float32),
        "dw_b": s * jax.random.normal(ks[1], (1, dim), jnp.float32),
        "ln_w": jnp.ones((1, dim), jnp.float32),
        "ln_b": jnp.zeros((1, dim), jnp.float32),
        "w1a": s * jax.random.normal(ks[2], (dim, r1), jnp.float32),
        "w1b": s * jax.random.normal(ks[3], (r1, hidden), jnp.float32),
        "b1": s * jax.random.normal(ks[4], (1, hidden), jnp.float32),
        "w2a": s * jax.random.normal(ks[5], (hidden, r2), jnp.float32),
        "w2b": s * jax.random.normal(ks[6], (r2, dim), jnp.float32),
        "b2": s * jax.random.normal(ks[7], (1, dim), jnp.float32),
        "gamma": layer_scale_init_value * jnp.ones((1, dim), jnp.float32),
    }


def ref_forward(x_nchw, params):
    """Pure-JAX f32 reference of the PyTorch forward (for sanity checking)."""
    x = jnp.transpose(x_nchw, (0, 2, 3, 1))
    C = x.shape[-1]
    rhs = params["dw_w"][:, :, None, :]                    # (7,7,1,C) HWIO
    y = jax.lax.conv_general_dilated(
        x, rhs, window_strides=(1, 1), padding=((PAD, PAD), (PAD, PAD)),
        dimension_numbers=("NHWC", "HWIO", "NHWC"), feature_group_count=C)
    y = y + params["dw_b"][0]
    mean = jnp.mean(y, axis=-1, keepdims=True)
    var = jnp.mean((y - mean) ** 2, axis=-1, keepdims=True)
    y = (y - mean) * jax.lax.rsqrt(var + EPS)
    y = y * params["ln_w"][0] + params["ln_b"][0]
    y = y @ params["w1a"] @ params["w1b"] + params["b1"][0]
    y = jax.nn.gelu(y, approximate=False)
    y = y @ params["w2a"] @ params["w2b"] + params["b2"][0]
    y = y * params["gamma"][0]
    y = x + y
    return jnp.transpose(y, (0, 3, 1, 2))


if __name__ == "__main__":
    key = jax.random.PRNGKey(0)
    kx, kp = jax.random.split(key)

    B, dim, H, W = 2, 32, 16, 16
    x = jax.random.normal(kx, (B, dim, H, W), jnp.float32)
    # layer_scale_init_value=1.0 so the MLP branch contributes at O(1e-1) and
    # the comparison below is actually sensitive to it (module default is 1e-6).
    params = make_params(kp, dim, rank_ratio=0.25, expan_ratio=4,
                         layer_scale_init_value=1.0)
    ref = ref_forward(x, params)

    # 1) row-tiled path (halo windows), LoRA + LN + gamma folded to dense weights
    out1 = jax.block_until_ready(conv_encoder_forward(x, params, tile_h=8))
    # 2) auto tile choice (single tile at this size), LoRA kept split in-kernel
    out2 = jax.block_until_ready(
        conv_encoder_forward(x, params, tile_h=None, fold_lora_max_dim=0))

    assert out1.shape == (B, dim, H, W) and out2.shape == (B, dim, H, W)
    for out in (out1, out2):
        err = float(jnp.max(jnp.abs(out - ref)))
        assert err < 3e-3, f"mismatch vs reference: max abs err = {err}"
    print("KERNEL_OK")
</pallas_src>

<mosaic_0001>
module attributes {stable_mosaic.version = 11 : i64} {
  func.func @_kernel_folded(%arg0: i32, %arg1: i32, %arg2: memref<1x22x22x32xf32, #tpu.memory_space<vmem>>, %arg3: memref<7x7x32xf32, #tpu.memory_space<vmem>>, %arg4: memref<1x32xf32, #tpu.memory_space<vmem>>, %arg5: memref<32x128xbf16, #tpu.memory_space<vmem>>, %arg6: memref<1x128xf32, #tpu.memory_space<vmem>>, %arg7: memref<128x32xbf16, #tpu.memory_space<vmem>>, %arg8: memref<1x32xf32, #tpu.memory_space<vmem>>, %arg9: memref<1x16x16x32xf32, #tpu.memory_space<vmem>>) attributes {dimension_semantics = [#tpu.dimension_semantics<parallel>, #tpu.dimension_semantics<parallel>], iteration_bounds = array<i64: 2, 1>, scalar_prefetch = 0 : i64, scratch_operands = 0 : i64, tpu.core_type = #tpu.core_type<tc>, window_params = [{transform_indices = @transform_0, window_bounds = array<i64: 1, 22, 22, 32>}, {pipeline_mode = #tpu.pipeline_mode<synchronous>, transform_indices = @transform_1, window_bounds = array<i64: 7, 7, 32>}, {pipeline_mode = #tpu.pipeline_mode<synchronous>, transform_indices = @transform_2, window_bounds = array<i64: 1, 32>}, {pipeline_mode = #tpu.pipeline_mode<synchronous>, transform_indices = @transform_3, window_bounds = array<i64: 32, 128>}, {pipeline_mode = #tpu.pipeline_mode<synchronous>, transform_indices = @transform_4, window_bounds = array<i64: 1, 128>}, {pipeline_mode = #tpu.pipeline_mode<synchronous>, transform_indices = @transform_5, window_bounds = array<i64: 128, 32>}, {pipeline_mode = #tpu.pipeline_mode<synchronous>, transform_indices = @transform_6, window_bounds = array<i64: 1, 32>}, {transform_indices = @transform_7, window_bounds = array<i64: 1, 16, 16, 32>}]} {
    %c0 = arith.constant 0 : index
    %c0_0 = arith.constant 0 : index
    %c0_1 = arith.constant 0 : index
    %c0_2 = arith.constant 0 : index
    %0 = vector.load %arg2[%c0, %c0_0, %c0_1, %c0_2] : memref<1x22x22x32xf32, #tpu.memory_space<vmem>>, vector<1x22x22x32xf32>
    %1 = vector.shape_cast %0 : vector<1x22x22x32xf32> to vector<22x22x32xf32>
    %c0_3 = arith.constant 0 : index
    %c0_4 = arith.constant 0 : index
    %c0_5 = arith.constant 0 : index
    %2 = vector.load %arg3[%c0_3, %c0_4, %c0_5] : memref<7x7x32xf32, #tpu.memory_space<vmem>>, vector<7x7x32xf32>
    %cst = arith.constant 0.000000e+00 : f32
    %3 = vector.broadcast %cst : f32 to vector<16x16x32xf32>
    %4 = vector.extract_strided_slice %1 {offsets = [0, 0, 0], sizes = [22, 16, 32], strides = [1, 1, 1]} : vector<22x22x32xf32> to vector<22x16x32xf32>
    %5 = vector.extract_strided_slice %4 {offsets = [0, 0, 0], sizes = [16, 16, 32], strides = [1, 1, 1]} : vector<22x16x32xf32> to vector<16x16x32xf32>
    %6 = vector.extract_strided_slice %2 {offsets = [0, 0, 0], sizes = [1, 1, 32], strides = [1, 1, 1]} : vector<7x7x32xf32> to vector<1x1x32xf32>
    %7 = vector.shape_cast %6 : vector<1x1x32xf32> to vector<32xf32>
    %8 = vector.shape_cast %7 : vector<32xf32> to vector<1x1x32xf32>
    %9 = vector.broadcast %8 : vector<1x1x32xf32> to vector<16x16x32xf32>
    %10 = arith.mulf %5, %9 : vector<16x16x32xf32>
    %11 = arith.addf %3, %10 : vector<16x16x32xf32>
    %12 = vector.extract_strided_slice %4 {offsets = [1, 0, 0], sizes = [16, 16, 32], strides = [1, 1, 1]} : vector<22x16x32xf32> to vector<16x16x32xf32>
    %13 = vector.extract_strided_slice %2 {offsets = [1, 0, 0], sizes = [1, 1, 32], strides = [1, 1, 1]} : vector<7x7x32xf32> to vector<1x1x32xf32>
    %14 = vector.shape_cast %13 : vector<1x1x32xf32> to vector<32xf32>
    %15 = vector.shape_cast %14 : vector<32xf32> to vector<1x1x32xf32>
    %16 = vector.broadcast %15 : vector<1x1x32xf32> to vector<16x16x32xf32>
    %17 = arith.mulf %12, %16 : vector<16x16x32xf32>
    %18 = arith.addf %11, %17 : vector<16x16x32xf32>
    %19 = vector.extract_strided_slice %4 {offsets = [2, 0, 0], sizes = [16, 16, 32], strides = [1, 1, 1]} : vector<22x16x32xf32> to vector<16x16x32xf32>
    %20 = vector.extract_strided_slice %2 {offsets = [2, 0, 0], sizes = [1, 1, 32], strides = [1, 1, 1]} : vector<7x7x32xf32> to vector<1x1x32xf32>
    %21 = vector.shape_cast %20 : vector<1x1x32xf32> to vector<32xf32>
    %22 = vector.shape_cast %21 : vector<32xf32> to vector<1x1x32xf32>
    %23 = vector.broadcast %22 : vector<1x1x32xf32> to vector<16x16x32xf32>
    %24 = arith.mulf %19, %23 : vector<16x16x32xf32>
    %25 = arith.addf %18, %24 : vector<16x16x32xf32>
    %26 = vector.extract_strided_slice %4 {offsets = [3, 0, 0], sizes = [16, 16, 32], strides = [1, 1, 1]} : vector<22x16x32xf32> to vector<16x16x32xf32>
    %27 = vector.extract_strided_slice %2 {offsets = [3, 0, 0], sizes = [1, 1, 32], strides = [1, 1, 1]} : vector<7x7x32xf32> to vector<1x1x32xf32>
    %28 = vector.shape_cast %27 : vector<1x1x32xf32> to vector<32xf32>
    %29 = vector.shape_cast %28 : vector<32xf32> to vector<1x1x32xf32>
    %30 = vector.broadcast %29 : vector<1x1x32xf32> to vector<16x16x32xf32>
    %31 = arith.mulf %26, %30 : vector<16x16x32xf32>
    %32 = arith.addf %25, %31 : vector<16x16x32xf32>
    %33 = vector.extract_strided_slice %4 {offsets = [4, 0, 0], sizes = [16, 16, 32], strides = [1, 1, 1]} : vector<22x16x32xf32> to vector<16x16x32xf32>
    %34 = vector.extract_strided_slice %2 {offsets = [4, 0, 0], sizes = [1, 1, 32], strides = [1, 1, 1]} : vector<7x7x32xf32> to vector<1x1x32xf32>
    %35 = vector.shape_cast %34 : vector<1x1x32xf32> to vector<32xf32>
    %36 = vector.shape_cast %35 : vector<32xf32> to vector<1x1x32xf32>
    %37 = vector.broadcast %36 : vector<1x1x32xf32> to vector<16x16x32xf32>
    %38 = arith.mulf %33, %37 : vector<16x16x32xf32>
    %39 = arith.addf %32, %38 : vector<16x16x32xf32>
    %40 = vector.extract_strided_slice %4 {offsets = [5, 0, 0], sizes = [16, 16, 32], strides = [1, 1, 1]} : vector<22x16x32xf32> to vector<16x16x32xf32>
    %41 = vector.extract_strided_slice %2 {offsets = [5, 0, 0], sizes = [1, 1, 32], strides = [1, 1, 1]} : vector<7x7x32xf32> to vector<1x1x32xf32>
    %42 = vector.shape_cast %41 : vector<1x1x32xf32> to vector<32xf32>
    %43 = vector.shape_cast %42 : vector<32xf32> to vector<1x1x32xf32>
    %44 = vector.broadcast %43 : vector<1x1x32xf32> to vector<16x16x32xf32>
    %45 = arith.mulf %40, %44 : vector<16x16x32xf32>
    %46 = arith.addf %39, %45 : vector<16x16x32xf32>
    %47 = vector.extract_strided_slice %4 {offsets = [6, 0, 0], sizes = [16, 16, 32], strides = [1, 1, 1]} : vector<22x16x32xf32> to vector<16x16x32xf32>
    %48 = vector.extract_strided_slice %2 {offsets = [6, 0, 0], sizes = [1, 1, 32], strides = [1, 1, 1]} : vector<7x7x32xf32> to vector<1x1x32xf32>
    %49 = vector.shape_cast %48 : vector<1x1x32xf32> to vector<32xf32>
    %50 = vector.shape_cast %49 : vector<32xf32> to vector<1x1x32xf32>
    %51 = vector.broadcast %50 : vector<1x1x32xf32> to vector<16x16x32xf32>
    %52 = arith.mulf %47, %51 : vector<16x16x32xf32>
    %53 = arith.addf %46, %52 : vector<16x16x32xf32>
    %54 = vector.extract_strided_slice %1 {offsets = [0, 1, 0], sizes = [22, 16, 32], strides = [1, 1, 1]} : vector<22x22x32xf32> to vector<22x16x32xf32>
    %55 = vector.extract_strided_slice %54 {offsets = [0, 0, 0], sizes = [16, 16, 32], strides = [1, 1, 1]} : vector<22x16x32xf32> to vector<16x16x32xf32>
    %56 = vector.extract_strided_slice %2 {offsets = [0, 1, 0], sizes = [1, 1, 32], strides = [1, 1, 1]} : vector<7x7x32xf32> to vector<1x1x32xf32>
    %57 = vector.shape_cast %56 : vector<1x1x32xf32> to vector<32xf32>
    %58 = vector.shape_cast %57 : vector<32xf32> to vector<1x1x32xf32>
    %59 = vector.broadcast %58 : vector<1x1x32xf32> to vector<16x16x32xf32>
    %60 = arith.mulf %55, %59 : vector<16x16x32xf32>
    %61 = arith.addf %53, %60 : vector<16x16x32xf32>
    %62 = vector.extract_strided_slice %54 {offsets = [1, 0, 0], sizes = [16, 16, 32], strides = [1, 1, 1]} : vector<22x16x32xf32> to vector<16x16x32xf32>
    %63 = vector.extract_strided_slice %2 {offsets = [1, 1, 0], sizes = [1, 1, 32], strides = [1, 1, 1]} : vector<7x7x32xf32> to vector<1x1x32xf32>
    %64 = vector.shape_cast %63 : vector<1x1x32xf32> to vector<32xf32>
    %65 = vector.shape_cast %64 : vector<32xf32> to vector<1x1x32xf32>
    %66 = vector.broadcast %65 : vector<1x1x32xf32> to vector<16x16x32xf32>
    %67 = arith.mulf %62, %66 : vector<16x16x32xf32>
    %68 = arith.addf %61, %67 : vector<16x16x32xf32>
    %69 = vector.extract_strided_slice %54 {offsets = [2, 0, 0], sizes = [16, 16, 32], strides = [1, 1, 1]} : vector<22x16x32xf32> to vector<16x16x32xf32>
    %70 = vector.extract_strided_slice %2 {offsets = [2, 1, 0], sizes = [1, 1, 32], strides = [1, 1, 1]} : vector<7x7x32xf32> to vector<1x1x32xf32>
    %71 = vector.shape_cast %70 : vector<1x1x32xf32> to vector<32xf32>
    %72 = vector.shape_cast %71 : vector<32xf32> to vector<1x1x32xf32>
    %73 = vector.broadcast %72 : vector<1x1x32xf32> to vector<16x16x32xf32>
    %74 = arith.mulf %69, %73 : vector<16x16x32xf32>
    %75 = arith.addf %68, %74 : vector<16x16x32xf32>
    %76 = vector.extract_strided_slice %54 {offsets = [3, 0, 0], sizes = [16, 16, 32], strides = [1, 1, 1]} : vector<22x16x32xf32> to vector<16x16x32xf32>
    %77 = vector.extract_strided_slice %2 {offsets = [3, 1, 0], sizes = [1, 1, 32], strides = [1, 1, 1]} : vector<7x7x32xf32> to vector<1x1x32xf32>
    %78 = vector.shape_cast %77 : vector<1x1x32xf32> to vector<32xf32>
    %79 = vector.shape_cast %78 : vector<32xf32> to vector<1x1x32xf32>
    %80 = vector.broadcast %79 : vector<1x1x32xf32> to vector<16x16x32xf32>
    %81 = arith.mulf %76, %80 : vector<16x16x32xf32>
    %82 = arith.addf %75, %81 : vector<16x16x32xf32>
    %83 = vector.extract_strided_slice %54 {offsets = [4, 0, 0], sizes = [16, 16, 32], strides = [1, 1, 1]} : vector<22x16x32xf32> to vector<16x16x32xf32>
    %84 = vector.extract_strided_slice %2 {offsets = [4, 1, 0], sizes = [1, 1, 32], strides = [1, 1, 1]} : vector<7x7x32xf32> to vector<1x1x32xf32>
    %85 = vector.shape_cast %84 : vector<1x1x32xf32> to vector<32xf32>
    %86 = vector.shape_cast %85 : vector<32xf32> to vector<1x1x32xf32>
    %87 = vector.broadcast %86 : vector<1x1x32xf32> to vector<16x16x32xf32>
    %88 = arith.mulf %83, %87 : vector<16x16x32xf32>
    %89 = arith.addf %82, %88 : vector<16x16x32xf32>
    %90 = vector.extract_strided_slice %54 {offsets = [5, 0, 0], sizes = [16, 16, 32], strides = [1, 1, 1]} : vector<22x16x32xf32> to vector<16x16x32xf32>
    %91 = vector.extract_strided_slice %2 {offsets = [5, 1, 0], sizes = [1, 1, 32], strides = [1, 1, 1]} : vector<7x7x32xf32> to vector<1x1x32xf32>
    %92 = vector.shape_cast %91 : vector<1x1x32xf32> to vector<32xf32>
    %93 = vector.shape_cast %92 : vector<32xf32> to vector<1x1x32xf32>
    %94 = vector.broadcast %93 : vector<1x1x32xf32> to vector<16x16x32xf32>
    %95 = arith.mulf %90, %94 : vector<16x16x32xf32>
    %96 = arith.addf %89, %95 : vector<16x16x32xf32>
    %97 = vector.extract_strided_slice %54 {offsets = [6, 0, 0], sizes = [16, 16, 32], strides = [1, 1, 1]} : vector<22x16x32xf32> to vector<16x16x32xf32>
    %98 = vector.extract_strided_slice %2 {offsets = [6, 1, 0], sizes = [1, 1, 32], strides = [1, 1, 1]} : vector<7x7x32xf32> to vector<1x1x32xf32>
    %99 = vector.shape_cast %98 : vector<1x1x32xf32> to vector<32xf32>
    %100 = vector.shape_cast %99 : vector<32xf32> to vector<1x1x32xf32>
    %101 = vector.broadcast %100 : vector<1x1x32xf32> to vector<16x16x32xf32>
    %102 = arith.mulf %97, %101 : vector<16x16x32xf32>
    %103 = arith.addf %96, %102 : vector<16x16x32xf32>
    %104 = vector.extract_strided_slice %1 {offsets = [0, 2, 0], sizes = [22, 16, 32], strides = [1, 1, 1]} : vector<22x22x32xf32> to vector<22x16x32xf32>
    %105 = vector.extract_strided_slice %104 {offsets = [0, 0, 0], sizes = [16, 16, 32], strides = [1, 1, 1]} : vector<22x16x32xf32> to vector<16x16x32xf32>
    %106 = vector.extract_strided_slice %2 {offsets = [0, 2, 0], sizes = [1, 1, 32], strides = [1, 1, 1]} : vector<7x7x32xf32> to vector<1x1x32xf32>
    %107 = vector.shape_cast %106 : vector<1x1x32xf32> to vector<32xf32>
    %108 = vector.shape_cast %107 : vector<32xf32> to vector<1x1x32xf32>
    %109 = vector.broadcast %108 : vector<1x1x32xf32> to vector<16x16x32xf32>
    %110 = arith.mulf %105, %109 : vector<16x16x32xf32>
    %111 = arith.addf %103, %110 : vector<16x16x32xf32>
    %112 = vector.extract_strided_slice %104 {offsets = [1, 0, 0], sizes = [16, 16, 32], strides = [1, 1, 1]} : vector<22x16x32xf32> to vector<16x16x32xf32>
    %113 = vector.extract_strided_slice %2 {offsets = [1, 2, 0], sizes = [1, 1, 32], strides = [1, 1, 1]} : vector<7x7x32xf32> to vector<1x1x32xf32>
    %114 = vector.shape_cast %113 : vector<1x1x32xf32> to vector<32xf32>
    %115 = vector.shape_cast %114 : vector<32xf32> to vector<1x1x32xf32>
    %116 = vector.broadcast %115 : vector<1x1x32xf32> to vector<16x16x32xf32>
    %117 = arith.mulf %112, %116 : vector<16x16x32xf32>
    %118 = arith.addf %111, %117 : vector<16x16x32xf32>
    %119 = vector.extract_strided_slice %104 {offsets = [2, 0, 0], sizes = [16, 16, 32], strides = [1, 1, 1]} : vector<22x16x32xf32> to vector<16x16x32xf32>
    %120 = vector.extract_strided_slice %2 {offsets = [2, 2, 0], sizes = [1, 1, 32], strides = [1, 1, 1]} : vector<7x7x32xf32> to vector<1x1x32xf32>
    %121 = vector.shape_cast %120 : vector<1x1x32xf32> to vector<32xf32>
    %122 = vector.shape_cast %121 : vector<32xf32> to vector<1x1x32xf32>
    %123 = vector.broadcast %122 : vector<1x1x32xf32> to vector<16x16x32xf32>
    %124 = arith.mulf %119, %123 : vector<16x16x32xf32>
    %125 = arith.addf %118, %124 : vector<16x16x32xf32>
    %126 = vector.extract_strided_slice %104 {offsets = [3, 0, 0], sizes = [16, 16, 32], strides = [1, 1, 1]} : vector<22x16x32xf32> to vector<16x16x32xf32>
    %127 = vector.extract_strided_slice %2 {offsets = [3, 2, 0], sizes = [1, 1, 32], strides = [1, 1, 1]} : vector<7x7x32xf32> to vector<1x1x32xf32>
    %128 = vector.shape_cast %127 : vector<1x1x32xf32> to vector<32xf32>
    %129 = vector.shape_cast %128 : vector<32xf32> to vector<1x1x32xf32>
    %130 = vector.broadcast %129 : vector<1x1x32xf32> to vector<16x16x32xf32>
    %131 = arith.mulf %126, %130 : vector<16x16x32xf32>
    %132 = arith.addf %125, %131 : vector<16x16x32xf32>
    %133 = vector.extract_strided_slice %104 {offsets = [4, 0, 0], sizes = [16, 16, 32], strides = [1, 1, 1]} : vector<22x16x32xf32> to vector<16x16x32xf32>
    %134 = vector.extract_strided_slice %2 {offsets = [4, 2, 0], sizes = [1, 1, 32], strides = [1, 1, 1]} : vector<7x7x32xf32> to vector<1x1x32xf32>
    %135 = vector.shape_cast %134 : vector<1x1x32xf32> to vector<32xf32>
    %136 = vector.shape_cast %135 : vector<32xf32> to vector<1x1x32xf32>
    %137 = vector.broadcast %136 : vector<1x1x32xf32> to vector<16x16x32xf32>
    %138 = arith.mulf %133, %137 : vector<16x16x32xf32>
    %139 = arith.addf %132, %138 : vector<16x16x32xf32>
    %140 = vector.extract_strided_slice %104 {offsets = [5, 0, 0], sizes = [16, 16, 32], strides = [1, 1, 1]} : vector<22x16x32xf32> to vector<16x16x32xf32>
    %141 = vector.extract_strided_slice %2 {offsets = [5, 2, 0], sizes = [1, 1, 32], strides = [1, 1, 1]} : vector<7x7x32xf32> to vector<1x1x32xf32>
    %142 = vector.shape_cast %141 : vector<1x1x32xf32> to vector<32xf32>
    %143 = vector.shape_cast %142 : vector<32xf32> to vector<1x1x32xf32>
    %144 = vector.broadcast %143 : vector<1x1x32xf32> to vector<16x16x32xf32>
    %145 = arith.mulf %140, %144 : vector<16x16x32xf32>
    %146 = arith.addf %139, %145 : vector<16x16x32xf32>
    %147 = vector.extract_strided_slice %104 {offsets = [6, 0, 0], sizes = [16, 16, 32], strides = [1, 1, 1]} : vector<22x16x32xf32> to vector<16x16x32xf32>
    %148 = vector.extract_strided_slice %2 {offsets = [6, 2, 0], sizes = [1, 1, 32], strides = [1, 1, 1]} : vector<7x7x32xf32> to vector<1x1x32xf32>
    %149 = vector.shape_cast %148 : vector<1x1x32xf32> to vector<32xf32>
    %150 = vector.shape_cast %149 : vector<32xf32> to vector<1x1x32xf32>
    %151 = vector.broadcast %150 : vector<1x1x32xf32> to vector<16x16x32xf32>
    %152 = arith.mulf %147, %151 : vector<16x16x32xf32>
    %153 = arith.addf %146, %152 : vector<16x16x32xf32>
    %154 = vector.extract_strided_slice %1 {offsets = [0, 3, 0], sizes = [22, 16, 32], strides = [1, 1, 1]} : vector<22x22x32xf32> to vector<22x16x32xf32>
    %155 = vector.extract_strided_slice %154 {offsets = [0, 0, 0], sizes = [16, 16, 32], strides = [1, 1, 1]} : vector<22x16x32xf32> to vector<16x16x32xf32>
    %156 = vector.extract_strided_slice %2 {offsets = [0, 3, 0], sizes = [1, 1, 32], strides = [1, 1, 1]} : vector<7x7x32xf32> to vector<1x1x32xf32>
    %157 = vector.shape_cast %156 : vector<1x1x32xf32> to vector<32xf32>
    %158 = vector.shape_cast %157 : vector<32xf32> to vector<1x1x32xf32>
    %159 = vector.broadcast %158 : vector<1x1x32xf32> to vector<16x16x32xf32>
    %160 = arith.mulf %155, %159 : vector<16x16x32xf32>
    %161 = arith.addf %153, %160 : vector<16x16x32xf32>
    %162 = vector.extract_strided_slice %154 {offsets = [1, 0, 0], sizes = [16, 16, 32], strides = [1, 1, 1]} : vector<22x16x32xf32> to vector<16x16x32xf32>
    %163 = vector.extract_strided_slice %2 {offsets = [1, 3, 0], sizes = [1, 1, 32], strides = [1, 1, 1]} : vector<7x7x32xf32> to vector<1x1x32xf32>
    %164 = vector.shape_cast %163 : vector<1x1x32xf32> to vector<32xf32>
    %165 = vector.shape_cast %164 : vector<32xf32> to vector<1x1x32xf32>
    %166 = vector.broadcast %165 : vector<1x1x32xf32> to vector<16x16x32xf32>
    %167 = arith.mulf %162, %166 : vector<16x16x32xf32>
    %168 = arith.addf %161, %167 : vector<16x16x32xf32>
    %169 = vector.extract_strided_slice %154 {offsets = [2, 0, 0], sizes = [16, 16, 32], strides = [1, 1, 1]} : vector<22x16x32xf32> to vector<16x16x32xf32>
    %170 = vector.extract_strided_slice %2 {offsets = [2, 3, 0], sizes = [1, 1, 32], strides = [1, 1, 1]} : vector<7x7x32xf32> to vector<1x1x32xf32>
    %171 = vector.shape_cast %170 : vector<1x1x32xf32> to vector<32xf32>
    %172 = vector.shape_cast %171 : vector<32xf32> to vector<1x1x32xf32>
    %173 = vector.broadcast %172 : vector<1x1x32xf32> to vector<16x16x32xf32>
    %174 = arith.mulf %169, %173 : vector<16x16x32xf32>
    %175 = arith.addf %168, %174 : vector<16x16x32xf32>
    %176 = vector.extract_strided_slice %154 {offsets = [3, 0, 0], sizes = [16, 16, 32], strides = [1, 1, 1]} : vector<22x16x32xf32> to vector<16x16x32xf32>
    %177 = vector.extract_strided_slice %2 {offsets = [3, 3, 0], sizes = [1, 1, 32], strides = [1, 1, 1]} : vector<7x7x32xf32> to vector<1x1x32xf32>
    %178 = vector.shape_cast %177 : vector<1x1x32xf32> to vector<32xf32>
    %179 = vector.shape_cast %178 : vector<32xf32> to vector<1x1x32xf32>
    %180 = vector.broadcast %179 : vector<1x1x32xf32> to vector<16x16x32xf32>
    %181 = arith.mulf %176, %180 : vector<16x16x32xf32>
    %182 = arith.addf %175, %181 : vector<16x16x32xf32>
    %183 = vector.extract_strided_slice %154 {offsets = [4, 0, 0], sizes = [16, 16, 32], strides = [1, 1, 1]} : vector<22x16x32xf32> to vector<16x16x32xf32>
    %184 = vector.extract_strided_slice %2 {offsets = [4, 3, 0], sizes = [1, 1, 32], strides = [1, 1, 1]} : vector<7x7x32xf32> to vector<1x1x32xf32>
    %185 = vector.shape_cast %184 : vector<1x1x32xf32> to vector<32xf32>
    %186 = vector.shape_cast %185 : vector<32xf32> to vector<1x1x32xf32>
    %187 = vector.broadcast %186 : vector<1x1x32xf32> to vector<16x16x32xf32>
    %188 = arith.mulf %183, %187 : vector<16x16x32xf32>
    %189 = arith.addf %182, %188 : vector<16x16x32xf32>
    %190 = vector.extract_strided_slice %154 {offsets = [5, 0, 0], sizes = [16, 16, 32], strides = [1, 1, 1]} : vector<22x16x32xf32> to vector<16x16x32xf32>
    %191 = vector.extract_strided_slice %2 {offsets = [5, 3, 0], sizes = [1, 1, 32], strides = [1, 1, 1]} : vector<7x7x32xf32> to vector<1x1x32xf32>
    %192 = vector.shape_cast %191 : vector<1x1x32xf32> to vector<32xf32>
    %193 = vector.shape_cast %192 : vector<32xf32> to vector<1x1x32xf32>
    %194 = vector.broadcast %193 : vector<1x1x32xf32> to vector<16x16x32xf32>
    %195 = arith.mulf %190, %194 : vector<16x16x32xf32>
    %196 = arith.addf %189, %195 : vector<16x16x32xf32>
    %197 = vector.extract_strided_slice %154 {offsets = [6, 0, 0], sizes = [16, 16, 32], strides = [1, 1, 1]} : vector<22x16x32xf32> to vector<16x16x32xf32>
    %198 = vector.extract_strided_slice %2 {offsets = [6, 3, 0], sizes = [1, 1, 32], strides = [1, 1, 1]} : vector<7x7x32xf32> to vector<1x1x32xf32>
    %199 = vector.shape_cast %198 : vector<1x1x32xf32> to vector<32xf32>
    %200 = vector.shape_cast %199 : vector<32xf32> to vector<1x1x32xf32>
    %201 = vector.broadcast %200 : vector<1x1x32xf32> to vector<16x16x32xf32>
    %202 = arith.mulf %197, %201 : vector<16x16x32xf32>
    %203 = arith.addf %196, %202 : vector<16x16x32xf32>
    %204 = vector.extract_strided_slice %1 {offsets = [0, 4, 0], sizes = [22, 16, 32], strides = [1, 1, 1]} : vector<22x22x32xf32> to vector<22x16x32xf32>
    %205 = vector.extract_strided_slice %204 {offsets = [0, 0, 0], sizes = [16, 16, 32], strides = [1, 1, 1]} : vector<22x16x32xf32> to vector<16x16x32xf32>
    %206 = vector.extract_strided_slice %2 {offsets = [0, 4, 0], sizes = [1, 1, 32], strides = [1, 1, 1]} : vector<7x7x32xf32> to vector<1x1x32xf32>
    %207 = vector.shape_cast %206 : vector<1x1x32xf32> to vector<32xf32>
    %208 = vector.shape_cast %207 : vector<32xf32> to vector<1x1x32xf32>
    %209 = vector.broadcast %208 : vector<1x1x32xf32> to vector<16x16x32xf32>
    %210 = arith.mulf %205, %209 : vector<16x16x32xf32>
    %211 = arith.addf %203, %210 : vector<16x16x32xf32>
    %212 = vector.extract_strided_slice %204 {offsets = [1, 0, 0], sizes = [16, 16, 32], strides = [1, 1, 1]} : vector<22x16x32xf32> to vector<16x16x32xf32>
    %213 = vector.extract_strided_slice %2 {offsets = [1, 4, 0], sizes = [1, 1, 32], strides = [1, 1, 1]} : vector<7x7x32xf32> to vector<1x1x32xf32>
    %214 = vector.shape_cast %213 : vector<1x1x32xf32> to vector<32xf32>
    %215 = vector.shape_cast %214 : vector<32xf32> to vector<1x1x32xf32>
    %216 = vector.broadcast %215 : vector<1x1x32xf32> to vector<16x16x32xf32>
    %217 = arith.mulf %212, %216 : vector<16x16x32xf32>
    %218 = arith.addf %211, %217 : vector<16x16x32xf32>
    %219 = vector.extract_strided_slice %204 {offsets = [2, 0, 0], sizes = [16, 16, 32], strides = [1, 1, 1]} : vector<22x16x32xf32> to vector<16x16x32xf32>
    %220 = vector.extract_strided_slice %2 {offsets = [2, 4, 0], sizes = [1, 1, 32], strides = [1, 1, 1]} : vector<7x7x32xf32> to vector<1x1x32xf32>
    %221 = vector.shape_cast %220 : vector<1x1x32xf32> to vector<32xf32>
    %222 = vector.shape_cast %221 : vector<32xf32> to vector<1x1x32xf32>
    %223 = vector.broadcast %222 : vector<1x1x32xf32> to vector<16x16x32xf32>
    %224 = arith.mulf %219, %223 : vector<16x16x32xf32>
    %225 = arith.addf %218, %224 : vector<16x16x32xf32>
    %226 = vector.extract_strided_slice %204 {offsets = [3, 0, 0], sizes = [16, 16, 32], strides = [1, 1, 1]} : vector<22x16x32xf32> to vector<16x16x32xf32>
    %227 = vector.extract_strided_slice %2 {offsets = [3, 4, 0], sizes = [1, 1, 32], strides = [1, 1, 1]} : vector<7x7x32xf32> to vector<1x1x32xf32>
    %228 = vector.shape_cast %227 : vector<1x1x32xf32> to vector<32xf32>
    %229 = vector.shape_cast %228 : vector<32xf32> to vector<1x1x32xf32>
    %230 = vector.broadcast %229 : vector<1x1x32xf32> to vector<16x16x32xf32>
    %231 = arith.mulf %226, %230 : vector<16x16x32xf32>
    %232 = arith.addf %225, %231 : vector<16x16x32xf32>
    %233 = vector.extract_strided_slice %204 {offsets = [4, 0, 0], sizes = [16, 16, 32], strides = [1, 1, 1]} : vector<22x16x32xf32> to vector<16x16x32xf32>
    %234 = vector.extract_strided_slice %2 {offsets = [4, 4, 0], sizes = [1, 1, 32], strides = [1, 1, 1]} : vector<7x7x32xf32> to vector<1x1x32xf32>
    %235 = vector.shape_cast %234 : vector<1x1x32xf32> to vector<32xf32>
    %236 = vector.shape_cast %235 : vector<32xf32> to vector<1x1x32xf32>
    %237 = vector.broadcast %236 : vector<1x1x32xf32> to vector<16x16x32xf32>
    %238 = arith.mulf %233, %237 : vector<16x16x32xf32>
    %239 = arith.addf %232, %238 : vector<16x16x32xf32>
    %240 = vector.extract_strided_slice %204 {offsets = [5, 0, 0], sizes = [16, 16, 32], strides = [1, 1, 1]} : vector<22x16x32xf32> to vector<16x16x32xf32>
    %241 = vector.extract_strided_slice %2 {offsets = [5, 4, 0], sizes = [1, 1, 32], strides = [1, 1, 1]} : vector<7x7x32xf32> to vector<1x1x32xf32>
    %242 = vector.shape_cast %241 : vector<1x1x32xf32> to vector<32xf32>
    %243 = vector.shape_cast %242 : vector<32xf32> to vector<1x1x32xf32>
    %244 = vector.broadcast %243 : vector<1x1x32xf32> to vector<16x16x32xf32>
    %245 = arith.mulf %240, %244 : vector<16x16x32xf32>
    %246 = arith.addf %239, %245 : vector<16x16x32xf32>
    %247 = vector.extract_strided_slice %204 {offsets = [6, 0, 0], sizes = [16, 16, 32], strides = [1, 1, 1]} : vector<22x16x32xf32> to vector<16x16x32xf32>
    %248 = vector.extract_strided_slice %2 {offsets = [6, 4, 0], sizes = [1, 1, 32], strides = [1, 1, 1]} : vector<7x7x32xf32> to vector<1x1x32xf32>
    %249 = vector.shape_cast %248 : vector<1x1x32xf32> to vector<32xf32>
    %250 = vector.shape_cast %249 : vector<32xf32> to vector<1x1x32xf32>
    %251 = vector.broadcast %250 : vector<1x1x32xf32> to vector<16x16x32xf32>
    %252 = arith.mulf %247, %251 : vector<16x16x32xf32>
    %253 = arith.addf %246, %252 : vector<16x16x32xf32>
    %254 = vector.extract_strided_slice %1 {offsets = [0, 5, 0], sizes = [22, 16, 32], strides = [1, 1, 1]} : vector<22x22x32xf32> to vector<22x16x32xf32>
    %255 = vector.extract_strided_slice %254 {offsets = [0, 0, 0], sizes = [16, 16, 32], strides = [1, 1, 1]} : vector<22x16x32xf32> to vector<16x16x32xf32>
    %256 = vector.extract_strided_slice %2 {offsets = [0, 5, 0], sizes = [1, 1, 32], strides = [1, 1, 1]} : vector<7x7x32xf32> to vector<1x1x32xf32>
    %257 = vector.shape_cast %256 : vector<1x1x32xf32> to vector<32xf32>
    %258 = vector.shape_cast %257 : vector<32xf32> to vector<1x1x32xf32>
    %259 = vector.broadcast %258 : vector<1x1x32xf32> to vector<16x16x32xf32>
    %260 = arith.mulf %255, %259 : vector<16x16x32xf32>
    %261 = arith.addf %253, %260 : vector<16x16x32xf32>
    %262 = vector.extract_strided_slice %254 {offsets = [1, 0, 0], sizes = [16, 16, 32], strides = [1, 1, 1]} : vector<22x16x32xf32> to vector<16x16x32xf32>
    %263 = vector.extract_strided_slice %2 {offsets = [1, 5, 0], sizes = [1, 1, 32], strides = [1, 1, 1]} : vector<7x7x32xf32> to vector<1x1x32xf32>
    %264 = vector.shape_cast %263 : vector<1x1x32xf32> to vector<32xf32>
    %265 = vector.shape_cast %264 : vector<32xf32> to vector<1x1x32xf32>
    %266 = vector.broadcast %265 : vector<1x1x32xf32> to vector<16x16x32xf32>
    %267 = arith.mulf %262, %266 : vector<16x16x32xf32>
    %268 = arith.addf %261, %267 : vector<16x16x32xf32>
    %269 = vector.extract_strided_slice %254 {offsets = [2, 0, 0], sizes = [16, 16, 32], strides = [1, 1, 1]} : vector<22x16x32xf32> to vector<16x16x32xf32>
    %270 = vector.extract_strided_slice %2 {offsets = [2, 5, 0], sizes = [1, 1, 32], strides = [1, 1, 1]} : vector<7x7x32xf32> to vector<1x1x32xf32>
    %271 = vector.shape_cast %270 : vector<1x1x32xf32> to vector<32xf32>
    %272 = vector.shape_cast %271 : vector<32xf32> to vector<1x1x32xf32>
    %273 = vector.broadcast %272 : vector<1x1x32xf32> to vector<16x16x32xf32>
    %274 = arith.mulf %269, %273 : vector<16x16x32xf32>
    %275 = arith.addf %268, %274 : vector<16x16x32xf32>
    %276 = vector.extract_strided_slice %254 {offsets = [3, 0, 0], sizes = [16, 16, 32], strides = [1, 1, 1]} : vector<22x16x32xf32> to vector<16x16x32xf32>
    %277 = vector.extract_strided_slice %2 {offsets = [3, 5, 0], sizes = [1, 1, 32], strides = [1, 1, 1]} : vector<7x7x32xf32> to vector<1x1x32xf32>
    %278 = vector.shape_cast %277 : vector<1x1x32xf32> to vector<32xf32>
    %279 = vector.shape_cast %278 : vector<32xf32> to vector<1x1x32xf32>
    %280 = vector.broadcast %279 : vector<1x1x32xf32> to vector<16x16x32xf32>
    %281 = arith.mulf %276, %280 : vector<16x16x32xf32>
    %282 = arith.addf %275, %281 : vector<16x16x32xf32>
    %283 = vector.extract_strided_slice %254 {offsets = [4, 0, 0], sizes = [16, 16, 32], strides = [1, 1, 1]} : vector<22x16x32xf32> to vector<16x16x32xf32>
    %284 = vector.extract_strided_slice %2 {offsets = [4, 5, 0], sizes = [1, 1, 32], strides = [1, 1, 1]} : vector<7x7x32xf32> to vector<1x1x32xf32>
    %285 = vector.shape_cast %284 : vector<1x1x32xf32> to vector<32xf32>
    %286 = vector.shape_cast %285 : vector<32xf32> to vector<1x1x32xf32>
    %287 = vector.broadcast %286 : vector<1x1x32xf32> to vector<16x16x32xf32>
    %288 = arith.mulf %283, %287 : vector<16x16x32xf32>
    %289 = arith.addf %282, %288 : vector<16x16x32xf32>
    %290 = vector.extract_strided_slice %254 {offsets = [5, 0, 0], sizes = [16, 16, 32], strides = [1, 1, 1]} : vector<22x16x32xf32> to vector<16x16x32xf32>
    %291 = vector.extract_strided_slice %2 {offsets = [5, 5, 0], sizes = [1, 1, 32], strides = [1, 1, 1]} : vector<7x7x32xf32> to vector<1x1x32xf32>
    %292 = vector.shape_cast %291 : vector<1x1x32xf32> to vector<32xf32>
    %293 = vector.shape_cast %292 : vector<32xf32> to vector<1x1x32xf32>
    %294 = vector.broadcast %293 : vector<1x1x32xf32> to vector<16x16x32xf32>
    %295 = arith.mulf %290, %294 : vector<16x16x32xf32>
    %296 = arith.addf %289, %295 : vector<16x16x32xf32>
    %297 = vector.extract_strided_slice %254 {offsets = [6, 0, 0], sizes = [16, 16, 32], strides = [1, 1, 1]} : vector<22x16x32xf32> to vector<16x16x32xf32>
    %298 = vector.extract_strided_slice %2 {offsets = [6, 5, 0], sizes = [1, 1, 32], strides = [1, 1, 1]} : vector<7x7x32xf32> to vector<1x1x32xf32>
    %299 = vector.shape_cast %298 : vector<1x1x32xf32> to vector<32xf32>
    %300 = vector.shape_cast %299 : vector<32xf32> to vector<1x1x32xf32>
    %301 = vector.broadcast %300 : vector<1x1x32xf32> to vector<16x16x32xf32>
    %302 = arith.mulf %297, %301 : vector<16x16x32xf32>
    %303 = arith.addf %296, %302 : vector<16x16x32xf32>
    %304 = vector.extract_strided_slice %1 {offsets = [0, 6, 0], sizes = [22, 16, 32], strides = [1, 1, 1]} : vector<22x22x32xf32> to vector<22x16x32xf32>
    %305 = vector.extract_strided_slice %304 {offsets = [0, 0, 0], sizes = [16, 16, 32], strides = [1, 1, 1]} : vector<22x16x32xf32> to vector<16x16x32xf32>
    %306 = vector.extract_strided_slice %2 {offsets = [0, 6, 0], sizes = [1, 1, 32], strides = [1, 1, 1]} : vector<7x7x32xf32> to vector<1x1x32xf32>
    %307 = vector.shape_cast %306 : vector<1x1x32xf32> to vector<32xf32>
    %308 = vector.shape_cast %307 : vector<32xf32> to vector<1x1x32xf32>
    %309 = vector.broadcast %308 : vector<1x1x32xf32> to vector<16x16x32xf32>
    %310 = arith.mulf %305, %309 : vector<16x16x32xf32>
    %311 = arith.addf %303, %310 : vector<16x16x32xf32>
    %312 = vector.extract_strided_slice %304 {offsets = [1, 0, 0], sizes = [16, 16, 32], strides = [1, 1, 1]} : vector<22x16x32xf32> to vector<16x16x32xf32>
    %313 = vector.extract_strided_slice %2 {offsets = [1, 6, 0], sizes = [1, 1, 32], strides = [1, 1, 1]} : vector<7x7x32xf32> to vector<1x1x32xf32>
    %314 = vector.shape_cast %313 : vector<1x1x32xf32> to vector<32xf32>
    %315 = vector.shape_cast %314 : vector<32xf32> to vector<1x1x32xf32>
    %316 = vector.broadcast %315 : vector<1x1x32xf32> to vector<16x16x32xf32>
    %317 = arith.mulf %312, %316 : vector<16x16x32xf32>
    %318 = arith.addf %311, %317 : vector<16x16x32xf32>
    %319 = vector.extract_strided_slice %304 {offsets = [2, 0, 0], sizes = [16, 16, 32], strides = [1, 1, 1]} : vector<22x16x32xf32> to vector<16x16x32xf32>
    %320 = vector.extract_strided_slice %2 {offsets = [2, 6, 0], sizes = [1, 1, 32], strides = [1, 1, 1]} : vector<7x7x32xf32> to vector<1x1x32xf32>
    %321 = vector.shape_cast %320 : vector<1x1x32xf32> to vector<32xf32>
    %322 = vector.shape_cast %321 : vector<32xf32> to vector<1x1x32xf32>
    %323 = vector.broadcast %322 : vector<1x1x32xf32> to vector<16x16x32xf32>
    %324 = arith.mulf %319, %323 : vector<16x16x32xf32>
    %325 = arith.addf %318, %324 : vector<16x16x32xf32>
    %326 = vector.extract_strided_slice %304 {offsets = [3, 0, 0], sizes = [16, 16, 32], strides = [1, 1, 1]} : vector<22x16x32xf32> to vector<16x16x32xf32>
    %327 = vector.extract_strided_slice %2 {offsets = [3, 6, 0], sizes = [1, 1, 32], strides = [1, 1, 1]} : vector<7x7x32xf32> to vector<1x1x32xf32>
    %328 = vector.shape_cast %327 : vector<1x1x32xf32> to vector<32xf32>
    %329 = vector.shape_cast %328 : vector<32xf32> to vector<1x1x32xf32>
    %330 = vector.broadcast %329 : vector<1x1x32xf32> to vector<16x16x32xf32>
    %331 = arith.mulf %326, %330 : vector<16x16x32xf32>
    %332 = arith.addf %325, %331 : vector<16x16x32xf32>
    %333 = vector.extract_strided_slice %304 {offsets = [4, 0, 0], sizes = [16, 16, 32], strides = [1, 1, 1]} : vector<22x16x32xf32> to vector<16x16x32xf32>
    %334 = vector.extract_strided_slice %2 {offsets = [4, 6, 0], sizes = [1, 1, 32], strides = [1, 1, 1]} : vector<7x7x32xf32> to vector<1x1x32xf32>
    %335 = vector.shape_cast %334 : vector<1x1x32xf32> to vector<32xf32>
    %336 = vector.shape_cast %335 : vector<32xf32> to vector<1x1x32xf32>
    %337 = vector.broadcast %336 : vector<1x1x32xf32> to vector<16x16x32xf32>
    %338 = arith.mulf %333, %337 : vector<16x16x32xf32>
    %339 = arith.addf %332, %338 : vector<16x16x32xf32>
    %340 = vector.extract_strided_slice %304 {offsets = [5, 0, 0], sizes = [16, 16, 32], strides = [1, 1, 1]} : vector<22x16x32xf32> to vector<16x16x32xf32>
    %341 = vector.extract_strided_slice %2 {offsets = [5, 6, 0], sizes = [1, 1, 32], strides = [1, 1, 1]} : vector<7x7x32xf32> to vector<1x1x32xf32>
    %342 = vector.shape_cast %341 : vector<1x1x32xf32> to vector<32xf32>
    %343 = vector.shape_cast %342 : vector<32xf32> to vector<1x1x32xf32>
    %344 = vector.broadcast %343 : vector<1x1x32xf32> to vector<16x16x32xf32>
    %345 = arith.mulf %340, %344 : vector<16x16x32xf32>
    %346 = arith.addf %339, %345 : vector<16x16x32xf32>
    %347 = vector.extract_strided_slice %304 {offsets = [6, 0, 0], sizes = [16, 16, 32], strides = [1, 1, 1]} : vector<22x16x32xf32> to vector<16x16x32xf32>
    %348 = vector.extract_strided_slice %2 {offsets = [6, 6, 0], sizes = [1, 1, 32], strides = [1, 1, 1]} : vector<7x7x32xf32> to vector<1x1x32xf32>
    %349 = vector.shape_cast %348 : vector<1x1x32xf32> to vector<32xf32>
    %350 = vector.shape_cast %349 : vector<32xf32> to vector<1x1x32xf32>
    %351 = vector.broadcast %350 : vector<1x1x32xf32> to vector<16x16x32xf32>
    %352 = arith.mulf %347, %351 : vector<16x16x32xf32>
    %353 = arith.addf %346, %352 : vector<16x16x32xf32>
    %c0_6 = arith.constant 0 : index
    %c0_7 = arith.constant 0 : index
    %354 = vector.load %arg4[%c0_6, %c0_7] : memref<1x32xf32, #tpu.memory_space<vmem>>, vector<1x32xf32>
    %355 = vector.shape_cast %354 : vector<1x32xf32> to vector<1x1x32xf32>
    %356 = vector.broadcast %355 : vector<1x1x32xf32> to vector<16x16x32xf32>
    %357 = arith.addf %353, %356 : vector<16x16x32xf32>
    %358 = vector.shape_cast %357 : vector<16x16x32xf32> to vector<256x32xf32>
    %cst_8 = arith.constant dense<0.000000e+00> : vector<256xf32>
    %359 = vector.multi_reduction <add>, %358, %cst_8 [1] : vector<256x32xf32> to vector<256xf32>
    %360 = vector.shape_cast %359 : vector<256xf32> to vector<256x1xf32>
    %cst_9 = arith.constant 3.125000e-02 : f32
    %361 = vector.broadcast %cst_9 : f32 to vector<256x1xf32>
    %362 = arith.mulf %360, %361 : vector<256x1xf32>
    %363 = arith.mulf %358, %358 : vector<256x32xf32>
    %cst_10 = arith.constant dense<0.000000e+00> : vector<256xf32>
    %364 = vector.multi_reduction <add>, %363, %cst_10 [1] : vector<256x32xf32> to vector<256xf32>
    %365 = vector.shape_cast %364 : vector<256xf32> to vector<256x1xf32>
    %cst_11 = arith.constant 3.125000e-02 : f32
    %366 = vector.broadcast %cst_11 : f32 to vector<256x1xf32>
    %367 = arith.mulf %365, %366 : vector<256x1xf32>
    %368 = arith.mulf %362, %362 : vector<256x1xf32>
    %369 = arith.subf %367, %368 : vector<256x1xf32>
    %370 = vector.broadcast %362 : vector<256x1xf32> to vector<256x32xf32>
    %371 = arith.subf %358, %370 : vector<256x32xf32>
    %cst_12 = arith.constant 9.99999997E-7 : f32
    %372 = vector.broadcast %cst_12 : f32 to vector<256x1xf32>
    %373 = arith.addf %369, %372 : vector<256x1xf32>
    %374 = math.rsqrt %373 : vector<256x1xf32>
    %375 = vector.broadcast %374 : vector<256x1xf32> to vector<256x32xf32>
    %376 = arith.mulf %371, %375 : vector<256x32xf32>
    %377 = arith.truncf %376 : vector<256x32xf32> to vector<256x32xbf16>
    %c0_13 = arith.constant 0 : index
    %c0_14 = arith.constant 0 : index
    %378 = vector.load %arg5[%c0_13, %c0_14] : memref<32x128xbf16, #tpu.memory_space<vmem>>, vector<32x128xbf16>
    %cst_15 = arith.constant dense<0.000000e+00> : vector<256x128xf32>
    %379 = tpu.matmul %377, %378, %cst_15 {dimension_numbers = #tpu.dot_dimension_numbers<[1], [0], [0], [1], [0, 0, 1, 1], [], []>} : vector<256x32xbf16>, vector<32x128xbf16>, vector<256x128xf32> -> vector<256x128xf32>
    %c0_16 = arith.constant 0 : index
    %c0_17 = arith.constant 0 : index
    %380 = vector.load %arg6[%c0_16, %c0_17] : memref<1x128xf32, #tpu.memory_space<vmem>>, vector<1x128xf32>
    %381 = vector.broadcast %380 : vector<1x128xf32> to vector<256x128xf32>
    %382 = arith.addf %379, %381 : vector<256x128xf32>
    %cst_18 = arith.constant 5.000000e-01 : f32
    %383 = vector.broadcast %cst_18 : f32 to vector<256x128xf32>
    %384 = arith.mulf %383, %382 : vector<256x128xf32>
    %cst_19 = arith.constant 0.707106769 : f32
    %385 = vector.broadcast %cst_19 : f32 to vector<256x128xf32>
    %386 = arith.mulf %382, %385 : vector<256x128xf32>
    %387 = math.erf %386 : vector<256x128xf32>
    %cst_20 = arith.constant 1.000000e+00 : f32
    %388 = vector.broadcast %cst_20 : f32 to vector<256x128xf32>
    %389 = arith.addf %388, %387 : vector<256x128xf32>
    %390 = arith.mulf %384, %389 : vector<256x128xf32>
    %391 = arith.truncf %390 : vector<256x128xf32> to vector<256x128xbf16>
    %c0_21 = arith.constant 0 : index
    %c0_22 = arith.constant 0 : index
    %392 = vector.load %arg7[%c0_21, %c0_22] : memref<128x32xbf16, #tpu.memory_space<vmem>>, vector<128x32xbf16>
    %cst_23 = arith.constant dense<0.000000e+00> : vector<256x32xf32>
    %393 = tpu.matmul %391, %392, %cst_23 {dimension_numbers = #tpu.dot_dimension_numbers<[1], [0], [0], [1], [0, 0, 1, 1], [], []>} : vector<256x128xbf16>, vector<128x32xbf16>, vector<256x32xf32> -> vector<256x32xf32>
    %c0_24 = arith.constant 0 : index
    %c0_25 = arith.constant 0 : index
    %394 = vector.load %arg8[%c0_24, %c0_25] : memref<1x32xf32, #tpu.memory_space<vmem>>, vector<1x32xf32>
    %395 = vector.broadcast %394 : vector<1x32xf32> to vector<256x32xf32>
    %396 = arith.addf %393, %395 : vector<256x32xf32>
    %397 = vector.extract_strided_slice %154 {offsets = [3, 0, 0], sizes = [16, 16, 32], strides = [1, 1, 1]} : vector<22x16x32xf32> to vector<16x16x32xf32>
    %398 = vector.shape_cast %396 : vector<256x32xf32> to vector<16x16x32xf32>
    %399 = arith.addf %398, %397 : vector<16x16x32xf32>
    %c0_26 = arith.constant 0 : index
    %c0_27 = arith.constant 0 : index
    %c0_28 = arith.constant 0 : index
    %c0_29 = arith.constant 0 : index
    %400 = vector.load %arg9[%c0_26, %c0_27, %c0_28, %c0_29] : memref<1x16x16x32xf32, #tpu.memory_space<vmem>>, vector<1x16x16x32xf32>
    %401 = vector.shape_cast %400 : vector<1x16x16x32xf32> to vector<16x16x32xf32>
    %402 = vector.shape_cast %399 : vector<16x16x32xf32> to vector<1x16x16x32xf32>
    tpu.vector_store %arg9[%c0_26, %c0_27, %c0_28, %c0_29], %402 {strides = array<i32>} : memref<1x16x16x32xf32, #tpu.memory_space<vmem>>, vector<1x16x16x32xf32>,
    return
  }
  func.func @transform_0(%arg0: i32, %arg1: i32) -> (i32, i32, i32, i32) {
    %c0_i32 = arith.constant 0 : i32
    %c0_i32_0 = arith.constant 0 : i32
    %c0_i32_1 = arith.constant 0 : i32
    %c0_i32_2 = arith.constant 0 : i32
    return %arg0, %c0_i32, %c0_i32_0, %c0_i32_1 : i32, i32, i32, i32
  }
  func.func @transform_1(%arg0: i32, %arg1: i32) -> (i32, i32, i32) {
    %c0_i32 = arith.constant 0 : i32
    %c0_i32_0 = arith.constant 0 : i32
    %c0_i32_1 = arith.constant 0 : i32
    %c0_i32_2 = arith.constant 0 : i32
    return %c0_i32, %c0_i32_0, %c0_i32_1 : i32, i32, i32
  }
  func.func @transform_2(%arg0: i32, %arg1: i32) -> (i32, i32) {
    %c0_i32 = arith.constant 0 : i32
    %c0_i32_0 = arith.constant 0 : i32
    %c0_i32_1 = arith.constant 0 : i32
    return %c0_i32, %c0_i32_0 : i32, i32
  }
  func.func @transform_3(%arg0: i32, %arg1: i32) -> (i32, i32) {
    %c0_i32 = arith.constant 0 : i32
    %c0_i32_0 = arith.constant 0 : i32
    %c0_i32_1 = arith.constant 0 : i32
    return %c0_i32, %c0_i32_0 : i32, i32
  }
  func.func @transform_4(%arg0: i32, %arg1: i32) -> (i32, i32) {
    %c0_i32 = arith.constant 0 : i32
    %c0_i32_0 = arith.constant 0 : i32
    %c0_i32_1 = arith.constant 0 : i32
    return %c0_i32, %c0_i32_0 : i32, i32
  }
  func.func @transform_5(%arg0: i32, %arg1: i32) -> (i32, i32) {
    %c0_i32 = arith.constant 0 : i32
    %c0_i32_0 = arith.constant 0 : i32
    %c0_i32_1 = arith.constant 0 : i32
    return %c0_i32, %c0_i32_0 : i32, i32
  }
  func.func @transform_6(%arg0: i32, %arg1: i32) -> (i32, i32) {
    %c0_i32 = arith.constant 0 : i32
    %c0_i32_0 = arith.constant 0 : i32
    %c0_i32_1 = arith.constant 0 : i32
    return %c0_i32, %c0_i32_0 : i32, i32
  }
  func.func @transform_7(%arg0: i32, %arg1: i32) -> (i32, i32, i32, i32) {
    %c0_i32 = arith.constant 0 : i32
    %c0_i32_0 = arith.constant 0 : i32
    %c0_i32_1 = arith.constant 0 : i32
    return %arg0, %arg1, %c0_i32, %c0_i32_0 : i32, i32, i32, i32
  }
}

</mosaic_0001>

<llo_original>
// kernel: tpu_custom_call.1
$region0: #{tpu_custom_call.1}
  #allocation0 [shape = 'u32[]', space=smem, size = 0x4, offset = 0x4, fixed_abs, tag = 'smem constant byte address 0x4 - core index']
  #allocation1 [shape = 'u32[144,128]{1,0:T(1,128)}', space=vmem, size = 0x12000, scoped, tag = 'internal scratch']
  %s0 = inlined_call_operand.vmem [shape: f32[2,22,22,32], index: 0, kind: input, shape index: {}]
  %s1 = inlined_call_operand.vmem [shape: f32[7,7,32], index: 1, kind: input, shape index: {}]
  %s2 = inlined_call_operand.vmem [shape: f32[1,32], index: 2, kind: input, shape index: {}]
  %s3 = inlined_call_operand.vmem [shape: bf16[32,128], index: 3, kind: input, shape index: {}]
  %s4 = inlined_call_operand.vmem [shape: f32[1,128], index: 4, kind: input, shape index: {}]
  %s5 = inlined_call_operand.vmem [shape: bf16[128,32], index: 5, kind: input, shape index: {}]
  %s6 = inlined_call_operand.vmem [shape: f32[1,32], index: 6, kind: input, shape index: {}]
  %s7 = inlined_call_operand.hbm [shape: f32[2,16,16,32], index: 7, kind: output, shape index: {}]
  %s8 = sld [smem:[#allocation0]]
  $region61: #{tpu_custom_call.1} parent=0
    _
  %s10 = ssub.s32 1, %s8
  %s11 = scalar_select 0, %s10, %s8
  $region1: #{tpu_custom_call.1} parent=0
    #allocation2 [shape = 'u8[262144]{0}', space=vmem, size = 0x40000, scoped, tag = 'output window, operand 0']
    #allocation3 [shape = 's32[2]{0}', space=sflag, size = 0x8, scoped, tag = 'scoped memory for tpu_custom_call.1']
    %12 = vsyncpa [#allocation3], 0
    %s13 = scalar_lea.sflag [#allocation3], 1
    %14 = vsyncpa %s13, 0
    loop: start=0, step=1, limit=4
    $region2: #{tpu_custom_call.1} parent=1 // loop_pre_header
      _
    $region3: #{tpu_custom_call.1} parent=1 // loop_header
      %s16 = sphi 0, %s20
      %p17 = scmp.ge.s32.totalorder %s16, 4
      %s23 = sphi 0, %s35
      %s24 = sphi 0, %s31
      %s25 = sphi 0, %s23
      %s26 = sphi 0, %s24
      %s27 = sphi 0, %s25
      %s28 = sphi 0, %s26
      %s38 = sphi 0, %s40
      %s41 = sphi 0, %s38
      %s42 = sphi 0, %s41
      %s58 = sphi 0, %s42
      %s62 = sphi 0, %s62
      %s64 = sphi 0, %s62
      %s65 = sphi 0, %s64
      %s79 = sphi 0, %s65
      %s83 = sphi 0, %s83
      %s85 = sphi 0, %s83
      %s86 = sphi 0, %s85
      %s100 = sphi 0, %s86
      %s104 = sphi 0, %s104
      %s106 = sphi 0, %s104
      %s107 = sphi 0, %s106
      %s121 = sphi 0, %s107
      %s125 = sphi 0, %s125
      %s127 = sphi 0, %s125
      %s128 = sphi 0, %s127
      %s142 = sphi 0, %s128
      %s146 = sphi 0, %s146
      %s148 = sphi 0, %s146
      %s149 = sphi 0, %s148
      %s163 = sphi 0, %s149
      %s167 = sphi 0, %s167
      %s169 = sphi 0, %s167
      %s170 = sphi 0, %s169
      %s184 = sphi 0, %s170
      %s192 = sphi 0, %s194
      %s195 = sphi 0, %s192
      %s196 = sphi 0, %s195
      %s212 = sphi 0, %s196
    $region4: #{tpu_custom_call.1} parent=1 // loop_header_branch
      %19 = sbr.rel (%p17) target = $region8
    $region5: #{tpu_custom_call.1} parent=1 // loop_body
      %s21 = ssub.s32 %s16, 1
      %s22 = ssub.s32 %s16, 2
      %s29 = sadd.s32 1, %s24
      %p30 = scmp.ge.s32.totalorder %s29, 1
      %s31 = scalar_select %p30, 0, %s29
      %s32 = sadd.s32 1, %s23
      %s33 = scalar_select %p30, %s32, %s23
      %p34 = scmp.ge.s32.totalorder %s33, 2
      %s35 = scalar_select %p34, 0, %s33
      %s36 = ssub.s32 %s23, %s35
      %p37 = scmp.eq.s32.totalorder %s36, 0
      %s39 = sadd.s32 %s38, 1
      %s40 = scalar_select %p37, %s38, %s39
      %p43 = pneg %p37
      %p44 = scmp.eq.s32.totalorder %s16, 1
      %p45 = por %p43, %p44
      %p46 = scmp.ne.s32.totalorder %s38, %s41
      %p47 = scmp.eq.s32.totalorder %s16, 0
      %p48 = por %p46, %p47
      %p49 = scmp.ne.s32.totalorder %s38, %s41
      %p50 = scmp.eq.s32.totalorder %s21, 1
      %p51 = por %p49, %p50
      %p52 = scmp.ne.s32.totalorder %s41, %s42
      %p53 = scmp.eq.s32.totalorder %s21, 0
      %p54 = por %p52, %p53
      %p55 = scmp.ne.s32.totalorder %s41, %s42
      %p56 = scmp.eq.s32.totalorder %s22, 1
      %p57 = por %p55, %p56
      %p59 = scmp.ne.s32.totalorder %s42, %s58
      %p60 = scmp.eq.s32.totalorder %s22, 0
      %p61 = por %p59, %p60
      %s63 = sadd.s32 %s62, 1
      %p66 = scmp.eq.s32.totalorder %s16, 1
      %p67 = scmp.ne.s32.totalorder %s62, %s64
      %p68 = scmp.eq.s32.totalorder %s16, 0
      %p69 = por %p67, %p68
      %p70 = scmp.ne.s32.totalorder %s62, %s64
      %p71 = scmp.eq.s32.totalorder %s21, 1
      %p72 = por %p70, %p71
      %p73 = scmp.ne.s32.totalorder %s64, %s65
      %p74 = scmp.eq.s32.totalorder %s21, 0
      %p75 = por %p73, %p74
      %p76 = scmp.ne.s32.totalorder %s64, %s65
      %p77 = scmp.eq.s32.totalorder %s22, 1
      %p78 = por %p76, %p77
      %p80 = scmp.ne.s32.totalorder %s65, %s79
      %p81 = scmp.eq.s32.totalorder %s22, 0
      %p82 = por %p80, %p81
      %s84 = sadd.s32 %s83, 1
      %p87 = scmp.eq.s32.totalorder %s16, 1
      %p88 = scmp.ne.s32.totalorder %s83, %s85
      %p89 = scmp.eq.s32.totalorder %s16, 0
      %p90 = por %p88, %p89
      %p91 = scmp.ne.s32.totalorder %s83, %s85
      %p92 = scmp.eq.s32.totalorder %s21, 1
      %p93 = por %p91, %p92
      %p94 = scmp.ne.s32.totalorder %s85, %s86
      %p95 = scmp.eq.s32.totalorder %s21, 0
      %p96 = por %p94, %p95
      %p97 = scmp.ne.s32.totalorder %s85, %s86
      %p98 = scmp.eq.s32.totalorder %s22, 1
      %p99 = por %p97, %p98
      %p101 = scmp.ne.s32.totalorder %s86, %s100
      %p102 = scmp.eq.s32.totalorder %s22, 0
      %p103 = por %p101, %p102
      %s105 = sadd.s32 %s104, 1
      %p108 = scmp.eq.s32.totalorder %s16, 1
      %p109 = scmp.ne.s32.totalorder %s104, %s106
      %p110 = scmp.eq.s32.totalorder %s16, 0
      %p111 = por %p109, %p110
      %p112 = scmp.ne.s32.totalorder %s104, %s106
      %p113 = scmp.eq.s32.totalorder %s21, 1
      %p114 = por %p112, %p113
      %p115 = scmp.ne.s32.totalorder %s106, %s107
      %p116 = scmp.eq.s32.totalorder %s21, 0
      %p117 = por %p115, %p116
      %p118 = scmp.ne.s32.totalorder %s106, %s107
      %p119 = scmp.eq.s32.totalorder %s22, 1
      %p120 = por %p118, %p119
      %p122 = scmp.ne.s32.totalorder %s107, %s121
      %p123 = scmp.eq.s32.totalorder %s22, 0
      %p124 = por %p122, %p123
      %s126 = sadd.s32 %s125, 1
      %p129 = scmp.eq.s32.totalorder %s16, 1
      %p130 = scmp.ne.s32.totalorder %s125, %s127
      %p131 = scmp.eq.s32.totalorder %s16, 0
      %p132 = por %p130, %p131
      %p133 = scmp.ne.s32.totalorder %s125, %s127
      %p134 = scmp.eq.s32.totalorder %s21, 1
      %p135 = por %p133, %p134
      %p136 = scmp.ne.s32.totalorder %s127, %s128
      %p137 = scmp.eq.s32.totalorder %s21, 0
      %p138 = por %p136, %p137
      %p139 = scmp.ne.s32.totalorder %s127, %s128
      %p140 = scmp.eq.s32.totalorder %s22, 1
      %p141 = por %p139, %p140
      %p143 = scmp.ne.s32.totalorder %s128, %s142
      %p144 = scmp.eq.s32.totalorder %s22, 0
      %p145 = por %p143, %p144
      %s147 = sadd.s32 %s146, 1
      %p150 = scmp.eq.s32.totalorder %s16, 1
      %p151 = scmp.ne.s32.totalorder %s146, %s148
      %p152 = scmp.eq.s32.totalorder %s16, 0
      %p153 = por %p151, %p152
      %p154 = scmp.ne.s32.totalorder %s146, %s148
      %p155 = scmp.eq.s32.totalorder %s21, 1
      %p156 = por %p154, %p155
      %p157 = scmp.ne.s32.totalorder %s148, %s149
      %p158 = scmp.eq.s32.totalorder %s21, 0
      %p159 = por %p157, %p158
      %p160 = scmp.ne.s32.totalorder %s148, %s149
      %p161 = scmp.eq.s32.totalorder %s22, 1
      %p162 = por %p160, %p161
      %p164 = scmp.ne.s32.totalorder %s149, %s163
      %p165 = scmp.eq.s32.totalorder %s22, 0
      %p166 = por %p164, %p165
      %s168 = sadd.s32 %s167, 1
      %p171 = scmp.eq.s32.totalorder %s16, 1
      %p172 = scmp.ne.s32.totalorder %s167, %s169
      %p173 = scmp.eq.s32.totalorder %s16, 0
      %p174 = por %p172, %p173
      %p175 = scmp.ne.s32.totalorder %s167, %s169
      %p176 = scmp.eq.s32.totalorder %s21, 1
      %p177 = por %p175, %p176
      %p178 = scmp.ne.s32.totalorder %s169, %s170
      %p179 = scmp.eq.s32.totalorder %s21, 0
      %p180 = por %p178, %p179
      %p181 = scmp.ne.s32.totalorder %s169, %s170
      %p182 = scmp.eq.s32.totalorder %s22, 1
      %p183 = por %p181, %p182
      %p185 = scmp.ne.s32.totalorder %s170, %s184
      %p186 = scmp.eq.s32.totalorder %s22, 0
      %p187 = por %p185, %p186
      %s188 = ssub.s32 %s23, %s35
      %s189 = ssub.s32 %s24, %s31
      %s190 = sor.u32 %s188, %s189
      %p191 = scmp.eq.s32.totalorder %s190, 0
      %s193 = sadd.s32 %s192, 1
      %s194 = scalar_select %p191, %s192, %s193
      %p197 = pneg %p191
      %p198 = scmp.eq.s32.totalorder %s16, 1
      %p199 = por %p197, %p198
      %p200 = scmp.ne.s32.totalorder %s192, %s195
      %p201 = scmp.eq.s32.totalorder %s16, 0
      %p202 = por %p200, %p201
      %p203 = scmp.ne.s32.totalorder %s192, %s195
      %p204 = scmp.eq.s32.totalorder %s21, 1
      %p205 = por %p203, %p204
      %p206 = scmp.ne.s32.totalorder %s195, %s196
      %p207 = scmp.eq.s32.totalorder %s21, 0
      %p208 = por %p206, %p207
      %p209 = scmp.ne.s32.totalorder %s195, %s196
      %p210 = scmp.eq.s32.totalorder %s22, 1
      %p211 = por %p209, %p210
      %p213 = scmp.ne.s32.totalorder %s196, %s212
      %p214 = scmp.eq.s32.totalorder %s22, 0
      %p215 = por %p213, %p214
      %p216 = scmp.le.s32.totalorder 1, %s16
      %p217 = scmp.lt.s32.totalorder %s16, 3
      %p218 = pnand %p216, %p217
      %p219 = pneg %p218
      // Predicated region
      $region9: #{tpu_custom_call.1} parent=5 // pred_check
        _
      $region10: #{tpu_custom_call.1} parent=5 // pred_check_branch
        %221 = sbr.rel (%p218) target = $region12
      $region11: #{tpu_custom_call.1} parent=5 // pred_region
        %s222 = ssub.s32 %s16, 1
        // Predicated region
        $region13: #{tpu_custom_call.1} parent=11 // pred_check
          %p223 = pneg %p75
        $region14: #{tpu_custom_call.1} parent=11 // pred_check_branch
          %225 = sbr.rel (%p223) target = $region16
        $region15: #{tpu_custom_call.1} parent=11 // pred_region
          _
        $region16: #{tpu_custom_call.1} parent=11 // pred_fallthru
          _
        // Predicated region
        $region17: #{tpu_custom_call.1} parent=11 // pred_check
          %p226 = pneg %p96
        $region18: #{tpu_custom_call.1} parent=11 // pred_check_branch
          %228 = sbr.rel (%p226) target = $region20
        $region19: #{tpu_custom_call.1} parent=11 // pred_region
          _
        $region20: #{tpu_custom_call.1} parent=11 // pred_fallthru
          _
        // Predicated region
        $region21: #{tpu_custom_call.1} parent=11 // pred_check
          %p229 = pneg %p117
        $region22: #{tpu_custom_call.1} parent=11 // pred_check_branch
          %231 = sbr.rel (%p229) target = $region24
        $region23: #{tpu_custom_call.1} parent=11 // pred_region
          _
        $region24: #{tpu_custom_call.1} parent=11 // pred_fallthru
          _
        // Predicated region
        $region25: #{tpu_custom_call.1} parent=11 // pred_check
          %p232 = pneg %p138
        $region26: #{tpu_custom_call.1} parent=11 // pred_check_branch
          %234 = sbr.rel (%p232) target = $region28
        $region27: #{tpu_custom_call.1} parent=11 // pred_region
          _
        $region28: #{tpu_custom_call.1} parent=11 // pred_fallthru
          _
        // Predicated region
        $region29: #{tpu_custom_call.1} parent=11 // pred_check
          %p235 = pneg %p159
        $region30: #{tpu_custom_call.1} parent=11 // pred_check_branch
          %237 = sbr.rel (%p235) target = $region32
        $region31: #{tpu_custom_call.1} parent=11 // pred_region
          _
        $region32: #{tpu_custom_call.1} parent=11 // pred_fallthru
          _
        // Predicated region
        $region33: #{tpu_custom_call.1} parent=11 // pred_check
          %p238 = pneg %p180
        $region34: #{tpu_custom_call.1} parent=11 // pred_check_branch
          %240 = sbr.rel (%p238) target = $region36
        $region35: #{tpu_custom_call.1} parent=11 // pred_region
          _
        $region36: #{tpu_custom_call.1} parent=11 // pred_fallthru
          _
      $region12: #{tpu_custom_call.1} parent=5 // pred_fallthru
        _
      %p241 = scmp.lt.s32.totalorder %s16, 2
      // Predicated region
      $region37: #{tpu_custom_call.1} parent=5 // pred_check
        %p242 = pneg %p241
      $region38: #{tpu_custom_call.1} parent=5 // pred_check_branch
        %244 = sbr.rel (%p242) target = $region40
      $region39: #{tpu_custom_call.1} parent=5 // pred_region
        // Predicated region
        $region41: #{tpu_custom_call.1} parent=39 // pred_check
          %p245 = pneg %p48
        $region42: #{tpu_custom_call.1} parent=39 // pred_check_branch
          %247 = sbr.rel (%p245) target = $region44
        $region43: #{tpu_custom_call.1} parent=39 // pred_region
          %p248 = scmp.lt.s32.totalorder %s23, 1
          %s249 = scalar_select %p248, %s23, 1
          %s250 = smul.addr %s249, 66
          %s251 = smul.addr %s250, 8
          %s252 = scalar_lea.vmem %s0, %s251
        $region44: #{tpu_custom_call.1} parent=39 // pred_fallthru
          _
      $region40: #{tpu_custom_call.1} parent=5 // pred_fallthru
        _
      %p253 = scmp.le.s32.totalorder 1, %s16
      %p254 = scmp.lt.s32.totalorder %s16, 3
      %p255 = pnand %p253, %p254
      %p256 = pneg %p255
      // Predicated region
      $region45: #{tpu_custom_call.1} parent=5 // pred_check
        _
      $region46: #{tpu_custom_call.1} parent=5 // pred_check_branch
        %258 = sbr.rel (%p255) target = $region48
      $region47: #{tpu_custom_call.1} parent=5 // pred_region
        %s259 = ssub.s32 %s16, 1
        %p260 = scmp.lt.s32.totalorder %s25, 1
        %s261 = scalar_select %p260, %s25, 1
        %s262 = smul.addr %s261, 66
        %s263 = smul.addr %s262, 8
        %s264 = scalar_lea.vmem %s0, %s263
        %p265 = pneg %p54
        %p266 = pneg %p51
        %p267 = pneg %p75
        %p268 = pneg %p72
        %p269 = pneg %p96
        %p270 = pneg %p93
        %p271 = pneg %p117
        %p272 = pneg %p114
        %p273 = pneg %p138
        %p274 = pneg %p135
        %p275 = pneg %p159
        %p276 = pneg %p156
        %p277 = pneg %p180
        %p278 = pneg %p177
        %p279 = pneg %p208
        %p280 = pneg %p205
        %s281 = sand.u32 %s195, 1
        %s282 = scalar_lea.sflag [#allocation3], %s281
        %s283 = sand.u32 %s195, 1
        %s284 = smul.addr %s283, 256
        %s285 = scalar_lea.vmem [#allocation2], %s284
        %p286 = scmp.lt.s32.totalorder %s25, 1
        %s287 = scalar_select %p286, %s25, 1
        %s288 = smul.addr %s287, 66
        %s289 = smul.addr %s288, 8
        %s290 = scalar_lea.vmem %s0, %s289
        %s291 = smul.u32 16, %s26
        %v293 = vld [vmem:[%s290] sm:$0xff]
        %v294 = vld [vmem:[%s290 + $0x8] sm:$0xff]
        %v295 = vld [vmem:[%s290 + $0x10] sm:$0x3f]
        %v296 = vld [vmem:[%s290 + $0x18] sm:$0xff]
        %v297 = vld [vmem:[%s290 + $0x20] sm:$0xff]
        %v298 = vld [vmem:[%s290 + $0x28] sm:$0x3f]
        %v299 = vld [vmem:[%s290 + $0x30] sm:$0xff]
        %v300 = vld [vmem:[%s290 + $0x38] sm:$0xff]
        %v301 = vld [vmem:[%s290 + $0x40] sm:$0x3f]
        %v302 = vld [vmem:[%s290 + $0x48] sm:$0xff]
        %v303 = vld [vmem:[%s290 + $0x50] sm:$0xff]
        %v304 = vld [vmem:[%s290 + $0x58] sm:$0x3f]
        %v305 = vld [vmem:[%s290 + $0x60] sm:$0xff]
        %v306 = vld [vmem:[%s290 + $0x68] sm:$0xff]
        %v307 = vld [vmem:[%s290 + $0x70] sm:$0x3f]
        %v308 = vld [vmem:[%s290 + $0x78] sm:$0xff]
        %v309 = vld [vmem:[%s290 + $0x80] sm:$0xff]
        %v310 = vld [vmem:[%s290 + $0x88] sm:$0x3f]
        %v311 = vld [vmem:[%s290 + $0x90] sm:$0xff]
        %v312 = vld [vmem:[%s290 + $0x98] sm:$0xff]
        %v313 = vld [vmem:[%s290 + $0xa0] sm:$0x3f]
        %v314 = vld [vmem:[%s290 + $0xa8] sm:$0xff]
        %v315 = vld [vmem:[%s290 + $0xb0] sm:$0xff]
        %v316 = vld [vmem:[%s290 + $0xb8] sm:$0x3f]
        %v317 = vld [vmem:[%s290 + $0xc0] sm:$0xff]
        %v318 = vld [vmem:[%s290 + $0xc8] sm:$0xff]
        %v319 = vld [vmem:[%s290 + $0xd0] sm:$0x3f]
        %v320 = vld [vmem:[%s290 + $0xd8] sm:$0xff]
        %v321 = vld [vmem:[%s290 + $0xe0] sm:$0xff]
        %v322 = vld [vmem:[%s290 + $0xe8] sm:$0x3f]
        %v323 = vld [vmem:[%s290 + $0xf0] sm:$0xff]
        %v324 = vld [vmem:[%s290 + $0xf8] sm:$0xff]
        %v325 = vld [vmem:[%s290 + $0x100] sm:$0x3f]
        %v326 = vld [vmem:[%s290 + $0x108] sm:$0xff]
        %v327 = vld [vmem:[%s290 + $0x110] sm:$0xff]
        %v328 = vld [vmem:[%s290 + $0x118] sm:$0x3f]
        %v329 = vld [vmem:[%s290 + $0x120] sm:$0xff]
        %v330 = vld [vmem:[%s290 + $0x128] sm:$0xff]
        %v331 = vld [vmem:[%s290 + $0x130] sm:$0x3f]
        %v332 = vld [vmem:[%s290 + $0x138] sm:$0xff]
        %v333 = vld [vmem:[%s290 + $0x140] sm:$0xff]
        %v334 = vld [vmem:[%s290 + $0x148] sm:$0x3f]
        %v335 = vld [vmem:[%s290 + $0x150] sm:$0xff]
        %v336 = vld [vmem:[%s290 + $0x158] sm:$0xff]
        %v337 = vld [vmem:[%s290 + $0x160] sm:$0x3f]
        %v338 = vld [vmem:[%s290 + $0x168] sm:$0xff]
        %v339 = vld [vmem:[%s290 + $0x170] sm:$0xff]
        %v340 = vld [vmem:[%s290 + $0x178] sm:$0x3f]
        %v341 = vld [vmem:[%s290 + $0x180] sm:$0xff]
        %v342 = vld [vmem:[%s290 + $0x188] sm:$0xff]
        %v343 = vld [vmem:[%s290 + $0x190] sm:$0x3f]
        %v344 = vld [vmem:[%s290 + $0x198] sm:$0xff]
        %v345 = vld [vmem:[%s290 + $0x1a0] sm:$0xff]
        %v346 = vld [vmem:[%s290 + $0x1a8] sm:$0x3f]
        %v347 = vld [vmem:[%s290 + $0x1b0] sm:$0xff]
        %v348 = vld [vmem:[%s290 + $0x1b8] sm:$0xff]
        %v349 = vld [vmem:[%s290 + $0x1c0] sm:$0x3f]
        %v350 = vld [vmem:[%s290 + $0x1c8] sm:$0xff]
        %v351 = vld [vmem:[%s290 + $0x1d0] sm:$0xff]
        %v352 = vld [vmem:[%s290 + $0x1d8] sm:$0x3f]
        %v353 = vld [vmem:[%s290 + $0x1e0] sm:$0xff]
        %v354 = vld [vmem:[%s290 + $0x1e8] sm:$0xff]
        %v355 = vld [vmem:[%s290 + $0x1f0] sm:$0x3f]
        %v356 = vld [vmem:[%s290 + $0x1f8] sm:$0xff]
        %v357 = vld [vmem:[%s290 + $0x200] sm:$0xff]
        %v358 = vld [vmem:[%s290 + $0x208] sm:$0x3f]
        %v359 = vld [vmem:[%s1] sm:$0x7f]
        %v360 = vld [vmem:[%s1 + $0x8] sm:$0x7f]
        %v361 = vld [vmem:[%s1 + $0x10] sm:$0x7f]
        %v362 = vld [vmem:[%s1 + $0x18] sm:$0x7f]
        %v363 = vld [vmem:[%s1 + $0x20] sm:$0x7f]
        %v364 = vld [vmem:[%s1 + $0x28] sm:$0x7f]
        %v365 = vld [vmem:[%s1 + $0x30] sm:$0x7f]
        %v366 = vlaneseq
        %v367 = vshrl.u32 %v366, 7
        %v368 = vsub.s32 0, %v367
        %v369 = vrot.slane %v359, %v368
        %v370 = vmul.f32 %v293, %v369
        %v371 = vmul.f32 %v294, %v369
        %v372 = vmul.f32 %v296, %v369
        %v373 = vmul.f32 %v297, %v369
        %v374 = vmul.f32 %v299, %v369
        %v375 = vmul.f32 %v300, %v369
        %v376 = vmul.f32 %v302, %v369
        %v377 = vmul.f32 %v303, %v369
        %v378 = vmul.f32 %v305, %v369
        %v379 = vmul.f32 %v306, %v369
        %v380 = vmul.f32 %v308, %v369
        %v381 = vmul.f32 %v309, %v369
        %v382 = vmul.f32 %v311, %v369
        %v383 = vmul.f32 %v312, %v369
        %v384 = vmul.f32 %v314, %v369
        %v385 = vmul.f32 %v315, %v369
        %v386 = vmul.f32 %v317, %v369
        %v387 = vmul.f32 %v318, %v369
        %v388 = vmul.f32 %v320, %v369
        %v389 = vmul.f32 %v321, %v369
        %v390 = vmul.f32 %v323, %v369
        %v391 = vmul.f32 %v324, %v369
        %v392 = vmul.f32 %v326, %v369
        %v393 = vmul.f32 %v327, %v369
        %v394 = vmul.f32 %v329, %v369
        %v395 = vmul.f32 %v330, %v369
        %v396 = vmul.f32 %v332, %v369
        %v397 = vmul.f32 %v333, %v369
        %v398 = vmul.f32 %v335, %v369
        %v399 = vmul.f32 %v336, %v369
        %v400 = vmul.f32 %v338, %v369
        %v401 = vmul.f32 %v339, %v369
        %v402 = vadd.f32 %v370, 0.0
        %v403 = vadd.f32 %v371, 0.0
        %v404 = vadd.f32 %v372, 0.0
        %v405 = vadd.f32 %v373, 0.0
        %v406 = vadd.f32 %v374, 0.0
        %v407 = vadd.f32 %v375, 0.0
        %v408 = vadd.f32 %v376, 0.0
        %v409 = vadd.f32 %v377, 0.0
        %v410 = vadd.f32 %v378, 0.0
        %v411 = vadd.f32 %v379, 0.0
        %v412 = vadd.f32 %v380, 0.0
        %v413 = vadd.f32 %v381, 0.0
        %v414 = vadd.f32 %v382, 0.0
        %v415 = vadd.f32 %v383, 0.0
        %v416 = vadd.f32 %v384, 0.0
        %v417 = vadd.f32 %v385, 0.0
        %v418 = vadd.f32 %v386, 0.0
        %v419 = vadd.f32 %v387, 0.0
        %v420 = vadd.f32 %v388, 0.0
        %v421 = vadd.f32 %v389, 0.0
        %v422 = vadd.f32 %v390, 0.0
        %v423 = vadd.f32 %v391, 0.0
        %v424 = vadd.f32 %v392, 0.0
        %v425 = vadd.f32 %v393, 0.0
        %v426 = vadd.f32 %v394, 0.0
        %v427 = vadd.f32 %v395, 0.0
        %v428 = vadd.f32 %v396, 0.0
        %v429 = vadd.f32 %v397, 0.0
        %v430 = vadd.f32 %v398, 0.0
        %v431 = vadd.f32 %v399, 0.0
        %v432 = vadd.f32 %v400, 0.0
        %v433 = vadd.f32 %v401, 0.0
        %v434 = vlaneseq
        %v435 = vshrl.u32 %v434, 7
        %v436 = vsub.s32 0, %v435
        %v437 = vrot.slane %v360, %v436
        %v438 = vmul.f32 %v296, %v437
        %v439 = vmul.f32 %v297, %v437
        %v440 = vmul.f32 %v299, %v437
        %v441 = vmul.f32 %v300, %v437
        %v442 = vmul.f32 %v302, %v437
        %v443 = vmul.f32 %v303, %v437
        %v444 = vmul.f32 %v305, %v437
        %v445 = vmul.f32 %v306, %v437
        %v446 = vmul.f32 %v308, %v437
        %v447 = vmul.f32 %v309, %v437
        %v448 = vmul.f32 %v311, %v437
        %v449 = vmul.f32 %v312, %v437
        %v450 = vmul.f32 %v314, %v437
        %v451 = vmul.f32 %v315, %v437
        %v452 = vmul.f32 %v317, %v437
        %v453 = vmul.f32 %v318, %v437
        %v454 = vmul.f32 %v320, %v437
        %v455 = vmul.f32 %v321, %v437
        %v456 = vmul.f32 %v323, %v437
        %v457 = vmul.f32 %v324, %v437
        %v458 = vmul.f32 %v326, %v437
        %v459 = vmul.f32 %v327, %v437
        %v460 = vmul.f32 %v329, %v437
        %v461 = vmul.f32 %v330, %v437
        %v462 = vmul.f32 %v332, %v437
        %v463 = vmul.f32 %v333, %v437
        %v464 = vmul.f32 %v335, %v437
        %v465 = vmul.f32 %v336, %v437
        %v466 = vmul.f32 %v338, %v437
        %v467 = vmul.f32 %v339, %v437
        %v468 = vmul.f32 %v341, %v437
        %v469 = vmul.f32 %v342, %v437
        %v470 = vadd.f32 %v402, %v438
        %v471 = vadd.f32 %v403, %v439
        %v472 = vadd.f32 %v404, %v440
        %v473 = vadd.f32 %v405, %v441
        %v474 = vadd.f32 %v406, %v442
        %v475 = vadd.f32 %v407, %v443
        %v476 = vadd.f32 %v408, %v444
        %v477 = vadd.f32 %v409, %v445
        %v478 = vadd.f32 %v410, %v446
        %v479 = vadd.f32 %v411, %v447
        %v480 = vadd.f32 %v412, %v448
        %v481 = vadd.f32 %v413, %v449
        %v482 = vadd.f32 %v414, %v450
        %v483 = vadd.f32 %v415, %v451
        %v484 = vadd.f32 %v416, %v452
        %v485 = vadd.f32 %v417, %v453
        %v486 = vadd.f32 %v418, %v454
        %v487 = vadd.f32 %v419, %v455
        %v488 = vadd.f32 %v420, %v456
        %v489 = vadd.f32 %v421, %v457
        %v490 = vadd.f32 %v422, %v458
        %v491 = vadd.f32 %v423, %v459
        %v492 = vadd.f32 %v424, %v460
        %v493 = vadd.f32 %v425, %v461
        %v494 = vadd.f32 %v426, %v462
        %v495 = vadd.f32 %v427, %v463
        %v496 = vadd.f32 %v428, %v464
        %v497 = vadd.f32 %v429, %v465
        %v498 = vadd.f32 %v430, %v466
        %v499 = vadd.f32 %v431, %v467
        %v500 = vadd.f32 %v432, %v468
        %v501 = vadd.f32 %v433, %v469
        %v502 = vlaneseq
        %v503 = vshrl.u32 %v502, 7
        %v504 = vsub.s32 0, %v503
        %v505 = vrot.slane %v361, %v504
        %v506 = vmul.f32 %v299, %v505
        %v507 = vmul.f32 %v300, %v505
        %v508 = vmul.f32 %v302, %v505
        %v509 = vmul.f32 %v303, %v505
        %v510 = vmul.f32 %v305, %v505
        %v511 = vmul.f32 %v306, %v505
        %v512 = vmul.f32 %v308, %v505
        %v513 = vmul.f32 %v309, %v505
        %v514 = vmul.f32 %v311, %v505
        %v515 = vmul.f32 %v312, %v505
        %v516 = vmul.f32 %v314, %v505
        %v517 = vmul.f32 %v315, %v505
        %v518 = vmul.f32 %v317, %v505
        %v519 = vmul.f32 %v318, %v505
        %v520 = vmul.f32 %v320, %v505
        %v521 = vmul.f32 %v321, %v505
        %v522 = vmul.f32 %v323, %v505
        %v523 = vmul.f32 %v324, %v505
        %v524 = vmul.f32 %v326, %v505
        %v525 = vmul.f32 %v327, %v505
        %v526 = vmul.f32 %v329, %v505
        %v527 = vmul.f32 %v330, %v505
        %v528 = vmul.f32 %v332, %v505
        %v529 = vmul.f32 %v333, %v505
        %v530 = vmul.f32 %v335, %v505
        %v531 = vmul.f32 %v336, %v505
        %v532 = vmul.f32 %v338, %v505
        %v533 = vmul.f32 %v339, %v505
        %v534 = vmul.f32 %v341, %v505
        %v535 = vmul.f32 %v342, %v505
        %v536 = vmul.f32 %v344, %v505
        %v537 = vmul.f32 %v345, %v505
        %v538 = vadd.f32 %v470, %v506
        %v539 = vadd.f32 %v471, %v507
        %v540 = vadd.f32 %v472, %v508
        %v541 = vadd.f32 %v473, %v509
        %v542 = vadd.f32 %v474, %v510
        %v543 = vadd.f32 %v475, %v511
        %v544 = vadd.f32 %v476, %v512
        %v545 = vadd.f32 %v477, %v513
        %v546 = vadd.f32 %v478, %v514
        %v547 = vadd.f32 %v479, %v515
        %v548 = vadd.f32 %v480, %v516
        %v549 = vadd.f32 %v481, %v517
        %v550 = vadd.f32 %v482, %v518
        %v551 = vadd.f32 %v483, %v519
        %v552 = vadd.f32 %v484, %v520
        %v553 = vadd.f32 %v485, %v521
        %v554 = vadd.f32 %v486, %v522
        %v555 = vadd.f32 %v487, %v523
        %v556 = vadd.f32 %v488, %v524
        %v557 = vadd.f32 %v489, %v525
        %v558 = vadd.f32 %v490, %v526
        %v559 = vadd.f32 %v491, %v527
        %v560 = vadd.f32 %v492, %v528
        %v561 = vadd.f32 %v493, %v529
        %v562 = vadd.f32 %v494, %v530
        %v563 = vadd.f32 %v495, %v531
        %v564 = vadd.f32 %v496, %v532
        %v565 = vadd.f32 %v497, %v533
        %v566 = vadd.f32 %v498, %v534
        %v567 = vadd.f32 %v499, %v535
        %v568 = vadd.f32 %v500, %v536
        %v569 = vadd.f32 %v501, %v537
        %v570 = vlaneseq
        %v571 = vshrl.u32 %v570, 7
        %v572 = vsub.s32 0, %v571
        %v573 = vrot.slane %v362, %v572
        %v574 = vmul.f32 %v302, %v573
        %v575 = vmul.f32 %v303, %v573
        %v576 = vmul.f32 %v305, %v573
        %v577 = vmul.f32 %v306, %v573
        %v578 = vmul.f32 %v308, %v573
        %v579 = vmul.f32 %v309, %v573
        %v580 = vmul.f32 %v311, %v573
        %v581 = vmul.f32 %v312, %v573
        %v582 = vmul.f32 %v314, %v573
        %v583 = vmul.f32 %v315, %v573
        %v584 = vmul.f32 %v317, %v573
        %v585 = vmul.f32 %v318, %v573
        %v586 = vmul.f32 %v320, %v573
        %v587 = vmul.f32 %v321, %v573
        %v588 = vmul.f32 %v323, %v573
        %v589 = vmul.f32 %v324, %v573
        %v590 = vmul.f32 %v326, %v573
        %v591 = vmul.f32 %v327, %v573
        %v592 = vmul.f32 %v329, %v573
        %v593 = vmul.f32 %v330, %v573
        %v594 = vmul.f32 %v332, %v573
        %v595 = vmul.f32 %v333, %v573
        %v596 = vmul.f32 %v335, %v573
        %v597 = vmul.f32 %v336, %v573
        %v598 = vmul.f32 %v338, %v573
        %v599 = vmul.f32 %v339, %v573
        %v600 = vmul.f32 %v341, %v573
        %v601 = vmul.f32 %v342, %v573
        %v602 = vmul.f32 %v344, %v573
        %v603 = vmul.f32 %v345, %v573
        %v604 = vmul.f32 %v347, %v573
        %v605 = vmul.f32 %v348, %v573
        %v606 = vadd.f32 %v538, %v574
        %v607 = vadd.f32 %v539, %v575
        %v608 = vadd.f32 %v540, %v576
        %v609 = vadd.f32 %v541, %v577
        %v610 = vadd.f32 %v542, %v578
        %v611 = vadd.f32 %v543, %v579
        %v612 = vadd.f32 %v544, %v580
        %v613 = vadd.f32 %v545, %v581
        %v614 = vadd.f32 %v546, %v582
        %v615 = vadd.f32 %v547, %v583
        %v616 = vadd.f32 %v548, %v584
        %v617 = vadd.f32 %v549, %v585
        %v618 = vadd.f32 %v550, %v586
        %v619 = vadd.f32 %v551, %v587
        %v620 = vadd.f32 %v552, %v588
        %v621 = vadd.f32 %v553, %v589
        %v622 = vadd.f32 %v554, %v590
        %v623 = vadd.f32 %v555, %v591
        %v624 = vadd.f32 %v556, %v592
        %v625 = vadd.f32 %v557, %v593
        %v626 = vadd.f32 %v558, %v594
        %v627 = vadd.f32 %v559, %v595
        %v628 = vadd.f32 %v560, %v596
        %v629 = vadd.f32 %v561, %v597
        %v630 = vadd.f32 %v562, %v598
        %v631 = vadd.f32 %v563, %v599
        %v632 = vadd.f32 %v564, %v600
        %v633 = vadd.f32 %v565, %v601
        %v634 = vadd.f32 %v566, %v602
        %v635 = vadd.f32 %v567, %v603
        %v636 = vadd.f32 %v568, %v604
        %v637 = vadd.f32 %v569, %v605
        %v638 = vlaneseq
        %v639 = vshrl.u32 %v638, 7
        %v640 = vsub.s32 0, %v639
        %v641 = vrot.slane %v363, %v640
        %v642 = vmul.f32 %v305, %v641
        %v643 = vmul.f32 %v306, %v641
        %v644 = vmul.f32 %v308, %v641
        %v645 = vmul.f32 %v309, %v641
        %v646 = vmul.f32 %v311, %v641
        %v647 = vmul.f32 %v312, %v641
        %v648 = vmul.f32 %v314, %v641
        %v649 = vmul.f32 %v315, %v641
        %v650 = vmul.f32 %v317, %v641
        %v651 = vmul.f32 %v318, %v641
        %v652 = vmul.f32 %v320, %v641
        %v653 = vmul.f32 %v321, %v641
        %v654 = vmul.f32 %v323, %v641
        %v655 = vmul.f32 %v324, %v641
        %v656 = vmul.f32 %v326, %v641
        %v657 = vmul.f32 %v327, %v641
        %v658 = vmul.f32 %v329, %v641
        %v659 = vmul.f32 %v330, %v641
        %v660 = vmul.f32 %v332, %v641
        %v661 = vmul.f32 %v333, %v641
        %v662 = vmul.f32 %v335, %v641
        %v663 = vmul.f32 %v336, %v641
        %v664 = vmul.f32 %v338, %v641
        %v665 = vmul.f32 %v339, %v641
        %v666 = vmul.f32 %v341, %v641
        %v667 = vmul.f32 %v342, %v641
        %v668 = vmul.f32 %v344, %v641
        %v669 = vmul.f32 %v345, %v641
        %v670 = vmul.f32 %v347, %v641
        %v671 = vmul.f32 %v348, %v641
        %v672 = vmul.f32 %v350, %v641
        %v673 = vmul.f32 %v351, %v641
        %v674 = vadd.f32 %v606, %v642
        %v675 = vadd.f32 %v607, %v643
        %v676 = vadd.f32 %v608, %v644
        %v677 = vadd.f32 %v609, %v645
        %v678 = vadd.f32 %v610, %v646
        %v679 = vadd.f32 %v611, %v647
        %v680 = vadd.f32 %v612, %v648
        %v681 = vadd.f32 %v613, %v649
        %v682 = vadd.f32 %v614, %v650
        %v683 = vadd.f32 %v615, %v651
        %v684 = vadd.f32 %v616, %v652
        %v685 = vadd.f32 %v617, %v653
        %v686 = vadd.f32 %v618, %v654
        %v687 = vadd.f32 %v619, %v655
        %v688 = vadd.f32 %v620, %v656
        %v689 = vadd.f32 %v621, %v657
        %v690 = vadd.f32 %v622, %v658
        %v691 = vadd.f32 %v623, %v659
        %v692 = vadd.f32 %v624, %v660
        %v693 = vadd.f32 %v625, %v661
        %v694 = vadd.f32 %v626, %v662
        %v695 = vadd.f32 %v627, %v663
        %v696 = vadd.f32 %v628, %v664
        %v697 = vadd.f32 %v629, %v665
        %v698 = vadd.f32 %v630, %v666
        %v699 = vadd.f32 %v631, %v667
        %v700 = vadd.f32 %v632, %v668
        %v701 = vadd.f32 %v633, %v669
        %v702 = vadd.f32 %v634, %v670
        %v703 = vadd.f32 %v635, %v671
        %v704 = vadd.f32 %v636, %v672
        %v705 = vadd.f32 %v637, %v673
        %v706 = vlaneseq
        %v707 = vshrl.u32 %v706, 7
        %v708 = vsub.s32 0, %v707
        %v709 = vrot.slane %v364, %v708
        %v710 = vmul.f32 %v308, %v709
        %v711 = vmul.f32 %v309, %v709
        %v712 = vmul.f32 %v311, %v709
        %v713 = vmul.f32 %v312, %v709
        %v714 = vmul.f32 %v314, %v709
        %v715 = vmul.f32 %v315, %v709
        %v716 = vmul.f32 %v317, %v709
        %v717 = vmul.f32 %v318, %v709
        %v718 = vmul.f32 %v320, %v709
        %v719 = vmul.f32 %v321, %v709
        %v720 = vmul.f32 %v323, %v709
        %v721 = vmul.f32 %v324, %v709
        %v722 = vmul.f32 %v326, %v709
        %v723 = vmul.f32 %v327, %v709
        %v724 = vmul.f32 %v329, %v709
        %v725 = vmul.f32 %v330, %v709
        %v726 = vmul.f32 %v332, %v709
        %v727 = vmul.f32 %v333, %v709
        %v728 = vmul.f32 %v335, %v709
        %v729 = vmul.f32 %v336, %v709
        %v730 = vmul.f32 %v338, %v709
        %v731 = vmul.f32 %v339, %v709
        %v732 = vmul.f32 %v341, %v709
        %v733 = vmul.f32 %v342, %v709
        %v734 = vmul.f32 %v344, %v709
        %v735 = vmul.f32 %v345, %v709
        %v736 = vmul.f32 %v347, %v709
        %v737 = vmul.f32 %v348, %v709
        %v738 = vmul.f32 %v350, %v709
        %v739 = vmul.f32 %v351, %v709
        %v740 = vmul.f32 %v353, %v709
        %v741 = vmul.f32 %v354, %v709
        %v742 = vadd.f32 %v674, %v710
        %v743 = vadd.f32 %v675, %v711
        %v744 = vadd.f32 %v676, %v712
        %v745 = vadd.f32 %v677, %v713
        %v746 = vadd.f32 %v678, %v714
        %v747 = vadd.f32 %v679, %v715
        %v748 = vadd.f32 %v680, %v716
        %v749 = vadd.f32 %v681, %v717
        %v750 = vadd.f32 %v682, %v718
        %v751 = vadd.f32 %v683, %v719
        %v752 = vadd.f32 %v684, %v720
        %v753 = vadd.f32 %v685, %v721
        %v754 = vadd.f32 %v686, %v722
        %v755 = vadd.f32 %v687, %v723
        %v756 = vadd.f32 %v688, %v724
        %v757 = vadd.f32 %v689, %v725
        %v758 = vadd.f32 %v690, %v726
        %v759 = vadd.f32 %v691, %v727
        %v760 = vadd.f32 %v692, %v728
        %v761 = vadd.f32 %v693, %v729
        %v762 = vadd.f32 %v694, %v730
        %v763 = vadd.f32 %v695, %v731
        %v764 = vadd.f32 %v696, %v732
        %v765 = vadd.f32 %v697, %v733
        %v766 = vadd.f32 %v698, %v734
        %v767 = vadd.f32 %v699, %v735
        %v768 = vadd.f32 %v700, %v736
        %v769 = vadd.f32 %v701, %v737
        %v770 = vadd.f32 %v702, %v738
        %v771 = vadd.f32 %v703, %v739
        %v772 = vadd.f32 %v704, %v740
        %v773 = vadd.f32 %v705, %v741
        %v774 = vlaneseq
        %v775 = vshrl.u32 %v774, 7
        %v776 = vsub.s32 0, %v775
        %v777 = vrot.slane %v365, %v776
        %v778 = vmul.f32 %v311, %v777
        %v779 = vmul.f32 %v312, %v777
        %v780 = vmul.f32 %v314, %v777
        %v781 = vmul.f32 %v315, %v777
        %v782 = vmul.f32 %v317, %v777
        %v783 = vmul.f32 %v318, %v777
        %v784 = vmul.f32 %v320, %v777
        %v785 = vmul.f32 %v321, %v777
        %v786 = vmul.f32 %v323, %v777
        %v787 = vmul.f32 %v324, %v777
        %v788 = vmul.f32 %v326, %v777
        %v789 = vmul.f32 %v327, %v777
        %v790 = vmul.f32 %v329, %v777
        %v791 = vmul.f32 %v330, %v777
        %v792 = vmul.f32 %v332, %v777
        %v793 = vmul.f32 %v333, %v777
        %v794 = vmul.f32 %v335, %v777
        %v795 = vmul.f32 %v336, %v777
        %v796 = vmul.f32 %v338, %v777
        %v797 = vmul.f32 %v339, %v777
        %v798 = vmul.f32 %v341, %v777
        %v799 = vmul.f32 %v342, %v777
        %v800 = vmul.f32 %v344, %v777
        %v801 = vmul.f32 %v345, %v777
        %v802 = vmul.f32 %v347, %v777
        %v803 = vmul.f32 %v348, %v777
        %v804 = vmul.f32 %v350, %v777
        %v805 = vmul.f32 %v351, %v777
        %v806 = vmul.f32 %v353, %v777
        %v807 = vmul.f32 %v354, %v777
        %v808 = vmul.f32 %v356, %v777
        %v809 = vmul.f32 %v357, %v777
        %v810 = vadd.f32 %v742, %v778
        %v811 = vadd.f32 %v743, %v779
        %v812 = vadd.f32 %v744, %v780
        %v813 = vadd.f32 %v745, %v781
        %v814 = vadd.f32 %v746, %v782
        %v815 = vadd.f32 %v747, %v783
        %v816 = vadd.f32 %v748, %v784
        %v817 = vadd.f32 %v749, %v785
        %v818 = vadd.f32 %v750, %v786
        %v819 = vadd.f32 %v751, %v787
        %v820 = vadd.f32 %v752, %v788
        %v821 = vadd.f32 %v753, %v789
        %v822 = vadd.f32 %v754, %v790
        %v823 = vadd.f32 %v755, %v791
        %v824 = vadd.f32 %v756, %v792
        %v825 = vadd.f32 %v757, %v793
        %v826 = vadd.f32 %v758, %v794
        %v827 = vadd.f32 %v759, %v795
        %v828 = vadd.f32 %v760, %v796
        %v829 = vadd.f32 %v761, %v797
        %v830 = vadd.f32 %v762, %v798
        %v831 = vadd.f32 %v763, %v799
        %v832 = vadd.f32 %v764, %v800
        %v833 = vadd.f32 %v765, %v801
        %v834 = vadd.f32 %v766, %v802
        %v835 = vadd.f32 %v767, %v803
        %v836 = vadd.f32 %v768, %v804
        %v837 = vadd.f32 %v769, %v805
        %v838 = vadd.f32 %v770, %v806
        %v839 = vadd.f32 %v771, %v807
        %v840 = vadd.f32 %v772, %v808
        %v841 = vadd.f32 %v773, %v809
        %v842 = vlaneseq
        %v843 = vshrl.u32 %v842, 7
        %v844 = vsub.s32 1, %v843
        %v845 = vrot.slane %v359, %v844
        %v846 = vmul.f32 %v293, %v845
        %v847 = vmul.f32 %v294, %v845
        %v848 = vmul.f32 %v295, %v845
        %v849 = vmul.f32 %v296, %v845
        %v850 = vmul.f32 %v297, %v845
        %v851 = vmul.f32 %v298, %v845
        %v852 = vmul.f32 %v299, %v845
        %v853 = vmul.f32 %v300, %v845
        %v854 = vmul.f32 %v301, %v845
        %v855 = vmul.f32 %v302, %v845
        %v856 = vmul.f32 %v303, %v845
        %v857 = vmul.f32 %v304, %v845
        %v858 = vmul.f32 %v305, %v845
        %v859 = vmul.f32 %v306, %v845
        %v860 = vmul.f32 %v307, %v845
        %v861 = vmul.f32 %v308, %v845
        %v862 = vmul.f32 %v309, %v845
        %v863 = vmul.f32 %v310, %v845
        %v864 = vmul.f32 %v311, %v845
        %v865 = vmul.f32 %v312, %v845
        %v866 = vmul.f32 %v313, %v845
        %v867 = vmul.f32 %v314, %v845
        %v868 = vmul.f32 %v315, %v845
        %v869 = vmul.f32 %v316, %v845
        %v870 = vmul.f32 %v317, %v845
        %v871 = vmul.f32 %v318, %v845
        %v872 = vmul.f32 %v319, %v845
        %v873 = vmul.f32 %v320, %v845
        %v874 = vmul.f32 %v321, %v845
        %v875 = vmul.f32 %v322, %v845
        %v876 = vmul.f32 %v323, %v845
        %v877 = vmul.f32 %v324, %v845
        %v878 = vmul.f32 %v325, %v845
        %v879 = vmul.f32 %v326, %v845
        %v880 = vmul.f32 %v327, %v845
        %v881 = vmul.f32 %v328, %v845
        %v882 = vmul.f32 %v329, %v845
        %v883 = vmul.f32 %v330, %v845
        %v884 = vmul.f32 %v331, %v845
        %v885 = vmul.f32 %v332, %v845
        %v886 = vmul.f32 %v333, %v845
        %v887 = vmul.f32 %v334, %v845
        %v888 = vmul.f32 %v335, %v845
        %v889 = vmul.f32 %v336, %v845
        %v890 = vmul.f32 %v337, %v845
        %v891 = vmul.f32 %v338, %v845
        %v892 = vmul.f32 %v339, %v845
        %v893 = vmul.f32 %v340, %v845
        %vm942 = vcmask 1046528
        %v943 = vrot.slane %v846, 1
        %v944 = vrot.slane %v847, 1
        %v945 = vsel %vm942, %v943, %v944
        %v946 = vrot.slane %v848, 1
        %v947 = vsel %vm942, %v944, %v946
        %v948 = vrot.slane %v849, 1
        %v949 = vrot.slane %v850, 1
        %v950 = vsel %vm942, %v948, %v949
        %v951 = vrot.slane %v851, 1
        %v952 = vsel %vm942, %v949, %v951
        %v953 = vrot.slane %v852, 1
        %v954 = vrot.slane %v853, 1
        %v955 = vsel %vm942, %v953, %v954
        %v956 = vrot.slane %v854, 1
        %v957 = vsel %vm942, %v954, %v956
        %v958 = vrot.slane %v855, 1
        %v959 = vrot.slane %v856, 1
        %v960 = vsel %vm942, %v958, %v959
        %v961 = vrot.slane %v857, 1
        %v962 = vsel %vm942, %v959, %v961
        %v963 = vrot.slane %v858, 1
        %v964 = vrot.slane %v859, 1
        %v965 = vsel %vm942, %v963, %v964
        %v966 = vrot.slane %v860, 1
        %v967 = vsel %vm942, %v964, %v966
        %v968 = vrot.slane %v861, 1
        %v969 = vrot.slane %v862, 1
        %v970 = vsel %vm942, %v968, %v969
        %v971 = vrot.slane %v863, 1
        %v972 = vsel %vm942, %v969, %v971
        %v973 = vrot.slane %v864, 1
        %v974 = vrot.slane %v865, 1
        %v975 = vsel %vm942, %v973, %v974
        %v976 = vrot.slane %v866, 1
        %v977 = vsel %vm942, %v974, %v976
        %v978 = vrot.slane %v867, 1
        %v979 = vrot.slane %v868, 1
        %v980 = vsel %vm942, %v978, %v979
        %v981 = vrot.slane %v869, 1
        %v982 = vsel %vm942, %v979, %v981
        %v983 = vrot.slane %v870, 1
        %v984 = vrot.slane %v871, 1
        %v985 = vsel %vm942, %v983, %v984
        %v986 = vrot.slane %v872, 1
        %v987 = vsel %vm942, %v984, %v986
        %v988 = vrot.slane %v873, 1
        %v989 = vrot.slane %v874, 1
        %v990 = vsel %vm942, %v988, %v989
        %v991 = vrot.slane %v875, 1
        %v992 = vsel %vm942, %v989, %v991
        %v993 = vrot.slane %v876, 1
        %v994 = vrot.slane %v877, 1
        %v995 = vsel %vm942, %v993, %v994
        %v996 = vrot.slane %v878, 1
        %v997 = vsel %vm942, %v994, %v996
        %v998 = vrot.slane %v879, 1
        %v999 = vrot.slane %v880, 1
        %v1000 = vsel %vm942, %v998, %v999
        %v1001 = vrot.slane %v881, 1
        %v1002 = vsel %vm942, %v999, %v1001
        %v1003 = vrot.slane %v882, 1
        %v1004 = vrot.slane %v883, 1
        %v1005 = vsel %vm942, %v1003, %v1004
        %v1006 = vrot.slane %v884, 1
        %v1007 = vsel %vm942, %v1004, %v1006
        %v1008 = vrot.slane %v885, 1
        %v1009 = vrot.slane %v886, 1
        %v1010 = vsel %vm942, %v1008, %v1009
        %v1011 = vrot.slane %v887, 1
        %v1012 = vsel %vm942, %v1009, %v1011
        %v1013 = vrot.slane %v888, 1
        %v1014 = vrot.slane %v889, 1
        %v1015 = vsel %vm942, %v1013, %v1014
        %v1016 = vrot.slane %v890, 1
        %v1017 = vsel %vm942, %v1014, %v1016
        %v1018 = vrot.slane %v891, 1
        %v1019 = vrot.slane %v892, 1
        %v1020 = vsel %vm942, %v1018, %v1019
        %v1021 = vrot.slane %v893, 1
        %v1022 = vsel %vm942, %v1019, %v1021
        %v1055 = vadd.f32 %v810, %v945
        %v1056 = vadd.f32 %v811, %v947
        %v1057 = vadd.f32 %v812, %v950
        %v1058 = vadd.f32 %v813, %v952
        %v1059 = vadd.f32 %v814, %v955
        %v1060 = vadd.f32 %v815, %v957
        %v1061 = vadd.f32 %v816, %v960
        %v1062 = vadd.f32 %v817, %v962
        %v1063 = vadd.f32 %v818, %v965
        %v1064 = vadd.f32 %v819, %v967
        %v1065 = vadd.f32 %v820, %v970
        %v1066 = vadd.f32 %v821, %v972
        %v1067 = vadd.f32 %v822, %v975
        %v1068 = vadd.f32 %v823, %v977
        %v1069 = vadd.f32 %v824, %v980
        %v1070 = vadd.f32 %v825, %v982
        %v1071 = vadd.f32 %v826, %v985
        %v1072 = vadd.f32 %v827, %v987
        %v1073 = vadd.f32 %v828, %v990
        %v1074 = vadd.f32 %v829, %v992
        %v1075 = vadd.f32 %v830, %v995
        %v1076 = vadd.f32 %v831, %v997
        %v1077 = vadd.f32 %v832, %v1000
        %v1078 = vadd.f32 %v833, %v1002
        %v1079 = vadd.f32 %v834, %v1005
        %v1080 = vadd.f32 %v835, %v1007
        %v1081 = vadd.f32 %v836, %v1010
        %v1082 = vadd.f32 %v837, %v1012
        %v1083 = vadd.f32 %v838, %v1015
        %v1084 = vadd.f32 %v839, %v1017
        %v1085 = vadd.f32 %v840, %v1020
        %v1086 = vadd.f32 %v841, %v1022
        %v1087 = vlaneseq
        %v1088 = vshrl.u32 %v1087, 7
        %v1089 = vsub.s32 1, %v1088
        %v1090 = vrot.slane %v360, %v1089
        %v1091 = vmul.f32 %v296, %v1090
        %v1092 = vmul.f32 %v297, %v1090
        %v1093 = vmul.f32 %v298, %v1090
        %v1094 = vmul.f32 %v299, %v1090
        %v1095 = vmul.f32 %v300, %v1090
        %v1096 = vmul.f32 %v301, %v1090
        %v1097 = vmul.f32 %v302, %v1090
        %v1098 = vmul.f32 %v303, %v1090
        %v1099 = vmul.f32 %v304, %v1090
        %v1100 = vmul.f32 %v305, %v1090
        %v1101 = vmul.f32 %v306, %v1090
        %v1102 = vmul.f32 %v307, %v1090
        %v1103 = vmul.f32 %v308, %v1090
        %v1104 = vmul.f32 %v309, %v1090
        %v1105 = vmul.f32 %v310, %v1090
        %v1106 = vmul.f32 %v311, %v1090
        %v1107 = vmul.f32 %v312, %v1090
        %v1108 = vmul.f32 %v313, %v1090
        %v1109 = vmul.f32 %v314, %v1090
        %v1110 = vmul.f32 %v315, %v1090
        %v1111 = vmul.f32 %v316, %v1090
        %v1112 = vmul.f32 %v317, %v1090
        %v1113 = vmul.f32 %v318, %v1090
        %v1114 = vmul.f32 %v319, %v1090
        %v1115 = vmul.f32 %v320, %v1090
        %v1116 = vmul.f32 %v321, %v1090
        %v1117 = vmul.f32 %v322, %v1090
        %v1118 = vmul.f32 %v323, %v1090
        %v1119 = vmul.f32 %v324, %v1090
        %v1120 = vmul.f32 %v325, %v1090
        %v1121 = vmul.f32 %v326, %v1090
        %v1122 = vmul.f32 %v327, %v1090
        %v1123 = vmul.f32 %v328, %v1090
        %v1124 = vmul.f32 %v329, %v1090
        %v1125 = vmul.f32 %v330, %v1090
        %v1126 = vmul.f32 %v331, %v1090
        %v1127 = vmul.f32 %v332, %v1090
        %v1128 = vmul.f32 %v333, %v1090
        %v1129 = vmul.f32 %v334, %v1090
        %v1130 = vmul.f32 %v335, %v1090
        %v1131 = vmul.f32 %v336, %v1090
        %v1132 = vmul.f32 %v337, %v1090
        %v1133 = vmul.f32 %v338, %v1090
        %v1134 = vmul.f32 %v339, %v1090
        %v1135 = vmul.f32 %v340, %v1090
        %v1136 = vmul.f32 %v341, %v1090
        %v1137 = vmul.f32 %v342, %v1090
        %v1138 = vmul.f32 %v343, %v1090
        %v1187 = vrot.slane %v1091, 1
        %v1188 = vrot.slane %v1092, 1
        %v1189 = vsel %vm942, %v1187, %v1188
        %v1190 = vrot.slane %v1093, 1
        %v1191 = vsel %vm942, %v1188, %v1190
        %v1192 = vrot.slane %v1094, 1
        %v1193 = vrot.slane %v1095, 1
        %v1194 = vsel %vm942, %v1192, %v1193
        %v1195 = vrot.slane %v1096, 1
        %v1196 = vsel %vm942, %v1193, %v1195
        %v1197 = vrot.slane %v1097, 1
        %v1198 = vrot.slane %v1098, 1
        %v1199 = vsel %vm942, %v1197, %v1198
        %v1200 = vrot.slane %v1099, 1
        %v1201 = vsel %vm942, %v1198, %v1200
        %v1202 = vrot.slane %v1100, 1
        %v1203 = vrot.slane %v1101, 1
        %v1204 = vsel %vm942, %v1202, %v1203
        %v1205 = vrot.slane %v1102, 1
        %v1206 = vsel %vm942, %v1203, %v1205
        %v1207 = vrot.slane %v1103, 1
        %v1208 = vrot.slane %v1104, 1
        %v1209 = vsel %vm942, %v1207, %v1208
        %v1210 = vrot.slane %v1105, 1
        %v1211 = vsel %vm942, %v1208, %v1210
        %v1212 = vrot.slane %v1106, 1
        %v1213 = vrot.slane %v1107, 1
        %v1214 = vsel %vm942, %v1212, %v1213
        %v1215 = vrot.slane %v1108, 1
        %v1216 = vsel %vm942, %v1213, %v1215
        %v1217 = vrot.slane %v1109, 1
        %v1218 = vrot.slane %v1110, 1
        %v1219 = vsel %vm942, %v1217, %v1218
        %v1220 = vrot.slane %v1111, 1
        %v1221 = vsel %vm942, %v1218, %v1220
        %v1222 = vrot.slane %v1112, 1
        %v1223 = vrot.slane %v1113, 1
        %v1224 = vsel %vm942, %v1222, %v1223
        %v1225 = vrot.slane %v1114, 1
        %v1226 = vsel %vm942, %v1223, %v1225
        %v1227 = vrot.slane %v1115, 1
        %v1228 = vrot.slane %v1116, 1
        %v1229 = vsel %vm942, %v1227, %v1228
        %v1230 = vrot.slane %v1117, 1
        %v1231 = vsel %vm942, %v1228, %v1230
        %v1232 = vrot.slane %v1118, 1
        %v1233 = vrot.slane %v1119, 1
        %v1234 = vsel %vm942, %v1232, %v1233
        %v1235 = vrot.slane %v1120, 1
        %v1236 = vsel %vm942, %v1233, %v1235
        %v1237 = vrot.slane %v1121, 1
        %v1238 = vrot.slane %v1122, 1
        %v1239 = vsel %vm942, %v1237, %v1238
        %v1240 = vrot.slane %v1123, 1
        %v1241 = vsel %vm942, %v1238, %v1240
        %v1242 = vrot.slane %v1124, 1
        %v1243 = vrot.slane %v1125, 1
        %v1244 = vsel %vm942, %v1242, %v1243
        %v1245 = vrot.slane %v1126, 1
        %v1246 = vsel %vm942, %v1243, %v1245
        %v1247 = vrot.slane %v1127, 1
        %v1248 = vrot.slane %v1128, 1
        %v1249 = vsel %vm942, %v1247, %v1248
        %v1250 = vrot.slane %v1129, 1
        %v1251 = vsel %vm942, %v1248, %v1250
        %v1252 = vrot.slane %v1130, 1
        %v1253 = vrot.slane %v1131, 1
        %v1254 = vsel %vm942, %v1252, %v1253
        %v1255 = vrot.slane %v1132, 1
        %v1256 = vsel %vm942, %v1253, %v1255
        %v1257 = vrot.slane %v1133, 1
        %v1258 = vrot.slane %v1134, 1
        %v1259 = vsel %vm942, %v1257, %v1258
        %v1260 = vrot.slane %v1135, 1
        %v1261 = vsel %vm942, %v1258, %v1260
        %v1262 = vrot.slane %v1136, 1
        %v1263 = vrot.slane %v1137, 1
        %v1264 = vsel %vm942, %v1262, %v1263
        %v1265 = vrot.slane %v1138, 1
        %v1266 = vsel %vm942, %v1263, %v1265
        %v1299 = vadd.f32 %v1055, %v1189
        %v1300 = vadd.f32 %v1056, %v1191
        %v1301 = vadd.f32 %v1057, %v1194
        %v1302 = vadd.f32 %v1058, %v1196
        %v1303 = vadd.f32 %v1059, %v1199
        %v1304 = vadd.f32 %v1060, %v1201
        %v1305 = vadd.f32 %v1061, %v1204
        %v1306 = vadd.f32 %v1062, %v1206
        %v1307 = vadd.f32 %v1063, %v1209
        %v1308 = vadd.f32 %v1064, %v1211
        %v1309 = vadd.f32 %v1065, %v1214
        %v1310 = vadd.f32 %v1066, %v1216
        %v1311 = vadd.f32 %v1067, %v1219
        %v1312 = vadd.f32 %v1068, %v1221
        %v1313 = vadd.f32 %v1069, %v1224
        %v1314 = vadd.f32 %v1070, %v1226
        %v1315 = vadd.f32 %v1071, %v1229
        %v1316 = vadd.f32 %v1072, %v1231
        %v1317 = vadd.f32 %v1073, %v1234
        %v1318 = vadd.f32 %v1074, %v1236
        %v1319 = vadd.f32 %v1075, %v1239
        %v1320 = vadd.f32 %v1076, %v1241
        %v1321 = vadd.f32 %v1077, %v1244
        %v1322 = vadd.f32 %v1078, %v1246
        %v1323 = vadd.f32 %v1079, %v1249
        %v1324 = vadd.f32 %v1080, %v1251
        %v1325 = vadd.f32 %v1081, %v1254
        %v1326 = vadd.f32 %v1082, %v1256
        %v1327 = vadd.f32 %v1083, %v1259
        %v1328 = vadd.f32 %v1084, %v1261
        %v1329 = vadd.f32 %v1085, %v1264
        %v1330 = vadd.f32 %v1086, %v1266
        %v1331 = vlaneseq
        %v1332 = vshrl.u32 %v1331, 7
        %v1333 = vsub.s32 1, %v1332
        %v1334 = vrot.slane %v361, %v1333
        %v1335 = vmul.f32 %v299, %v1334
        %v1336 = vmul.f32 %v300, %v1334
        %v1337 = vmul.f32 %v301, %v1334
        %v1338 = vmul.f32 %v302, %v1334
        %v1339 = vmul.f32 %v303, %v1334
        %v1340 = vmul.f32 %v304, %v1334
        %v1341 = vmul.f32 %v305, %v1334
        %v1342 = vmul.f32 %v306, %v1334
        %v1343 = vmul.f32 %v307, %v1334
        %v1344 = vmul.f32 %v308, %v1334
        %v1345 = vmul.f32 %v309, %v1334
        %v1346 = vmul.f32 %v310, %v1334
        %v1347 = vmul.f32 %v311, %v1334
        %v1348 = vmul.f32 %v312, %v1334
        %v1349 = vmul.f32 %v313, %v1334
        %v1350 = vmul.f32 %v314, %v1334
        %v1351 = vmul.f32 %v315, %v1334
        %v1352 = vmul.f32 %v316, %v1334
        %v1353 = vmul.f32 %v317, %v1334
        %v1354 = vmul.f32 %v318, %v1334
        %v1355 = vmul.f32 %v319, %v1334
        %v1356 = vmul.f32 %v320, %v1334
        %v1357 = vmul.f32 %v321, %v1334
        %v1358 = vmul.f32 %v322, %v1334
        %v1359 = vmul.f32 %v323, %v1334
        %v1360 = vmul.f32 %v324, %v1334
        %v1361 = vmul.f32 %v325, %v1334
        %v1362 = vmul.f32 %v326, %v1334
        %v1363 = vmul.f32 %v327, %v1334
        %v1364 = vmul.f32 %v328, %v1334
        %v1365 = vmul.f32 %v329, %v1334
        %v1366 = vmul.f32 %v330, %v1334
        %v1367 = vmul.f32 %v331, %v1334
        %v1368 = vmul.f32 %v332, %v1334
        %v1369 = vmul.f32 %v333, %v1334
        %v1370 = vmul.f32 %v334, %v1334
        %v1371 = vmul.f32 %v335, %v1334
        %v1372 = vmul.f32 %v336, %v1334
        %v1373 = vmul.f32 %v337, %v1334
        %v1374 = vmul.f32 %v338, %v1334
        %v1375 = vmul.f32 %v339, %v1334
        %v1376 = vmul.f32 %v340, %v1334
        %v1377 = vmul.f32 %v341, %v1334
        %v1378 = vmul.f32 %v342, %v1334
        %v1379 = vmul.f32 %v343, %v1334
        %v1380 = vmul.f32 %v344, %v1334
        %v1381 = vmul.f32 %v345, %v1334
        %v1382 = vmul.f32 %v346, %v1334
        %v1431 = vrot.slane %v1335, 1
        %v1432 = vrot.slane %v1336, 1
        %v1433 = vsel %vm942, %v1431, %v1432
        %v1434 = vrot.slane %v1337, 1
        %v1435 = vsel %vm942, %v1432, %v1434
        %v1436 = vrot.slane %v1338, 1
        %v1437 = vrot.slane %v1339, 1
        %v1438 = vsel %vm942, %v1436, %v1437
        %v1439 = vrot.slane %v1340, 1
        %v1440 = vsel %vm942, %v1437, %v1439
        %v1441 = vrot.slane %v1341, 1
        %v1442 = vrot.slane %v1342, 1
        %v1443 = vsel %vm942, %v1441, %v1442
        %v1444 = vrot.slane %v1343, 1
        %v1445 = vsel %vm942, %v1442, %v1444
        %v1446 = vrot.slane %v1344, 1
        %v1447 = vrot.slane %v1345, 1
        %v1448 = vsel %vm942, %v1446, %v1447
        %v1449 = vrot.slane %v1346, 1
        %v1450 = vsel %vm942, %v1447, %v1449
        %v1451 = vrot.slane %v1347, 1
        %v1452 = vrot.slane %v1348, 1
        %v1453 = vsel %vm942, %v1451, %v1452
        %v1454 = vrot.slane %v1349, 1
        %v1455 = vsel %vm942, %v1452, %v1454
        %v1456 = vrot.slane %v1350, 1
        %v1457 = vrot.slane %v1351, 1
        %v1458 = vsel %vm942, %v1456, %v1457
        %v1459 = vrot.slane %v1352, 1
        %v1460 = vsel %vm942, %v1457, %v1459
        %v1461 = vrot.slane %v1353, 1
        %v1462 = vrot.slane %v1354, 1
        %v1463 = vsel %vm942, %v1461, %v1462
        %v1464 = vrot.slane %v1355, 1
        %v1465 = vsel %vm942, %v1462, %v1464
        %v1466 = vrot.slane %v1356, 1
        %v1467 = vrot.slane %v1357, 1
        %v1468 = vsel %vm942, %v1466, %v1467
        %v1469 = vrot.slane %v1358, 1
        %v1470 = vsel %vm942, %v1467, %v1469
        %v1471 = vrot.slane %v1359, 1
        %v1472 = vrot.slane %v1360, 1
        %v1473 = vsel %vm942, %v1471, %v1472
        %v1474 = vrot.slane %v1361, 1
        %v1475 = vsel %vm942, %v1472, %v1474
        %v1476 = vrot.slane %v1362, 1
        %v1477 = vrot.slane %v1363, 1
        %v1478 = vsel %vm942, %v1476, %v1477
        %v1479 = vrot.slane %v1364, 1
        %v1480 = vsel %vm942, %v1477, %v1479
        %v1481 = vrot.slane %v1365, 1
        %v1482 = vrot.slane %v1366, 1
        %v1483 = vsel %vm942, %v1481, %v1482
        %v1484 = vrot.slane %v1367, 1
        %v1485 = vsel %vm942, %v1482, %v1484
        %v1486 = vrot.slane %v1368, 1
        %v1487 = vrot.slane %v1369, 1
        %v1488 = vsel %vm942, %v1486, %v1487
        %v1489 = vrot.slane %v1370, 1
        %v1490 = vsel %vm942, %v1487, %v1489
        %v1491 = vrot.slane %v1371, 1
        %v1492 = vrot.slane %v1372, 1
        %v1493 = vsel %vm942, %v1491, %v1492
        %v1494 = vrot.slane %v1373, 1
        %v1495 = vsel %vm942, %v1492, %v1494
        %v1496 = vrot.slane %v1374, 1
        %v1497 = vrot.slane %v1375, 1
        %v1498 = vsel %vm942, %v1496, %v1497
        %v1499 = vrot.slane %v1376, 1
        %v1500 = vsel %vm942, %v1497, %v1499
        %v1501 = vrot.slane %v1377, 1
        %v1502 = vrot.slane %v1378, 1
        %v1503 = vsel %vm942, %v1501, %v1502
        %v1504 = vrot.slane %v1379, 1
        %v1505 = vsel %vm942, %v1502, %v1504
        %v1506 = vrot.slane %v1380, 1
        %v1507 = vrot.slane %v1381, 1
        %v1508 = vsel %vm942, %v1506, %v1507
        %v1509 = vrot.slane %v1382, 1
        %v1510 = vsel %vm942, %v1507, %v1509
        %v1543 = vadd.f32 %v1299, %v1433
        %v1544 = vadd.f32 %v1300, %v1435
        %v1545 = vadd.f32 %v1301, %v1438
        %v1546 = vadd.f32 %v1302, %v1440
        %v1547 = vadd.f32 %v1303, %v1443
        %v1548 = vadd.f32 %v1304, %v1445
        %v1549 = vadd.f32 %v1305, %v1448
        %v1550 = vadd.f32 %v1306, %v1450
        %v1551 = vadd.f32 %v1307, %v1453
        %v1552 = vadd.f32 %v1308, %v1455
        %v1553 = vadd.f32 %v1309, %v1458
        %v1554 = vadd.f32 %v1310, %v1460
        %v1555 = vadd.f32 %v1311, %v1463
        %v1556 = vadd.f32 %v1312, %v1465
        %v1557 = vadd.f32 %v1313, %v1468
        %v1558 = vadd.f32 %v1314, %v1470
        %v1559 = vadd.f32 %v1315, %v1473
        %v1560 = vadd.f32 %v1316, %v1475
        %v1561 = vadd.f32 %v1317, %v1478
        %v1562 = vadd.f32 %v1318, %v1480
        %v1563 = vadd.f32 %v1319, %v1483
        %v1564 = vadd.f32 %v1320, %v1485
        %v1565 = vadd.f32 %v1321, %v1488
        %v1566 = vadd.f32 %v1322, %v1490
        %v1567 = vadd.f32 %v1323, %v1493
        %v1568 = vadd.f32 %v1324, %v1495
        %v1569 = vadd.f32 %v1325, %v1498
        %v1570 = vadd.f32 %v1326, %v1500
        %v1571 = vadd.f32 %v1327, %v1503
        %v1572 = vadd.f32 %v1328, %v1505
        %v1573 = vadd.f32 %v1329, %v1508
        %v1574 = vadd.f32 %v1330, %v1510
        %v1575 = vlaneseq
        %v1576 = vshrl.u32 %v1575, 7
        %v1577 = vsub.s32 1, %v1576
        %v1578 = vrot.slane %v362, %v1577
        %v1579 = vmul.f32 %v302, %v1578
        %v1580 = vmul.f32 %v303, %v1578
        %v1581 = vmul.f32 %v304, %v1578
        %v1582 = vmul.f32 %v305, %v1578
        %v1583 = vmul.f32 %v306, %v1578
        %v1584 = vmul.f32 %v307, %v1578
        %v1585 = vmul.f32 %v308, %v1578
        %v1586 = vmul.f32 %v309, %v1578
        %v1587 = vmul.f32 %v310, %v1578
        %v1588 = vmul.f32 %v311, %v1578
        %v1589 = vmul.f32 %v312, %v1578
        %v1590 = vmul.f32 %v313, %v1578
        %v1591 = vmul.f32 %v314, %v1578
        %v1592 = vmul.f32 %v315, %v1578
        %v1593 = vmul.f32 %v316, %v1578
        %v1594 = vmul.f32 %v317, %v1578
        %v1595 = vmul.f32 %v318, %v1578
        %v1596 = vmul.f32 %v319, %v1578
        %v1597 = vmul.f32 %v320, %v1578
        %v1598 = vmul.f32 %v321, %v1578
        %v1599 = vmul.f32 %v322, %v1578
        %v1600 = vmul.f32 %v323, %v1578
        %v1601 = vmul.f32 %v324, %v1578
        %v1602 = vmul.f32 %v325, %v1578
        %v1603 = vmul.f32 %v326, %v1578
        %v1604 = vmul.f32 %v327, %v1578
        %v1605 = vmul.f32 %v328, %v1578
        %v1606 = vmul.f32 %v329, %v1578
        %v1607 = vmul.f32 %v330, %v1578
        %v1608 = vmul.f32 %v331, %v1578
        %v1609 = vmul.f32 %v332, %v1578
        %v1610 = vmul.f32 %v333, %v1578
        %v1611 = vmul.f32 %v334, %v1578
        %v1612 = vmul.f32 %v335, %v1578
        %v1613 = vmul.f32 %v336, %v1578
        %v1614 = vmul.f32 %v337, %v1578
        %v1615 = vmul.f32 %v338, %v1578
        %v1616 = vmul.f32 %v339, %v1578
        %v1617 = vmul.f32 %v340, %v1578
        %v1618 = vmul.f32 %v341, %v1578
        %v1619 = vmul.f32 %v342, %v1578
        %v1620 = vmul.f32 %v343, %v1578
        %v1621 = vmul.f32 %v344, %v1578
        %v1622 = vmul.f32 %v345, %v1578
        %v1623 = vmul.f32 %v346, %v1578
        %v1624 = vmul.f32 %v347, %v1578
        %v1625 = vmul.f32 %v348, %v1578
        %v1626 = vmul.f32 %v349, %v1578
        %v1675 = vrot.slane %v1579, 1
        %v1676 = vrot.slane %v1580, 1
        %v1677 = vsel %vm942, %v1675, %v1676
        %v1678 = vrot.slane %v1581, 1
        %v1679 = vsel %vm942, %v1676, %v1678
        %v1680 = vrot.slane %v1582, 1
        %v1681 = vrot.slane %v1583, 1
        %v1682 = vsel %vm942, %v1680, %v1681
        %v1683 = vrot.slane %v1584, 1
        %v1684 = vsel %vm942, %v1681, %v1683
        %v1685 = vrot.slane %v1585, 1
        %v1686 = vrot.slane %v1586, 1
        %v1687 = vsel %vm942, %v1685, %v1686
        %v1688 = vrot.slane %v1587, 1
        %v1689 = vsel %vm942, %v1686, %v1688
        %v1690 = vrot.slane %v1588, 1
        %v1691 = vrot.slane %v1589, 1
        %v1692 = vsel %vm942, %v1690, %v1691
        %v1693 = vrot.slane %v1590, 1
        %v1694 = vsel %vm942, %v1691, %v1693
        %v1695 = vrot.slane %v1591, 1
        %v1696 = vrot.slane %v1592, 1
        %v1697 = vsel %vm942, %v1695, %v1696
        %v1698 = vrot.slane %v1593, 1
        %v1699 = vsel %vm942, %v1696, %v1698
        %v1700 = vrot.slane %v1594, 1
        %v1701 = vrot.slane %v1595, 1
        %v1702 = vsel %vm942, %v1700, %v1701
        %v1703 = vrot.slane %v1596, 1
        %v1704 = vsel %vm942, %v1701, %v1703
        %v1705 = vrot.slane %v1597, 1
        %v1706 = vrot.slane %v1598, 1
        %v1707 = vsel %vm942, %v1705, %v1706
        %v1708 = vrot.slane %v1599, 1
        %v1709 = vsel %vm942, %v1706, %v1708
        %v1710 = vrot.slane %v1600, 1
        %v1711 = vrot.slane %v1601, 1
        %v1712 = vsel %vm942, %v1710, %v1711
        %v1713 = vrot.slane %v1602, 1
        %v1714 = vsel %vm942, %v1711, %v1713
        %v1715 = vrot.slane %v1603, 1
        %v1716 = vrot.slane %v1604, 1
        %v1717 = vsel %vm942, %v1715, %v1716
        %v1718 = vrot.slane %v1605, 1
        %v1719 = vsel %vm942, %v1716, %v1718
        %v1720 = vrot.slane %v1606, 1
        %v1721 = vrot.slane %v1607, 1
        %v1722 = vsel %vm942, %v1720, %v1721
        %v1723 = vrot.slane %v1608, 1
        %v1724 = vsel %vm942, %v1721, %v1723
        %v1725 = vrot.slane %v1609, 1
        %v1726 = vrot.slane %v1610, 1
        %v1727 = vsel %vm942, %v1725, %v1726
        %v1728 = vrot.slane %v1611, 1
        %v1729 = vsel %vm942, %v1726, %v1728
        %v1730 = vrot.slane %v1612, 1
        %v1731 = vrot.slane %v1613, 1
        %v1732 = vsel %vm942, %v1730, %v1731
        %v1733 = vrot.slane %v1614, 1
        %v1734 = vsel %vm942, %v1731, %v1733
        %v1735 = vrot.slane %v1615, 1
        %v1736 = vrot.slane %v1616, 1
        %v1737 = vsel %vm942, %v1735, %v1736
        %v1738 = vrot.slane %v1617, 1
        %v1739 = vsel %vm942, %v1736, %v1738
        %v1740 = vrot.slane %v1618, 1
        %v1741 = vrot.slane %v1619, 1
        %v1742 = vsel %vm942, %v1740, %v1741
        %v1743 = vrot.slane %v1620, 1
        %v1744 = vsel %vm942, %v1741, %v1743
        %v1745 = vrot.slane %v1621, 1
        %v1746 = vrot.slane %v1622, 1
        %v1747 = vsel %vm942, %v1745, %v1746
        %v1748 = vrot.slane %v1623, 1
        %v1749 = vsel %vm942, %v1746, %v1748
        %v1750 = vrot.slane %v1624, 1
        %v1751 = vrot.slane %v1625, 1
        %v1752 = vsel %vm942, %v1750, %v1751
        %v1753 = vrot.slane %v1626, 1
        %v1754 = vsel %vm942, %v1751, %v1753
        %v1787 = vadd.f32 %v1543, %v1677
        %v1788 = vadd.f32 %v1544, %v1679
        %v1789 = vadd.f32 %v1545, %v1682
        %v1790 = vadd.f32 %v1546, %v1684
        %v1791 = vadd.f32 %v1547, %v1687
        %v1792 = vadd.f32 %v1548, %v1689
        %v1793 = vadd.f32 %v1549, %v1692
        %v1794 = vadd.f32 %v1550, %v1694
        %v1795 = vadd.f32 %v1551, %v1697
        %v1796 = vadd.f32 %v1552, %v1699
        %v1797 = vadd.f32 %v1553, %v1702
        %v1798 = vadd.f32 %v1554, %v1704
        %v1799 = vadd.f32 %v1555, %v1707
        %v1800 = vadd.f32 %v1556, %v1709
        %v1801 = vadd.f32 %v1557, %v1712
        %v1802 = vadd.f32 %v1558, %v1714
        %v1803 = vadd.f32 %v1559, %v1717
        %v1804 = vadd.f32 %v1560, %v1719
        %v1805 = vadd.f32 %v1561, %v1722
        %v1806 = vadd.f32 %v1562, %v1724
        %v1807 = vadd.f32 %v1563, %v1727
        %v1808 = vadd.f32 %v1564, %v1729
        %v1809 = vadd.f32 %v1565, %v1732
        %v1810 = vadd.f32 %v1566, %v1734
        %v1811 = vadd.f32 %v1567, %v1737
        %v1812 = vadd.f32 %v1568, %v1739
        %v1813 = vadd.f32 %v1569, %v1742
        %v1814 = vadd.f32 %v1570, %v1744
        %v1815 = vadd.f32 %v1571, %v1747
        %v1816 = vadd.f32 %v1572, %v1749
        %v1817 = vadd.f32 %v1573, %v1752
        %v1818 = vadd.f32 %v1574, %v1754
        %v1819 = vlaneseq
        %v1820 = vshrl.u32 %v1819, 7
        %v1821 = vsub.s32 1, %v1820
        %v1822 = vrot.slane %v363, %v1821
        %v1823 = vmul.f32 %v305, %v1822
        %v1824 = vmul.f32 %v306, %v1822
        %v1825 = vmul.f32 %v307, %v1822
        %v1826 = vmul.f32 %v308, %v1822
        %v1827 = vmul.f32 %v309, %v1822
        %v1828 = vmul.f32 %v310, %v1822
        %v1829 = vmul.f32 %v311, %v1822
        %v1830 = vmul.f32 %v312, %v1822
        %v1831 = vmul.f32 %v313, %v1822
        %v1832 = vmul.f32 %v314, %v1822
        %v1833 = vmul.f32 %v315, %v1822
        %v1834 = vmul.f32 %v316, %v1822
        %v1835 = vmul.f32 %v317, %v1822
        %v1836 = vmul.f32 %v318, %v1822
        %v1837 = vmul.f32 %v319, %v1822
        %v1838 = vmul.f32 %v320, %v1822
        %v1839 = vmul.f32 %v321, %v1822
        %v1840 = vmul.f32 %v322, %v1822
        %v1841 = vmul.f32 %v323, %v1822
        %v1842 = vmul.f32 %v324, %v1822
        %v1843 = vmul.f32 %v325, %v1822
        %v1844 = vmul.f32 %v326, %v1822
        %v1845 = vmul.f32 %v327, %v1822
        %v1846 = vmul.f32 %v328, %v1822
        %v1847 = vmul.f32 %v329, %v1822
        %v1848 = vmul.f32 %v330, %v1822
        %v1849 = vmul.f32 %v331, %v1822
        %v1850 = vmul.f32 %v332, %v1822
        %v1851 = vmul.f32 %v333, %v1822
        %v1852 = vmul.f32 %v334, %v1822
        %v1853 = vmul.f32 %v335, %v1822
        %v1854 = vmul.f32 %v336, %v1822
        %v1855 = vmul.f32 %v337, %v1822
        %v1856 = vmul.f32 %v338, %v1822
        %v1857 = vmul.f32 %v339, %v1822
        %v1858 = vmul.f32 %v340, %v1822
        %v1859 = vmul.f32 %v341, %v1822
        %v1860 = vmul.f32 %v342, %v1822
        %v1861 = vmul.f32 %v343, %v1822
        %v1862 = vmul.f32 %v344, %v1822
        %v1863 = vmul.f32 %v345, %v1822
        %v1864 = vmul.f32 %v346, %v1822
        %v1865 = vmul.f32 %v347, %v1822
        %v1866 = vmul.f32 %v348, %v1822
        %v1867 = vmul.f32 %v349, %v1822
        %v1868 = vmul.f32 %v350, %v1822
        %v1869 = vmul.f32 %v351, %v1822
        %v1870 = vmul.f32 %v352, %v1822
        %v1919 = vrot.slane %v1823, 1
        %v1920 = vrot.slane %v1824, 1
        %v1921 = vsel %vm942, %v1919, %v1920
        %v1922 = vrot.slane %v1825, 1
        %v1923 = vsel %vm942, %v1920, %v1922
        %v1924 = vrot.slane %v1826, 1
        %v1925 = vrot.slane %v1827, 1
        %v1926 = vsel %vm942, %v1924, %v1925
        %v1927 = vrot.slane %v1828, 1
        %v1928 = vsel %vm942, %v1925, %v1927
        %v1929 = vrot.slane %v1829, 1
        %v1930 = vrot.slane %v1830, 1
        %v1931 = vsel %vm942, %v1929, %v1930
        %v1932 = vrot.slane %v1831, 1
        %v1933 = vsel %vm942, %v1930, %v1932
        %v1934 = vrot.slane %v1832, 1
        %v1935 = vrot.slane %v1833, 1
        %v1936 = vsel %vm942, %v1934, %v1935
        %v1937 = vrot.slane %v1834, 1
        %v1938 = vsel %vm942, %v1935, %v1937
        %v1939 = vrot.slane %v1835, 1
        %v1940 = vrot.slane %v1836, 1
        %v1941 = vsel %vm942, %v1939, %v1940
        %v1942 = vrot.slane %v1837, 1
        %v1943 = vsel %vm942, %v1940, %v1942
        %v1944 = vrot.slane %v1838, 1
        %v1945 = vrot.slane %v1839, 1
        %v1946 = vsel %vm942, %v1944, %v1945
        %v1947 = vrot.slane %v1840, 1
        %v1948 = vsel %vm942, %v1945, %v1947
        %v1949 = vrot.slane %v1841, 1
        %v1950 = vrot.slane %v1842, 1
        %v1951 = vsel %vm942, %v1949, %v1950
        %v1952 = vrot.slane %v1843, 1
        %v1953 = vsel %vm942, %v1950, %v1952
        %v1954 = vrot.slane %v1844, 1
        %v1955 = vrot.slane %v1845, 1
        %v1956 = vsel %vm942, %v1954, %v1955
        %v1957 = vrot.slane %v1846, 1
        %v1958 = vsel %vm942, %v1955, %v1957
        %v1959 = vrot.slane %v1847, 1
        %v1960 = vrot.slane %v1848, 1
        %v1961 = vsel %vm942, %v1959, %v1960
        %v1962 = vrot.slane %v1849, 1
        %v1963 = vsel %vm942, %v1960, %v1962
        %v1964 = vrot.slane %v1850, 1
        %v1965 = vrot.slane %v1851, 1
        %v1966 = vsel %vm942, %v1964, %v1965
        %v1967 = vrot.slane %v1852, 1
        %v1968 = vsel %vm942, %v1965, %v1967
        %v1969 = vrot.slane %v1853, 1
        %v1970 = vrot.slane %v1854, 1
        %v1971 = vsel %vm942, %v1969, %v1970
        %v1972 = vrot.slane %v1855, 1
        %v1973 = vsel %vm942, %v1970, %v1972
        %v1974 = vrot.slane %v1856, 1
        %v1975 = vrot.slane %v1857, 1
        %v1976 = vsel %vm942, %v1974, %v1975
        %v1977 = vrot.slane %v1858, 1
        %v1978 = vsel %vm942, %v1975, %v1977
        %v1979 = vrot.slane %v1859, 1
        %v1980 = vrot.slane %v1860, 1
        %v1981 = vsel %vm942, %v1979, %v1980
        %v1982 = vrot.slane %v1861, 1
        %v1983 = vsel %vm942, %v1980, %v1982
        %v1984 = vrot.slane %v1862, 1
        %v1985 = vrot.slane %v1863, 1
        %v1986 = vsel %vm942, %v1984, %v1985
        %v1987 = vrot.slane %v1864, 1
        %v1988 = vsel %vm942, %v1985, %v1987
        %v1989 = vrot.slane %v1865, 1
        %v1990 = vrot.slane %v1866, 1
        %v1991 = vsel %vm942, %v1989, %v1990
        %v1992 = vrot.slane %v1867, 1
        %v1993 = vsel %vm942, %v1990, %v1992
        %v1994 = vrot.slane %v1868, 1
        %v1995 = vrot.slane %v1869, 1
        %v1996 = vsel %vm942, %v1994, %v1995
        %v1997 = vrot.slane %v1870, 1
        %v1998 = vsel %vm942, %v1995, %v1997
        %v2031 = vadd.f32 %v1787, %v1921
        %v2032 = vadd.f32 %v1788, %v1923
        %v2033 = vadd.f32 %v1789, %v1926
        %v2034 = vadd.f32 %v1790, %v1928
        %v2035 = vadd.f32 %v1791, %v1931
        %v2036 = vadd.f32 %v1792, %v1933
        %v2037 = vadd.f32 %v1793, %v1936
        %v2038 = vadd.f32 %v1794, %v1938
        %v2039 = vadd.f32 %v1795, %v1941
        %v2040 = vadd.f32 %v1796, %v1943
        %v2041 = vadd.f32 %v1797, %v1946
        %v2042 = vadd.f32 %v1798, %v1948
        %v2043 = vadd.f32 %v1799, %v1951
        %v2044 = vadd.f32 %v1800, %v1953
        %v2045 = vadd.f32 %v1801, %v1956
        %v2046 = vadd.f32 %v1802, %v1958
        %v2047 = vadd.f32 %v1803, %v1961
        %v2048 = vadd.f32 %v1804, %v1963
        %v2049 = vadd.f32 %v1805, %v1966
        %v2050 = vadd.f32 %v1806, %v1968
        %v2051 = vadd.f32 %v1807, %v1971
        %v2052 = vadd.f32 %v1808, %v1973
        %v2053 = vadd.f32 %v1809, %v1976
        %v2054 = vadd.f32 %v1810, %v1978
        %v2055 = vadd.f32 %v1811, %v1981
        %v2056 = vadd.f32 %v1812, %v1983
        %v2057 = vadd.f32 %v1813, %v1986
        %v2058 = vadd.f32 %v1814, %v1988
        %v2059 = vadd.f32 %v1815, %v1991
        %v2060 = vadd.f32 %v1816, %v1993
        %v2061 = vadd.f32 %v1817, %v1996
        %v2062 = vadd.f32 %v1818, %v1998
        %v2063 = vlaneseq
        %v2064 = vshrl.u32 %v2063, 7
        %v2065 = vsub.s32 1, %v2064
        %v2066 = vrot.slane %v364, %v2065
        %v2067 = vmul.f32 %v308, %v2066
        %v2068 = vmul.f32 %v309, %v2066
        %v2069 = vmul.f32 %v310, %v2066
        %v2070 = vmul.f32 %v311, %v2066
        %v2071 = vmul.f32 %v312, %v2066
        %v2072 = vmul.f32 %v313, %v2066
        %v2073 = vmul.f32 %v314, %v2066
        %v2074 = vmul.f32 %v315, %v2066
        %v2075 = vmul.f32 %v316, %v2066
        %v2076 = vmul.f32 %v317, %v2066
        %v2077 = vmul.f32 %v318, %v2066
        %v2078 = vmul.f32 %v319, %v2066
        %v2079 = vmul.f32 %v320, %v2066
        %v2080 = vmul.f32 %v321, %v2066
        %v2081 = vmul.f32 %v322, %v2066
        %v2082 = vmul.f32 %v323, %v2066
        %v2083 = vmul.f32 %v324, %v2066
        %v2084 = vmul.f32 %v325, %v2066
        %v2085 = vmul.f32 %v326, %v2066
        %v2086 = vmul.f32 %v327, %v2066
        %v2087 = vmul.f32 %v328, %v2066
        %v2088 = vmul.f32 %v329, %v2066
        %v2089 = vmul.f32 %v330, %v2066
        %v2090 = vmul.f32 %v331, %v2066
        %v2091 = vmul.f32 %v332, %v2066
        %v2092 = vmul.f32 %v333, %v2066
        %v2093 = vmul.f32 %v334, %v2066
        %v2094 = vmul.f32 %v335, %v2066
        %v2095 = vmul.f32 %v336, %v2066
        %v2096 = vmul.f32 %v337, %v2066
        %v2097 = vmul.f32 %v338, %v2066
        %v2098 = vmul.f32 %v339, %v2066
        %v2099 = vmul.f32 %v340, %v2066
        %v2100 = vmul.f32 %v341, %v2066
        %v2101 = vmul.f32 %v342, %v2066
        %v2102 = vmul.f32 %v343, %v2066
        %v2103 = vmul.f32 %v344, %v2066
        %v2104 = vmul.f32 %v345, %v2066
        %v2105 = vmul.f32 %v346, %v2066
        %v2106 = vmul.f32 %v347, %v2066
        %v2107 = vmul.f32 %v348, %v2066
        %v2108 = vmul.f32 %v349, %v2066
        %v2109 = vmul.f32 %v350, %v2066
        %v2110 = vmul.f32 %v351, %v2066
        %v2111 = vmul.f32 %v352, %v2066
        %v2112 = vmul.f32 %v353, %v2066
        %v2113 = vmul.f32 %v354, %v2066
        %v2114 = vmul.f32 %v355, %v2066
        %v2163 = vrot.slane %v2067, 1
        %v2164 = vrot.slane %v2068, 1
        %v2165 = vsel %vm942, %v2163, %v2164
        %v2166 = vrot.slane %v2069, 1
        %v2167 = vsel %vm942, %v2164, %v2166
        %v2168 = vrot.slane %v2070, 1
        %v2169 = vrot.slane %v2071, 1
        %v2170 = vsel %vm942, %v2168, %v2169
        %v2171 = vrot.slane %v2072, 1
        %v2172 = vsel %vm942, %v2169, %v2171
        %v2173 = vrot.slane %v2073, 1
        %v2174 = vrot.slane %v2074, 1
        %v2175 = vsel %vm942, %v2173, %v2174
        %v2176 = vrot.slane %v2075, 1
        %v2177 = vsel %vm942, %v2174, %v2176
        %v2178 = vrot.slane %v2076, 1
        %v2179 = vrot.slane %v2077, 1
        %v2180 = vsel %vm942, %v2178, %v2179
        %v2181 = vrot.slane %v2078, 1
        %v2182 = vsel %vm942, %v2179, %v2181
        %v2183 = vrot.slane %v2079, 1
        %v2184 = vrot.slane %v2080, 1
        %v2185 = vsel %vm942, %v2183, %v2184
        %v2186 = vrot.slane %v2081, 1
        %v2187 = vsel %vm942, %v2184, %v2186
        %v2188 = vrot.slane %v2082, 1
        %v2189 = vrot.slane %v2083, 1
        %v2190 = vsel %vm942, %v2188, %v2189
        %v2191 = vrot.slane %v2084, 1
        %v2192 = vsel %vm942, %v2189, %v2191
        %v2193 = vrot.slane %v2085, 1
        %v2194 = vrot.slane %v2086, 1
        %v2195 = vsel %vm942, %v2193, %v2194
        %v2196 = vrot.slane %v2087, 1
        %v2197 = vsel %vm942, %v2194, %v2196
        %v2198 = vrot.slane %v2088, 1
        %v2199 = vrot.slane %v2089, 1
        %v2200 = vsel %vm942, %v2198, %v2199
        %v2201 = vrot.slane %v2090, 1
        %v2202 = vsel %vm942, %v2199, %v2201
        %v2203 = vrot.slane %v2091, 1
        %v2204 = vrot.slane %v2092, 1
        %v2205 = vsel %vm942, %v2203, %v2204
        %v2206 = vrot.slane %v2093, 1
        %v2207 = vsel %vm942, %v2204, %v2206
        %v2208 = vrot.slane %v2094, 1
        %v2209 = vrot.slane %v2095, 1
        %v2210 = vsel %vm942, %v2208, %v2209
        %v2211 = vrot.slane %v2096, 1
        %v2212 = vsel %vm942, %v2209, %v2211
        %v2213 = vrot.slane %v2097, 1
        %v2214 = vrot.slane %v2098, 1
        %v2215 = vsel %vm942, %v2213, %v2214
        %v2216 = vrot.slane %v2099, 1
        %v2217 = vsel %vm942, %v2214, %v2216
        %v2218 = vrot.slane %v2100, 1
        %v2219 = vrot.slane %v2101, 1
        %v2220 = vsel %vm942, %v2218, %v2219
        %v2221 = vrot.slane %v2102, 1
        %v2222 = vsel %vm942, %v2219, %v2221
        %v2223 = vrot.slane %v2103, 1
        %v2224 = vrot.slane %v2104, 1
        %v2225 = vsel %vm942, %v2223, %v2224
        %v2226 = vrot.slane %v2105, 1
        %v2227 = vsel %vm942, %v2224, %v2226
        %v2228 = vrot.slane %v2106, 1
        %v2229 = vrot.slane %v2107, 1
        %v2230 = vsel %vm942, %v2228, %v2229
        %v2231 = vrot.slane %v2108, 1
        %v2232 = vsel %vm942, %v2229, %v2231
        %v2233 = vrot.slane %v2109, 1
        %v2234 = vrot.slane %v2110, 1
        %v2235 = vsel %vm942, %v2233, %v2234
        %v2236 = vrot.slane %v2111, 1
        %v2237 = vsel %vm942, %v2234, %v2236
        %v2238 = vrot.slane %v2112, 1
        %v2239 = vrot.slane %v2113, 1
        %v2240 = vsel %vm942, %v2238, %v2239
        %v2241 = vrot.slane %v2114, 1
        %v2242 = vsel %vm942, %v2239, %v2241
        %v2275 = vadd.f32 %v2031, %v2165
        %v2276 = vadd.f32 %v2032, %v2167
        %v2277 = vadd.f32 %v2033, %v2170
        %v2278 = vadd.f32 %v2034, %v2172
        %v2279 = vadd.f32 %v2035, %v2175
        %v2280 = vadd.f32 %v2036, %v2177
        %v2281 = vadd.f32 %v2037, %v2180
        %v2282 = vadd.f32 %v2038, %v2182
        %v2283 = vadd.f32 %v2039, %v2185
        %v2284 = vadd.f32 %v2040, %v2187
        %v2285 = vadd.f32 %v2041, %v2190
        %v2286 = vadd.f32 %v2042, %v2192
        %v2287 = vadd.f32 %v2043, %v2195
        %v2288 = vadd.f32 %v2044, %v2197
        %v2289 = vadd.f32 %v2045, %v2200
        %v2290 = vadd.f32 %v2046, %v2202
        %v2291 = vadd.f32 %v2047, %v2205
        %v2292 = vadd.f32 %v2048, %v2207
        %v2293 = vadd.f32 %v2049, %v2210
        %v2294 = vadd.f32 %v2050, %v2212
        %v2295 = vadd.f32 %v2051, %v2215
        %v2296 = vadd.f32 %v2052, %v2217
        %v2297 = vadd.f32 %v2053, %v2220
        %v2298 = vadd.f32 %v2054, %v2222
        %v2299 = vadd.f32 %v2055, %v2225
        %v2300 = vadd.f32 %v2056, %v2227
        %v2301 = vadd.f32 %v2057, %v2230
        %v2302 = vadd.f32 %v2058, %v2232
        %v2303 = vadd.f32 %v2059, %v2235
        %v2304 = vadd.f32 %v2060, %v2237
        %v2305 = vadd.f32 %v2061, %v2240
        %v2306 = vadd.f32 %v2062, %v2242
        %v2307 = vlaneseq
        %v2308 = vshrl.u32 %v2307, 7
        %v2309 = vsub.s32 1, %v2308
        %v2310 = vrot.slane %v365, %v2309
        %v2311 = vmul.f32 %v311, %v2310
        %v2312 = vmul.f32 %v312, %v2310
        %v2313 = vmul.f32 %v313, %v2310
        %v2314 = vmul.f32 %v314, %v2310
        %v2315 = vmul.f32 %v315, %v2310
        %v2316 = vmul.f32 %v316, %v2310
        %v2317 = vmul.f32 %v317, %v2310
        %v2318 = vmul.f32 %v318, %v2310
        %v2319 = vmul.f32 %v319, %v2310
        %v2320 = vmul.f32 %v320, %v2310
        %v2321 = vmul.f32 %v321, %v2310
        %v2322 = vmul.f32 %v322, %v2310
        %v2323 = vmul.f32 %v323, %v2310
        %v2324 = vmul.f32 %v324, %v2310
        %v2325 = vmul.f32 %v325, %v2310
        %v2326 = vmul.f32 %v326, %v2310
        %v2327 = vmul.f32 %v327, %v2310
        %v2328 = vmul.f32 %v328, %v2310
        %v2329 = vmul.f32 %v329, %v2310
        %v2330 = vmul.f32 %v330, %v2310
        %v2331 = vmul.f32 %v331, %v2310
        %v2332 = vmul.f32 %v332, %v2310
        %v2333 = vmul.f32 %v333, %v2310
        %v2334 = vmul.f32 %v334, %v2310
        %v2335 = vmul.f32 %v335, %v2310
        %v2336 = vmul.f32 %v336, %v2310
        %v2337 = vmul.f32 %v337, %v2310
        %v2338 = vmul.f32 %v338, %v2310
        %v2339 = vmul.f32 %v339, %v2310
        %v2340 = vmul.f32 %v340, %v2310
        %v2341 = vmul.f32 %v341, %v2310
        %v2342 = vmul.f32 %v342, %v2310
        %v2343 = vmul.f32 %v343, %v2310
        %v2344 = vmul.f32 %v344, %v2310
        %v2345 = vmul.f32 %v345, %v2310
        %v2346 = vmul.f32 %v346, %v2310
        %v2347 = vmul.f32 %v347, %v2310
        %v2348 = vmul.f32 %v348, %v2310
        %v2349 = vmul.f32 %v349, %v2310
        %v2350 = vmul.f32 %v350, %v2310
        %v2351 = vmul.f32 %v351, %v2310
        %v2352 = vmul.f32 %v352, %v2310
        %v2353 = vmul.f32 %v353, %v2310
        %v2354 = vmul.f32 %v354, %v2310
        %v2355 = vmul.f32 %v355, %v2310
        %v2356 = vmul.f32 %v356, %v2310
        %v2357 = vmul.f32 %v357, %v2310
        %v2358 = vmul.f32 %v358, %v2310
        %v2407 = vrot.slane %v2311, 1
        %v2408 = vrot.slane %v2312, 1
        %v2409 = vsel %vm942, %v2407, %v2408
        %v2410 = vrot.slane %v2313, 1
        %v2411 = vsel %vm942, %v2408, %v2410
        %v2412 = vrot.slane %v2314, 1
        %v2413 = vrot.slane %v2315, 1
        %v2414 = vsel %vm942, %v2412, %v2413
        %v2415 = vrot.slane %v2316, 1
        %v2416 = vsel %vm942, %v2413, %v2415
        %v2417 = vrot.slane %v2317, 1
        %v2418 = vrot.slane %v2318, 1
        %v2419 = vsel %vm942, %v2417, %v2418
        %v2420 = vrot.slane %v2319, 1
        %v2421 = vsel %vm942, %v2418, %v2420
        %v2422 = vrot.slane %v2320, 1
        %v2423 = vrot.slane %v2321, 1
        %v2424 = vsel %vm942, %v2422, %v2423
        %v2425 = vrot.slane %v2322, 1
        %v2426 = vsel %vm942, %v2423, %v2425
        %v2427 = vrot.slane %v2323, 1
        %v2428 = vrot.slane %v2324, 1
        %v2429 = vsel %vm942, %v2427, %v2428
        %v2430 = vrot.slane %v2325, 1
        %v2431 = vsel %vm942, %v2428, %v2430
        %v2432 = vrot.slane %v2326, 1
        %v2433 = vrot.slane %v2327, 1
        %v2434 = vsel %vm942, %v2432, %v2433
        %v2435 = vrot.slane %v2328, 1
        %v2436 = vsel %vm942, %v2433, %v2435
        %v2437 = vrot.slane %v2329, 1
        %v2438 = vrot.slane %v2330, 1
        %v2439 = vsel %vm942, %v2437, %v2438
        %v2440 = vrot.slane %v2331, 1
        %v2441 = vsel %vm942, %v2438, %v2440
        %v2442 = vrot.slane %v2332, 1
        %v2443 = vrot.slane %v2333, 1
        %v2444 = vsel %vm942, %v2442, %v2443
        %v2445 = vrot.slane %v2334, 1
        %v2446 = vsel %vm942, %v2443, %v2445
        %v2447 = vrot.slane %v2335, 1
        %v2448 = vrot.slane %v2336, 1
        %v2449 = vsel %vm942, %v2447, %v2448
        %v2450 = vrot.slane %v2337, 1
        %v2451 = vsel %vm942, %v2448, %v2450
        %v2452 = vrot.slane %v2338, 1
        %v2453 = vrot.slane %v2339, 1
        %v2454 = vsel %vm942, %v2452, %v2453
        %v2455 = vrot.slane %v2340, 1
        %v2456 = vsel %vm942, %v2453, %v2455
        %v2457 = vrot.slane %v2341, 1
        %v2458 = vrot.slane %v2342, 1
        %v2459 = vsel %vm942, %v2457, %v2458
        %v2460 = vrot.slane %v2343, 1
        %v2461 = vsel %vm942, %v2458, %v2460
        %v2462 = vrot.slane %v2344, 1
        %v2463 = vrot.slane %v2345, 1
        %v2464 = vsel %vm942, %v2462, %v2463
        %v2465 = vrot.slane %v2346, 1
        %v2466 = vsel %vm942, %v2463, %v2465
        %v2467 = vrot.slane %v2347, 1
        %v2468 = vrot.slane %v2348, 1
        %v2469 = vsel %vm942, %v2467, %v2468
        %v2470 = vrot.slane %v2349, 1
        %v2471 = vsel %vm942, %v2468, %v2470
        %v2472 = vrot.slane %v2350, 1
        %v2473 = vrot.slane %v2351, 1
        %v2474 = vsel %vm942, %v2472, %v2473
        %v2475 = vrot.slane %v2352, 1
        %v2476 = vsel %vm942, %v2473, %v2475
        %v2477 = vrot.slane %v2353, 1
        %v2478 = vrot.slane %v2354, 1
        %v2479 = vsel %vm942, %v2477, %v2478
        %v2480 = vrot.slane %v2355, 1
        %v2481 = vsel %vm942, %v2478, %v2480
        %v2482 = vrot.slane %v2356, 1
        %v2483 = vrot.slane %v2357, 1
        %v2484 = vsel %vm942, %v2482, %v2483
        %v2485 = vrot.slane %v2358, 1
        %v2486 = vsel %vm942, %v2483, %v2485
        %v2519 = vadd.f32 %v2275, %v2409
        %v2520 = vadd.f32 %v2276, %v2411
        %v2521 = vadd.f32 %v2277, %v2414
        %v2522 = vadd.f32 %v2278, %v2416
        %v2523 = vadd.f32 %v2279, %v2419
        %v2524 = vadd.f32 %v2280, %v2421
        %v2525 = vadd.f32 %v2281, %v2424
        %v2526 = vadd.f32 %v2282, %v2426
        %v2527 = vadd.f32 %v2283, %v2429
        %v2528 = vadd.f32 %v2284, %v2431
        %v2529 = vadd.f32 %v2285, %v2434
        %v2530 = vadd.f32 %v2286, %v2436
        %v2531 = vadd.f32 %v2287, %v2439
        %v2532 = vadd.f32 %v2288, %v2441
        %v2533 = vadd.f32 %v2289, %v2444
        %v2534 = vadd.f32 %v2290, %v2446
        %v2535 = vadd.f32 %v2291, %v2449
        %v2536 = vadd.f32 %v2292, %v2451
        %v2537 = vadd.f32 %v2293, %v2454
        %v2538 = vadd.f32 %v2294, %v2456
        %v2539 = vadd.f32 %v2295, %v2459
        %v2540 = vadd.f32 %v2296, %v2461
        %v2541 = vadd.f32 %v2297, %v2464
        %v2542 = vadd.f32 %v2298, %v2466
        %v2543 = vadd.f32 %v2299, %v2469
        %v2544 = vadd.f32 %v2300, %v2471
        %v2545 = vadd.f32 %v2301, %v2474
        %v2546 = vadd.f32 %v2302, %v2476
        %v2547 = vadd.f32 %v2303, %v2479
        %v2548 = vadd.f32 %v2304, %v2481
        %v2549 = vadd.f32 %v2305, %v2484
        %v2550 = vadd.f32 %v2306, %v2486
        %v2551 = vlaneseq
        %v2552 = vshrl.u32 %v2551, 7
        %v2553 = vsub.s32 2, %v2552
        %v2554 = vrot.slane %v359, %v2553
        %v2555 = vmul.f32 %v293, %v2554
        %v2556 = vmul.f32 %v294, %v2554
        %v2557 = vmul.f32 %v295, %v2554
        %v2558 = vmul.f32 %v296, %v2554
        %v2559 = vmul.f32 %v297, %v2554
        %v2560 = vmul.f32 %v298, %v2554
        %v2561 = vmul.f32 %v299, %v2554
        %v2562 = vmul.f32 %v300, %v2554
        %v2563 = vmul.f32 %v301, %v2554
        %v2564 = vmul.f32 %v302, %v2554
        %v2565 = vmul.f32 %v303, %v2554
        %v2566 = vmul.f32 %v304, %v2554
        %v2567 = vmul.f32 %v305, %v2554
        %v2568 = vmul.f32 %v306, %v2554
        %v2569 = vmul.f32 %v307, %v2554
        %v2570 = vmul.f32 %v308, %v2554
        %v2571 = vmul.f32 %v309, %v2554
        %v2572 = vmul.f32 %v310, %v2554
        %v2573 = vmul.f32 %v311, %v2554
        %v2574 = vmul.f32 %v312, %v2554
        %v2575 = vmul.f32 %v313, %v2554
        %v2576 = vmul.f32 %v314, %v2554
        %v2577 = vmul.f32 %v315, %v2554
        %v2578 = vmul.f32 %v316, %v2554
        %v2579 = vmul.f32 %v317, %v2554
        %v2580 = vmul.f32 %v318, %v2554
        %v2581 = vmul.f32 %v319, %v2554
        %v2582 = vmul.f32 %v320, %v2554
        %v2583 = vmul.f32 %v321, %v2554
        %v2584 = vmul.f32 %v322, %v2554
        %v2585 = vmul.f32 %v323, %v2554
        %v2586 = vmul.f32 %v324, %v2554
        %v2587 = vmul.f32 %v325, %v2554
        %v2588 = vmul.f32 %v326, %v2554
        %v2589 = vmul.f32 %v327, %v2554
        %v2590 = vmul.f32 %v328, %v2554
        %v2591 = vmul.f32 %v329, %v2554
        %v2592 = vmul.f32 %v330, %v2554
        %v2593 = vmul.f32 %v331, %v2554
        %v2594 = vmul.f32 %v332, %v2554
        %v2595 = vmul.f32 %v333, %v2554
        %v2596 = vmul.f32 %v334, %v2554
        %v2597 = vmul.f32 %v335, %v2554
        %v2598 = vmul.f32 %v336, %v2554
        %v2599 = vmul.f32 %v337, %v2554
        %v2600 = vmul.f32 %v338, %v2554
        %v2601 = vmul.f32 %v339, %v2554
        %v2602 = vmul.f32 %v340, %v2554
        %vm2651 = vcmask 1045504
        %v2652 = vrot.slane %v2555, 2
        %v2653 = vrot.slane %v2556, 2
        %v2654 = vsel %vm2651, %v2652, %v2653
        %v2655 = vrot.slane %v2557, 2
        %v2656 = vsel %vm2651, %v2653, %v2655
        %v2657 = vrot.slane %v2558, 2
        %v2658 = vrot.slane %v2559, 2
        %v2659 = vsel %vm2651, %v2657, %v2658
        %v2660 = vrot.slane %v2560, 2
        %v2661 = vsel %vm2651, %v2658, %v2660
        %v2662 = vrot.slane %v2561, 2
        %v2663 = vrot.slane %v2562, 2
        %v2664 = vsel %vm2651, %v2662, %v2663
        %v2665 = vrot.slane %v2563, 2
        %v2666 = vsel %vm2651, %v2663, %v2665
        %v2667 = vrot.slane %v2564, 2
        %v2668 = vrot.slane %v2565, 2
        %v2669 = vsel %vm2651, %v2667, %v2668
        %v2670 = vrot.slane %v2566, 2
        %v2671 = vsel %vm2651, %v2668, %v2670
        %v2672 = vrot.slane %v2567, 2
        %v2673 = vrot.slane %v2568, 2
        %v2674 = vsel %vm2651, %v2672, %v2673
        %v2675 = vrot.slane %v2569, 2
        %v2676 = vsel %vm2651, %v2673, %v2675
        %v2677 = vrot.slane %v2570, 2
        %v2678 = vrot.slane %v2571, 2
        %v2679 = vsel %vm2651, %v2677, %v2678
        %v2680 = vrot.slane %v2572, 2
        %v2681 = vsel %vm2651, %v2678, %v2680
        %v2682 = vrot.slane %v2573, 2
        %v2683 = vrot.slane %v2574, 2
        %v2684 = vsel %vm2651, %v2682, %v2683
        %v2685 = vrot.slane %v2575, 2
        %v2686 = vsel %vm2651, %v2683, %v2685
        %v2687 = vrot.slane %v2576, 2
        %v2688 = vrot.slane %v2577, 2
        %v2689 = vsel %vm2651, %v2687, %v2688
        %v2690 = vrot.slane %v2578, 2
        %v2691 = vsel %vm2651, %v2688, %v2690
        %v2692 = vrot.slane %v2579, 2
        %v2693 = vrot.slane %v2580, 2
        %v2694 = vsel %vm2651, %v2692, %v2693
        %v2695 = vrot.slane %v2581, 2
        %v2696 = vsel %vm2651, %v2693, %v2695
        %v2697 = vrot.slane %v2582, 2
        %v2698 = vrot.slane %v2583, 2
        %v2699 = vsel %vm2651, %v2697, %v2698
        %v2700 = vrot.slane %v2584, 2
        %v2701 = vsel %vm2651, %v2698, %v2700
        %v2702 = vrot.slane %v2585, 2
        %v2703 = vrot.slane %v2586, 2
        %v2704 = vsel %vm2651, %v2702, %v2703
        %v2705 = vrot.slane %v2587, 2
        %v2706 = vsel %vm2651, %v2703, %v2705
        %v2707 = vrot.slane %v2588, 2
        %v2708 = vrot.slane %v2589, 2
        %v2709 = vsel %vm2651, %v2707, %v2708
        %v2710 = vrot.slane %v2590, 2
        %v2711 = vsel %vm2651, %v2708, %v2710
        %v2712 = vrot.slane %v2591, 2
        %v2713 = vrot.slane %v2592, 2
        %v2714 = vsel %vm2651, %v2712, %v2713
        %v2715 = vrot.slane %v2593, 2
        %v2716 = vsel %vm2651, %v2713, %v2715
        %v2717 = vrot.slane %v2594, 2
        %v2718 = vrot.slane %v2595, 2
        %v2719 = vsel %vm2651, %v2717, %v2718
        %v2720 = vrot.slane %v2596, 2
        %v2721 = vsel %vm2651, %v2718, %v2720
        %v2722 = vrot.slane %v2597, 2
        %v2723 = vrot.slane %v2598, 2
        %v2724 = vsel %vm2651, %v2722, %v2723
        %v2725 = vrot.slane %v2599, 2
        %v2726 = vsel %vm2651, %v2723, %v2725
        %v2727 = vrot.slane %v2600, 2
        %v2728 = vrot.slane %v2601, 2
        %v2729 = vsel %vm2651, %v2727, %v2728
        %v2730 = vrot.slane %v2602, 2
        %v2731 = vsel %vm2651, %v2728, %v2730
        %v2764 = vadd.f32 %v2519, %v2654
        %v2765 = vadd.f32 %v2520, %v2656
        %v2766 = vadd.f32 %v2521, %v2659
        %v2767 = vadd.f32 %v2522, %v2661
        %v2768 = vadd.f32 %v2523, %v2664
        %v2769 = vadd.f32 %v2524, %v2666
        %v2770 = vadd.f32 %v2525, %v2669
        %v2771 = vadd.f32 %v2526, %v2671
        %v2772 = vadd.f32 %v2527, %v2674
        %v2773 = vadd.f32 %v2528, %v2676
        %v2774 = vadd.f32 %v2529, %v2679
        %v2775 = vadd.f32 %v2530, %v2681
        %v2776 = vadd.f32 %v2531, %v2684
        %v2777 = vadd.f32 %v2532, %v2686
        %v2778 = vadd.f32 %v2533, %v2689
        %v2779 = vadd.f32 %v2534, %v2691
        %v2780 = vadd.f32 %v2535, %v2694
        %v2781 = vadd.f32 %v2536, %v2696
        %v2782 = vadd.f32 %v2537, %v2699
        %v2783 = vadd.f32 %v2538, %v2701
        %v2784 = vadd.f32 %v2539, %v2704
        %v2785 = vadd.f32 %v2540, %v2706
        %v2786 = vadd.f32 %v2541, %v2709
        %v2787 = vadd.f32 %v2542, %v2711
        %v2788 = vadd.f32 %v2543, %v2714
        %v2789 = vadd.f32 %v2544, %v2716
        %v2790 = vadd.f32 %v2545, %v2719
        %v2791 = vadd.f32 %v2546, %v2721
        %v2792 = vadd.f32 %v2547, %v2724
        %v2793 = vadd.f32 %v2548, %v2726
        %v2794 = vadd.f32 %v2549, %v2729
        %v2795 = vadd.f32 %v2550, %v2731
        %v2796 = vlaneseq
        %v2797 = vshrl.u32 %v2796, 7
        %v2798 = vsub.s32 2, %v2797
        %v2799 = vrot.slane %v360, %v2798
        %v2800 = vmul.f32 %v296, %v2799
        %v2801 = vmul.f32 %v297, %v2799
        %v2802 = vmul.f32 %v298, %v2799
        %v2803 = vmul.f32 %v299, %v2799
        %v2804 = vmul.f32 %v300, %v2799
        %v2805 = vmul.f32 %v301, %v2799
        %v2806 = vmul.f32 %v302, %v2799
        %v2807 = vmul.f32 %v303, %v2799
        %v2808 = vmul.f32 %v304, %v2799
        %v2809 = vmul.f32 %v305, %v2799
        %v2810 = vmul.f32 %v306, %v2799
        %v2811 = vmul.f32 %v307, %v2799
        %v2812 = vmul.f32 %v308, %v2799
        %v2813 = vmul.f32 %v309, %v2799
        %v2814 = vmul.f32 %v310, %v2799
        %v2815 = vmul.f32 %v311, %v2799
        %v2816 = vmul.f32 %v312, %v2799
        %v2817 = vmul.f32 %v313, %v2799
        %v2818 = vmul.f32 %v314, %v2799
        %v2819 = vmul.f32 %v315, %v2799
        %v2820 = vmul.f32 %v316, %v2799
        %v2821 = vmul.f32 %v317, %v2799
        %v2822 = vmul.f32 %v318, %v2799
        %v2823 = vmul.f32 %v319, %v2799
        %v2824 = vmul.f32 %v320, %v2799
        %v2825 = vmul.f32 %v321, %v2799
        %v2826 = vmul.f32 %v322, %v2799
        %v2827 = vmul.f32 %v323, %v2799
        %v2828 = vmul.f32 %v324, %v2799
        %v2829 = vmul.f32 %v325, %v2799
        %v2830 = vmul.f32 %v326, %v2799
        %v2831 = vmul.f32 %v327, %v2799
        %v2832 = vmul.f32 %v328, %v2799
        %v2833 = vmul.f32 %v329, %v2799
        %v2834 = vmul.f32 %v330, %v2799
        %v2835 = vmul.f32 %v331, %v2799
        %v2836 = vmul.f32 %v332, %v2799
        %v2837 = vmul.f32 %v333, %v2799
        %v2838 = vmul.f32 %v334, %v2799
        %v2839 = vmul.f32 %v335, %v2799
        %v2840 = vmul.f32 %v336, %v2799
        %v2841 = vmul.f32 %v337, %v2799
        %v2842 = vmul.f32 %v338, %v2799
        %v2843 = vmul.f32 %v339, %v2799
        %v2844 = vmul.f32 %v340, %v2799
        %v2845 = vmul.f32 %v341, %v2799
        %v2846 = vmul.f32 %v342, %v2799
        %v2847 = vmul.f32 %v343, %v2799
        %v2896 = vrot.slane %v2800, 2
        %v2897 = vrot.slane %v2801, 2
        %v2898 = vsel %vm2651, %v2896, %v2897
        %v2899 = vrot.slane %v2802, 2
        %v2900 = vsel %vm2651, %v2897, %v2899
        %v2901 = vrot.slane %v2803, 2
        %v2902 = vrot.slane %v2804, 2
        %v2903 = vsel %vm2651, %v2901, %v2902
        %v2904 = vrot.slane %v2805, 2
        %v2905 = vsel %vm2651, %v2902, %v2904
        %v2906 = vrot.slane %v2806, 2
        %v2907 = vrot.slane %v2807, 2
        %v2908 = vsel %vm2651, %v2906, %v2907
        %v2909 = vrot.slane %v2808, 2
        %v2910 = vsel %vm2651, %v2907, %v2909
        %v2911 = vrot.slane %v2809, 2
        %v2912 = vrot.slane %v2810, 2
        %v2913 = vsel %vm2651, %v2911, %v2912
        %v2914 = vrot.slane %v2811, 2
        %v2915 = vsel %vm2651, %v2912, %v2914
        %v2916 = vrot.slane %v2812, 2
        %v2917 = vrot.slane %v2813, 2
        %v2918 = vsel %vm2651, %v2916, %v2917
        %v2919 = vrot.slane %v2814, 2
        %v2920 = vsel %vm2651, %v2917, %v2919
        %v2921 = vrot.slane %v2815, 2
        %v2922 = vrot.slane %v2816, 2
        %v2923 = vsel %vm2651, %v2921, %v2922
        %v2924 = vrot.slane %v2817, 2
        %v2925 = vsel %vm2651, %v2922, %v2924
        %v2926 = vrot.slane %v2818, 2
        %v2927 = vrot.slane %v2819, 2
        %v2928 = vsel %vm2651, %v2926, %v2927
        %v2929 = vrot.slane %v2820, 2
        %v2930 = vsel %vm2651, %v2927, %v2929
        %v2931 = vrot.slane %v2821, 2
        %v2932 = vrot.slane %v2822, 2
        %v2933 = vsel %vm2651, %v2931, %v2932
        %v2934 = vrot.slane %v2823, 2
        %v2935 = vsel %vm2651, %v2932, %v2934
        %v2936 = vrot.slane %v2824, 2
        %v2937 = vrot.slane %v2825, 2
        %v2938 = vsel %vm2651, %v2936, %v2937
        %v2939 = vrot.slane %v2826, 2
        %v2940 = vsel %vm2651, %v2937, %v2939
        %v2941 = vrot.slane %v2827, 2
        %v2942 = vrot.slane %v2828, 2
        %v2943 = vsel %vm2651, %v2941, %v2942
        %v2944 = vrot.slane %v2829, 2
        %v2945 = vsel %vm2651, %v2942, %v2944
        %v2946 = vrot.slane %v2830, 2
        %v2947 = vrot.slane %v2831, 2
        %v2948 = vsel %vm2651, %v2946, %v2947
        %v2949 = vrot.slane %v2832, 2
        %v2950 = vsel %vm2651, %v2947, %v2949
        %v2951 = vrot.slane %v2833, 2
        %v2952 = vrot.slane %v2834, 2
        %v2953 = vsel %vm2651, %v2951, %v2952
        %v2954 = vrot.slane %v2835, 2
        %v2955 = vsel %vm2651, %v2952, %v2954
        %v2956 = vrot.slane %v2836, 2
        %v2957 = vrot.slane %v2837, 2
        %v2958 = vsel %vm2651, %v2956, %v2957
        %v2959 = vrot.slane %v2838, 2
        %v2960 = vsel %vm2651, %v2957, %v2959
        %v2961 = vrot.slane %v2839, 2
        %v2962 = vrot.slane %v2840, 2
        %v2963 = vsel %vm2651, %v2961, %v2962
        %v2964 = vrot.slane %v2841, 2
        %v2965 = vsel %vm2651, %v2962, %v2964
        %v2966 = vrot.slane %v2842, 2
        %v2967 = vrot.slane %v2843, 2
        %v2968 = vsel %vm2651, %v2966, %v2967
        %v2969 = vrot.slane %v2844, 2
        %v2970 = vsel %vm2651, %v2967, %v2969
        %v2971 = vrot.slane %v2845, 2
        %v2972 = vrot.slane %v2846, 2
        %v2973 = vsel %vm2651, %v2971, %v2972
        %v2974 = vrot.slane %v2847, 2
        %v2975 = vsel %vm2651, %v2972, %v2974
        %v3008 = vadd.f32 %v2764, %v2898
        %v3009 = vadd.f32 %v2765, %v2900
        %v3010 = vadd.f32 %v2766, %v2903
        %v3011 = vadd.f32 %v2767, %v2905
        %v3012 = vadd.f32 %v2768, %v2908
        %v3013 = vadd.f32 %v2769, %v2910
        %v3014 = vadd.f32 %v2770, %v2913
        %v3015 = vadd.f32 %v2771, %v2915
        %v3016 = vadd.f32 %v2772, %v2918
        %v3017 = vadd.f32 %v2773, %v2920
        %v3018 = vadd.f32 %v2774, %v2923
        %v3019 = vadd.f32 %v2775, %v2925
        %v3020 = vadd.f32 %v2776, %v2928
        %v3021 = vadd.f32 %v2777, %v2930
        %v3022 = vadd.f32 %v2778, %v2933
        %v3023 = vadd.f32 %v2779, %v2935
        %v3024 = vadd.f32 %v2780, %v2938
        %v3025 = vadd.f32 %v2781, %v2940
        %v3026 = vadd.f32 %v2782, %v2943
        %v3027 = vadd.f32 %v2783, %v2945
        %v3028 = vadd.f32 %v2784, %v2948
        %v3029 = vadd.f32 %v2785, %v2950
        %v3030 = vadd.f32 %v2786, %v2953
        %v3031 = vadd.f32 %v2787, %v2955
        %v3032 = vadd.f32 %v2788, %v2958
        %v3033 = vadd.f32 %v2789, %v2960
        %v3034 = vadd.f32 %v2790, %v2963
        %v3035 = vadd.f32 %v2791, %v2965
        %v3036 = vadd.f32 %v2792, %v2968
        %v3037 = vadd.f32 %v2793, %v2970
        %v3038 = vadd.f32 %v2794, %v2973
        %v3039 = vadd.f32 %v2795, %v2975
        %v3040 = vlaneseq
        %v3041 = vshrl.u32 %v3040, 7
        %v3042 = vsub.s32 2, %v3041
        %v3043 = vrot.slane %v361, %v3042
        %v3044 = vmul.f32 %v299, %v3043
        %v3045 = vmul.f32 %v300, %v3043
        %v3046 = vmul.f32 %v301, %v3043
        %v3047 = vmul.f32 %v302, %v3043
        %v3048 = vmul.f32 %v303, %v3043
        %v3049 = vmul.f32 %v304, %v3043
        %v3050 = vmul.f32 %v305, %v3043
        %v3051 = vmul.f32 %v306, %v3043
        %v3052 = vmul.f32 %v307, %v3043
        %v3053 = vmul.f32 %v308, %v3043
        %v3054 = vmul.f32 %v309, %v3043
        %v3055 = vmul.f32 %v310, %v3043
        %v3056 = vmul.f32 %v311, %v3043
        %v3057 = vmul.f32 %v312, %v3043
        %v3058 = vmul.f32 %v313, %v3043
        %v3059 = vmul.f32 %v314, %v3043
        %v3060 = vmul.f32 %v315, %v3043
        %v3061 = vmul.f32 %v316, %v3043
        %v3062 = vmul.f32 %v317, %v3043
        %v3063 = vmul.f32 %v318, %v3043
        %v3064 = vmul.f32 %v319, %v3043
        %v3065 = vmul.f32 %v320, %v3043
        %v3066 = vmul.f32 %v321, %v3043
        %v3067 = vmul.f32 %v322, %v3043
        %v3068 = vmul.f32 %v323, %v3043
        %v3069 = vmul.f32 %v324, %v3043
        %v3070 = vmul.f32 %v325, %v3043
        %v3071 = vmul.f32 %v326, %v3043
        %v3072 = vmul.f32 %v327, %v3043
        %v3073 = vmul.f32 %v328, %v3043
        %v3074 = vmul.f32 %v329, %v3043
        %v3075 = vmul.f32 %v330, %v3043
        %v3076 = vmul.f32 %v331, %v3043
        %v3077 = vmul.f32 %v332, %v3043
        %v3078 = vmul.f32 %v333, %v3043
        %v3079 = vmul.f32 %v334, %v3043
        %v3080 = vmul.f32 %v335, %v3043
        %v3081 = vmul.f32 %v336, %v3043
        %v3082 = vmul.f32 %v337, %v3043
        %v3083 = vmul.f32 %v338, %v3043
        %v3084 = vmul.f32 %v339, %v3043
        %v3085 = vmul.f32 %v340, %v3043
        %v3086 = vmul.f32 %v341, %v3043
        %v3087 = vmul.f32 %v342, %v3043
        %v3088 = vmul.f32 %v343, %v3043
        %v3089 = vmul.f32 %v344, %v3043
        %v3090 = vmul.f32 %v345, %v3043
        %v3091 = vmul.f32 %v346, %v3043
        %v3140 = vrot.slane %v3044, 2
        %v3141 = vrot.slane %v3045, 2
        %v3142 = vsel %vm2651, %v3140, %v3141
        %v3143 = vrot.slane %v3046, 2
        %v3144 = vsel %vm2651, %v3141, %v3143
        %v3145 = vrot.slane %v3047, 2
        %v3146 = vrot.slane %v3048, 2
        %v3147 = vsel %vm2651, %v3145, %v3146
        %v3148 = vrot.slane %v3049, 2
        %v3149 = vsel %vm2651, %v3146, %v3148
        %v3150 = vrot.slane %v3050, 2
        %v3151 = vrot.slane %v3051, 2
        %v3152 = vsel %vm2651, %v3150, %v3151
        %v3153 = vrot.slane %v3052, 2
        %v3154 = vsel %vm2651, %v3151, %v3153
        %v3155 = vrot.slane %v3053, 2
        %v3156 = vrot.slane %v3054, 2
        %v3157 = vsel %vm2651, %v3155, %v3156
        %v3158 = vrot.slane %v3055, 2
        %v3159 = vsel %vm2651, %v3156, %v3158
        %v3160 = vrot.slane %v3056, 2
        %v3161 = vrot.slane %v3057, 2
        %v3162 = vsel %vm2651, %v3160, %v3161
        %v3163 = vrot.slane %v3058, 2
        %v3164 = vsel %vm2651, %v3161, %v3163
        %v3165 = vrot.slane %v3059, 2
        %v3166 = vrot.slane %v3060, 2
        %v3167 = vsel %vm2651, %v3165, %v3166
        %v3168 = vrot.slane %v3061, 2
        %v3169 = vsel %vm2651, %v3166, %v3168
        %v3170 = vrot.slane %v3062, 2
        %v3171 = vrot.slane %v3063, 2
        %v3172 = vsel %vm2651, %v3170, %v3171
        %v3173 = vrot.slane %v3064, 2
        %v3174 = vsel %vm2651, %v3171, %v3173
        %v3175 = vrot.slane %v3065, 2
        %v3176 = vrot.slane %v3066, 2
        %v3177 = vsel %vm2651, %v3175, %v3176
        %v3178 = vrot.slane %v3067, 2
        %v3179 = vsel %vm2651, %v3176, %v3178
        %v3180 = vrot.slane %v3068, 2
        %v3181 = vrot.slane %v3069, 2
        %v3182 = vsel %vm2651, %v3180, %v3181
        %v3183 = vrot.slane %v3070, 2
        %v3184 = vsel %vm2651, %v3181, %v3183
        %v3185 = vrot.slane %v3071, 2
        %v3186 = vrot.slane %v3072, 2
        %v3187 = vsel %vm2651, %v3185, %v3186
        %v3188 = vrot.slane %v3073, 2
        %v3189 = vsel %vm2651, %v3186, %v3188
        %v3190 = vrot.slane %v3074, 2
        %v3191 = vrot.slane %v3075, 2
        %v3192 = vsel %vm2651, %v3190, %v3191
        %v3193 = vrot.slane %v3076, 2
        %v3194 = vsel %vm2651, %v3191, %v3193
        %v3195 = vrot.slane %v3077, 2
        %v3196 = vrot.slane %v3078, 2
        %v3197 = vsel %vm2651, %v3195, %v3196
        %v3198 = vrot.slane %v3079, 2
        %v3199 = vsel %vm2651, %v3196, %v3198
        %v3200 = vrot.slane %v3080, 2
        %v3201 = vrot.slane %v3081, 2
        %v3202 = vsel %vm2651, %v3200, %v3201
        %v3203 = vrot.slane %v3082, 2
        %v3204 = vsel %vm2651, %v3201, %v3203
        %v3205 = vrot.slane %v3083, 2
        %v3206 = vrot.slane %v3084, 2
        %v3207 = vsel %vm2651, %v3205, %v3206
        %v3208 = vrot.slane %v3085, 2
        %v3209 = vsel %vm2651, %v3206, %v3208
        %v3210 = vrot.slane %v3086, 2
        %v3211 = vrot.slane %v3087, 2
        %v3212 = vsel %vm2651, %v3210, %v3211
        %v3213 = vrot.slane %v3088, 2
        %v3214 = vsel %vm2651, %v3211, %v3213
        %v3215 = vrot.slane %v3089, 2
        %v3216 = vrot.slane %v3090, 2
        %v3217 = vsel %vm2651, %v3215, %v3216
        %v3218 = vrot.slane %v3091, 2
        %v3219 = vsel %vm2651, %v3216, %v3218
        %v3252 = vadd.f32 %v3008, %v3142
        %v3253 = vadd.f32 %v3009, %v3144
        %v3254 = vadd.f32 %v3010, %v3147
        %v3255 = vadd.f32 %v3011, %v3149
        %v3256 = vadd.f32 %v3012, %v3152
        %v3257 = vadd.f32 %v3013, %v3154
        %v3258 = vadd.f32 %v3014, %v3157
        %v3259 = vadd.f32 %v3015, %v3159
        %v3260 = vadd.f32 %v3016, %v3162
        %v3261 = vadd.f32 %v3017, %v3164
        %v3262 = vadd.f32 %v3018, %v3167
        %v3263 = vadd.f32 %v3019, %v3169
        %v3264 = vadd.f32 %v3020, %v3172
        %v3265 = vadd.f32 %v3021, %v3174
        %v3266 = vadd.f32 %v3022, %v3177
        %v3267 = vadd.f32 %v3023, %v3179
        %v3268 = vadd.f32 %v3024, %v3182
        %v3269 = vadd.f32 %v3025, %v3184
        %v3270 = vadd.f32 %v3026, %v3187
        %v3271 = vadd.f32 %v3027, %v3189
        %v3272 = vadd.f32 %v3028, %v3192
        %v3273 = vadd.f32 %v3029, %v3194
        %v3274 = vadd.f32 %v3030, %v3197
        %v3275 = vadd.f32 %v3031, %v3199
        %v3276 = vadd.f32 %v3032, %v3202
        %v3277 = vadd.f32 %v3033, %v3204
        %v3278 = vadd.f32 %v3034, %v3207
        %v3279 = vadd.f32 %v3035, %v3209
        %v3280 = vadd.f32 %v3036, %v3212
        %v3281 = vadd.f32 %v3037, %v3214
        %v3282 = vadd.f32 %v3038, %v3217
        %v3283 = vadd.f32 %v3039, %v3219
        %v3284 = vlaneseq
        %v3285 = vshrl.u32 %v3284, 7
        %v3286 = vsub.s32 2, %v3285
        %v3287 = vrot.slane %v362, %v3286
        %v3288 = vmul.f32 %v302, %v3287
        %v3289 = vmul.f32 %v303, %v3287
        %v3290 = vmul.f32 %v304, %v3287
        %v3291 = vmul.f32 %v305, %v3287
        %v3292 = vmul.f32 %v306, %v3287
        %v3293 = vmul.f32 %v307, %v3287
        %v3294 = vmul.f32 %v308, %v3287
        %v3295 = vmul.f32 %v309, %v3287
        %v3296 = vmul.f32 %v310, %v3287
        %v3297 = vmul.f32 %v311, %v3287
        %v3298 = vmul.f32 %v312, %v3287
        %v3299 = vmul.f32 %v313, %v3287
        %v3300 = vmul.f32 %v314, %v3287
        %v3301 = vmul.f32 %v315, %v3287
        %v3302 = vmul.f32 %v316, %v3287
        %v3303 = vmul.f32 %v317, %v3287
        %v3304 = vmul.f32 %v318, %v3287
        %v3305 = vmul.f32 %v319, %v3287
        %v3306 = vmul.f32 %v320, %v3287
        %v3307 = vmul.f32 %v321, %v3287
        %v3308 = vmul.f32 %v322, %v3287
        %v3309 = vmul.f32 %v323, %v3287
        %v3310 = vmul.f32 %v324, %v3287
        %v3311 = vmul.f32 %v325, %v3287
        %v3312 = vmul.f32 %v326, %v3287
        %v3313 = vmul.f32 %v327, %v3287
        %v3314 = vmul.f32 %v328, %v3287
        %v3315 = vmul.f32 %v329, %v3287
        %v3316 = vmul.f32 %v330, %v3287
        %v3317 = vmul.f32 %v331, %v3287
        %v3318 = vmul.f32 %v332, %v3287
        %v3319 = vmul.f32 %v333, %v3287
        %v3320 = vmul.f32 %v334, %v3287
        %v3321 = vmul.f32 %v335, %v3287
        %v3322 = vmul.f32 %v336, %v3287
        %v3323 = vmul.f32 %v337, %v3287
        %v3324 = vmul.f32 %v338, %v3287
        %v3325 = vmul.f32 %v339, %v3287
        %v3326 = vmul.f32 %v340, %v3287
        %v3327 = vmul.f32 %v341, %v3287
        %v3328 = vmul.f32 %v342, %v3287
        %v3329 = vmul.f32 %v343, %v3287
        %v3330 = vmul.f32 %v344, %v3287
        %v3331 = vmul.f32 %v345, %v3287
        %v3332 = vmul.f32 %v346, %v3287
        %v3333 = vmul.f32 %v347, %v3287
        %v3334 = vmul.f32 %v348, %v3287
        %v3335 = vmul.f32 %v349, %v3287
        %v3384 = vrot.slane %v3288, 2
        %v3385 = vrot.slane %v3289, 2
        %v3386 = vsel %vm2651, %v3384, %v3385
        %v3387 = vrot.slane %v3290, 2
        %v3388 = vsel %vm2651, %v3385, %v3387
        %v3389 = vrot.slane %v3291, 2
        %v3390 = vrot.slane %v3292, 2
        %v3391 = vsel %vm2651, %v3389, %v3390
        %v3392 = vrot.slane %v3293, 2
        %v3393 = vsel %vm2651, %v3390, %v3392
        %v3394 = vrot.slane %v3294, 2
        %v3395 = vrot.slane %v3295, 2
        %v3396 = vsel %vm2651, %v3394, %v3395
        %v3397 = vrot.slane %v3296, 2
        %v3398 = vsel %vm2651, %v3395, %v3397
        %v3399 = vrot.slane %v3297, 2
        %v3400 = vrot.slane %v3298, 2
        %v3401 = vsel %vm2651, %v3399, %v3400
        %v3402 = vrot.slane %v3299, 2
        %v3403 = vsel %vm2651, %v3400, %v3402
        %v3404 = vrot.slane %v3300, 2
        %v3405 = vrot.slane %v3301, 2
        %v3406 = vsel %vm2651, %v3404, %v3405
        %v3407 = vrot.slane %v3302, 2
        %v3408 = vsel %vm2651, %v3405, %v3407
        %v3409 = vrot.slane %v3303, 2
        %v3410 = vrot.slane %v3304, 2
        %v3411 = vsel %vm2651, %v3409, %v3410
        %v3412 = vrot.slane %v3305, 2
        %v3413 = vsel %vm2651, %v3410, %v3412
        %v3414 = vrot.slane %v3306, 2
        %v3415 = vrot.slane %v3307, 2
        %v3416 = vsel %vm2651, %v3414, %v3415
        %v3417 = vrot.slane %v3308, 2
        %v3418 = vsel %vm2651, %v3415, %v3417
        %v3419 = vrot.slane %v3309, 2
        %v3420 = vrot.slane %v3310, 2
        %v3421 = vsel %vm2651, %v3419, %v3420
        %v3422 = vrot.slane %v3311, 2
        %v3423 = vsel %vm2651, %v3420, %v3422
        %v3424 = vrot.slane %v3312, 2
        %v3425 = vrot.slane %v3313, 2
        %v3426 = vsel %vm2651, %v3424, %v3425
        %v3427 = vrot.slane %v3314, 2
        %v3428 = vsel %vm2651, %v3425, %v3427
        %v3429 = vrot.slane %v3315, 2
        %v3430 = vrot.slane %v3316, 2
        %v3431 = vsel %vm2651, %v3429, %v3430
        %v3432 = vrot.slane %v3317, 2
        %v3433 = vsel %vm2651, %v3430, %v3432
        %v3434 = vrot.slane %v3318, 2
        %v3435 = vrot.slane %v3319, 2
        %v3436 = vsel %vm2651, %v3434, %v3435
        %v3437 = vrot.slane %v3320, 2
        %v3438 = vsel %vm2651, %v3435, %v3437
        %v3439 = vrot.slane %v3321, 2
        %v3440 = vrot.slane %v3322, 2
        %v3441 = vsel %vm2651, %v3439, %v3440
        %v3442 = vrot.slane %v3323, 2
        %v3443 = vsel %vm2651, %v3440, %v3442
        %v3444 = vrot.slane %v3324, 2
        %v3445 = vrot.slane %v3325, 2
        %v3446 = vsel %vm2651, %v3444, %v3445
        %v3447 = vrot.slane %v3326, 2
        %v3448 = vsel %vm2651, %v3445, %v3447
        %v3449 = vrot.slane %v3327, 2
        %v3450 = vrot.slane %v3328, 2
        %v3451 = vsel %vm2651, %v3449, %v3450
        %v3452 = vrot.slane %v3329, 2
        %v3453 = vsel %vm2651, %v3450, %v3452
        %v3454 = vrot.slane %v3330, 2
        %v3455 = vrot.slane %v3331, 2
        %v3456 = vsel %vm2651, %v3454, %v3455
        %v3457 = vrot.slane %v3332, 2
        %v3458 = vsel %vm2651, %v3455, %v3457
        %v3459 = vrot.slane %v3333, 2
        %v3460 = vrot.slane %v3334, 2
        %v3461 = vsel %vm2651, %v3459, %v3460
        %v3462 = vrot.slane %v3335, 2
        %v3463 = vsel %vm2651, %v3460, %v3462
        %v3496 = vadd.f32 %v3252, %v3386
        %v3497 = vadd.f32 %v3253, %v3388
        %v3498 = vadd.f32 %v3254, %v3391
        %v3499 = vadd.f32 %v3255, %v3393
        %v3500 = vadd.f32 %v3256, %v3396
        %v3501 = vadd.f32 %v3257, %v3398
        %v3502 = vadd.f32 %v3258, %v3401
        %v3503 = vadd.f32 %v3259, %v3403
        %v3504 = vadd.f32 %v3260, %v3406
        %v3505 = vadd.f32 %v3261, %v3408
        %v3506 = vadd.f32 %v3262, %v3411
        %v3507 = vadd.f32 %v3263, %v3413
        %v3508 = vadd.f32 %v3264, %v3416
        %v3509 = vadd.f32 %v3265, %v3418
        %v3510 = vadd.f32 %v3266, %v3421
        %v3511 = vadd.f32 %v3267, %v3423
        %v3512 = vadd.f32 %v3268, %v3426
        %v3513 = vadd.f32 %v3269, %v3428
        %v3514 = vadd.f32 %v3270, %v3431
        %v3515 = vadd.f32 %v3271, %v3433
        %v3516 = vadd.f32 %v3272, %v3436
        %v3517 = vadd.f32 %v3273, %v3438
        %v3518 = vadd.f32 %v3274, %v3441
        %v3519 = vadd.f32 %v3275, %v3443
        %v3520 = vadd.f32 %v3276, %v3446
        %v3521 = vadd.f32 %v3277, %v3448
        %v3522 = vadd.f32 %v3278, %v3451
        %v3523 = vadd.f32 %v3279, %v3453
        %v3524 = vadd.f32 %v3280, %v3456
        %v3525 = vadd.f32 %v3281, %v3458
        %v3526 = vadd.f32 %v3282, %v3461
        %v3527 = vadd.f32 %v3283, %v3463
        %v3528 = vlaneseq
        %v3529 = vshrl.u32 %v3528, 7
        %v3530 = vsub.s32 2, %v3529
        %v3531 = vrot.slane %v363, %v3530
        %v3532 = vmul.f32 %v305, %v3531
        %v3533 = vmul.f32 %v306, %v3531
        %v3534 = vmul.f32 %v307, %v3531
        %v3535 = vmul.f32 %v308, %v3531
        %v3536 = vmul.f32 %v309, %v3531
        %v3537 = vmul.f32 %v310, %v3531
        %v3538 = vmul.f32 %v311, %v3531
        %v3539 = vmul.f32 %v312, %v3531
        %v3540 = vmul.f32 %v313, %v3531
        %v3541 = vmul.f32 %v314, %v3531
        %v3542 = vmul.f32 %v315, %v3531
        %v3543 = vmul.f32 %v316, %v3531
        %v3544 = vmul.f32 %v317, %v3531
        %v3545 = vmul.f32 %v318, %v3531
        %v3546 = vmul.f32 %v319, %v3531
        %v3547 = vmul.f32 %v320, %v3531
        %v3548 = vmul.f32 %v321, %v3531
        %v3549 = vmul.f32 %v322, %v3531
        %v3550 = vmul.f32 %v323, %v3531
        %v3551 = vmul.f32 %v324, %v3531
        %v3552 = vmul.f32 %v325, %v3531
        %v3553 = vmul.f32 %v326, %v3531
        %v3554 = vmul.f32 %v327, %v3531
        %v3555 = vmul.f32 %v328, %v3531
        %v3556 = vmul.f32 %v329, %v3531
        %v3557 = vmul.f32 %v330, %v3531
        %v3558 = vmul.f32 %v331, %v3531
        %v3559 = vmul.f32 %v332, %v3531
        %v3560 = vmul.f32 %v333, %v3531
        %v3561 = vmul.f32 %v334, %v3531
        %v3562 = vmul.f32 %v335, %v3531
        %v3563 = vmul.f32 %v336, %v3531
        %v3564 = vmul.f32 %v337, %v3531
        %v3565 = vmul.f32 %v338, %v3531
        %v3566 = vmul.f32 %v339, %v3531
        %v3567 = vmul.f32 %v340, %v3531
        %v3568 = vmul.f32 %v341, %v3531
        %v3569 = vmul.f32 %v342, %v3531
        %v3570 = vmul.f32 %v343, %v3531
        %v3571 = vmul.f32 %v344, %v3531
        %v3572 = vmul.f32 %v345, %v3531
        %v3573 = vmul.f32 %v346, %v3531
        %v3574 = vmul.f32 %v347, %v3531
        %v3575 = vmul.f32 %v348, %v3531
        %v3576 = vmul.f32 %v349, %v3531
        %v3577 = vmul.f32 %v350, %v3531
        %v3578 = vmul.f32 %v351, %v3531
        %v3579 = vmul.f32 %v352, %v3531
        %v3628 = vrot.slane %v3532, 2
        %v3629 = vrot.slane %v3533, 2
        %v3630 = vsel %vm2651, %v3628, %v3629
        %v3631 = vrot.slane %v3534, 2
        %v3632 = vsel %vm2651, %v3629, %v3631
        %v3633 = vrot.slane %v3535, 2
        %v3634 = vrot.slane %v3536, 2
        %v3635 = vsel %vm2651, %v3633, %v3634
        %v3636 = vrot.slane %v3537, 2
        %v3637 = vsel %vm2651, %v3634, %v3636
        %v3638 = vrot.slane %v3538, 2
        %v3639 = vrot.slane %v3539, 2
        %v3640 = vsel %vm2651, %v3638, %v3639
        %v3641 = vrot.slane %v3540, 2
        %v3642 = vsel %vm2651, %v3639, %v3641
        %v3643 = vrot.slane %v3541, 2
        %v3644 = vrot.slane %v3542, 2
        %v3645 = vsel %vm2651, %v3643, %v3644
        %v3646 = vrot.slane %v3543, 2
        %v3647 = vsel %vm2651, %v3644, %v3646
        %v3648 = vrot.slane %v3544, 2
        %v3649 = vrot.slane %v3545, 2
        %v3650 = vsel %vm2651, %v3648, %v3649
        %v3651 = vrot.slane %v3546, 2
        %v3652 = vsel %vm2651, %v3649, %v3651
        %v3653 = vrot.slane %v3547, 2
        %v3654 = vrot.slane %v3548, 2
        %v3655 = vsel %vm2651, %v3653, %v3654
        %v3656 = vrot.slane %v3549, 2
        %v3657 = vsel %vm2651, %v3654, %v3656
        %v3658 = vrot.slane %v3550, 2
        %v3659 = vrot.slane %v3551, 2
        %v3660 = vsel %vm2651, %v3658, %v3659
        %v3661 = vrot.slane %v3552, 2
        %v3662 = vsel %vm2651, %v3659, %v3661
        %v3663 = vrot.slane %v3553, 2
        %v3664 = vrot.slane %v3554, 2
        %v3665 = vsel %vm2651, %v3663, %v3664
        %v3666 = vrot.slane %v3555, 2
        %v3667 = vsel %vm2651, %v3664, %v3666
        %v3668 = vrot.slane %v3556, 2
        %v3669 = vrot.slane %v3557, 2
        %v3670 = vsel %vm2651, %v3668, %v3669
        %v3671 = vrot.slane %v3558, 2
        %v3672 = vsel %vm2651, %v3669, %v3671
        %v3673 = vrot.slane %v3559, 2
        %v3674 = vrot.slane %v3560, 2
        %v3675 = vsel %vm2651, %v3673, %v3674
        %v3676 = vrot.slane %v3561, 2
        %v3677 = vsel %vm2651, %v3674, %v3676
        %v3678 = vrot.slane %v3562, 2
        %v3679 = vrot.slane %v3563, 2
        %v3680 = vsel %vm2651, %v3678, %v3679
        %v3681 = vrot.slane %v3564, 2
        %v3682 = vsel %vm2651, %v3679, %v3681
        %v3683 = vrot.slane %v3565, 2
        %v3684 = vrot.slane %v3566, 2
        %v3685 = vsel %vm2651, %v3683, %v3684
        %v3686 = vrot.slane %v3567, 2
        %v3687 = vsel %vm2651, %v3684, %v3686
        %v3688 = vrot.slane %v3568, 2
        %v3689 = vrot.slane %v3569, 2
        %v3690 = vsel %vm2651, %v3688, %v3689
        %v3691 = vrot.slane %v3570, 2
        %v3692 = vsel %vm2651, %v3689, %v3691
        %v3693 = vrot.slane %v3571, 2
        %v3694 = vrot.slane %v3572, 2
        %v3695 = vsel %vm2651, %v3693, %v3694
        %v3696 = vrot.slane %v3573, 2
        %v3697 = vsel %vm2651, %v3694, %v3696
        %v3698 = vrot.slane %v3574, 2
        %v3699 = vrot.slane %v3575, 2
        %v3700 = vsel %vm2651, %v3698, %v3699
        %v3701 = vrot.slane %v3576, 2
        %v3702 = vsel %vm2651, %v3699, %v3701
        %v3703 = vrot.slane %v3577, 2
        %v3704 = vrot.slane %v3578, 2
        %v3705 = vsel %vm2651, %v3703, %v3704
        %v3706 = vrot.slane %v3579, 2
        %v3707 = vsel %vm2651, %v3704, %v3706
        %v3740 = vadd.f32 %v3496, %v3630
        %v3741 = vadd.f32 %v3497, %v3632
        %v3742 = vadd.f32 %v3498, %v3635
        %v3743 = vadd.f32 %v3499, %v3637
        %v3744 = vadd.f32 %v3500, %v3640
        %v3745 = vadd.f32 %v3501, %v3642
        %v3746 = vadd.f32 %v3502, %v3645
        %v3747 = vadd.f32 %v3503, %v3647
        %v3748 = vadd.f32 %v3504, %v3650
        %v3749 = vadd.f32 %v3505, %v3652
        %v3750 = vadd.f32 %v3506, %v3655
        %v3751 = vadd.f32 %v3507, %v3657
        %v3752 = vadd.f32 %v3508, %v3660
        %v3753 = vadd.f32 %v3509, %v3662
        %v3754 = vadd.f32 %v3510, %v3665
        %v3755 = vadd.f32 %v3511, %v3667
        %v3756 = vadd.f32 %v3512, %v3670
        %v3757 = vadd.f32 %v3513, %v3672
        %v3758 = vadd.f32 %v3514, %v3675
        %v3759 = vadd.f32 %v3515, %v3677
        %v3760 = vadd.f32 %v3516, %v3680
        %v3761 = vadd.f32 %v3517, %v3682
        %v3762 = vadd.f32 %v3518, %v3685
        %v3763 = vadd.f32 %v3519, %v3687
        %v3764 = vadd.f32 %v3520, %v3690
        %v3765 = vadd.f32 %v3521, %v3692
        %v3766 = vadd.f32 %v3522, %v3695
        %v3767 = vadd.f32 %v3523, %v3697
        %v3768 = vadd.f32 %v3524, %v3700
        %v3769 = vadd.f32 %v3525, %v3702
        %v3770 = vadd.f32 %v3526, %v3705
        %v3771 = vadd.f32 %v3527, %v3707
        %v3772 = vlaneseq
        %v3773 = vshrl.u32 %v3772, 7
        %v3774 = vsub.s32 2, %v3773
        %v3775 = vrot.slane %v364, %v3774
        %v3776 = vmul.f32 %v308, %v3775
        %v3777 = vmul.f32 %v309, %v3775
        %v3778 = vmul.f32 %v310, %v3775
        %v3779 = vmul.f32 %v311, %v3775
        %v3780 = vmul.f32 %v312, %v3775
        %v3781 = vmul.f32 %v313, %v3775
        %v3782 = vmul.f32 %v314, %v3775
        %v3783 = vmul.f32 %v315, %v3775
        %v3784 = vmul.f32 %v316, %v3775
        %v3785 = vmul.f32 %v317, %v3775
        %v3786 = vmul.f32 %v318, %v3775
        %v3787 = vmul.f32 %v319, %v3775
        %v3788 = vmul.f32 %v320, %v3775
        %v3789 = vmul.f32 %v321, %v3775
        %v3790 = vmul.f32 %v322, %v3775
        %v3791 = vmul.f32 %v323, %v3775
        %v3792 = vmul.f32 %v324, %v3775
        %v3793 = vmul.f32 %v325, %v3775
        %v3794 = vmul.f32 %v326, %v3775
        %v3795 = vmul.f32 %v327, %v3775
        %v3796 = vmul.f32 %v328, %v3775
        %v3797 = vmul.f32 %v329, %v3775
        %v3798 = vmul.f32 %v330, %v3775
        %v3799 = vmul.f32 %v331, %v3775
        %v3800 = vmul.f32 %v332, %v3775
        %v3801 = vmul.f32 %v333, %v3775
        %v3802 = vmul.f32 %v334, %v3775
        %v3803 = vmul.f32 %v335, %v3775
        %v3804 = vmul.f32 %v336, %v3775
        %v3805 = vmul.f32 %v337, %v3775
        %v3806 = vmul.f32 %v338, %v3775
        %v3807 = vmul.f32 %v339, %v3775
        %v3808 = vmul.f32 %v340, %v3775
        %v3809 = vmul.f32 %v341, %v3775
        %v3810 = vmul.f32 %v342, %v3775
        %v3811 = vmul.f32 %v343, %v3775
        %v3812 = vmul.f32 %v344, %v3775
        %v3813 = vmul.f32 %v345, %v3775
        %v3814 = vmul.f32 %v346, %v3775
        %v3815 = vmul.f32 %v347, %v3775
        %v3816 = vmul.f32 %v348, %v3775
        %v3817 = vmul.f32 %v349, %v3775
        %v3818 = vmul.f32 %v350, %v3775
        %v3819 = vmul.f32 %v351, %v3775
        %v3820 = vmul.f32 %v352, %v3775
        %v3821 = vmul.f32 %v353, %v3775
        %v3822 = vmul.f32 %v354, %v3775
        %v3823 = vmul.f32 %v355, %v3775
        %v3872 = vrot.slane %v3776, 2
        %v3873 = vrot.slane %v3777, 2
        %v3874 = vsel %vm2651, %v3872, %v3873
        %v3875 = vrot.slane %v3778, 2
        %v3876 = vsel %vm2651, %v3873, %v3875
        %v3877 = vrot.slane %v3779, 2
        %v3878 = vrot.slane %v3780, 2
        %v3879 = vsel %vm2651, %v3877, %v3878
        %v3880 = vrot.slane %v3781, 2
        %v3881 = vsel %vm2651, %v3878, %v3880
        %v3882 = vrot.slane %v3782, 2
        %v3883 = vrot.slane %v3783, 2
        %v3884 = vsel %vm2651, %v3882, %v3883
        %v3885 = vrot.slane %v3784, 2
        %v3886 = vsel %vm2651, %v3883, %v3885
        %v3887 = vrot.slane %v3785, 2
        %v3888 = vrot.slane %v3786, 2
        %v3889 = vsel %vm2651, %v3887, %v3888
        %v3890 = vrot.slane %v3787, 2
        %v3891 = vsel %vm2651, %v3888, %v3890
        %v3892 = vrot.slane %v3788, 2
        %v3893 = vrot.slane %v3789, 2
        %v3894 = vsel %vm2651, %v3892, %v3893
        %v3895 = vrot.slane %v3790, 2
        %v3896 = vsel %vm2651, %v3893, %v3895
        %v3897 = vrot.slane %v3791, 2
        %v3898 = vrot.slane %v3792, 2
        %v3899 = vsel %vm2651, %v3897, %v3898
        %v3900 = vrot.slane %v3793, 2
        %v3901 = vsel %vm2651, %v3898, %v3900
        %v3902 = vrot.slane %v3794, 2
        %v3903 = vrot.slane %v3795, 2
        %v3904 = vsel %vm2651, %v3902, %v3903
        %v3905 = vrot.slane %v3796, 2
        %v3906 = vsel %vm2651, %v3903, %v3905
        %v3907 = vrot.slane %v3797, 2
        %v3908 = vrot.slane %v3798, 2
        %v3909 = vsel %vm2651, %v3907, %v3908
        %v3910 = vrot.slane %v3799, 2
        %v3911 = vsel %vm2651, %v3908, %v3910
        %v3912 = vrot.slane %v3800, 2
        %v3913 = vrot.slane %v3801, 2
        %v3914 = vsel %vm2651, %v3912, %v3913
        %v3915 = vrot.slane %v3802, 2
        %v3916 = vsel %vm2651, %v3913, %v3915
        %v3917 = vrot.slane %v3803, 2
        %v3918 = vrot.slane %v3804, 2
        %v3919 = vsel %vm2651, %v3917, %v3918
        %v3920 = vrot.slane %v3805, 2
        %v3921 = vsel %vm2651, %v3918, %v3920
        %v3922 = vrot.slane %v3806, 2
        %v3923 = vrot.slane %v3807, 2
        %v3924 = vsel %vm2651, %v3922, %v3923
        %v3925 = vrot.slane %v3808, 2
        %v3926 = vsel %vm2651, %v3923, %v3925
        %v3927 = vrot.slane %v3809, 2
        %v3928 = vrot.slane %v3810, 2
        %v3929 = vsel %vm2651, %v3927, %v3928
        %v3930 = vrot.slane %v3811, 2
        %v3931 = vsel %vm2651, %v3928, %v3930
        %v3932 = vrot.slane %v3812, 2
        %v3933 = vrot.slane %v3813, 2
        %v3934 = vsel %vm2651, %v3932, %v3933
        %v3935 = vrot.slane %v3814, 2
        %v3936 = vsel %vm2651, %v3933, %v3935
        %v3937 = vrot.slane %v3815, 2
        %v3938 = vrot.slane %v3816, 2
        %v3939 = vsel %vm2651, %v3937, %v3938
        %v3940 = vrot.slane %v3817, 2
        %v3941 = vsel %vm2651, %v3938, %v3940
        %v3942 = vrot.slane %v3818, 2
        %v3943 = vrot.slane %v3819, 2
        %v3944 = vsel %vm2651, %v3942, %v3943
        %v3945 = vrot.slane %v3820, 2
        %v3946 = vsel %vm2651, %v3943, %v3945
        %v3947 = vrot.slane %v3821, 2
        %v3948 = vrot.slane %v3822, 2
        %v3949 = vsel %vm2651, %v3947, %v3948
        %v3950 = vrot.slane %v3823, 2
        %v3951 = vsel %vm2651, %v3948, %v3950
        %v3984 = vadd.f32 %v3740, %v3874
        %v3985 = vadd.f32 %v3741, %v3876
        %v3986 = vadd.f32 %v3742, %v3879
        %v3987 = vadd.f32 %v3743, %v3881
        %v3988 = vadd.f32 %v3744, %v3884
        %v3989 = vadd.f32 %v3745, %v3886
        %v3990 = vadd.f32 %v3746, %v3889
        %v3991 = vadd.f32 %v3747, %v3891
        %v3992 = vadd.f32 %v3748, %v3894
        %v3993 = vadd.f32 %v3749, %v3896
        %v3994 = vadd.f32 %v3750, %v3899
        %v3995 = vadd.f32 %v3751, %v3901
        %v3996 = vadd.f32 %v3752, %v3904
        %v3997 = vadd.f32 %v3753, %v3906
        %v3998 = vadd.f32 %v3754, %v3909
        %v3999 = vadd.f32 %v3755, %v3911
        %v4000 = vadd.f32 %v3756, %v3914
        %v4001 = vadd.f32 %v3757, %v3916
        %v4002 = vadd.f32 %v3758, %v3919
        %v4003 = vadd.f32 %v3759, %v3921
        %v4004 = vadd.f32 %v3760, %v3924
        %v4005 = vadd.f32 %v3761, %v3926
        %v4006 = vadd.f32 %v3762, %v3929
        %v4007 = vadd.f32 %v3763, %v3931
        %v4008 = vadd.f32 %v3764, %v3934
        %v4009 = vadd.f32 %v3765, %v3936
        %v4010 = vadd.f32 %v3766, %v3939
        %v4011 = vadd.f32 %v3767, %v3941
        %v4012 = vadd.f32 %v3768, %v3944
        %v4013 = vadd.f32 %v3769, %v3946
        %v4014 = vadd.f32 %v3770, %v3949
        %v4015 = vadd.f32 %v3771, %v3951
        %v4016 = vlaneseq
        %v4017 = vshrl.u32 %v4016, 7
        %v4018 = vsub.s32 2, %v4017
        %v4019 = vrot.slane %v365, %v4018
        %v4020 = vmul.f32 %v311, %v4019
        %v4021 = vmul.f32 %v312, %v4019
        %v4022 = vmul.f32 %v313, %v4019
        %v4023 = vmul.f32 %v314, %v4019
        %v4024 = vmul.f32 %v315, %v4019
        %v4025 = vmul.f32 %v316, %v4019
        %v4026 = vmul.f32 %v317, %v4019
        %v4027 = vmul.f32 %v318, %v4019
        %v4028 = vmul.f32 %v319, %v4019
        %v4029 = vmul.f32 %v320, %v4019
        %v4030 = vmul.f32 %v321, %v4019
        %v4031 = vmul.f32 %v322, %v4019
        %v4032 = vmul.f32 %v323, %v4019
        %v4033 = vmul.f32 %v324, %v4019
        %v4034 = vmul.f32 %v325, %v4019
        %v4035 = vmul.f32 %v326, %v4019
        %v4036 = vmul.f32 %v327, %v4019
        %v4037 = vmul.f32 %v328, %v4019
        %v4038 = vmul.f32 %v329, %v4019
        %v4039 = vmul.f32 %v330, %v4019
        %v4040 = vmul.f32 %v331, %v4019
        %v4041 = vmul.f32 %v332, %v4019
        %v4042 = vmul.f32 %v333, %v4019
        %v4043 = vmul.f32 %v334, %v4019
        %v4044 = vmul.f32 %v335, %v4019
        %v4045 = vmul.f32 %v336, %v4019
        %v4046 = vmul.f32 %v337, %v4019
        %v4047 = vmul.f32 %v338, %v4019
        %v4048 = vmul.f32 %v339, %v4019
        %v4049 = vmul.f32 %v340, %v4019
        %v4050 = vmul.f32 %v341, %v4019
        %v4051 = vmul.f32 %v342, %v4019
        %v4052 = vmul.f32 %v343, %v4019
        %v4053 = vmul.f32 %v344, %v4019
        %v4054 = vmul.f32 %v345, %v4019
        %v4055 = vmul.f32 %v346, %v4019
        %v4056 = vmul.f32 %v347, %v4019
        %v4057 = vmul.f32 %v348, %v4019
        %v4058 = vmul.f32 %v349, %v4019
        %v4059 = vmul.f32 %v350, %v4019
        %v4060 = vmul.f32 %v351, %v4019
        %v4061 = vmul.f32 %v352, %v4019
        %v4062 = vmul.f32 %v353, %v4019
        %v4063 = vmul.f32 %v354, %v4019
        %v4064 = vmul.f32 %v355, %v4019
        %v4065 = vmul.f32 %v356, %v4019
        %v4066 = vmul.f32 %v357, %v4019
        %v4067 = vmul.f32 %v358, %v4019
        %v4116 = vrot.slane %v4020, 2
        %v4117 = vrot.slane %v4021, 2
        %v4118 = vsel %vm2651, %v4116, %v4117
        %v4119 = vrot.slane %v4022, 2
        %v4120 = vsel %vm2651, %v4117, %v4119
        %v4121 = vrot.slane %v4023, 2
        %v4122 = vrot.slane %v4024, 2
        %v4123 = vsel %vm2651, %v4121, %v4122
        %v4124 = vrot.slane %v4025, 2
        %v4125 = vsel %vm2651, %v4122, %v4124
        %v4126 = vrot.slane %v4026, 2
        %v4127 = vrot.slane %v4027, 2
        %v4128 = vsel %vm2651, %v4126, %v4127
        %v4129 = vrot.slane %v4028, 2
        %v4130 = vsel %vm2651, %v4127, %v4129
        %v4131 = vrot.slane %v4029, 2
        %v4132 = vrot.slane %v4030, 2
        %v4133 = vsel %vm2651, %v4131, %v4132
        %v4134 = vrot.slane %v4031, 2
        %v4135 = vsel %vm2651, %v4132, %v4134
        %v4136 = vrot.slane %v4032, 2
        %v4137 = vrot.slane %v4033, 2
        %v4138 = vsel %vm2651, %v4136, %v4137
        %v4139 = vrot.slane %v4034, 2
        %v4140 = vsel %vm2651, %v4137, %v4139
        %v4141 = vrot.slane %v4035, 2
        %v4142 = vrot.slane %v4036, 2
        %v4143 = vsel %vm2651, %v4141, %v4142
        %v4144 = vrot.slane %v4037, 2
        %v4145 = vsel %vm2651, %v4142, %v4144
        %v4146 = vrot.slane %v4038, 2
        %v4147 = vrot.slane %v4039, 2
        %v4148 = vsel %vm2651, %v4146, %v4147
        %v4149 = vrot.slane %v4040, 2
        %v4150 = vsel %vm2651, %v4147, %v4149
        %v4151 = vrot.slane %v4041, 2
        %v4152 = vrot.slane %v4042, 2
        %v4153 = vsel %vm2651, %v4151, %v4152
        %v4154 = vrot.slane %v4043, 2
        %v4155 = vsel %vm2651, %v4152, %v4154
        %v4156 = vrot.slane %v4044, 2
        %v4157 = vrot.slane %v4045, 2
        %v4158 = vsel %vm2651, %v4156, %v4157
        %v4159 = vrot.slane %v4046, 2
        %v4160 = vsel %vm2651, %v4157, %v4159
        %v4161 = vrot.slane %v4047, 2
        %v4162 = vrot.slane %v4048, 2
        %v4163 = vsel %vm2651, %v4161, %v4162
        %v4164 = vrot.slane %v4049, 2
        %v4165 = vsel %vm2651, %v4162, %v4164
        %v4166 = vrot.slane %v4050, 2
        %v4167 = vrot.slane %v4051, 2
        %v4168 = vsel %vm2651, %v4166, %v4167
        %v4169 = vrot.slane %v4052, 2
        %v4170 = vsel %vm2651, %v4167, %v4169
        %v4171 = vrot.slane %v4053, 2
        %v4172 = vrot.slane %v4054, 2
        %v4173 = vsel %vm2651, %v4171, %v4172
        %v4174 = vrot.slane %v4055, 2
        %v4175 = vsel %vm2651, %v4172, %v4174
        %v4176 = vrot.slane %v4056, 2
        %v4177 = vrot.slane %v4057, 2
        %v4178 = vsel %vm2651, %v4176, %v4177
        %v4179 = vrot.slane %v4058, 2
        %v4180 = vsel %vm2651, %v4177, %v4179
        %v4181 = vrot.slane %v4059, 2
        %v4182 = vrot.slane %v4060, 2
        %v4183 = vsel %vm2651, %v4181, %v4182
        %v4184 = vrot.slane %v4061, 2
        %v4185 = vsel %vm2651, %v4182, %v4184
        %v4186 = vrot.slane %v4062, 2
        %v4187 = vrot.slane %v4063, 2
        %v4188 = vsel %vm2651, %v4186, %v4187
        %v4189 = vrot.slane %v4064, 2
        %v4190 = vsel %vm2651, %v4187, %v4189
        %v4191 = vrot.slane %v4065, 2
        %v4192 = vrot.slane %v4066, 2
        %v4193 = vsel %vm2651, %v4191, %v4192
        %v4194 = vrot.slane %v4067, 2
        %v4195 = vsel %vm2651, %v4192, %v4194
        %v4228 = vadd.f32 %v3984, %v4118
        %v4229 = vadd.f32 %v3985, %v4120
        %v4230 = vadd.f32 %v3986, %v4123
        %v4231 = vadd.f32 %v3987, %v4125
        %v4232 = vadd.f32 %v3988, %v4128
        %v4233 = vadd.f32 %v3989, %v4130
        %v4234 = vadd.f32 %v3990, %v4133
        %v4235 = vadd.f32 %v3991, %v4135
        %v4236 = vadd.f32 %v3992, %v4138
        %v4237 = vadd.f32 %v3993, %v4140
        %v4238 = vadd.f32 %v3994, %v4143
        %v4239 = vadd.f32 %v3995, %v4145
        %v4240 = vadd.f32 %v3996, %v4148
        %v4241 = vadd.f32 %v3997, %v4150
        %v4242 = vadd.f32 %v3998, %v4153
        %v4243 = vadd.f32 %v3999, %v4155
        %v4244 = vadd.f32 %v4000, %v4158
        %v4245 = vadd.f32 %v4001, %v4160
        %v4246 = vadd.f32 %v4002, %v4163
        %v4247 = vadd.f32 %v4003, %v4165
        %v4248 = vadd.f32 %v4004, %v4168
        %v4249 = vadd.f32 %v4005, %v4170
        %v4250 = vadd.f32 %v4006, %v4173
        %v4251 = vadd.f32 %v4007, %v4175
        %v4252 = vadd.f32 %v4008, %v4178
        %v4253 = vadd.f32 %v4009, %v4180
        %v4254 = vadd.f32 %v4010, %v4183
        %v4255 = vadd.f32 %v4011, %v4185
        %v4256 = vadd.f32 %v4012, %v4188
        %v4257 = vadd.f32 %v4013, %v4190
        %v4258 = vadd.f32 %v4014, %v4193
        %v4259 = vadd.f32 %v4015, %v4195
        %v4260 = vlaneseq
        %v4261 = vshrl.u32 %v4260, 7
        %v4262 = vsub.s32 3, %v4261
        %v4263 = vrot.slane %v359, %v4262
        %v4264 = vmul.f32 %v293, %v4263
        %v4265 = vmul.f32 %v294, %v4263
        %v4266 = vmul.f32 %v295, %v4263
        %v4267 = vmul.f32 %v296, %v4263
        %v4268 = vmul.f32 %v297, %v4263
        %v4269 = vmul.f32 %v298, %v4263
        %v4270 = vmul.f32 %v299, %v4263
        %v4271 = vmul.f32 %v300, %v4263
        %v4272 = vmul.f32 %v301, %v4263
        %v4273 = vmul.f32 %v302, %v4263
        %v4274 = vmul.f32 %v303, %v4263
        %v4275 = vmul.f32 %v304, %v4263
        %v4276 = vmul.f32 %v305, %v4263
        %v4277 = vmul.f32 %v306, %v4263
        %v4278 = vmul.f32 %v307, %v4263
        %v4279 = vmul.f32 %v308, %v4263
        %v4280 = vmul.f32 %v309, %v4263
        %v4281 = vmul.f32 %v310, %v4263
        %v4282 = vmul.f32 %v311, %v4263
        %v4283 = vmul.f32 %v312, %v4263
        %v4284 = vmul.f32 %v313, %v4263
        %v4285 = vmul.f32 %v314, %v4263
        %v4286 = vmul.f32 %v315, %v4263
        %v4287 = vmul.f32 %v316, %v4263
        %v4288 = vmul.f32 %v317, %v4263
        %v4289 = vmul.f32 %v318, %v4263
        %v4290 = vmul.f32 %v319, %v4263
        %v4291 = vmul.f32 %v320, %v4263
        %v4292 = vmul.f32 %v321, %v4263
        %v4293 = vmul.f32 %v322, %v4263
        %v4294 = vmul.f32 %v323, %v4263
        %v4295 = vmul.f32 %v324, %v4263
        %v4296 = vmul.f32 %v325, %v4263
        %v4297 = vmul.f32 %v326, %v4263
        %v4298 = vmul.f32 %v327, %v4263
        %v4299 = vmul.f32 %v328, %v4263
        %v4300 = vmul.f32 %v329, %v4263
        %v4301 = vmul.f32 %v330, %v4263
        %v4302 = vmul.f32 %v331, %v4263
        %v4303 = vmul.f32 %v332, %v4263
        %v4304 = vmul.f32 %v333, %v4263
        %v4305 = vmul.f32 %v334, %v4263
        %v4306 = vmul.f32 %v335, %v4263
        %v4307 = vmul.f32 %v336, %v4263
        %v4308 = vmul.f32 %v337, %v4263
        %v4309 = vmul.f32 %v338, %v4263
        %v4310 = vmul.f32 %v339, %v4263
        %v4311 = vmul.f32 %v340, %v4263
        %vm4360 = vcmask 1044480
        %v4361 = vrot.slane %v4264, 3
        %v4362 = vrot.slane %v4265, 3
        %v4363 = vsel %vm4360, %v4361, %v4362
        %v4364 = vrot.slane %v4266, 3
        %v4365 = vsel %vm4360, %v4362, %v4364
        %v4366 = vrot.slane %v4267, 3
        %v4367 = vrot.slane %v4268, 3
        %v4368 = vsel %vm4360, %v4366, %v4367
        %v4369 = vrot.slane %v4269, 3
        %v4370 = vsel %vm4360, %v4367, %v4369
        %v4371 = vrot.slane %v4270, 3
        %v4372 = vrot.slane %v4271, 3
        %v4373 = vsel %vm4360, %v4371, %v4372
        %v4374 = vrot.slane %v4272, 3
        %v4375 = vsel %vm4360, %v4372, %v4374
        %v4376 = vrot.slane %v4273, 3
        %v4377 = vrot.slane %v4274, 3
        %v4378 = vsel %vm4360, %v4376, %v4377
        %v4379 = vrot.slane %v4275, 3
        %v4380 = vsel %vm4360, %v4377, %v4379
        %v4381 = vrot.slane %v4276, 3
        %v4382 = vrot.slane %v4277, 3
        %v4383 = vsel %vm4360, %v4381, %v4382
        %v4384 = vrot.slane %v4278, 3
        %v4385 = vsel %vm4360, %v4382, %v4384
        %v4386 = vrot.slane %v4279, 3
        %v4387 = vrot.slane %v4280, 3
        %v4388 = vsel %vm4360, %v4386, %v4387
        %v4389 = vrot.slane %v4281, 3
        %v4390 = vsel %vm4360, %v4387, %v4389
        %v4391 = vrot.slane %v4282, 3
        %v4392 = vrot.slane %v4283, 3
        %v4393 = vsel %vm4360, %v4391, %v4392
        %v4394 = vrot.slane %v4284, 3
        %v4395 = vsel %vm4360, %v4392, %v4394
        %v4396 = vrot.slane %v4285, 3
        %v4397 = vrot.slane %v4286, 3
        %v4398 = vsel %vm4360, %v4396, %v4397
        %v4399 = vrot.slane %v4287, 3
        %v4400 = vsel %vm4360, %v4397, %v4399
        %v4401 = vrot.slane %v4288, 3
        %v4402 = vrot.slane %v4289, 3
        %v4403 = vsel %vm4360, %v4401, %v4402
        %v4404 = vrot.slane %v4290, 3
        %v4405 = vsel %vm4360, %v4402, %v4404
        %v4406 = vrot.slane %v4291, 3
        %v4407 = vrot.slane %v4292, 3
        %v4408 = vsel %vm4360, %v4406, %v4407
        %v4409 = vrot.slane %v4293, 3
        %v4410 = vsel %vm4360, %v4407, %v4409
        %v4411 = vrot.slane %v4294, 3
        %v4412 = vrot.slane %v4295, 3
        %v4413 = vsel %vm4360, %v4411, %v4412
        %v4414 = vrot.slane %v4296, 3
        %v4415 = vsel %vm4360, %v4412, %v4414
        %v4416 = vrot.slane %v4297, 3
        %v4417 = vrot.slane %v4298, 3
        %v4418 = vsel %vm4360, %v4416, %v4417
        %v4419 = vrot.slane %v4299, 3
        %v4420 = vsel %vm4360, %v4417, %v4419
        %v4421 = vrot.slane %v4300, 3
        %v4422 = vrot.slane %v4301, 3
        %v4423 = vsel %vm4360, %v4421, %v4422
        %v4424 = vrot.slane %v4302, 3
        %v4425 = vsel %vm4360, %v4422, %v4424
        %v4426 = vrot.slane %v4303, 3
        %v4427 = vrot.slane %v4304, 3
        %v4428 = vsel %vm4360, %v4426, %v4427
        %v4429 = vrot.slane %v4305, 3
        %v4430 = vsel %vm4360, %v4427, %v4429
        %v4431 = vrot.slane %v4306, 3
        %v4432 = vrot.slane %v4307, 3
        %v4433 = vsel %vm4360, %v4431, %v4432
        %v4434 = vrot.slane %v4308, 3
        %v4435 = vsel %vm4360, %v4432, %v4434
        %v4436 = vrot.slane %v4309, 3
        %v4437 = vrot.slane %v4310, 3
        %v4438 = vsel %vm4360, %v4436, %v4437
        %v4439 = vrot.slane %v4311, 3
        %v4440 = vsel %vm4360, %v4437, %v4439
        %v4473 = vadd.f32 %v4228, %v4363
        %v4474 = vadd.f32 %v4229, %v4365
        %v4475 = vadd.f32 %v4230, %v4368
        %v4476 = vadd.f32 %v4231, %v4370
        %v4477 = vadd.f32 %v4232, %v4373
        %v4478 = vadd.f32 %v4233, %v4375
        %v4479 = vadd.f32 %v4234, %v4378
        %v4480 = vadd.f32 %v4235, %v4380
        %v4481 = vadd.f32 %v4236, %v4383
        %v4482 = vadd.f32 %v4237, %v4385
        %v4483 = vadd.f32 %v4238, %v4388
        %v4484 = vadd.f32 %v4239, %v4390
        %v4485 = vadd.f32 %v4240, %v4393
        %v4486 = vadd.f32 %v4241, %v4395
        %v4487 = vadd.f32 %v4242, %v4398
        %v4488 = vadd.f32 %v4243, %v4400
        %v4489 = vadd.f32 %v4244, %v4403
        %v4490 = vadd.f32 %v4245, %v4405
        %v4491 = vadd.f32 %v4246, %v4408
        %v4492 = vadd.f32 %v4247, %v4410
        %v4493 = vadd.f32 %v4248, %v4413
        %v4494 = vadd.f32 %v4249, %v4415
        %v4495 = vadd.f32 %v4250, %v4418
        %v4496 = vadd.f32 %v4251, %v4420
        %v4497 = vadd.f32 %v4252, %v4423
        %v4498 = vadd.f32 %v4253, %v4425
        %v4499 = vadd.f32 %v4254, %v4428
        %v4500 = vadd.f32 %v4255, %v4430
        %v4501 = vadd.f32 %v4256, %v4433
        %v4502 = vadd.f32 %v4257, %v4435
        %v4503 = vadd.f32 %v4258, %v4438
        %v4504 = vadd.f32 %v4259, %v4440
        %v4505 = vlaneseq
        %v4506 = vshrl.u32 %v4505, 7
        %v4507 = vsub.s32 3, %v4506
        %v4508 = vrot.slane %v360, %v4507
        %v4509 = vmul.f32 %v296, %v4508
        %v4510 = vmul.f32 %v297, %v4508
        %v4511 = vmul.f32 %v298, %v4508
        %v4512 = vmul.f32 %v299, %v4508
        %v4513 = vmul.f32 %v300, %v4508
        %v4514 = vmul.f32 %v301, %v4508
        %v4515 = vmul.f32 %v302, %v4508
        %v4516 = vmul.f32 %v303, %v4508
        %v4517 = vmul.f32 %v304, %v4508
        %v4518 = vmul.f32 %v305, %v4508
        %v4519 = vmul.f32 %v306, %v4508
        %v4520 = vmul.f32 %v307, %v4508
        %v4521 = vmul.f32 %v308, %v4508
        %v4522 = vmul.f32 %v309, %v4508
        %v4523 = vmul.f32 %v310, %v4508
        %v4524 = vmul.f32 %v311, %v4508
        %v4525 = vmul.f32 %v312, %v4508
        %v4526 = vmul.f32 %v313, %v4508
        %v4527 = vmul.f32 %v314, %v4508
        %v4528 = vmul.f32 %v315, %v4508
        %v4529 = vmul.f32 %v316, %v4508
        %v4530 = vmul.f32 %v317, %v4508
        %v4531 = vmul.f32 %v318, %v4508
        %v4532 = vmul.f32 %v319, %v4508
        %v4533 = vmul.f32 %v320, %v4508
        %v4534 = vmul.f32 %v321, %v4508
        %v4535 = vmul.f32 %v322, %v4508
        %v4536 = vmul.f32 %v323, %v4508
        %v4537 = vmul.f32 %v324, %v4508
        %v4538 = vmul.f32 %v325, %v4508
        %v4539 = vmul.f32 %v326, %v4508
        %v4540 = vmul.f32 %v327, %v4508
        %v4541 = vmul.f32 %v328, %v4508
        %v4542 = vmul.f32 %v329, %v4508
        %v4543 = vmul.f32 %v330, %v4508
        %v4544 = vmul.f32 %v331, %v4508
        %v4545 = vmul.f32 %v332, %v4508
        %v4546 = vmul.f32 %v333, %v4508
        %v4547 = vmul.f32 %v334, %v4508
        %v4548 = vmul.f32 %v335, %v4508
        %v4549 = vmul.f32 %v336, %v4508
        %v4550 = vmul.f32 %v337, %v4508
        %v4551 = vmul.f32 %v338, %v4508
        %v4552 = vmul.f32 %v339, %v4508
        %v4553 = vmul.f32 %v340, %v4508
        %v4554 = vmul.f32 %v341, %v4508
        %v4555 = vmul.f32 %v342, %v4508
        %v4556 = vmul.f32 %v343, %v4508
        %v4605 = vrot.slane %v4509, 3
        %v4606 = vrot.slane %v4510, 3
        %v4607 = vsel %vm4360, %v4605, %v4606
        %v4608 = vrot.slane %v4511, 3
        %v4609 = vsel %vm4360, %v4606, %v4608
        %v4610 = vrot.slane %v4512, 3
        %v4611 = vrot.slane %v4513, 3
        %v4612 = vsel %vm4360, %v4610, %v4611
        %v4613 = vrot.slane %v4514, 3
        %v4614 = vsel %vm4360, %v4611, %v4613
        %v4615 = vrot.slane %v4515, 3
        %v4616 = vrot.slane %v4516, 3
        %v4617 = vsel %vm4360, %v4615, %v4616
        %v4618 = vrot.slane %v4517, 3
        %v4619 = vsel %vm4360, %v4616, %v4618
        %v4620 = vrot.slane %v4518, 3
        %v4621 = vrot.slane %v4519, 3
        %v4622 = vsel %vm4360, %v4620, %v4621
        %v4623 = vrot.slane %v4520, 3
        %v4624 = vsel %vm4360, %v4621, %v4623
        %v4625 = vrot.slane %v4521, 3
        %v4626 = vrot.slane %v4522, 3
        %v4627 = vsel %vm4360, %v4625, %v4626
        %v4628 = vrot.slane %v4523, 3
        %v4629 = vsel %vm4360, %v4626, %v4628
        %v4630 = vrot.slane %v4524, 3
        %v4631 = vrot.slane %v4525, 3
        %v4632 = vsel %vm4360, %v4630, %v4631
        %v4633 = vrot.slane %v4526, 3
        %v4634 = vsel %vm4360, %v4631, %v4633
        %v4635 = vrot.slane %v4527, 3
        %v4636 = vrot.slane %v4528, 3
        %v4637 = vsel %vm4360, %v4635, %v4636
        %v4638 = vrot.slane %v4529, 3
        %v4639 = vsel %vm4360, %v4636, %v4638
        %v4640 = vrot.slane %v4530, 3
        %v4641 = vrot.slane %v4531, 3
        %v4642 = vsel %vm4360, %v4640, %v4641
        %v4643 = vrot.slane %v4532, 3
        %v4644 = vsel %vm4360, %v4641, %v4643
        %v4645 = vrot.slane %v4533, 3
        %v4646 = vrot.slane %v4534, 3
        %v4647 = vsel %vm4360, %v4645, %v4646
        %v4648 = vrot.slane %v4535, 3
        %v4649 = vsel %vm4360, %v4646, %v4648
        %v4650 = vrot.slane %v4536, 3
        %v4651 = vrot.slane %v4537, 3
        %v4652 = vsel %vm4360, %v4650, %v4651
        %v4653 = vrot.slane %v4538, 3
        %v4654 = vsel %vm4360, %v4651, %v4653
        %v4655 = vrot.slane %v4539, 3
        %v4656 = vrot.slane %v4540, 3
        %v4657 = vsel %vm4360, %v4655, %v4656
        %v4658 = vrot.slane %v4541, 3
        %v4659 = vsel %vm4360, %v4656, %v4658
        %v4660 = vrot.slane %v4542, 3
        %v4661 = vrot.slane %v4543, 3
        %v4662 = vsel %vm4360, %v4660, %v4661
        %v4663 = vrot.slane %v4544, 3
        %v4664 = vsel %vm4360, %v4661, %v4663
        %v4665 = vrot.slane %v4545, 3
        %v4666 = vrot.slane %v4546, 3
        %v4667 = vsel %vm4360, %v4665, %v4666
        %v4668 = vrot.slane %v4547, 3
        %v4669 = vsel %vm4360, %v4666, %v4668
        %v4670 = vrot.slane %v4548, 3
        %v4671 = vrot.slane %v4549, 3
        %v4672 = vsel %vm4360, %v4670, %v4671
        %v4673 = vrot.slane %v4550, 3
        %v4674 = vsel %vm4360, %v4671, %v4673
        %v4675 = vrot.slane %v4551, 3
        %v4676 = vrot.slane %v4552, 3
        %v4677 = vsel %vm4360, %v4675, %v4676
        %v4678 = vrot.slane %v4553, 3
        %v4679 = vsel %vm4360, %v4676, %v4678
        %v4680 = vrot.slane %v4554, 3
        %v4681 = vrot.slane %v4555, 3
        %v4682 = vsel %vm4360, %v4680, %v4681
        %v4683 = vrot.slane %v4556, 3
        %v4684 = vsel %vm4360, %v4681, %v4683
        %v4717 = vadd.f32 %v4473, %v4607
        %v4718 = vadd.f32 %v4474, %v4609
        %v4719 = vadd.f32 %v4475, %v4612
        %v4720 = vadd.f32 %v4476, %v4614
        %v4721 = vadd.f32 %v4477, %v4617
        %v4722 = vadd.f32 %v4478, %v4619
        %v4723 = vadd.f32 %v4479, %v4622
        %v4724 = vadd.f32 %v4480, %v4624
        %v4725 = vadd.f32 %v4481, %v4627
        %v4726 = vadd.f32 %v4482, %v4629
        %v4727 = vadd.f32 %v4483, %v4632
        %v4728 = vadd.f32 %v4484, %v4634
        %v4729 = vadd.f32 %v4485, %v4637
        %v4730 = vadd.f32 %v4486, %v4639
        %v4731 = vadd.f32 %v4487, %v4642
        %v4732 = vadd.f32 %v4488, %v4644
        %v4733 = vadd.f32 %v4489, %v4647
        %v4734 = vadd.f32 %v4490, %v4649
        %v4735 = vadd.f32 %v4491, %v4652
        %v4736 = vadd.f32 %v4492, %v4654
        %v4737 = vadd.f32 %v4493, %v4657
        %v4738 = vadd.f32 %v4494, %v4659
        %v4739 = vadd.f32 %v4495, %v4662
        %v4740 = vadd.f32 %v4496, %v4664
        %v4741 = vadd.f32 %v4497, %v4667
        %v4742 = vadd.f32 %v4498, %v4669
        %v4743 = vadd.f32 %v4499, %v4672
        %v4744 = vadd.f32 %v4500, %v4674
        %v4745 = vadd.f32 %v4501, %v4677
        %v4746 = vadd.f32 %v4502, %v4679
        %v4747 = vadd.f32 %v4503, %v4682
        %v4748 = vadd.f32 %v4504, %v4684
        %v4749 = vlaneseq
        %v4750 = vshrl.u32 %v4749, 7
        %v4751 = vsub.s32 3, %v4750
        %v4752 = vrot.slane %v361, %v4751
        %v4753 = vmul.f32 %v299, %v4752
        %v4754 = vmul.f32 %v300, %v4752
        %v4755 = vmul.f32 %v301, %v4752
        %v4756 = vmul.f32 %v302, %v4752
        %v4757 = vmul.f32 %v303, %v4752
        %v4758 = vmul.f32 %v304, %v4752
        %v4759 = vmul.f32 %v305, %v4752
        %v4760 = vmul.f32 %v306, %v4752
        %v4761 = vmul.f32 %v307, %v4752
        %v4762 = vmul.f32 %v308, %v4752
        %v4763 = vmul.f32 %v309, %v4752
        %v4764 = vmul.f32 %v310, %v4752
        %v4765 = vmul.f32 %v311, %v4752
        %v4766 = vmul.f32 %v312, %v4752
        %v4767 = vmul.f32 %v313, %v4752
        %v4768 = vmul.f32 %v314, %v4752
        %v4769 = vmul.f32 %v315, %v4752
        %v4770 = vmul.f32 %v316, %v4752
        %v4771 = vmul.f32 %v317, %v4752
        %v4772 = vmul.f32 %v318, %v4752
        %v4773 = vmul.f32 %v319, %v4752
        %v4774 = vmul.f32 %v320, %v4752
        %v4775 = vmul.f32 %v321, %v4752
        %v4776 = vmul.f32 %v322, %v4752
        %v4777 = vmul.f32 %v323, %v4752
        %v4778 = vmul.f32 %v324, %v4752
        %v4779 = vmul.f32 %v325, %v4752
        %v4780 = vmul.f32 %v326, %v4752
        %v4781 = vmul.f32 %v327, %v4752
        %v4782 = vmul.f32 %v328, %v4752
        %v4783 = vmul.f32 %v329, %v4752
        %v4784 = vmul.f32 %v330, %v4752
        %v4785 = vmul.f32 %v331, %v4752
        %v4786 = vmul.f32 %v332, %v4752
        %v4787 = vmul.f32 %v333, %v4752
        %v4788 = vmul.f32 %v334, %v4752
        %v4789 = vmul.f32 %v335, %v4752
        %v4790 = vmul.f32 %v336, %v4752
        %v4791 = vmul.f32 %v337, %v4752
        %v4792 = vmul.f32 %v338, %v4752
        %v4793 = vmul.f32 %v339, %v4752
        %v4794 = vmul.f32 %v340, %v4752
        %v4795 = vmul.f32 %v341, %v4752
        %v4796 = vmul.f32 %v342, %v4752
        %v4797 = vmul.f32 %v343, %v4752
        %v4798 = vmul.f32 %v344, %v4752
        %v4799 = vmul.f32 %v345, %v4752
        %v4800 = vmul.f32 %v346, %v4752
        %v4849 = vrot.slane %v4753, 3
        %v4850 = vrot.slane %v4754, 3
        %v4851 = vsel %vm4360, %v4849, %v4850
        %v4852 = vrot.slane %v4755, 3
        %v4853 = vsel %vm4360, %v4850, %v4852
        %v4854 = vrot.slane %v4756, 3
        %v4855 = vrot.slane %v4757, 3
        %v4856 = vsel %vm4360, %v4854, %v4855
        %v4857 = vrot.slane %v4758, 3
        %v4858 = vsel %vm4360, %v4855, %v4857
        %v4859 = vrot.slane %v4759, 3
        %v4860 = vrot.slane %v4760, 3
        %v4861 = vsel %vm4360, %v4859, %v4860
        %v4862 = vrot.slane %v4761, 3
        %v4863 = vsel %vm4360, %v4860, %v4862
        %v4864 = vrot.slane %v4762, 3
        %v4865 = vrot.slane %v4763, 3
        %v4866 = vsel %vm4360, %v4864, %v4865
        %v4867 = vrot.slane %v4764, 3
        %v4868 = vsel %vm4360, %v4865, %v4867
        %v4869 = vrot.slane %v4765, 3
        %v4870 = vrot.slane %v4766, 3
        %v4871 = vsel %vm4360, %v4869, %v4870
        %v4872 = vrot.slane %v4767, 3
        %v4873 = vsel %vm4360, %v4870, %v4872
        %v4874 = vrot.slane %v4768, 3
        %v4875 = vrot.slane %v4769, 3
        %v4876 = vsel %vm4360, %v4874, %v4875
        %v4877 = vrot.slane %v4770, 3
        %v4878 = vsel %vm4360, %v4875, %v4877
        %v4879 = vrot.slane %v4771, 3
        %v4880 = vrot.slane %v4772, 3
        %v4881 = vsel %vm4360, %v4879, %v4880
        %v4882 = vrot.slane %v4773, 3
        %v4883 = vsel %vm4360, %v4880, %v4882
        %v4884 = vrot.slane %v4774, 3
        %v4885 = vrot.slane %v4775, 3
        %v4886 = vsel %vm4360, %v4884, %v4885
        %v4887 = vrot.slane %v4776, 3
        %v4888 = vsel %vm4360, %v4885, %v4887
        %v4889 = vrot.slane %v4777, 3
        %v4890 = vrot.slane %v4778, 3
        %v4891 = vsel %vm4360, %v4889, %v4890
        %v4892 = vrot.slane %v4779, 3
        %v4893 = vsel %vm4360, %v4890, %v4892
        %v4894 = vrot.slane %v4780, 3
        %v4895 = vrot.slane %v4781, 3
        %v4896 = vsel %vm4360, %v4894, %v4895
        %v4897 = vrot.slane %v4782, 3
        %v4898 = vsel %vm4360, %v4895, %v4897
        %v4899 = vrot.slane %v4783, 3
        %v4900 = vrot.slane %v4784, 3
        %v4901 = vsel %vm4360, %v4899, %v4900
        %v4902 = vrot.slane %v4785, 3
        %v4903 = vsel %vm4360, %v4900, %v4902
        %v4904 = vrot.slane %v4786, 3
        %v4905 = vrot.slane %v4787, 3
        %v4906 = vsel %vm4360, %v4904, %v4905
        %v4907 = vrot.slane %v4788, 3
        %v4908 = vsel %vm4360, %v4905, %v4907
        %v4909 = vrot.slane %v4789, 3
        %v4910 = vrot.slane %v4790, 3
        %v4911 = vsel %vm4360, %v4909, %v4910
        %v4912 = vrot.slane %v4791, 3
        %v4913 = vsel %vm4360, %v4910, %v4912
        %v4914 = vrot.slane %v4792, 3
        %v4915 = vrot.slane %v4793, 3
        %v4916 = vsel %vm4360, %v4914, %v4915
        %v4917 = vrot.slane %v4794, 3
        %v4918 = vsel %vm4360, %v4915, %v4917
        %v4919 = vrot.slane %v4795, 3
        %v4920 = vrot.slane %v4796, 3
        %v4921 = vsel %vm4360, %v4919, %v4920
        %v4922 = vrot.slane %v4797, 3
        %v4923 = vsel %vm4360, %v4920, %v4922
        %v4924 = vrot.slane %v4798, 3
        %v4925 = vrot.slane %v4799, 3
        %v4926 = vsel %vm4360, %v4924, %v4925
        %v4927 = vrot.slane %v4800, 3
        %v4928 = vsel %vm4360, %v4925, %v4927
        %v4961 = vadd.f32 %v4717, %v4851
        %v4962 = vadd.f32 %v4718, %v4853
        %v4963 = vadd.f32 %v4719, %v4856
        %v4964 = vadd.f32 %v4720, %v4858
        %v4965 = vadd.f32 %v4721, %v4861
        %v4966 = vadd.f32 %v4722, %v4863
        %v4967 = vadd.f32 %v4723, %v4866
        %v4968 = vadd.f32 %v4724, %v4868
        %v4969 = vadd.f32 %v4725, %v4871
        %v4970 = vadd.f32 %v4726, %v4873
        %v4971 = vadd.f32 %v4727, %v4876
        %v4972 = vadd.f32 %v4728, %v4878
        %v4973 = vadd.f32 %v4729, %v4881
        %v4974 = vadd.f32 %v4730, %v4883
        %v4975 = vadd.f32 %v4731, %v4886
        %v4976 = vadd.f32 %v4732, %v4888
        %v4977 = vadd.f32 %v4733, %v4891
        %v4978 = vadd.f32 %v4734, %v4893
        %v4979 = vadd.f32 %v4735, %v4896
        %v4980 = vadd.f32 %v4736, %v4898
        %v4981 = vadd.f32 %v4737, %v4901
        %v4982 = vadd.f32 %v4738, %v4903
        %v4983 = vadd.f32 %v4739, %v4906
        %v4984 = vadd.f32 %v4740, %v4908
        %v4985 = vadd.f32 %v4741, %v4911
        %v4986 = vadd.f32 %v4742, %v4913
        %v4987 = vadd.f32 %v4743, %v4916
        %v4988 = vadd.f32 %v4744, %v4918
        %v4989 = vadd.f32 %v4745, %v4921
        %v4990 = vadd.f32 %v4746, %v4923
        %v4991 = vadd.f32 %v4747, %v4926
        %v4992 = vadd.f32 %v4748, %v4928
        %v4993 = vlaneseq
        %v4994 = vshrl.u32 %v4993, 7
        %v4995 = vsub.s32 3, %v4994
        %v4996 = vrot.slane %v362, %v4995
        %v4997 = vmul.f32 %v302, %v4996
        %v4998 = vmul.f32 %v303, %v4996
        %v4999 = vmul.f32 %v304, %v4996
        %v5000 = vmul.f32 %v305, %v4996
        %v5001 = vmul.f32 %v306, %v4996
        %v5002 = vmul.f32 %v307, %v4996
        %v5003 = vmul.f32 %v308, %v4996
        %v5004 = vmul.f32 %v309, %v4996
        %v5005 = vmul.f32 %v310, %v4996
        %v5006 = vmul.f32 %v311, %v4996
        %v5007 = vmul.f32 %v312, %v4996
        %v5008 = vmul.f32 %v313, %v4996
        %v5009 = vmul.f32 %v314, %v4996
        %v5010 = vmul.f32 %v315, %v4996
        %v5011 = vmul.f32 %v316, %v4996
        %v5012 = vmul.f32 %v317, %v4996
        %v5013 = vmul.f32 %v318, %v4996
        %v5014 = vmul.f32 %v319, %v4996
        %v5015 = vmul.f32 %v320, %v4996
        %v5016 = vmul.f32 %v321, %v4996
        %v5017 = vmul.f32 %v322, %v4996
        %v5018 = vmul.f32 %v323, %v4996
        %v5019 = vmul.f32 %v324, %v4996
        %v5020 = vmul.f32 %v325, %v4996
        %v5021 = vmul.f32 %v326, %v4996
        %v5022 = vmul.f32 %v327, %v4996
        %v5023 = vmul.f32 %v328, %v4996
        %v5024 = vmul.f32 %v329, %v4996
        %v5025 = vmul.f32 %v330, %v4996
        %v5026 = vmul.f32 %v331, %v4996
        %v5027 = vmul.f32 %v332, %v4996
        %v5028 = vmul.f32 %v333, %v4996
        %v5029 = vmul.f32 %v334, %v4996
        %v5030 = vmul.f32 %v335, %v4996
        %v5031 = vmul.f32 %v336, %v4996
        %v5032 = vmul.f32 %v337, %v4996
        %v5033 = vmul.f32 %v338, %v4996
        %v5034 = vmul.f32 %v339, %v4996
        %v5035 = vmul.f32 %v340, %v4996
        %v5036 = vmul.f32 %v341, %v4996
        %v5037 = vmul.f32 %v342, %v4996
        %v5038 = vmul.f32 %v343, %v4996
        %v5039 = vmul.f32 %v344, %v4996
        %v5040 = vmul.f32 %v345, %v4996
        %v5041 = vmul.f32 %v346, %v4996
        %v5042 = vmul.f32 %v347, %v4996
        %v5043 = vmul.f32 %v348, %v4996
        %v5044 = vmul.f32 %v349, %v4996
        %v5093 = vrot.slane %v4997, 3
        %v5094 = vrot.slane %v4998, 3
        %v5095 = vsel %vm4360, %v5093, %v5094
        %v5096 = vrot.slane %v4999, 3
        %v5097 = vsel %vm4360, %v5094, %v5096
        %v5098 = vrot.slane %v5000, 3
        %v5099 = vrot.slane %v5001, 3
        %v5100 = vsel %vm4360, %v5098, %v5099
        %v5101 = vrot.slane %v5002, 3
        %v5102 = vsel %vm4360, %v5099, %v5101
        %v5103 = vrot.slane %v5003, 3
        %v5104 = vrot.slane %v5004, 3
        %v5105 = vsel %vm4360, %v5103, %v5104
        %v5106 = vrot.slane %v5005, 3
        %v5107 = vsel %vm4360, %v5104, %v5106
        %v5108 = vrot.slane %v5006, 3
        %v5109 = vrot.slane %v5007, 3
        %v5110 = vsel %vm4360, %v5108, %v5109
        %v5111 = vrot.slane %v5008, 3
        %v5112 = vsel %vm4360, %v5109, %v5111
        %v5113 = vrot.slane %v5009, 3
        %v5114 = vrot.slane %v5010, 3
        %v5115 = vsel %vm4360, %v5113, %v5114
        %v5116 = vrot.slane %v5011, 3
        %v5117 = vsel %vm4360, %v5114, %v5116
        %v5118 = vrot.slane %v5012, 3
        %v5119 = vrot.slane %v5013, 3
        %v5120 = vsel %vm4360, %v5118, %v5119
        %v5121 = vrot.slane %v5014, 3
        %v5122 = vsel %vm4360, %v5119, %v5121
        %v5123 = vrot.slane %v5015, 3
        %v5124 = vrot.slane %v5016, 3
        %v5125 = vsel %vm4360, %v5123, %v5124
        %v5126 = vrot.slane %v5017, 3
        %v5127 = vsel %vm4360, %v5124, %v5126
        %v5128 = vrot.slane %v5018, 3
        %v5129 = vrot.slane %v5019, 3
        %v5130 = vsel %vm4360, %v5128, %v5129
        %v5131 = vrot.slane %v5020, 3
        %v5132 = vsel %vm4360, %v5129, %v5131
        %v5133 = vrot.slane %v5021, 3
        %v5134 = vrot.slane %v5022, 3
        %v5135 = vsel %vm4360, %v5133, %v5134
        %v5136 = vrot.slane %v5023, 3
        %v5137 = vsel %vm4360, %v5134, %v5136
        %v5138 = vrot.slane %v5024, 3
        %v5139 = vrot.slane %v5025, 3
        %v5140 = vsel %vm4360, %v5138, %v5139
        %v5141 = vrot.slane %v5026, 3
        %v5142 = vsel %vm4360, %v5139, %v5141
        %v5143 = vrot.slane %v5027, 3
        %v5144 = vrot.slane %v5028, 3
        %v5145 = vsel %vm4360, %v5143, %v5144
        %v5146 = vrot.slane %v5029, 3
        %v5147 = vsel %vm4360, %v5144, %v5146
        %v5148 = vrot.slane %v5030, 3
        %v5149 = vrot.slane %v5031, 3
        %v5150 = vsel %vm4360, %v5148, %v5149
        %v5151 = vrot.slane %v5032, 3
        %v5152 = vsel %vm4360, %v5149, %v5151
        %v5153 = vrot.slane %v5033, 3
        %v5154 = vrot.slane %v5034, 3
        %v5155 = vsel %vm4360, %v5153, %v5154
        %v5156 = vrot.slane %v5035, 3
        %v5157 = vsel %vm4360, %v5154, %v5156
        %v5158 = vrot.slane %v5036, 3
        %v5159 = vrot.slane %v5037, 3
        %v5160 = vsel %vm4360, %v5158, %v5159
        %v5161 = vrot.slane %v5038, 3
        %v5162 = vsel %vm4360, %v5159, %v5161
        %v5163 = vrot.slane %v5039, 3
        %v5164 = vrot.slane %v5040, 3
        %v5165 = vsel %vm4360, %v5163, %v5164
        %v5166 = vrot.slane %v5041, 3
        %v5167 = vsel %vm4360, %v5164, %v5166
        %v5168 = vrot.slane %v5042, 3
        %v5169 = vrot.slane %v5043, 3
        %v5170 = vsel %vm4360, %v5168, %v5169
        %v5171 = vrot.slane %v5044, 3
        %v5172 = vsel %vm4360, %v5169, %v5171
        %v5205 = vadd.f32 %v4961, %v5095
        %v5206 = vadd.f32 %v4962, %v5097
        %v5207 = vadd.f32 %v4963, %v5100
        %v5208 = vadd.f32 %v4964, %v5102
        %v5209 = vadd.f32 %v4965, %v5105
        %v5210 = vadd.f32 %v4966, %v5107
        %v5211 = vadd.f32 %v4967, %v5110
        %v5212 = vadd.f32 %v4968, %v5112
        %v5213 = vadd.f32 %v4969, %v5115
        %v5214 = vadd.f32 %v4970, %v5117
        %v5215 = vadd.f32 %v4971, %v5120
        %v5216 = vadd.f32 %v4972, %v5122
        %v5217 = vadd.f32 %v4973, %v5125
        %v5218 = vadd.f32 %v4974, %v5127
        %v5219 = vadd.f32 %v4975, %v5130
        %v5220 = vadd.f32 %v4976, %v5132
        %v5221 = vadd.f32 %v4977, %v5135
        %v5222 = vadd.f32 %v4978, %v5137
        %v5223 = vadd.f32 %v4979, %v5140
        %v5224 = vadd.f32 %v4980, %v5142
        %v5225 = vadd.f32 %v4981, %v5145
        %v5226 = vadd.f32 %v4982, %v5147
        %v5227 = vadd.f32 %v4983, %v5150
        %v5228 = vadd.f32 %v4984, %v5152
        %v5229 = vadd.f32 %v4985, %v5155
        %v5230 = vadd.f32 %v4986, %v5157
        %v5231 = vadd.f32 %v4987, %v5160
        %v5232 = vadd.f32 %v4988, %v5162
        %v5233 = vadd.f32 %v4989, %v5165
        %v5234 = vadd.f32 %v4990, %v5167
        %v5235 = vadd.f32 %v4991, %v5170
        %v5236 = vadd.f32 %v4992, %v5172
        %v5237 = vlaneseq
        %v5238 = vshrl.u32 %v5237, 7
        %v5239 = vsub.s32 3, %v5238
        %v5240 = vrot.slane %v363, %v5239
        %v5241 = vmul.f32 %v305, %v5240
        %v5242 = vmul.f32 %v306, %v5240
        %v5243 = vmul.f32 %v307, %v5240
        %v5244 = vmul.f32 %v308, %v5240
        %v5245 = vmul.f32 %v309, %v5240
        %v5246 = vmul.f32 %v310, %v5240
        %v5247 = vmul.f32 %v311, %v5240
        %v5248 = vmul.f32 %v312, %v5240
        %v5249 = vmul.f32 %v313, %v5240
        %v5250 = vmul.f32 %v314, %v5240
        %v5251 = vmul.f32 %v315, %v5240
        %v5252 = vmul.f32 %v316, %v5240
        %v5253 = vmul.f32 %v317, %v5240
        %v5254 = vmul.f32 %v318, %v5240
        %v5255 = vmul.f32 %v319, %v5240
        %v5256 = vmul.f32 %v320, %v5240
        %v5257 = vmul.f32 %v321, %v5240
        %v5258 = vmul.f32 %v322, %v5240
        %v5259 = vmul.f32 %v323, %v5240
        %v5260 = vmul.f32 %v324, %v5240
        %v5261 = vmul.f32 %v325, %v5240
        %v5262 = vmul.f32 %v326, %v5240
        %v5263 = vmul.f32 %v327, %v5240
        %v5264 = vmul.f32 %v328, %v5240
        %v5265 = vmul.f32 %v329, %v5240
        %v5266 = vmul.f32 %v330, %v5240
        %v5267 = vmul.f32 %v331, %v5240
        %v5268 = vmul.f32 %v332, %v5240
        %v5269 = vmul.f32 %v333, %v5240
        %v5270 = vmul.f32 %v334, %v5240
        %v5271 = vmul.f32 %v335, %v5240
        %v5272 = vmul.f32 %v336, %v5240
        %v5273 = vmul.f32 %v337, %v5240
        %v5274 = vmul.f32 %v338, %v5240
        %v5275 = vmul.f32 %v339, %v5240
        %v5276 = vmul.f32 %v340, %v5240
        %v5277 = vmul.f32 %v341, %v5240
        %v5278 = vmul.f32 %v342, %v5240
        %v5279 = vmul.f32 %v343, %v5240
        %v5280 = vmul.f32 %v344, %v5240
        %v5281 = vmul.f32 %v345, %v5240
        %v5282 = vmul.f32 %v346, %v5240
        %v5283 = vmul.f32 %v347, %v5240
        %v5284 = vmul.f32 %v348, %v5240
        %v5285 = vmul.f32 %v349, %v5240
        %v5286 = vmul.f32 %v350, %v5240
        %v5287 = vmul.f32 %v351, %v5240
        %v5288 = vmul.f32 %v352, %v5240
        %v5337 = vrot.slane %v5241, 3
        %v5338 = vrot.slane %v5242, 3
        %v5339 = vsel %vm4360, %v5337, %v5338
        %v5340 = vrot.slane %v5243, 3
        %v5341 = vsel %vm4360, %v5338, %v5340
        %v5342 = vrot.slane %v5244, 3
        %v5343 = vrot.slane %v5245, 3
        %v5344 = vsel %vm4360, %v5342, %v5343
        %v5345 = vrot.slane %v5246, 3
        %v5346 = vsel %vm4360, %v5343, %v5345
        %v5347 = vrot.slane %v5247, 3
        %v5348 = vrot.slane %v5248, 3
        %v5349 = vsel %vm4360, %v5347, %v5348
        %v5350 = vrot.slane %v5249, 3
        %v5351 = vsel %vm4360, %v5348, %v5350
        %v5352 = vrot.slane %v5250, 3
        %v5353 = vrot.slane %v5251, 3
        %v5354 = vsel %vm4360, %v5352, %v5353
        %v5355 = vrot.slane %v5252, 3
        %v5356 = vsel %vm4360, %v5353, %v5355
        %v5357 = vrot.slane %v5253, 3
        %v5358 = vrot.slane %v5254, 3
        %v5359 = vsel %vm4360, %v5357, %v5358
        %v5360 = vrot.slane %v5255, 3
        %v5361 = vsel %vm4360, %v5358, %v5360
        %v5362 = vrot.slane %v5256, 3
        %v5363 = vrot.slane %v5257, 3
        %v5364 = vsel %vm4360, %v5362, %v5363
        %v5365 = vrot.slane %v5258, 3
        %v5366 = vsel %vm4360, %v5363, %v5365
        %v5367 = vrot.slane %v5259, 3
        %v5368 = vrot.slane %v5260, 3
        %v5369 = vsel %vm4360, %v5367, %v5368
        %v5370 = vrot.slane %v5261, 3
        %v5371 = vsel %vm4360, %v5368, %v5370
        %v5372 = vrot.slane %v5262, 3
        %v5373 = vrot.slane %v5263, 3
        %v5374 = vsel %vm4360, %v5372, %v5373
        %v5375 = vrot.slane %v5264, 3
        %v5376 = vsel %vm4360, %v5373, %v5375
        %v5377 = vrot.slane %v5265, 3
        %v5378 = vrot.slane %v5266, 3
        %v5379 = vsel %vm4360, %v5377, %v5378
        %v5380 = vrot.slane %v5267, 3
        %v5381 = vsel %vm4360, %v5378, %v5380
        %v5382 = vrot.slane %v5268, 3
        %v5383 = vrot.slane %v5269, 3
        %v5384 = vsel %vm4360, %v5382, %v5383
        %v5385 = vrot.slane %v5270, 3
        %v5386 = vsel %vm4360, %v5383, %v5385
        %v5387 = vrot.slane %v5271, 3
        %v5388 = vrot.slane %v5272, 3
        %v5389 = vsel %vm4360, %v5387, %v5388
        %v5390 = vrot.slane %v5273, 3
        %v5391 = vsel %vm4360, %v5388, %v5390
        %v5392 = vrot.slane %v5274, 3
        %v5393 = vrot.slane %v5275, 3
        %v5394 = vsel %vm4360, %v5392, %v5393
        %v5395 = vrot.slane %v5276, 3
        %v5396 = vsel %vm4360, %v5393, %v5395
        %v5397 = vrot.slane %v5277, 3
        %v5398 = vrot.slane %v5278, 3
        %v5399 = vsel %vm4360, %v5397, %v5398
        %v5400 = vrot.slane %v5279, 3
        %v5401 = vsel %vm4360, %v5398, %v5400
        %v5402 = vrot.slane %v5280, 3
        %v5403 = vrot.slane %v5281, 3
        %v5404 = vsel %vm4360, %v5402, %v5403
        %v5405 = vrot.slane %v5282, 3
        %v5406 = vsel %vm4360, %v5403, %v5405
        %v5407 = vrot.slane %v5283, 3
        %v5408 = vrot.slane %v5284, 3
        %v5409 = vsel %vm4360, %v5407, %v5408
        %v5410 = vrot.slane %v5285, 3
        %v5411 = vsel %vm4360, %v5408, %v5410
        %v5412 = vrot.slane %v5286, 3
        %v5413 = vrot.slane %v5287, 3
        %v5414 = vsel %vm4360, %v5412, %v5413
        %v5415 = vrot.slane %v5288, 3
        %v5416 = vsel %vm4360, %v5413, %v5415
        %v5449 = vadd.f32 %v5205, %v5339
        %v5450 = vadd.f32 %v5206, %v5341
        %v5451 = vadd.f32 %v5207, %v5344
        %v5452 = vadd.f32 %v5208, %v5346
        %v5453 = vadd.f32 %v5209, %v5349
        %v5454 = vadd.f32 %v5210, %v5351
        %v5455 = vadd.f32 %v5211, %v5354
        %v5456 = vadd.f32 %v5212, %v5356
        %v5457 = vadd.f32 %v5213, %v5359
        %v5458 = vadd.f32 %v5214, %v5361
        %v5459 = vadd.f32 %v5215, %v5364
        %v5460 = vadd.f32 %v5216, %v5366
        %v5461 = vadd.f32 %v5217, %v5369
        %v5462 = vadd.f32 %v5218, %v5371
        %v5463 = vadd.f32 %v5219, %v5374
        %v5464 = vadd.f32 %v5220, %v5376
        %v5465 = vadd.f32 %v5221, %v5379
        %v5466 = vadd.f32 %v5222, %v5381
        %v5467 = vadd.f32 %v5223, %v5384
        %v5468 = vadd.f32 %v5224, %v5386
        %v5469 = vadd.f32 %v5225, %v5389
        %v5470 = vadd.f32 %v5226, %v5391
        %v5471 = vadd.f32 %v5227, %v5394
        %v5472 = vadd.f32 %v5228, %v5396
        %v5473 = vadd.f32 %v5229, %v5399
        %v5474 = vadd.f32 %v5230, %v5401
        %v5475 = vadd.f32 %v5231, %v5404
        %v5476 = vadd.f32 %v5232, %v5406
        %v5477 = vadd.f32 %v5233, %v5409
        %v5478 = vadd.f32 %v5234, %v5411
        %v5479 = vadd.f32 %v5235, %v5414
        %v5480 = vadd.f32 %v5236, %v5416
        %v5481 = vlaneseq
        %v5482 = vshrl.u32 %v5481, 7
        %v5483 = vsub.s32 3, %v5482
        %v5484 = vrot.slane %v364, %v5483
        %v5485 = vmul.f32 %v308, %v5484
        %v5486 = vmul.f32 %v309, %v5484
        %v5487 = vmul.f32 %v310, %v5484
        %v5488 = vmul.f32 %v311, %v5484
        %v5489 = vmul.f32 %v312, %v5484
        %v5490 = vmul.f32 %v313, %v5484
        %v5491 = vmul.f32 %v314, %v5484
        %v5492 = vmul.f32 %v315, %v5484
        %v5493 = vmul.f32 %v316, %v5484
        %v5494 = vmul.f32 %v317, %v5484
        %v5495 = vmul.f32 %v318, %v5484
        %v5496 = vmul.f32 %v319, %v5484
        %v5497 = vmul.f32 %v320, %v5484
        %v5498 = vmul.f32 %v321, %v5484
        %v5499 = vmul.f32 %v322, %v5484
        %v5500 = vmul.f32 %v323, %v5484
        %v5501 = vmul.f32 %v324, %v5484
        %v5502 = vmul.f32 %v325, %v5484
        %v5503 = vmul.f32 %v326, %v5484
        %v5504 = vmul.f32 %v327, %v5484
        %v5505 = vmul.f32 %v328, %v5484
        %v5506 = vmul.f32 %v329, %v5484
        %v5507 = vmul.f32 %v330, %v5484
        %v5508 = vmul.f32 %v331, %v5484
        %v5509 = vmul.f32 %v332, %v5484
        %v5510 = vmul.f32 %v333, %v5484
        %v5511 = vmul.f32 %v334, %v5484
        %v5512 = vmul.f32 %v335, %v5484
        %v5513 = vmul.f32 %v336, %v5484
        %v5514 = vmul.f32 %v337, %v5484
        %v5515 = vmul.f32 %v338, %v5484
        %v5516 = vmul.f32 %v339, %v5484
        %v5517 = vmul.f32 %v340, %v5484
        %v5518 = vmul.f32 %v341, %v5484
        %v5519 = vmul.f32 %v342, %v5484
        %v5520 = vmul.f32 %v343, %v5484
        %v5521 = vmul.f32 %v344, %v5484
        %v5522 = vmul.f32 %v345, %v5484
        %v5523 = vmul.f32 %v346, %v5484
        %v5524 = vmul.f32 %v347, %v5484
        %v5525 = vmul.f32 %v348, %v5484
        %v5526 = vmul.f32 %v349, %v5484
        %v5527 = vmul.f32 %v350, %v5484
        %v5528 = vmul.f32 %v351, %v5484
        %v5529 = vmul.f32 %v352, %v5484
        %v5530 = vmul.f32 %v353, %v5484
        %v5531 = vmul.f32 %v354, %v5484
        %v5532 = vmul.f32 %v355, %v5484
        %v5581 = vrot.slane %v5485, 3
        %v5582 = vrot.slane %v5486, 3
        %v5583 = vsel %vm4360, %v5581, %v5582
        %v5584 = vrot.slane %v5487, 3
        %v5585 = vsel %vm4360, %v5582, %v5584
        %v5586 = vrot.slane %v5488, 3
        %v5587 = vrot.slane %v5489, 3
        %v5588 = vsel %vm4360, %v5586, %v5587
        %v5589 = vrot.slane %v5490, 3
        %v5590 = vsel %vm4360, %v5587, %v5589
        %v5591 = vrot.slane %v5491, 3
        %v5592 = vrot.slane %v5492, 3
        %v5593 = vsel %vm4360, %v5591, %v5592
        %v5594 = vrot.slane %v5493, 3
        %v5595 = vsel %vm4360, %v5592, %v5594
        %v5596 = vrot.slane %v5494, 3
        %v5597 = vrot.slane %v5495, 3
        %v5598 = vsel %vm4360, %v5596, %v5597
        %v5599 = vrot.slane %v5496, 3
        %v5600 = vsel %vm4360, %v5597, %v5599
        %v5601 = vrot.slane %v5497, 3
        %v5602 = vrot.slane %v5498, 3
        %v5603 = vsel %vm4360, %v5601, %v5602
        %v5604 = vrot.slane %v5499, 3
        %v5605 = vsel %vm4360, %v5602, %v5604
        %v5606 = vrot.slane %v5500, 3
        %v5607 = vrot.slane %v5501, 3
        %v5608 = vsel %vm4360, %v5606, %v5607
        %v5609 = vrot.slane %v5502, 3
        %v5610 = vsel %vm4360, %v5607, %v5609
        %v5611 = vrot.slane %v5503, 3
        %v5612 = vrot.slane %v5504, 3
        %v5613 = vsel %vm4360, %v5611, %v5612
        %v5614 = vrot.slane %v5505, 3
        %v5615 = vsel %vm4360, %v5612, %v5614
        %v5616 = vrot.slane %v5506, 3
        %v5617 = vrot.slane %v5507, 3
        %v5618 = vsel %vm4360, %v5616, %v5617
        %v5619 = vrot.slane %v5508, 3
        %v5620 = vsel %vm4360, %v5617, %v5619
        %v5621 = vrot.slane %v5509, 3
        %v5622 = vrot.slane %v5510, 3
        %v5623 = vsel %vm4360, %v5621, %v5622
        %v5624 = vrot.slane %v5511, 3
        %v5625 = vsel %vm4360, %v5622, %v5624
        %v5626 = vrot.slane %v5512, 3
        %v5627 = vrot.slane %v5513, 3
        %v5628 = vsel %vm4360, %v5626, %v5627
        %v5629 = vrot.slane %v5514, 3
        %v5630 = vsel %vm4360, %v5627, %v5629
        %v5631 = vrot.slane %v5515, 3
        %v5632 = vrot.slane %v5516, 3
        %v5633 = vsel %vm4360, %v5631, %v5632
        %v5634 = vrot.slane %v5517, 3
        %v5635 = vsel %vm4360, %v5632, %v5634
        %v5636 = vrot.slane %v5518, 3
        %v5637 = vrot.slane %v5519, 3
        %v5638 = vsel %vm4360, %v5636, %v5637
        %v5639 = vrot.slane %v5520, 3
        %v5640 = vsel %vm4360, %v5637, %v5639
        %v5641 = vrot.slane %v5521, 3
        %v5642 = vrot.slane %v5522, 3
        %v5643 = vsel %vm4360, %v5641, %v5642
        %v5644 = vrot.slane %v5523, 3
        %v5645 = vsel %vm4360, %v5642, %v5644
        %v5646 = vrot.slane %v5524, 3
        %v5647 = vrot.slane %v5525, 3
        %v5648 = vsel %vm4360, %v5646, %v5647
        %v5649 = vrot.slane %v5526, 3
        %v5650 = vsel %vm4360, %v5647, %v5649
        %v5651 = vrot.slane %v5527, 3
        %v5652 = vrot.slane %v5528, 3
        %v5653 = vsel %vm4360, %v5651, %v5652
        %v5654 = vrot.slane %v5529, 3
        %v5655 = vsel %vm4360, %v5652, %v5654
        %v5656 = vrot.slane %v5530, 3
        %v5657 = vrot.slane %v5531, 3
        %v5658 = vsel %vm4360, %v5656, %v5657
        %v5659 = vrot.slane %v5532, 3
        %v5660 = vsel %vm4360, %v5657, %v5659
        %v5693 = vadd.f32 %v5449, %v5583
        %v5694 = vadd.f32 %v5450, %v5585
        %v5695 = vadd.f32 %v5451, %v5588
        %v5696 = vadd.f32 %v5452, %v5590
        %v5697 = vadd.f32 %v5453, %v5593
        %v5698 = vadd.f32 %v5454, %v5595
        %v5699 = vadd.f32 %v5455, %v5598
        %v5700 = vadd.f32 %v5456, %v5600
        %v5701 = vadd.f32 %v5457, %v5603
        %v5702 = vadd.f32 %v5458, %v5605
        %v5703 = vadd.f32 %v5459, %v5608
        %v5704 = vadd.f32 %v5460, %v5610
        %v5705 = vadd.f32 %v5461, %v5613
        %v5706 = vadd.f32 %v5462, %v5615
        %v5707 = vadd.f32 %v5463, %v5618
        %v5708 = vadd.f32 %v5464, %v5620
        %v5709 = vadd.f32 %v5465, %v5623
        %v5710 = vadd.f32 %v5466, %v5625
        %v5711 = vadd.f32 %v5467, %v5628
        %v5712 = vadd.f32 %v5468, %v5630
        %v5713 = vadd.f32 %v5469, %v5633
        %v5714 = vadd.f32 %v5470, %v5635
        %v5715 = vadd.f32 %v5471, %v5638
        %v5716 = vadd.f32 %v5472, %v5640
        %v5717 = vadd.f32 %v5473, %v5643
        %v5718 = vadd.f32 %v5474, %v5645
        %v5719 = vadd.f32 %v5475, %v5648
        %v5720 = vadd.f32 %v5476, %v5650
        %v5721 = vadd.f32 %v5477, %v5653
        %v5722 = vadd.f32 %v5478, %v5655
        %v5723 = vadd.f32 %v5479, %v5658
        %v5724 = vadd.f32 %v5480, %v5660
        %v5725 = vlaneseq
        %v5726 = vshrl.u32 %v5725, 7
        %v5727 = vsub.s32 3, %v5726
        %v5728 = vrot.slane %v365, %v5727
        %v5729 = vmul.f32 %v311, %v5728
        %v5730 = vmul.f32 %v312, %v5728
        %v5731 = vmul.f32 %v313, %v5728
        %v5732 = vmul.f32 %v314, %v5728
        %v5733 = vmul.f32 %v315, %v5728
        %v5734 = vmul.f32 %v316, %v5728
        %v5735 = vmul.f32 %v317, %v5728
        %v5736 = vmul.f32 %v318, %v5728
        %v5737 = vmul.f32 %v319, %v5728
        %v5738 = vmul.f32 %v320, %v5728
        %v5739 = vmul.f32 %v321, %v5728
        %v5740 = vmul.f32 %v322, %v5728
        %v5741 = vmul.f32 %v323, %v5728
        %v5742 = vmul.f32 %v324, %v5728
        %v5743 = vmul.f32 %v325, %v5728
        %v5744 = vmul.f32 %v326, %v5728
        %v5745 = vmul.f32 %v327, %v5728
        %v5746 = vmul.f32 %v328, %v5728
        %v5747 = vmul.f32 %v329, %v5728
        %v5748 = vmul.f32 %v330, %v5728
        %v5749 = vmul.f32 %v331, %v5728
        %v5750 = vmul.f32 %v332, %v5728
        %v5751 = vmul.f32 %v333, %v5728
        %v5752 = vmul.f32 %v334, %v5728
        %v5753 = vmul.f32 %v335, %v5728
        %v5754 = vmul.f32 %v336, %v5728
        %v5755 = vmul.f32 %v337, %v5728
        %v5756 = vmul.f32 %v338, %v5728
        %v5757 = vmul.f32 %v339, %v5728
        %v5758 = vmul.f32 %v340, %v5728
        %v5759 = vmul.f32 %v341, %v5728
        %v5760 = vmul.f32 %v342, %v5728
        %v5761 = vmul.f32 %v343, %v5728
        %v5762 = vmul.f32 %v344, %v5728
        %v5763 = vmul.f32 %v345, %v5728
        %v5764 = vmul.f32 %v346, %v5728
        %v5765 = vmul.f32 %v347, %v5728
        %v5766 = vmul.f32 %v348, %v5728
        %v5767 = vmul.f32 %v349, %v5728
        %v5768 = vmul.f32 %v350, %v5728
        %v5769 = vmul.f32 %v351, %v5728
        %v5770 = vmul.f32 %v352, %v5728
        %v5771 = vmul.f32 %v353, %v5728
        %v5772 = vmul.f32 %v354, %v5728
        %v5773 = vmul.f32 %v355, %v5728
        %v5774 = vmul.f32 %v356, %v5728
        %v5775 = vmul.f32 %v357, %v5728
        %v5776 = vmul.f32 %v358, %v5728
        %v5825 = vrot.slane %v5729, 3
        %v5826 = vrot.slane %v5730, 3
        %v5827 = vsel %vm4360, %v5825, %v5826
        %v5828 = vrot.slane %v5731, 3
        %v5829 = vsel %vm4360, %v5826, %v5828
        %v5830 = vrot.slane %v5732, 3
        %v5831 = vrot.slane %v5733, 3
        %v5832 = vsel %vm4360, %v5830, %v5831
        %v5833 = vrot.slane %v5734, 3
        %v5834 = vsel %vm4360, %v5831, %v5833
        %v5835 = vrot.slane %v5735, 3
        %v5836 = vrot.slane %v5736, 3
        %v5837 = vsel %vm4360, %v5835, %v5836
        %v5838 = vrot.slane %v5737, 3
        %v5839 = vsel %vm4360, %v5836, %v5838
        %v5840 = vrot.slane %v5738, 3
        %v5841 = vrot.slane %v5739, 3
        %v5842 = vsel %vm4360, %v5840, %v5841
        %v5843 = vrot.slane %v5740, 3
        %v5844 = vsel %vm4360, %v5841, %v5843
        %v5845 = vrot.slane %v5741, 3
        %v5846 = vrot.slane %v5742, 3
        %v5847 = vsel %vm4360, %v5845, %v5846
        %v5848 = vrot.slane %v5743, 3
        %v5849 = vsel %vm4360, %v5846, %v5848
        %v5850 = vrot.slane %v5744, 3
        %v5851 = vrot.slane %v5745, 3
        %v5852 = vsel %vm4360, %v5850, %v5851
        %v5853 = vrot.slane %v5746, 3
        %v5854 = vsel %vm4360, %v5851, %v5853
        %v5855 = vrot.slane %v5747, 3
        %v5856 = vrot.slane %v5748, 3
        %v5857 = vsel %vm4360, %v5855, %v5856
        %v5858 = vrot.slane %v5749, 3
        %v5859 = vsel %vm4360, %v5856, %v5858
        %v5860 = vrot.slane %v5750, 3
        %v5861 = vrot.slane %v5751, 3
        %v5862 = vsel %vm4360, %v5860, %v5861
        %v5863 = vrot.slane %v5752, 3
        %v5864 = vsel %vm4360, %v5861, %v5863
        %v5865 = vrot.slane %v5753, 3
        %v5866 = vrot.slane %v5754, 3
        %v5867 = vsel %vm4360, %v5865, %v5866
        %v5868 = vrot.slane %v5755, 3
        %v5869 = vsel %vm4360, %v5866, %v5868
        %v5870 = vrot.slane %v5756, 3
        %v5871 = vrot.slane %v5757, 3
        %v5872 = vsel %vm4360, %v5870, %v5871
        %v5873 = vrot.slane %v5758, 3
        %v5874 = vsel %vm4360, %v5871, %v5873
        %v5875 = vrot.slane %v5759, 3
        %v5876 = vrot.slane %v5760, 3
        %v5877 = vsel %vm4360, %v5875, %v5876
        %v5878 = vrot.slane %v5761, 3
        %v5879 = vsel %vm4360, %v5876, %v5878
        %v5880 = vrot.slane %v5762, 3
        %v5881 = vrot.slane %v5763, 3
        %v5882 = vsel %vm4360, %v5880, %v5881
        %v5883 = vrot.slane %v5764, 3
        %v5884 = vsel %vm4360, %v5881, %v5883
        %v5885 = vrot.slane %v5765, 3
        %v5886 = vrot.slane %v5766, 3
        %v5887 = vsel %vm4360, %v5885, %v5886
        %v5888 = vrot.slane %v5767, 3
        %v5889 = vsel %vm4360, %v5886, %v5888
        %v5890 = vrot.slane %v5768, 3
        %v5891 = vrot.slane %v5769, 3
        %v5892 = vsel %vm4360, %v5890, %v5891
        %v5893 = vrot.slane %v5770, 3
        %v5894 = vsel %vm4360, %v5891, %v5893
        %v5895 = vrot.slane %v5771, 3
        %v5896 = vrot.slane %v5772, 3
        %v5897 = vsel %vm4360, %v5895, %v5896
        %v5898 = vrot.slane %v5773, 3
        %v5899 = vsel %vm4360, %v5896, %v5898
        %v5900 = vrot.slane %v5774, 3
        %v5901 = vrot.slane %v5775, 3
        %v5902 = vsel %vm4360, %v5900, %v5901
        %v5903 = vrot.slane %v5776, 3
        %v5904 = vsel %vm4360, %v5901, %v5903
        %v5937 = vadd.f32 %v5693, %v5827
        %v5938 = vadd.f32 %v5694, %v5829
        %v5939 = vadd.f32 %v5695, %v5832
        %v5940 = vadd.f32 %v5696, %v5834
        %v5941 = vadd.f32 %v5697, %v5837
        %v5942 = vadd.f32 %v5698, %v5839
        %v5943 = vadd.f32 %v5699, %v5842
        %v5944 = vadd.f32 %v5700, %v5844
        %v5945 = vadd.f32 %v5701, %v5847
        %v5946 = vadd.f32 %v5702, %v5849
        %v5947 = vadd.f32 %v5703, %v5852
        %v5948 = vadd.f32 %v5704, %v5854
        %v5949 = vadd.f32 %v5705, %v5857
        %v5950 = vadd.f32 %v5706, %v5859
        %v5951 = vadd.f32 %v5707, %v5862
        %v5952 = vadd.f32 %v5708, %v5864
        %v5953 = vadd.f32 %v5709, %v5867
        %v5954 = vadd.f32 %v5710, %v5869
        %v5955 = vadd.f32 %v5711, %v5872
        %v5956 = vadd.f32 %v5712, %v5874
        %v5957 = vadd.f32 %v5713, %v5877
        %v5958 = vadd.f32 %v5714, %v5879
        %v5959 = vadd.f32 %v5715, %v5882
        %v5960 = vadd.f32 %v5716, %v5884
        %v5961 = vadd.f32 %v5717, %v5887
        %v5962 = vadd.f32 %v5718, %v5889
        %v5963 = vadd.f32 %v5719, %v5892
        %v5964 = vadd.f32 %v5720, %v5894
        %v5965 = vadd.f32 %v5721, %v5897
        %v5966 = vadd.f32 %v5722, %v5899
        %v5967 = vadd.f32 %v5723, %v5902
        %v5968 = vadd.f32 %v5724, %v5904
        %v5969 = vlaneseq
        %v5970 = vshrl.u32 %v5969, 7
        %v5971 = vsub.s32 4, %v5970
        %v5972 = vrot.slane %v359, %v5971
        %v5973 = vmul.f32 %v293, %v5972
        %v5974 = vmul.f32 %v294, %v5972
        %v5975 = vmul.f32 %v295, %v5972
        %v5976 = vmul.f32 %v296, %v5972
        %v5977 = vmul.f32 %v297, %v5972
        %v5978 = vmul.f32 %v298, %v5972
        %v5979 = vmul.f32 %v299, %v5972
        %v5980 = vmul.f32 %v300, %v5972
        %v5981 = vmul.f32 %v301, %v5972
        %v5982 = vmul.f32 %v302, %v5972
        %v5983 = vmul.f32 %v303, %v5972
        %v5984 = vmul.f32 %v304, %v5972
        %v5985 = vmul.f32 %v305, %v5972
        %v5986 = vmul.f32 %v306, %v5972
        %v5987 = vmul.f32 %v307, %v5972
        %v5988 = vmul.f32 %v308, %v5972
        %v5989 = vmul.f32 %v309, %v5972
        %v5990 = vmul.f32 %v310, %v5972
        %v5991 = vmul.f32 %v311, %v5972
        %v5992 = vmul.f32 %v312, %v5972
        %v5993 = vmul.f32 %v313, %v5972
        %v5994 = vmul.f32 %v314, %v5972
        %v5995 = vmul.f32 %v315, %v5972
        %v5996 = vmul.f32 %v316, %v5972
        %v5997 = vmul.f32 %v317, %v5972
        %v5998 = vmul.f32 %v318, %v5972
        %v5999 = vmul.f32 %v319, %v5972
        %v6000 = vmul.f32 %v320, %v5972
        %v6001 = vmul.f32 %v321, %v5972
        %v6002 = vmul.f32 %v322, %v5972
        %v6003 = vmul.f32 %v323, %v5972
        %v6004 = vmul.f32 %v324, %v5972
        %v6005 = vmul.f32 %v325, %v5972
        %v6006 = vmul.f32 %v326, %v5972
        %v6007 = vmul.f32 %v327, %v5972
        %v6008 = vmul.f32 %v328, %v5972
        %v6009 = vmul.f32 %v329, %v5972
        %v6010 = vmul.f32 %v330, %v5972
        %v6011 = vmul.f32 %v331, %v5972
        %v6012 = vmul.f32 %v332, %v5972
        %v6013 = vmul.f32 %v333, %v5972
        %v6014 = vmul.f32 %v334, %v5972
        %v6015 = vmul.f32 %v335, %v5972
        %v6016 = vmul.f32 %v336, %v5972
        %v6017 = vmul.f32 %v337, %v5972
        %v6018 = vmul.f32 %v338, %v5972
        %v6019 = vmul.f32 %v339, %v5972
        %v6020 = vmul.f32 %v340, %v5972
        %vm6069 = vcmask 1043456
        %v6070 = vrot.slane %v5973, 4
        %v6071 = vrot.slane %v5974, 4
        %v6072 = vsel %vm6069, %v6070, %v6071
        %v6073 = vrot.slane %v5975, 4
        %v6074 = vsel %vm6069, %v6071, %v6073
        %v6075 = vrot.slane %v5976, 4
        %v6076 = vrot.slane %v5977, 4
        %v6077 = vsel %vm6069, %v6075, %v6076
        %v6078 = vrot.slane %v5978, 4
        %v6079 = vsel %vm6069, %v6076, %v6078
        %v6080 = vrot.slane %v5979, 4
        %v6081 = vrot.slane %v5980, 4
        %v6082 = vsel %vm6069, %v6080, %v6081
        %v6083 = vrot.slane %v5981, 4
        %v6084 = vsel %vm6069, %v6081, %v6083
        %v6085 = vrot.slane %v5982, 4
        %v6086 = vrot.slane %v5983, 4
        %v6087 = vsel %vm6069, %v6085, %v6086
        %v6088 = vrot.slane %v5984, 4
        %v6089 = vsel %vm6069, %v6086, %v6088
        %v6090 = vrot.slane %v5985, 4
        %v6091 = vrot.slane %v5986, 4
        %v6092 = vsel %vm6069, %v6090, %v6091
        %v6093 = vrot.slane %v5987, 4
        %v6094 = vsel %vm6069, %v6091, %v6093
        %v6095 = vrot.slane %v5988, 4
        %v6096 = vrot.slane %v5989, 4
        %v6097 = vsel %vm6069, %v6095, %v6096
        %v6098 = vrot.slane %v5990, 4
        %v6099 = vsel %vm6069, %v6096, %v6098
        %v6100 = vrot.slane %v5991, 4
        %v6101 = vrot.slane %v5992, 4
        %v6102 = vsel %vm6069, %v6100, %v6101
        %v6103 = vrot.slane %v5993, 4
        %v6104 = vsel %vm6069, %v6101, %v6103
        %v6105 = vrot.slane %v5994, 4
        %v6106 = vrot.slane %v5995, 4
        %v6107 = vsel %vm6069, %v6105, %v6106
        %v6108 = vrot.slane %v5996, 4
        %v6109 = vsel %vm6069, %v6106, %v6108
        %v6110 = vrot.slane %v5997, 4
        %v6111 = vrot.slane %v5998, 4
        %v6112 = vsel %vm6069, %v6110, %v6111
        %v6113 = vrot.slane %v5999, 4
        %v6114 = vsel %vm6069, %v6111, %v6113
        %v6115 = vrot.slane %v6000, 4
        %v6116 = vrot.slane %v6001, 4
        %v6117 = vsel %vm6069, %v6115, %v6116
        %v6118 = vrot.slane %v6002, 4
        %v6119 = vsel %vm6069, %v6116, %v6118
        %v6120 = vrot.slane %v6003, 4
        %v6121 = vrot.slane %v6004, 4
        %v6122 = vsel %vm6069, %v6120, %v6121
        %v6123 = vrot.slane %v6005, 4
        %v6124 = vsel %vm6069, %v6121, %v6123
        %v6125 = vrot.slane %v6006, 4
        %v6126 = vrot.slane %v6007, 4
        %v6127 = vsel %vm6069, %v6125, %v6126
        %v6128 = vrot.slane %v6008, 4
        %v6129 = vsel %vm6069, %v6126, %v6128
        %v6130 = vrot.slane %v6009, 4
        %v6131 = vrot.slane %v6010, 4
        %v6132 = vsel %vm6069, %v6130, %v6131
        %v6133 = vrot.slane %v6011, 4
        %v6134 = vsel %vm6069, %v6131, %v6133
        %v6135 = vrot.slane %v6012, 4
        %v6136 = vrot.slane %v6013, 4
        %v6137 = vsel %vm6069, %v6135, %v6136
        %v6138 = vrot.slane %v6014, 4
        %v6139 = vsel %vm6069, %v6136, %v6138
        %v6140 = vrot.slane %v6015, 4
        %v6141 = vrot.slane %v6016, 4
        %v6142 = vsel %vm6069, %v6140, %v6141
        %v6143 = vrot.slane %v6017, 4
        %v6144 = vsel %vm6069, %v6141, %v6143
        %v6145 = vrot.slane %v6018, 4
        %v6146 = vrot.slane %v6019, 4
        %v6147 = vsel %vm6069, %v6145, %v6146
        %v6148 = vrot.slane %v6020, 4
        %v6149 = vsel %vm6069, %v6146, %v6148
        %v6182 = vadd.f32 %v5937, %v6072
        %v6183 = vadd.f32 %v5938, %v6074
        %v6184 = vadd.f32 %v5939, %v6077
        %v6185 = vadd.f32 %v5940, %v6079
        %v6186 = vadd.f32 %v5941, %v6082
        %v6187 = vadd.f32 %v5942, %v6084
        %v6188 = vadd.f32 %v5943, %v6087
        %v6189 = vadd.f32 %v5944, %v6089
        %v6190 = vadd.f32 %v5945, %v6092
        %v6191 = vadd.f32 %v5946, %v6094
        %v6192 = vadd.f32 %v5947, %v6097
        %v6193 = vadd.f32 %v5948, %v6099
        %v6194 = vadd.f32 %v5949, %v6102
        %v6195 = vadd.f32 %v5950, %v6104
        %v6196 = vadd.f32 %v5951, %v6107
        %v6197 = vadd.f32 %v5952, %v6109
        %v6198 = vadd.f32 %v5953, %v6112
        %v6199 = vadd.f32 %v5954, %v6114
        %v6200 = vadd.f32 %v5955, %v6117
        %v6201 = vadd.f32 %v5956, %v6119
        %v6202 = vadd.f32 %v5957, %v6122
        %v6203 = vadd.f32 %v5958, %v6124
        %v6204 = vadd.f32 %v5959, %v6127
        %v6205 = vadd.f32 %v5960, %v6129
        %v6206 = vadd.f32 %v5961, %v6132
        %v6207 = vadd.f32 %v5962, %v6134
        %v6208 = vadd.f32 %v5963, %v6137
        %v6209 = vadd.f32 %v5964, %v6139
        %v6210 = vadd.f32 %v5965, %v6142
        %v6211 = vadd.f32 %v5966, %v6144
        %v6212 = vadd.f32 %v5967, %v6147
        %v6213 = vadd.f32 %v5968, %v6149
        %v6214 = vlaneseq
        %v6215 = vshrl.u32 %v6214, 7
        %v6216 = vsub.s32 4, %v6215
        %v6217 = vrot.slane %v360, %v6216
        %v6218 = vmul.f32 %v296, %v6217
        %v6219 = vmul.f32 %v297, %v6217
        %v6220 = vmul.f32 %v298, %v6217
        %v6221 = vmul.f32 %v299, %v6217
        %v6222 = vmul.f32 %v300, %v6217
        %v6223 = vmul.f32 %v301, %v6217
        %v6224 = vmul.f32 %v302, %v6217
        %v6225 = vmul.f32 %v303, %v6217
        %v6226 = vmul.f32 %v304, %v6217
        %v6227 = vmul.f32 %v305, %v6217
        %v6228 = vmul.f32 %v306, %v6217
        %v6229 = vmul.f32 %v307, %v6217
        %v6230 = vmul.f32 %v308, %v6217
        %v6231 = vmul.f32 %v309, %v6217
        %v6232 = vmul.f32 %v310, %v6217
        %v6233 = vmul.f32 %v311, %v6217
        %v6234 = vmul.f32 %v312, %v6217
        %v6235 = vmul.f32 %v313, %v6217
        %v6236 = vmul.f32 %v314, %v6217
        %v6237 = vmul.f32 %v315, %v6217
        %v6238 = vmul.f32 %v316, %v6217
        %v6239 = vmul.f32 %v317, %v6217
        %v6240 = vmul.f32 %v318, %v6217
        %v6241 = vmul.f32 %v319, %v6217
        %v6242 = vmul.f32 %v320, %v6217
        %v6243 = vmul.f32 %v321, %v6217
        %v6244 = vmul.f32 %v322, %v6217
        %v6245 = vmul.f32 %v323, %v6217
        %v6246 = vmul.f32 %v324, %v6217
        %v6247 = vmul.f32 %v325, %v6217
        %v6248 = vmul.f32 %v326, %v6217
        %v6249 = vmul.f32 %v327, %v6217
        %v6250 = vmul.f32 %v328, %v6217
        %v6251 = vmul.f32 %v329, %v6217
        %v6252 = vmul.f32 %v330, %v6217
        %v6253 = vmul.f32 %v331, %v6217
        %v6254 = vmul.f32 %v332, %v6217
        %v6255 = vmul.f32 %v333, %v6217
        %v6256 = vmul.f32 %v334, %v6217
        %v6257 = vmul.f32 %v335, %v6217
        %v6258 = vmul.f32 %v336, %v6217
        %v6259 = vmul.f32 %v337, %v6217
        %v6260 = vmul.f32 %v338, %v6217
        %v6261 = vmul.f32 %v339, %v6217
        %v6262 = vmul.f32 %v340, %v6217
        %v6263 = vmul.f32 %v341, %v6217
        %v6264 = vmul.f32 %v342, %v6217
        %v6265 = vmul.f32 %v343, %v6217
        %v6314 = vrot.slane %v6218, 4
        %v6315 = vrot.slane %v6219, 4
        %v6316 = vsel %vm6069, %v6314, %v6315
        %v6317 = vrot.slane %v6220, 4
        %v6318 = vsel %vm6069, %v6315, %v6317
        %v6319 = vrot.slane %v6221, 4
        %v6320 = vrot.slane %v6222, 4
        %v6321 = vsel %vm6069, %v6319, %v6320
        %v6322 = vrot.slane %v6223, 4
        %v6323 = vsel %vm6069, %v6320, %v6322
        %v6324 = vrot.slane %v6224, 4
        %v6325 = vrot.slane %v6225, 4
        %v6326 = vsel %vm6069, %v6324, %v6325
        %v6327 = vrot.slane %v6226, 4
        %v6328 = vsel %vm6069, %v6325, %v6327
        %v6329 = vrot.slane %v6227, 4
        %v6330 = vrot.slane %v6228, 4
        %v6331 = vsel %vm6069, %v6329, %v6330
        %v6332 = vrot.slane %v6229, 4
        %v6333 = vsel %vm6069, %v6330, %v6332
        %v6334 = vrot.slane %v6230, 4
        %v6335 = vrot.slane %v6231, 4
        %v6336 = vsel %vm6069, %v6334, %v6335
        %v6337 = vrot.slane %v6232, 4
        %v6338 = vsel %vm6069, %v6335, %v6337
        %v6339 = vrot.slane %v6233, 4
        %v6340 = vrot.slane %v6234, 4
        %v6341 = vsel %vm6069, %v6339, %v6340
        %v6342 = vrot.slane %v6235, 4
        %v6343 = vsel %vm6069, %v6340, %v6342
        %v6344 = vrot.slane %v6236, 4
        %v6345 = vrot.slane %v6237, 4
        %v6346 = vsel %vm6069, %v6344, %v6345
        %v6347 = vrot.slane %v6238, 4
        %v6348 = vsel %vm6069, %v6345, %v6347
        %v6349 = vrot.slane %v6239, 4
        %v6350 = vrot.slane %v6240, 4
        %v6351 = vsel %vm6069, %v6349, %v6350
        %v6352 = vrot.slane %v6241, 4
        %v6353 = vsel %vm6069, %v6350, %v6352
        %v6354 = vrot.slane %v6242, 4
        %v6355 = vrot.slane %v6243, 4
        %v6356 = vsel %vm6069, %v6354, %v6355
        %v6357 = vrot.slane %v6244, 4
        %v6358 = vsel %vm6069, %v6355, %v6357
        %v6359 = vrot.slane %v6245, 4
        %v6360 = vrot.slane %v6246, 4
        %v6361 = vsel %vm6069, %v6359, %v6360
        %v6362 = vrot.slane %v6247, 4
        %v6363 = vsel %vm6069, %v6360, %v6362
        %v6364 = vrot.slane %v6248, 4
        %v6365 = vrot.slane %v6249, 4
        %v6366 = vsel %vm6069, %v6364, %v6365
        %v6367 = vrot.slane %v6250, 4
        %v6368 = vsel %vm6069, %v6365, %v6367
        %v6369 = vrot.slane %v6251, 4
        %v6370 = vrot.slane %v6252, 4
        %v6371 = vsel %vm6069, %v6369, %v6370
        %v6372 = vrot.slane %v6253, 4
        %v6373 = vsel %vm6069, %v6370, %v6372
        %v6374 = vrot.slane %v6254, 4
        %v6375 = vrot.slane %v6255, 4
        %v6376 = vsel %vm6069, %v6374, %v6375
        %v6377 = vrot.slane %v6256, 4
        %v6378 = vsel %vm6069, %v6375, %v6377
        %v6379 = vrot.slane %v6257, 4
        %v6380 = vrot.slane %v6258, 4
        %v6381 = vsel %vm6069, %v6379, %v6380
        %v6382 = vrot.slane %v6259, 4
        %v6383 = vsel %vm6069, %v6380, %v6382
        %v6384 = vrot.slane %v6260, 4
        %v6385 = vrot.slane %v6261, 4
        %v6386 = vsel %vm6069, %v6384, %v6385
        %v6387 = vrot.slane %v6262, 4
        %v6388 = vsel %vm6069, %v6385, %v6387
        %v6389 = vrot.slane %v6263, 4
        %v6390 = vrot.slane %v6264, 4
        %v6391 = vsel %vm6069, %v6389, %v6390
        %v6392 = vrot.slane %v6265, 4
        %v6393 = vsel %vm6069, %v6390, %v6392
        %v6426 = vadd.f32 %v6182, %v6316
        %v6427 = vadd.f32 %v6183, %v6318
        %v6428 = vadd.f32 %v6184, %v6321
        %v6429 = vadd.f32 %v6185, %v6323
        %v6430 = vadd.f32 %v6186, %v6326
        %v6431 = vadd.f32 %v6187, %v6328
        %v6432 = vadd.f32 %v6188, %v6331
        %v6433 = vadd.f32 %v6189, %v6333
        %v6434 = vadd.f32 %v6190, %v6336
        %v6435 = vadd.f32 %v6191, %v6338
        %v6436 = vadd.f32 %v6192, %v6341
        %v6437 = vadd.f32 %v6193, %v6343
        %v6438 = vadd.f32 %v6194, %v6346
        %v6439 = vadd.f32 %v6195, %v6348
        %v6440 = vadd.f32 %v6196, %v6351
        %v6441 = vadd.f32 %v6197, %v6353
        %v6442 = vadd.f32 %v6198, %v6356
        %v6443 = vadd.f32 %v6199, %v6358
        %v6444 = vadd.f32 %v6200, %v6361
        %v6445 = vadd.f32 %v6201, %v6363
        %v6446 = vadd.f32 %v6202, %v6366
        %v6447 = vadd.f32 %v6203, %v6368
        %v6448 = vadd.f32 %v6204, %v6371
        %v6449 = vadd.f32 %v6205, %v6373
        %v6450 = vadd.f32 %v6206, %v6376
        %v6451 = vadd.f32 %v6207, %v6378
        %v6452 = vadd.f32 %v6208, %v6381
        %v6453 = vadd.f32 %v6209, %v6383
        %v6454 = vadd.f32 %v6210, %v6386
        %v6455 = vadd.f32 %v6211, %v6388
        %v6456 = vadd.f32 %v6212, %v6391
        %v6457 = vadd.f32 %v6213, %v6393
        %v6458 = vlaneseq
        %v6459 = vshrl.u32 %v6458, 7
        %v6460 = vsub.s32 4, %v6459
        %v6461 = vrot.slane %v361, %v6460
        %v6462 = vmul.f32 %v299, %v6461
        %v6463 = vmul.f32 %v300, %v6461
        %v6464 = vmul.f32 %v301, %v6461
        %v6465 = vmul.f32 %v302, %v6461
        %v6466 = vmul.f32 %v303, %v6461
        %v6467 = vmul.f32 %v304, %v6461
        %v6468 = vmul.f32 %v305, %v6461
        %v6469 = vmul.f32 %v306, %v6461
        %v6470 = vmul.f32 %v307, %v6461
        %v6471 = vmul.f32 %v308, %v6461
        %v6472 = vmul.f32 %v309, %v6461
        %v6473 = vmul.f32 %v310, %v6461
        %v6474 = vmul.f32 %v311, %v6461
        %v6475 = vmul.f32 %v312, %v6461
        %v6476 = vmul.f32 %v313, %v6461
        %v6477 = vmul.f32 %v314, %v6461
        %v6478 = vmul.f32 %v315, %v6461
        %v6479 = vmul.f32 %v316, %v6461
        %v6480 = vmul.f32 %v317, %v6461
        %v6481 = vmul.f32 %v318, %v6461
        %v6482 = vmul.f32 %v319, %v6461
        %v6483 = vmul.f32 %v320, %v6461
        %v6484 = vmul.f32 %v321, %v6461
        %v6485 = vmul.f32 %v322, %v6461
        %v6486 = vmul.f32 %v323, %v6461
        %v6487 = vmul.f32 %v324, %v6461
        %v6488 = vmul.f32 %v325, %v6461
        %v6489 = vmul.f32 %v326, %v6461
        %v6490 = vmul.f32 %v327, %v6461
        %v6491 = vmul.f32 %v328, %v6461
        %v6492 = vmul.f32 %v329, %v6461
        %v6493 = vmul.f32 %v330, %v6461
        %v6494 = vmul.f32 %v331, %v6461
        %v6495 = vmul.f32 %v332, %v6461
        %v6496 = vmul.f32 %v333, %v6461
        %v6497 = vmul.f32 %v334, %v6461
        %v6498 = vmul.f32 %v335, %v6461
        %v6499 = vmul.f32 %v336, %v6461
        %v6500 = vmul.f32 %v337, %v6461
        %v6501 = vmul.f32 %v338, %v6461
        %v6502 = vmul.f32 %v339, %v6461
        %v6503 = vmul.f32 %v340, %v6461
        %v6504 = vmul.f32 %v341, %v6461
        %v6505 = vmul.f32 %v342, %v6461
        %v6506 = vmul.f32 %v343, %v6461
        %v6507 = vmul.f32 %v344, %v6461
        %v6508 = vmul.f32 %v345, %v6461
        %v6509 = vmul.f32 %v346, %v6461
        %v6558 = vrot.slane %v6462, 4
        %v6559 = vrot.slane %v6463, 4
        %v6560 = vsel %vm6069, %v6558, %v6559
        %v6561 = vrot.slane %v6464, 4
        %v6562 = vsel %vm6069, %v6559, %v6561
        %v6563 = vrot.slane %v6465, 4
        %v6564 = vrot.slane %v6466, 4
        %v6565 = vsel %vm6069, %v6563, %v6564
        %v6566 = vrot.slane %v6467, 4
        %v6567 = vsel %vm6069, %v6564, %v6566
        %v6568 = vrot.slane %v6468, 4
        %v6569 = vrot.slane %v6469, 4
        %v6570 = vsel %vm6069, %v6568, %v6569
        %v6571 = vrot.slane %v6470, 4
        %v6572 = vsel %vm6069, %v6569, %v6571
        %v6573 = vrot.slane %v6471, 4
        %v6574 = vrot.slane %v6472, 4
        %v6575 = vsel %vm6069, %v6573, %v6574
        %v6576 = vrot.slane %v6473, 4
        %v6577 = vsel %vm6069, %v6574, %v6576
        %v6578 = vrot.slane %v6474, 4
        %v6579 = vrot.slane %v6475, 4
        %v6580 = vsel %vm6069, %v6578, %v6579
        %v6581 = vrot.slane %v6476, 4
        %v6582 = vsel %vm6069, %v6579, %v6581
        %v6583 = vrot.slane %v6477, 4
        %v6584 = vrot.slane %v6478, 4
        %v6585 = vsel %vm6069, %v6583, %v6584
        %v6586 = vrot.slane %v6479, 4
        %v6587 = vsel %vm6069, %v6584, %v6586
        %v6588 = vrot.slane %v6480, 4
        %v6589 = vrot.slane %v6481, 4
        %v6590 = vsel %vm6069, %v6588, %v6589
        %v6591 = vrot.slane %v6482, 4
        %v6592 = vsel %vm6069, %v6589, %v6591
        %v6593 = vrot.slane %v6483, 4
        %v6594 = vrot.slane %v6484, 4
        %v6595 = vsel %vm6069, %v6593, %v6594
        %v6596 = vrot.slane %v6485, 4
        %v6597 = vsel %vm6069, %v6594, %v6596
        %v6598 = vrot.slane %v6486, 4
        %v6599 = vrot.slane %v6487, 4
        %v6600 = vsel %vm6069, %v6598, %v6599
        %v6601 = vrot.slane %v6488, 4
        %v6602 = vsel %vm6069, %v6599, %v6601
        %v6603 = vrot.slane %v6489, 4
        %v6604 = vrot.slane %v6490, 4
        %v6605 = vsel %vm6069, %v6603, %v6604
        %v6606 = vrot.slane %v6491, 4
        %v6607 = vsel %vm6069, %v6604, %v6606
        %v6608 = vrot.slane %v6492, 4
        %v6609 = vrot.slane %v6493, 4
        %v6610 = vsel %vm6069, %v6608, %v6609
        %v6611 = vrot.slane %v6494, 4
        %v6612 = vsel %vm6069, %v6609, %v6611
        %v6613 = vrot.slane %v6495, 4
        %v6614 = vrot.slane %v6496, 4
        %v6615 = vsel %vm6069, %v6613, %v6614
        %v6616 = vrot.slane %v6497, 4
        %v6617 = vsel %vm6069, %v6614, %v6616
        %v6618 = vrot.slane %v6498, 4
        %v6619 = vrot.slane %v6499, 4
        %v6620 = vsel %vm6069, %v6618, %v6619
        %v6621 = vrot.slane %v6500, 4
        %v6622 = vsel %vm6069, %v6619, %v6621
        %v6623 = vrot.slane %v6501, 4
        %v6624 = vrot.slane %v6502, 4
        %v6625 = vsel %vm6069, %v6623, %v6624
        %v6626 = vrot.slane %v6503, 4
        %v6627 = vsel %vm6069, %v6624, %v6626
        %v6628 = vrot.slane %v6504, 4
        %v6629 = vrot.slane %v6505, 4
        %v6630 = vsel %vm6069, %v6628, %v6629
        %v6631 = vrot.slane %v6506, 4
        %v6632 = vsel %vm6069, %v6629, %v6631
        %v6633 = vrot.slane %v6507, 4
        %v6634 = vrot.slane %v6508, 4
        %v6635 = vsel %vm6069, %v6633, %v6634
        %v6636 = vrot.slane %v6509, 4
        %v6637 = vsel %vm6069, %v6634, %v6636
        %v6670 = vadd.f32 %v6426, %v6560
        %v6671 = vadd.f32 %v6427, %v6562
        %v6672 = vadd.f32 %v6428, %v6565
        %v6673 = vadd.f32 %v6429, %v6567
        %v6674 = vadd.f32 %v6430, %v6570
        %v6675 = vadd.f32 %v6431, %v6572
        %v6676 = vadd.f32 %v6432, %v6575
        %v6677 = vadd.f32 %v6433, %v6577
        %v6678 = vadd.f32 %v6434, %v6580
        %v6679 = vadd.f32 %v6435, %v6582
        %v6680 = vadd.f32 %v6436, %v6585
        %v6681 = vadd.f32 %v6437, %v6587
        %v6682 = vadd.f32 %v6438, %v6590
        %v6683 = vadd.f32 %v6439, %v6592
        %v6684 = vadd.f32 %v6440, %v6595
        %v6685 = vadd.f32 %v6441, %v6597
        %v6686 = vadd.f32 %v6442, %v6600
        %v6687 = vadd.f32 %v6443, %v6602
        %v6688 = vadd.f32 %v6444, %v6605
        %v6689 = vadd.f32 %v6445, %v6607
        %v6690 = vadd.f32 %v6446, %v6610
        %v6691 = vadd.f32 %v6447, %v6612
        %v6692 = vadd.f32 %v6448, %v6615
        %v6693 = vadd.f32 %v6449, %v6617
        %v6694 = vadd.f32 %v6450, %v6620
        %v6695 = vadd.f32 %v6451, %v6622
        %v6696 = vadd.f32 %v6452, %v6625
        %v6697 = vadd.f32 %v6453, %v6627
        %v6698 = vadd.f32 %v6454, %v6630
        %v6699 = vadd.f32 %v6455, %v6632
        %v6700 = vadd.f32 %v6456, %v6635
        %v6701 = vadd.f32 %v6457, %v6637
        %v6702 = vlaneseq
        %v6703 = vshrl.u32 %v6702, 7
        %v6704 = vsub.s32 4, %v6703
        %v6705 = vrot.slane %v362, %v6704
        %v6706 = vmul.f32 %v302, %v6705
        %v6707 = vmul.f32 %v303, %v6705
        %v6708 = vmul.f32 %v304, %v6705
        %v6709 = vmul.f32 %v305, %v6705
        %v6710 = vmul.f32 %v306, %v6705
        %v6711 = vmul.f32 %v307, %v6705
        %v6712 = vmul.f32 %v308, %v6705
        %v6713 = vmul.f32 %v309, %v6705
        %v6714 = vmul.f32 %v310, %v6705
        %v6715 = vmul.f32 %v311, %v6705
        %v6716 = vmul.f32 %v312, %v6705
        %v6717 = vmul.f32 %v313, %v6705
        %v6718 = vmul.f32 %v314, %v6705
        %v6719 = vmul.f32 %v315, %v6705
        %v6720 = vmul.f32 %v316, %v6705
        %v6721 = vmul.f32 %v317, %v6705
        %v6722 = vmul.f32 %v318, %v6705
        %v6723 = vmul.f32 %v319, %v6705
        %v6724 = vmul.f32 %v320, %v6705
        %v6725 = vmul.f32 %v321, %v6705
        %v6726 = vmul.f32 %v322, %v6705
        %v6727 = vmul.f32 %v323, %v6705
        %v6728 = vmul.f32 %v324, %v6705
        %v6729 = vmul.f32 %v325, %v6705
        %v6730 = vmul.f32 %v326, %v6705
        %v6731 = vmul.f32 %v327, %v6705
        %v6732 = vmul.f32 %v328, %v6705
        %v6733 = vmul.f32 %v329, %v6705
        %v6734 = vmul.f32 %v330, %v6705
        %v6735 = vmul.f32 %v331, %v6705
        %v6736 = vmul.f32 %v332, %v6705
        %v6737 = vmul.f32 %v333, %v6705
        %v6738 = vmul.f32 %v334, %v6705
        %v6739 = vmul.f32 %v335, %v6705
        %v6740 = vmul.f32 %v336, %v6705
        %v6741 = vmul.f32 %v337, %v6705
        %v6742 = vmul.f32 %v338, %v6705
        %v6743 = vmul.f32 %v339, %v6705
        %v6744 = vmul.f32 %v340, %v6705
        %v6745 = vmul.f32 %v341, %v6705
        %v6746 = vmul.f32 %v342, %v6705
        %v6747 = vmul.f32 %v343, %v6705
        %v6748 = vmul.f32 %v344, %v6705
        %v6749 = vmul.f32 %v345, %v6705
        %v6750 = vmul.f32 %v346, %v6705
        %v6751 = vmul.f32 %v347, %v6705
        %v6752 = vmul.f32 %v348, %v6705
        %v6753 = vmul.f32 %v349, %v6705
        %v6802 = vrot.slane %v6706, 4
        %v6803 = vrot.slane %v6707, 4
        %v6804 = vsel %vm6069, %v6802, %v6803
        %v6805 = vrot.slane %v6708, 4
        %v6806 = vsel %vm6069, %v6803, %v6805
        %v6807 = vrot.slane %v6709, 4
        %v6808 = vrot.slane %v6710, 4
        %v6809 = vsel %vm6069, %v6807, %v6808
        %v6810 = vrot.slane %v6711, 4
        %v6811 = vsel %vm6069, %v6808, %v6810
        %v6812 = vrot.slane %v6712, 4
        %v6813 = vrot.slane %v6713, 4
        %v6814 = vsel %vm6069, %v6812, %v6813
        %v6815 = vrot.slane %v6714, 4
        %v6816 = vsel %vm6069, %v6813, %v6815
        %v6817 = vrot.slane %v6715, 4
        %v6818 = vrot.slane %v6716, 4
        %v6819 = vsel %vm6069, %v6817, %v6818
        %v6820 = vrot.slane %v6717, 4
        %v6821 = vsel %vm6069, %v6818, %v6820
        %v6822 = vrot.slane %v6718, 4
        %v6823 = vrot.slane %v6719, 4
        %v6824 = vsel %vm6069, %v6822, %v6823
        %v6825 = vrot.slane %v6720, 4
        %v6826 = vsel %vm6069, %v6823, %v6825
        %v6827 = vrot.slane %v6721, 4
        %v6828 = vrot.slane %v6722, 4
        %v6829 = vsel %vm6069, %v6827, %v6828
        %v6830 = vrot.slane %v6723, 4
        %v6831 = vsel %vm6069, %v6828, %v6830
        %v6832 = vrot.slane %v6724, 4
        %v6833 = vrot.slane %v6725, 4
        %v6834 = vsel %vm6069, %v6832, %v6833
        %v6835 = vrot.slane %v6726, 4
        %v6836 = vsel %vm6069, %v6833, %v6835
        %v6837 = vrot.slane %v6727, 4
        %v6838 = vrot.slane %v6728, 4
        %v6839 = vsel %vm6069, %v6837, %v6838
        %v6840 = vrot.slane %v6729, 4
        %v6841 = vsel %vm6069, %v6838, %v6840
        %v6842 = vrot.slane %v6730, 4
        %v6843 = vrot.slane %v6731, 4
        %v6844 = vsel %vm6069, %v6842, %v6843
        %v6845 = vrot.slane %v6732, 4
        %v6846 = vsel %vm6069, %v6843, %v6845
        %v6847 = vrot.slane %v6733, 4
        %v6848 = vrot.slane %v6734, 4
        %v6849 = vsel %vm6069, %v6847, %v6848
        %v6850 = vrot.slane %v6735, 4
        %v6851 = vsel %vm6069, %v6848, %v6850
        %v6852 = vrot.slane %v6736, 4
        %v6853 = vrot.slane %v6737, 4
        %v6854 = vsel %vm6069, %v6852, %v6853
        %v6855 = vrot.slane %v6738, 4
        %v6856 = vsel %vm6069, %v6853, %v6855
        %v6857 = vrot.slane %v6739, 4
        %v6858 = vrot.slane %v6740, 4
        %v6859 = vsel %vm6069, %v6857, %v6858
        %v6860 = vrot.slane %v6741, 4
        %v6861 = vsel %vm6069, %v6858, %v6860
        %v6862 = vrot.slane %v6742, 4
        %v6863 = vrot.slane %v6743, 4
        %v6864 = vsel %vm6069, %v6862, %v6863
        %v6865 = vrot.slane %v6744, 4
        %v6866 = vsel %vm6069, %v6863, %v6865
        %v6867 = vrot.slane %v6745, 4
        %v6868 = vrot.slane %v6746, 4
        %v6869 = vsel %vm6069, %v6867, %v6868
        %v6870 = vrot.slane %v6747, 4
        %v6871 = vsel %vm6069, %v6868, %v6870
        %v6872 = vrot.slane %v6748, 4
        %v6873 = vrot.slane %v6749, 4
        %v6874 = vsel %vm6069, %v6872, %v6873
        %v6875 = vrot.slane %v6750, 4
        %v6876 = vsel %vm6069, %v6873, %v6875
        %v6877 = vrot.slane %v6751, 4
        %v6878 = vrot.slane %v6752, 4
        %v6879 = vsel %vm6069, %v6877, %v6878
        %v6880 = vrot.slane %v6753, 4
        %v6881 = vsel %vm6069, %v6878, %v6880
        %v6914 = vadd.f32 %v6670, %v6804
        %v6915 = vadd.f32 %v6671, %v6806
        %v6916 = vadd.f32 %v6672, %v6809
        %v6917 = vadd.f32 %v6673, %v6811
        %v6918 = vadd.f32 %v6674, %v6814
        %v6919 = vadd.f32 %v6675, %v6816
        %v6920 = vadd.f32 %v6676, %v6819
        %v6921 = vadd.f32 %v6677, %v6821
        %v6922 = vadd.f32 %v6678, %v6824
        %v6923 = vadd.f32 %v6679, %v6826
        %v6924 = vadd.f32 %v6680, %v6829
        %v6925 = vadd.f32 %v6681, %v6831
        %v6926 = vadd.f32 %v6682, %v6834
        %v6927 = vadd.f32 %v6683, %v6836
        %v6928 = vadd.f32 %v6684, %v6839
        %v6929 = vadd.f32 %v6685, %v6841
        %v6930 = vadd.f32 %v6686, %v6844
        %v6931 = vadd.f32 %v6687, %v6846
        %v6932 = vadd.f32 %v6688, %v6849
        %v6933 = vadd.f32 %v6689, %v6851
        %v6934 = vadd.f32 %v6690, %v6854
        %v6935 = vadd.f32 %v6691, %v6856
        %v6936 = vadd.f32 %v6692, %v6859
        %v6937 = vadd.f32 %v6693, %v6861
        %v6938 = vadd.f32 %v6694, %v6864
        %v6939 = vadd.f32 %v6695, %v6866
        %v6940 = vadd.f32 %v6696, %v6869
        %v6941 = vadd.f32 %v6697, %v6871
        %v6942 = vadd.f32 %v6698, %v6874
        %v6943 = vadd.f32 %v6699, %v6876
        %v6944 = vadd.f32 %v6700, %v6879
        %v6945 = vadd.f32 %v6701, %v6881
        %v6946 = vlaneseq
        %v6947 = vshrl.u32 %v6946, 7
        %v6948 = vsub.s32 4, %v6947
        %v6949 = vrot.slane %v363, %v6948
        %v6950 = vmul.f32 %v305, %v6949
        %v6951 = vmul.f32 %v306, %v6949
        %v6952 = vmul.f32 %v307, %v6949
        %v6953 = vmul.f32 %v308, %v6949
        %v6954 = vmul.f32 %v309, %v6949
        %v6955 = vmul.f32 %v310, %v6949
        %v6956 = vmul.f32 %v311, %v6949
        %v6957 = vmul.f32 %v312, %v6949
        %v6958 = vmul.f32 %v313, %v6949
        %v6959 = vmul.f32 %v314, %v6949
        %v6960 = vmul.f32 %v315, %v6949
        %v6961 = vmul.f32 %v316, %v6949
        %v6962 = vmul.f32 %v317, %v6949
        %v6963 = vmul.f32 %v318, %v6949
        %v6964 = vmul.f32 %v319, %v6949
        %v6965 = vmul.f32 %v320, %v6949
        %v6966 = vmul.f32 %v321, %v6949
        %v6967 = vmul.f32 %v322, %v6949
        %v6968 = vmul.f32 %v323, %v6949
        %v6969 = vmul.f32 %v324, %v6949
        %v6970 = vmul.f32 %v325, %v6949
        %v6971 = vmul.f32 %v326, %v6949
        %v6972 = vmul.f32 %v327, %v6949
        %v6973 = vmul.f32 %v328, %v6949
        %v6974 = vmul.f32 %v329, %v6949
        %v6975 = vmul.f32 %v330, %v6949
        %v6976 = vmul.f32 %v331, %v6949
        %v6977 = vmul.f32 %v332, %v6949
        %v6978 = vmul.f32 %v333, %v6949
        %v6979 = vmul.f32 %v334, %v6949
        %v6980 = vmul.f32 %v335, %v6949
        %v6981 = vmul.f32 %v336, %v6949
        %v6982 = vmul.f32 %v337, %v6949
        %v6983 = vmul.f32 %v338, %v6949
        %v6984 = vmul.f32 %v339, %v6949
        %v6985 = vmul.f32 %v340, %v6949
        %v6986 = vmul.f32 %v341, %v6949
        %v6987 = vmul.f32 %v342, %v6949
        %v6988 = vmul.f32 %v343, %v6949
        %v6989 = vmul.f32 %v344, %v6949
        %v6990 = vmul.f32 %v345, %v6949
        %v6991 = vmul.f32 %v346, %v6949
        %v6992 = vmul.f32 %v347, %v6949
        %v6993 = vmul.f32 %v348, %v6949
        %v6994 = vmul.f32 %v349, %v6949
        %v6995 = vmul.f32 %v350, %v6949
        %v6996 = vmul.f32 %v351, %v6949
        %v6997 = vmul.f32 %v352, %v6949
        %v7046 = vrot.slane %v6950, 4
        %v7047 = vrot.slane %v6951, 4
        %v7048 = vsel %vm6069, %v7046, %v7047
        %v7049 = vrot.slane %v6952, 4
        %v7050 = vsel %vm6069, %v7047, %v7049
        %v7051 = vrot.slane %v6953, 4
        %v7052 = vrot.slane %v6954, 4
        %v7053 = vsel %vm6069, %v7051, %v7052
        %v7054 = vrot.slane %v6955, 4
        %v7055 = vsel %vm6069, %v7052, %v7054
        %v7056 = vrot.slane %v6956, 4
        %v7057 = vrot.slane %v6957, 4
        %v7058 = vsel %vm6069, %v7056, %v7057
        %v7059 = vrot.slane %v6958, 4
        %v7060 = vsel %vm6069, %v7057, %v7059
        %v7061 = vrot.slane %v6959, 4
        %v7062 = vrot.slane %v6960, 4
        %v7063 = vsel %vm6069, %v7061, %v7062
        %v7064 = vrot.slane %v6961, 4
        %v7065 = vsel %vm6069, %v7062, %v7064
        %v7066 = vrot.slane %v6962, 4
        %v7067 = vrot.slane %v6963, 4
        %v7068 = vsel %vm6069, %v7066, %v7067
        %v7069 = vrot.slane %v6964, 4
        %v7070 = vsel %vm6069, %v7067, %v7069
        %v7071 = vrot.slane %v6965, 4
        %v7072 = vrot.slane %v6966, 4
        %v7073 = vsel %vm6069, %v7071, %v7072
        %v7074 = vrot.slane %v6967, 4
        %v7075 = vsel %vm6069, %v7072, %v7074
        %v7076 = vrot.slane %v6968, 4
        %v7077 = vrot.slane %v6969, 4
        %v7078 = vsel %vm6069, %v7076, %v7077
        %v7079 = vrot.slane %v6970, 4
        %v7080 = vsel %vm6069, %v7077, %v7079
        %v7081 = vrot.slane %v6971, 4
        %v7082 = vrot.slane %v6972, 4
        %v7083 = vsel %vm6069, %v7081, %v7082
        %v7084 = vrot.slane %v6973, 4
        %v7085 = vsel %vm6069, %v7082, %v7084
        %v7086 = vrot.slane %v6974, 4
        %v7087 = vrot.slane %v6975, 4
        %v7088 = vsel %vm6069, %v7086, %v7087
        %v7089 = vrot.slane %v6976, 4
        %v7090 = vsel %vm6069, %v7087, %v7089
        %v7091 = vrot.slane %v6977, 4
        %v7092 = vrot.slane %v6978, 4
        %v7093 = vsel %vm6069, %v7091, %v7092
        %v7094 = vrot.slane %v6979, 4
        %v7095 = vsel %vm6069, %v7092, %v7094
        %v7096 = vrot.slane %v6980, 4
        %v7097 = vrot.slane %v6981, 4
        %v7098 = vsel %vm6069, %v7096, %v7097
        %v7099 = vrot.slane %v6982, 4
        %v7100 = vsel %vm6069, %v7097, %v7099
        %v7101 = vrot.slane %v6983, 4
        %v7102 = vrot.slane %v6984, 4
        %v7103 = vsel %vm6069, %v7101, %v7102
        %v7104 = vrot.slane %v6985, 4
        %v7105 = vsel %vm6069, %v7102, %v7104
        %v7106 = vrot.slane %v6986, 4
        %v7107 = vrot.slane %v6987, 4
        %v7108 = vsel %vm6069, %v7106, %v7107
        %v7109 = vrot.slane %v6988, 4
        %v7110 = vsel %vm6069, %v7107, %v7109
        %v7111 = vrot.slane %v6989, 4
        %v7112 = vrot.slane %v6990, 4
        %v7113 = vsel %vm6069, %v7111, %v7112
        %v7114 = vrot.slane %v6991, 4
        %v7115 = vsel %vm6069, %v7112, %v7114
        %v7116 = vrot.slane %v6992, 4
        %v7117 = vrot.slane %v6993, 4
        %v7118 = vsel %vm6069, %v7116, %v7117
        %v7119 = vrot.slane %v6994, 4
        %v7120 = vsel %vm6069, %v7117, %v7119
        %v7121 = vrot.slane %v6995, 4
        %v7122 = vrot.slane %v6996, 4
        %v7123 = vsel %vm6069, %v7121, %v7122
        %v7124 = vrot.slane %v6997, 4
        %v7125 = vsel %vm6069, %v7122, %v7124
        %v7158 = vadd.f32 %v6914, %v7048
        %v7159 = vadd.f32 %v6915, %v7050
        %v7160 = vadd.f32 %v6916, %v7053
        %v7161 = vadd.f32 %v6917, %v7055
        %v7162 = vadd.f32 %v6918, %v7058
        %v7163 = vadd.f32 %v6919, %v7060
        %v7164 = vadd.f32 %v6920, %v7063
        %v7165 = vadd.f32 %v6921, %v7065
        %v7166 = vadd.f32 %v6922, %v7068
        %v7167 = vadd.f32 %v6923, %v7070
        %v7168 = vadd.f32 %v6924, %v7073
        %v7169 = vadd.f32 %v6925, %v7075
        %v7170 = vadd.f32 %v6926, %v7078
        %v7171 = vadd.f32 %v6927, %v7080
        %v7172 = vadd.f32 %v6928, %v7083
        %v7173 = vadd.f32 %v6929, %v7085
        %v7174 = vadd.f32 %v6930, %v7088
        %v7175 = vadd.f32 %v6931, %v7090
        %v7176 = vadd.f32 %v6932, %v7093
        %v7177 = vadd.f32 %v6933, %v7095
        %v7178 = vadd.f32 %v6934, %v7098
        %v7179 = vadd.f32 %v6935, %v7100
        %v7180 = vadd.f32 %v6936, %v7103
        %v7181 = vadd.f32 %v6937, %v7105
        %v7182 = vadd.f32 %v6938, %v7108
        %v7183 = vadd.f32 %v6939, %v7110
        %v7184 = vadd.f32 %v6940, %v7113
        %v7185 = vadd.f32 %v6941, %v7115
        %v7186 = vadd.f32 %v6942, %v7118
        %v7187 = vadd.f32 %v6943, %v7120
        %v7188 = vadd.f32 %v6944, %v7123
        %v7189 = vadd.f32 %v6945, %v7125
        %v7190 = vlaneseq
        %v7191 = vshrl.u32 %v7190, 7
        %v7192 = vsub.s32 4, %v7191
        %v7193 = vrot.slane %v364, %v7192
        %v7194 = vmul.f32 %v308, %v7193
        %v7195 = vmul.f32 %v309, %v7193
        %v7196 = vmul.f32 %v310, %v7193
        %v7197 = vmul.f32 %v311, %v7193
        %v7198 = vmul.f32 %v312, %v7193
        %v7199 = vmul.f32 %v313, %v7193
        %v7200 = vmul.f32 %v314, %v7193
        %v7201 = vmul.f32 %v315, %v7193
        %v7202 = vmul.f32 %v316, %v7193
        %v7203 = vmul.f32 %v317, %v7193
        %v7204 = vmul.f32 %v318, %v7193
        %v7205 = vmul.f32 %v319, %v7193
        %v7206 = vmul.f32 %v320, %v7193
        %v7207 = vmul.f32 %v321, %v7193
        %v7208 = vmul.f32 %v322, %v7193
        %v7209 = vmul.f32 %v323, %v7193
        %v7210 = vmul.f32 %v324, %v7193
        %v7211 = vmul.f32 %v325, %v7193
        %v7212 = vmul.f32 %v326, %v7193
        %v7213 = vmul.f32 %v327, %v7193
        %v7214 = vmul.f32 %v328, %v7193
        %v7215 = vmul.f32 %v329, %v7193
        %v7216 = vmul.f32 %v330, %v7193
        %v7217 = vmul.f32 %v331, %v7193
        %v7218 = vmul.f32 %v332, %v7193
        %v7219 = vmul.f32 %v333, %v7193
        %v7220 = vmul.f32 %v334, %v7193
        %v7221 = vmul.f32 %v335, %v7193
        %v7222 = vmul.f32 %v336, %v7193
        %v7223 = vmul.f32 %v337, %v7193
        %v7224 = vmul.f32 %v338, %v7193
        %v7225 = vmul.f32 %v339, %v7193
        %v7226 = vmul.f32 %v340, %v7193
        %v7227 = vmul.f32 %v341, %v7193
        %v7228 = vmul.f32 %v342, %v7193
        %v7229 = vmul.f32 %v343, %v7193
        %v7230 = vmul.f32 %v344, %v7193
        %v7231 = vmul.f32 %v345, %v7193
        %v7232 = vmul.f32 %v346, %v7193
        %v7233 = vmul.f32 %v347, %v7193
        %v7234 = vmul.f32 %v348, %v7193
        %v7235 = vmul.f32 %v349, %v7193
        %v7236 = vmul.f32 %v350, %v7193
        %v7237 = vmul.f32 %v351, %v7193
        %v7238 = vmul.f32 %v352, %v7193
        %v7239 = vmul.f32 %v353, %v7193
        %v7240 = vmul.f32 %v354, %v7193
        %v7241 = vmul.f32 %v355, %v7193
        %v7290 = vrot.slane %v7194, 4
        %v7291 = vrot.slane %v7195, 4
        %v7292 = vsel %vm6069, %v7290, %v7291
        %v7293 = vrot.slane %v7196, 4
        %v7294 = vsel %vm6069, %v7291, %v7293
        %v7295 = vrot.slane %v7197, 4
        %v7296 = vrot.slane %v7198, 4
        %v7297 = vsel %vm6069, %v7295, %v7296
        %v7298 = vrot.slane %v7199, 4
        %v7299 = vsel %vm6069, %v7296, %v7298
        %v7300 = vrot.slane %v7200, 4
        %v7301 = vrot.slane %v7201, 4
        %v7302 = vsel %vm6069, %v7300, %v7301
        %v7303 = vrot.slane %v7202, 4
        %v7304 = vsel %vm6069, %v7301, %v7303
        %v7305 = vrot.slane %v7203, 4
        %v7306 = vrot.slane %v7204, 4
        %v7307 = vsel %vm6069, %v7305, %v7306
        %v7308 = vrot.slane %v7205, 4
        %v7309 = vsel %vm6069, %v7306, %v7308
        %v7310 = vrot.slane %v7206, 4
        %v7311 = vrot.slane %v7207, 4
        %v7312 = vsel %vm6069, %v7310, %v7311
        %v7313 = vrot.slane %v7208, 4
        %v7314 = vsel %vm6069, %v7311, %v7313
        %v7315 = vrot.slane %v7209, 4
        %v7316 = vrot.slane %v7210, 4
        %v7317 = vsel %vm6069, %v7315, %v7316
        %v7318 = vrot.slane %v7211, 4
        %v7319 = vsel %vm6069, %v7316, %v7318
        %v7320 = vrot.slane %v7212, 4
        %v7321 = vrot.slane %v7213, 4
        %v7322 = vsel %vm6069, %v7320, %v7321
        %v7323 = vrot.slane %v7214, 4
        %v7324 = vsel %vm6069, %v7321, %v7323
        %v7325 = vrot.slane %v7215, 4
        %v7326 = vrot.slane %v7216, 4
        %v7327 = vsel %vm6069, %v7325, %v7326
        %v7328 = vrot.slane %v7217, 4
        %v7329 = vsel %vm6069, %v7326, %v7328
        %v7330 = vrot.slane %v7218, 4
        %v7331 = vrot.slane %v7219, 4
        %v7332 = vsel %vm6069, %v7330, %v7331
        %v7333 = vrot.slane %v7220, 4
        %v7334 = vsel %vm6069, %v7331, %v7333
        %v7335 = vrot.slane %v7221, 4
        %v7336 = vrot.slane %v7222, 4
        %v7337 = vsel %vm6069, %v7335, %v7336
        %v7338 = vrot.slane %v7223, 4
        %v7339 = vsel %vm6069, %v7336, %v7338
        %v7340 = vrot.slane %v7224, 4
        %v7341 = vrot.slane %v7225, 4
        %v7342 = vsel %vm6069, %v7340, %v7341
        %v7343 = vrot.slane %v7226, 4
        %v7344 = vsel %vm6069, %v7341, %v7343
        %v7345 = vrot.slane %v7227, 4
        %v7346 = vrot.slane %v7228, 4
        %v7347 = vsel %vm6069, %v7345, %v7346
        %v7348 = vrot.slane %v7229, 4
        %v7349 = vsel %vm6069, %v7346, %v7348
        %v7350 = vrot.slane %v7230, 4
        %v7351 = vrot.slane %v7231, 4
        %v7352 = vsel %vm6069, %v7350, %v7351
        %v7353 = vrot.slane %v7232, 4
        %v7354 = vsel %vm6069, %v7351, %v7353
        %v7355 = vrot.slane %v7233, 4
        %v7356 = vrot.slane %v7234, 4
        %v7357 = vsel %vm6069, %v7355, %v7356
        %v7358 = vrot.slane %v7235, 4
        %v7359 = vsel %vm6069, %v7356, %v7358
        %v7360 = vrot.slane %v7236, 4
        %v7361 = vrot.slane %v7237, 4
        %v7362 = vsel %vm6069, %v7360, %v7361
        %v7363 = vrot.slane %v7238, 4
        %v7364 = vsel %vm6069, %v7361, %v7363
        %v7365 = vrot.slane %v7239, 4
        %v7366 = vrot.slane %v7240, 4
        %v7367 = vsel %vm6069, %v7365, %v7366
        %v7368 = vrot.slane %v7241, 4
        %v7369 = vsel %vm6069, %v7366, %v7368
        %v7402 = vadd.f32 %v7158, %v7292
        %v7403 = vadd.f32 %v7159, %v7294
        %v7404 = vadd.f32 %v7160, %v7297
        %v7405 = vadd.f32 %v7161, %v7299
        %v7406 = vadd.f32 %v7162, %v7302
        %v7407 = vadd.f32 %v7163, %v7304
        %v7408 = vadd.f32 %v7164, %v7307
        %v7409 = vadd.f32 %v7165, %v7309
        %v7410 = vadd.f32 %v7166, %v7312
        %v7411 = vadd.f32 %v7167, %v7314
        %v7412 = vadd.f32 %v7168, %v7317
        %v7413 = vadd.f32 %v7169, %v7319
        %v7414 = vadd.f32 %v7170, %v7322
        %v7415 = vadd.f32 %v7171, %v7324
        %v7416 = vadd.f32 %v7172, %v7327
        %v7417 = vadd.f32 %v7173, %v7329
        %v7418 = vadd.f32 %v7174, %v7332
        %v7419 = vadd.f32 %v7175, %v7334
        %v7420 = vadd.f32 %v7176, %v7337
        %v7421 = vadd.f32 %v7177, %v7339
        %v7422 = vadd.f32 %v7178, %v7342
        %v7423 = vadd.f32 %v7179, %v7344
        %v7424 = vadd.f32 %v7180, %v7347
        %v7425 = vadd.f32 %v7181, %v7349
        %v7426 = vadd.f32 %v7182, %v7352
        %v7427 = vadd.f32 %v7183, %v7354
        %v7428 = vadd.f32 %v7184, %v7357
        %v7429 = vadd.f32 %v7185, %v7359
        %v7430 = vadd.f32 %v7186, %v7362
        %v7431 = vadd.f32 %v7187, %v7364
        %v7432 = vadd.f32 %v7188, %v7367
        %v7433 = vadd.f32 %v7189, %v7369
        %v7434 = vlaneseq
        %v7435 = vshrl.u32 %v7434, 7
        %v7436 = vsub.s32 4, %v7435
        %v7437 = vrot.slane %v365, %v7436
        %v7438 = vmul.f32 %v311, %v7437
        %v7439 = vmul.f32 %v312, %v7437
        %v7440 = vmul.f32 %v313, %v7437
        %v7441 = vmul.f32 %v314, %v7437
        %v7442 = vmul.f32 %v315, %v7437
        %v7443 = vmul.f32 %v316, %v7437
        %v7444 = vmul.f32 %v317, %v7437
        %v7445 = vmul.f32 %v318, %v7437
        %v7446 = vmul.f32 %v319, %v7437
        %v7447 = vmul.f32 %v320, %v7437
        %v7448 = vmul.f32 %v321, %v7437
        %v7449 = vmul.f32 %v322, %v7437
        %v7450 = vmul.f32 %v323, %v7437
        %v7451 = vmul.f32 %v324, %v7437
        %v7452 = vmul.f32 %v325, %v7437
        %v7453 = vmul.f32 %v326, %v7437
        %v7454 = vmul.f32 %v327, %v7437
        %v7455 = vmul.f32 %v328, %v7437
        %v7456 = vmul.f32 %v329, %v7437
        %v7457 = vmul.f32 %v330, %v7437
        %v7458 = vmul.f32 %v331, %v7437
        %v7459 = vmul.f32 %v332, %v7437
        %v7460 = vmul.f32 %v333, %v7437
        %v7461 = vmul.f32 %v334, %v7437
        %v7462 = vmul.f32 %v335, %v7437
        %v7463 = vmul.f32 %v336, %v7437
        %v7464 = vmul.f32 %v337, %v7437
        %v7465 = vmul.f32 %v338, %v7437
        %v7466 = vmul.f32 %v339, %v7437
        %v7467 = vmul.f32 %v340, %v7437
        %v7468 = vmul.f32 %v341, %v7437
        %v7469 = vmul.f32 %v342, %v7437
        %v7470 = vmul.f32 %v343, %v7437
        %v7471 = vmul.f32 %v344, %v7437
        %v7472 = vmul.f32 %v345, %v7437
        %v7473 = vmul.f32 %v346, %v7437
        %v7474 = vmul.f32 %v347, %v7437
        %v7475 = vmul.f32 %v348, %v7437
        %v7476 = vmul.f32 %v349, %v7437
        %v7477 = vmul.f32 %v350, %v7437
        %v7478 = vmul.f32 %v351, %v7437
        %v7479 = vmul.f32 %v352, %v7437
        %v7480 = vmul.f32 %v353, %v7437
        %v7481 = vmul.f32 %v354, %v7437
        %v7482 = vmul.f32 %v355, %v7437
        %v7483 = vmul.f32 %v356, %v7437
        %v7484 = vmul.f32 %v357, %v7437
        %v7485 = vmul.f32 %v358, %v7437
        %v7534 = vrot.slane %v7438, 4
        %v7535 = vrot.slane %v7439, 4
        %v7536 = vsel %vm6069, %v7534, %v7535
        %v7537 = vrot.slane %v7440, 4
        %v7538 = vsel %vm6069, %v7535, %v7537
        %v7539 = vrot.slane %v7441, 4
        %v7540 = vrot.slane %v7442, 4
        %v7541 = vsel %vm6069, %v7539, %v7540
        %v7542 = vrot.slane %v7443, 4
        %v7543 = vsel %vm6069, %v7540, %v7542
        %v7544 = vrot.slane %v7444, 4
        %v7545 = vrot.slane %v7445, 4
        %v7546 = vsel %vm6069, %v7544, %v7545
        %v7547 = vrot.slane %v7446, 4
        %v7548 = vsel %vm6069, %v7545, %v7547
        %v7549 = vrot.slane %v7447, 4
        %v7550 = vrot.slane %v7448, 4
        %v7551 = vsel %vm6069, %v7549, %v7550
        %v7552 = vrot.slane %v7449, 4
        %v7553 = vsel %vm6069, %v7550, %v7552
        %v7554 = vrot.slane %v7450, 4
        %v7555 = vrot.slane %v7451, 4
        %v7556 = vsel %vm6069, %v7554, %v7555
        %v7557 = vrot.slane %v7452, 4
        %v7558 = vsel %vm6069, %v7555, %v7557
        %v7559 = vrot.slane %v7453, 4
        %v7560 = vrot.slane %v7454, 4
        %v7561 = vsel %vm6069, %v7559, %v7560
        %v7562 = vrot.slane %v7455, 4
        %v7563 = vsel %vm6069, %v7560, %v7562
        %v7564 = vrot.slane %v7456, 4
        %v7565 = vrot.slane %v7457, 4
        %v7566 = vsel %vm6069, %v7564, %v7565
        %v7567 = vrot.slane %v7458, 4
        %v7568 = vsel %vm6069, %v7565, %v7567
        %v7569 = vrot.slane %v7459, 4
        %v7570 = vrot.slane %v7460, 4
        %v7571 = vsel %vm6069, %v7569, %v7570
        %v7572 = vrot.slane %v7461, 4
        %v7573 = vsel %vm6069, %v7570, %v7572
        %v7574 = vrot.slane %v7462, 4
        %v7575 = vrot.slane %v7463, 4
        %v7576 = vsel %vm6069, %v7574, %v7575
        %v7577 = vrot.slane %v7464, 4
        %v7578 = vsel %vm6069, %v7575, %v7577
        %v7579 = vrot.slane %v7465, 4
        %v7580 = vrot.slane %v7466, 4
        %v7581 = vsel %vm6069, %v7579, %v7580
        %v7582 = vrot.slane %v7467, 4
        %v7583 = vsel %vm6069, %v7580, %v7582
        %v7584 = vrot.slane %v7468, 4
        %v7585 = vrot.slane %v7469, 4
        %v7586 = vsel %vm6069, %v7584, %v7585
        %v7587 = vrot.slane %v7470, 4
        %v7588 = vsel %vm6069, %v7585, %v7587
        %v7589 = vrot.slane %v7471, 4
        %v7590 = vrot.slane %v7472, 4
        %v7591 = vsel %vm6069, %v7589, %v7590
        %v7592 = vrot.slane %v7473, 4
        %v7593 = vsel %vm6069, %v7590, %v7592
        %v7594 = vrot.slane %v7474, 4
        %v7595 = vrot.slane %v7475, 4
        %v7596 = vsel %vm6069, %v7594, %v7595
        %v7597 = vrot.slane %v7476, 4
        %v7598 = vsel %vm6069, %v7595, %v7597
        %v7599 = vrot.slane %v7477, 4
        %v7600 = vrot.slane %v7478, 4
        %v7601 = vsel %vm6069, %v7599, %v7600
        %v7602 = vrot.slane %v7479, 4
        %v7603 = vsel %vm6069, %v7600, %v7602
        %v7604 = vrot.slane %v7480, 4
        %v7605 = vrot.slane %v7481, 4
        %v7606 = vsel %vm6069, %v7604, %v7605
        %v7607 = vrot.slane %v7482, 4
        %v7608 = vsel %vm6069, %v7605, %v7607
        %v7609 = vrot.slane %v7483, 4
        %v7610 = vrot.slane %v7484, 4
        %v7611 = vsel %vm6069, %v7609, %v7610
        %v7612 = vrot.slane %v7485, 4
        %v7613 = vsel %vm6069, %v7610, %v7612
        %v7646 = vadd.f32 %v7402, %v7536
        %v7647 = vadd.f32 %v7403, %v7538
        %v7648 = vadd.f32 %v7404, %v7541
        %v7649 = vadd.f32 %v7405, %v7543
        %v7650 = vadd.f32 %v7406, %v7546
        %v7651 = vadd.f32 %v7407, %v7548
        %v7652 = vadd.f32 %v7408, %v7551
        %v7653 = vadd.f32 %v7409, %v7553
        %v7654 = vadd.f32 %v7410, %v7556
        %v7655 = vadd.f32 %v7411, %v7558
        %v7656 = vadd.f32 %v7412, %v7561
        %v7657 = vadd.f32 %v7413, %v7563
        %v7658 = vadd.f32 %v7414, %v7566
        %v7659 = vadd.f32 %v7415, %v7568
        %v7660 = vadd.f32 %v7416, %v7571
        %v7661 = vadd.f32 %v7417, %v7573
        %v7662 = vadd.f32 %v7418, %v7576
        %v7663 = vadd.f32 %v7419, %v7578
        %v7664 = vadd.f32 %v7420, %v7581
        %v7665 = vadd.f32 %v7421, %v7583
        %v7666 = vadd.f32 %v7422, %v7586
        %v7667 = vadd.f32 %v7423, %v7588
        %v7668 = vadd.f32 %v7424, %v7591
        %v7669 = vadd.f32 %v7425, %v7593
        %v7670 = vadd.f32 %v7426, %v7596
        %v7671 = vadd.f32 %v7427, %v7598
        %v7672 = vadd.f32 %v7428, %v7601
        %v7673 = vadd.f32 %v7429, %v7603
        %v7674 = vadd.f32 %v7430, %v7606
        %v7675 = vadd.f32 %v7431, %v7608
        %v7676 = vadd.f32 %v7432, %v7611
        %v7677 = vadd.f32 %v7433, %v7613
        %v7678 = vlaneseq
        %v7679 = vshrl.u32 %v7678, 7
        %v7680 = vsub.s32 5, %v7679
        %v7681 = vrot.slane %v359, %v7680
        %v7682 = vmul.f32 %v293, %v7681
        %v7683 = vmul.f32 %v294, %v7681
        %v7684 = vmul.f32 %v295, %v7681
        %v7685 = vmul.f32 %v296, %v7681
        %v7686 = vmul.f32 %v297, %v7681
        %v7687 = vmul.f32 %v298, %v7681
        %v7688 = vmul.f32 %v299, %v7681
        %v7689 = vmul.f32 %v300, %v7681
        %v7690 = vmul.f32 %v301, %v7681
        %v7691 = vmul.f32 %v302, %v7681
        %v7692 = vmul.f32 %v303, %v7681
        %v7693 = vmul.f32 %v304, %v7681
        %v7694 = vmul.f32 %v305, %v7681
        %v7695 = vmul.f32 %v306, %v7681
        %v7696 = vmul.f32 %v307, %v7681
        %v7697 = vmul.f32 %v308, %v7681
        %v7698 = vmul.f32 %v309, %v7681
        %v7699 = vmul.f32 %v310, %v7681
        %v7700 = vmul.f32 %v311, %v7681
        %v7701 = vmul.f32 %v312, %v7681
        %v7702 = vmul.f32 %v313, %v7681
        %v7703 = vmul.f32 %v314, %v7681
        %v7704 = vmul.f32 %v315, %v7681
        %v7705 = vmul.f32 %v316, %v7681
        %v7706 = vmul.f32 %v317, %v7681
        %v7707 = vmul.f32 %v318, %v7681
        %v7708 = vmul.f32 %v319, %v7681
        %v7709 = vmul.f32 %v320, %v7681
        %v7710 = vmul.f32 %v321, %v7681
        %v7711 = vmul.f32 %v322, %v7681
        %v7712 = vmul.f32 %v323, %v7681
        %v7713 = vmul.f32 %v324, %v7681
        %v7714 = vmul.f32 %v325, %v7681
        %v7715 = vmul.f32 %v326, %v7681
        %v7716 = vmul.f32 %v327, %v7681
        %v7717 = vmul.f32 %v328, %v7681
        %v7718 = vmul.f32 %v329, %v7681
        %v7719 = vmul.f32 %v330, %v7681
        %v7720 = vmul.f32 %v331, %v7681
        %v7721 = vmul.f32 %v332, %v7681
        %v7722 = vmul.f32 %v333, %v7681
        %v7723 = vmul.f32 %v334, %v7681
        %v7724 = vmul.f32 %v335, %v7681
        %v7725 = vmul.f32 %v336, %v7681
        %v7726 = vmul.f32 %v337, %v7681
        %v7727 = vmul.f32 %v338, %v7681
        %v7728 = vmul.f32 %v339, %v7681
        %v7729 = vmul.f32 %v340, %v7681
        %vm7778 = vcmask 1042432
        %v7779 = vrot.slane %v7682, 5
        %v7780 = vrot.slane %v7683, 5
        %v7781 = vsel %vm7778, %v7779, %v7780
        %v7782 = vrot.slane %v7684, 5
        %v7783 = vsel %vm7778, %v7780, %v7782
        %v7784 = vrot.slane %v7685, 5
        %v7785 = vrot.slane %v7686, 5
        %v7786 = vsel %vm7778, %v7784, %v7785
        %v7787 = vrot.slane %v7687, 5
        %v7788 = vsel %vm7778, %v7785, %v7787
        %v7789 = vrot.slane %v7688, 5
        %v7790 = vrot.slane %v7689, 5
        %v7791 = vsel %vm7778, %v7789, %v7790
        %v7792 = vrot.slane %v7690, 5
        %v7793 = vsel %vm7778, %v7790, %v7792
        %v7794 = vrot.slane %v7691, 5
        %v7795 = vrot.slane %v7692, 5
        %v7796 = vsel %vm7778, %v7794, %v7795
        %v7797 = vrot.slane %v7693, 5
        %v7798 = vsel %vm7778, %v7795, %v7797
        %v7799 = vrot.slane %v7694, 5
        %v7800 = vrot.slane %v7695, 5
        %v7801 = vsel %vm7778, %v7799, %v7800
        %v7802 = vrot.slane %v7696, 5
        %v7803 = vsel %vm7778, %v7800, %v7802
        %v7804 = vrot.slane %v7697, 5
        %v7805 = vrot.slane %v7698, 5
        %v7806 = vsel %vm7778, %v7804, %v7805
        %v7807 = vrot.slane %v7699, 5
        %v7808 = vsel %vm7778, %v7805, %v7807
        %v7809 = vrot.slane %v7700, 5
        %v7810 = vrot.slane %v7701, 5
        %v7811 = vsel %vm7778, %v7809, %v7810
        %v7812 = vrot.slane %v7702, 5
        %v7813 = vsel %vm7778, %v7810, %v7812
        %v7814 = vrot.slane %v7703, 5
        %v7815 = vrot.slane %v7704, 5
        %v7816 = vsel %vm7778, %v7814, %v7815
        %v7817 = vrot.slane %v7705, 5
        %v7818 = vsel %vm7778, %v7815, %v7817
        %v7819 = vrot.slane %v7706, 5
        %v7820 = vrot.slane %v7707, 5
        %v7821 = vsel %vm7778, %v7819, %v7820
        %v7822 = vrot.slane %v7708, 5
        %v7823 = vsel %vm7778, %v7820, %v7822
        %v7824 = vrot.slane %v7709, 5
        %v7825 = vrot.slane %v7710, 5
        %v7826 = vsel %vm7778, %v7824, %v7825
        %v7827 = vrot.slane %v7711, 5
        %v7828 = vsel %vm7778, %v7825, %v7827
        %v7829 = vrot.slane %v7712, 5
        %v7830 = vrot.slane %v7713, 5
        %v7831 = vsel %vm7778, %v7829, %v7830
        %v7832 = vrot.slane %v7714, 5
        %v7833 = vsel %vm7778, %v7830, %v7832
        %v7834 = vrot.slane %v7715, 5
        %v7835 = vrot.slane %v7716, 5
        %v7836 = vsel %vm7778, %v7834, %v7835
        %v7837 = vrot.slane %v7717, 5
        %v7838 = vsel %vm7778, %v7835, %v7837
        %v7839 = vrot.slane %v7718, 5
        %v7840 = vrot.slane %v7719, 5
        %v7841 = vsel %vm7778, %v7839, %v7840
        %v7842 = vrot.slane %v7720, 5
        %v7843 = vsel %vm7778, %v7840, %v7842
        %v7844 = vrot.slane %v7721, 5
        %v7845 = vrot.slane %v7722, 5
        %v7846 = vsel %vm7778, %v7844, %v7845
        %v7847 = vrot.slane %v7723, 5
        %v7848 = vsel %vm7778, %v7845, %v7847
        %v7849 = vrot.slane %v7724, 5
        %v7850 = vrot.slane %v7725, 5
        %v7851 = vsel %vm7778, %v7849, %v7850
        %v7852 = vrot.slane %v7726, 5
        %v7853 = vsel %vm7778, %v7850, %v7852
        %v7854 = vrot.slane %v7727, 5
        %v7855 = vrot.slane %v7728, 5
        %v7856 = vsel %vm7778, %v7854, %v7855
        %v7857 = vrot.slane %v7729, 5
        %v7858 = vsel %vm7778, %v7855, %v7857
        %v7891 = vadd.f32 %v7646, %v7781
        %v7892 = vadd.f32 %v7647, %v7783
        %v7893 = vadd.f32 %v7648, %v7786
        %v7894 = vadd.f32 %v7649, %v7788
        %v7895 = vadd.f32 %v7650, %v7791
        %v7896 = vadd.f32 %v7651, %v7793
        %v7897 = vadd.f32 %v7652, %v7796
        %v7898 = vadd.f32 %v7653, %v7798
        %v7899 = vadd.f32 %v7654, %v7801
        %v7900 = vadd.f32 %v7655, %v7803
        %v7901 = vadd.f32 %v7656, %v7806
        %v7902 = vadd.f32 %v7657, %v7808
        %v7903 = vadd.f32 %v7658, %v7811
        %v7904 = vadd.f32 %v7659, %v7813
        %v7905 = vadd.f32 %v7660, %v7816
        %v7906 = vadd.f32 %v7661, %v7818
        %v7907 = vadd.f32 %v7662, %v7821
        %v7908 = vadd.f32 %v7663, %v7823
        %v7909 = vadd.f32 %v7664, %v7826
        %v7910 = vadd.f32 %v7665, %v7828
        %v7911 = vadd.f32 %v7666, %v7831
        %v7912 = vadd.f32 %v7667, %v7833
        %v7913 = vadd.f32 %v7668, %v7836
        %v7914 = vadd.f32 %v7669, %v7838
        %v7915 = vadd.f32 %v7670, %v7841
        %v7916 = vadd.f32 %v7671, %v7843
        %v7917 = vadd.f32 %v7672, %v7846
        %v7918 = vadd.f32 %v7673, %v7848
        %v7919 = vadd.f32 %v7674, %v7851
        %v7920 = vadd.f32 %v7675, %v7853
        %v7921 = vadd.f32 %v7676, %v7856
        %v7922 = vadd.f32 %v7677, %v7858
        %v7923 = vlaneseq
        %v7924 = vshrl.u32 %v7923, 7
        %v7925 = vsub.s32 5, %v7924
        %v7926 = vrot.slane %v360, %v7925
        %v7927 = vmul.f32 %v296, %v7926
        %v7928 = vmul.f32 %v297, %v7926
        %v7929 = vmul.f32 %v298, %v7926
        %v7930 = vmul.f32 %v299, %v7926
        %v7931 = vmul.f32 %v300, %v7926
        %v7932 = vmul.f32 %v301, %v7926
        %v7933 = vmul.f32 %v302, %v7926
        %v7934 = vmul.f32 %v303, %v7926
        %v7935 = vmul.f32 %v304, %v7926
        %v7936 = vmul.f32 %v305, %v7926
        %v7937 = vmul.f32 %v306, %v7926
        %v7938 = vmul.f32 %v307, %v7926
        %v7939 = vmul.f32 %v308, %v7926
        %v7940 = vmul.f32 %v309, %v7926
        %v7941 = vmul.f32 %v310, %v7926
        %v7942 = vmul.f32 %v311, %v7926
        %v7943 = vmul.f32 %v312, %v7926
        %v7944 = vmul.f32 %v313, %v7926
        %v7945 = vmul.f32 %v314, %v7926
        %v7946 = vmul.f32 %v315, %v7926
        %v7947 = vmul.f32 %v316, %v7926
        %v7948 = vmul.f32 %v317, %v7926
        %v7949 = vmul.f32 %v318, %v7926
        %v7950 = vmul.f32 %v319, %v7926
        %v7951 = vmul.f32 %v320, %v7926
        %v7952 = vmul.f32 %v321, %v7926
        %v7953 = vmul.f32 %v322, %v7926
        %v7954 = vmul.f32 %v323, %v7926
        %v7955 = vmul.f32 %v324, %v7926
        %v7956 = vmul.f32 %v325, %v7926
        %v7957 = vmul.f32 %v326, %v7926
        %v7958 = vmul.f32 %v327, %v7926
        %v7959 = vmul.f32 %v328, %v7926
        %v7960 = vmul.f32 %v329, %v7926
        %v7961 = vmul.f32 %v330, %v7926
        %v7962 = vmul.f32 %v331, %v7926
        %v7963 = vmul.f32 %v332, %v7926
        %v7964 = vmul.f32 %v333, %v7926
        %v7965 = vmul.f32 %v334, %v7926
        %v7966 = vmul.f32 %v335, %v7926
        %v7967 = vmul.f32 %v336, %v7926
        %v7968 = vmul.f32 %v337, %v7926
        %v7969 = vmul.f32 %v338, %v7926
        %v7970 = vmul.f32 %v339, %v7926
        %v7971 = vmul.f32 %v340, %v7926
        %v7972 = vmul.f32 %v341, %v7926
        %v7973 = vmul.f32 %v342, %v7926
        %v7974 = vmul.f32 %v343, %v7926
        %v8023 = vrot.slane %v7927, 5
        %v8024 = vrot.slane %v7928, 5
        %v8025 = vsel %vm7778, %v8023, %v8024
        %v8026 = vrot.slane %v7929, 5
        %v8027 = vsel %vm7778, %v8024, %v8026
        %v8028 = vrot.slane %v7930, 5
        %v8029 = vrot.slane %v7931, 5
        %v8030 = vsel %vm7778, %v8028, %v8029
        %v8031 = vrot.slane %v7932, 5
        %v8032 = vsel %vm7778, %v8029, %v8031
        %v8033 = vrot.slane %v7933, 5
        %v8034 = vrot.slane %v7934, 5
        %v8035 = vsel %vm7778, %v8033, %v8034
        %v8036 = vrot.slane %v7935, 5
        %v8037 = vsel %vm7778, %v8034, %v8036
        %v8038 = vrot.slane %v7936, 5
        %v8039 = vrot.slane %v7937, 5
        %v8040 = vsel %vm7778, %v8038, %v8039
        %v8041 = vrot.slane %v7938, 5
        %v8042 = vsel %vm7778, %v8039, %v8041
        %v8043 = vrot.slane %v7939, 5
        %v8044 = vrot.slane %v7940, 5
        %v8045 = vsel %vm7778, %v8043, %v8044
        %v8046 = vrot.slane %v7941, 5
        %v8047 = vsel %vm7778, %v8044, %v8046
        %v8048 = vrot.slane %v7942, 5
        %v8049 = vrot.slane %v7943, 5
        %v8050 = vsel %vm7778, %v8048, %v8049
        %v8051 = vrot.slane %v7944, 5
        %v8052 = vsel %vm7778, %v8049, %v8051
        %v8053 = vrot.slane %v7945, 5
        %v8054 = vrot.slane %v7946, 5
        %v8055 = vsel %vm7778, %v8053, %v8054
        %v8056 = vrot.slane %v7947, 5
        %v8057 = vsel %vm7778, %v8054, %v8056
        %v8058 = vrot.slane %v7948, 5
        %v8059 = vrot.slane %v7949, 5
        %v8060 = vsel %vm7778, %v8058, %v8059
        %v8061 = vrot.slane %v7950, 5
        %v8062 = vsel %vm7778, %v8059, %v8061
        %v8063 = vrot.slane %v7951, 5
        %v8064 = vrot.slane %v7952, 5
        %v8065 = vsel %vm7778, %v8063, %v8064
        %v8066 = vrot.slane %v7953, 5
        %v8067 = vsel %vm7778, %v8064, %v8066
        %v8068 = vrot.slane %v7954, 5
        %v8069 = vrot.slane %v7955, 5
        %v8070 = vsel %vm7778, %v8068, %v8069
        %v8071 = vrot.slane %v7956, 5
        %v8072 = vsel %vm7778, %v8069, %v8071
        %v8073 = vrot.slane %v7957, 5
        %v8074 = vrot.slane %v7958, 5
        %v8075 = vsel %vm7778, %v8073, %v8074
        %v8076 = vrot.slane %v7959, 5
        %v8077 = vsel %vm7778, %v8074, %v8076
        %v8078 = vrot.slane %v7960, 5
        %v8079 = vrot.slane %v7961, 5
        %v8080 = vsel %vm7778, %v8078, %v8079
        %v8081 = vrot.slane %v7962, 5
        %v8082 = vsel %vm7778, %v8079, %v8081
        %v8083 = vrot.slane %v7963, 5
        %v8084 = vrot.slane %v7964, 5
        %v8085 = vsel %vm7778, %v8083, %v8084
        %v8086 = vrot.slane %v7965, 5
        %v8087 = vsel %vm7778, %v8084, %v8086
        %v8088 = vrot.slane %v7966, 5
        %v8089 = vrot.slane %v7967, 5
        %v8090 = vsel %vm7778, %v8088, %v8089
        %v8091 = vrot.slane %v7968, 5
        %v8092 = vsel %vm7778, %v8089, %v8091
        %v8093 = vrot.slane %v7969, 5
        %v8094 = vrot.slane %v7970, 5
        %v8095 = vsel %vm7778, %v8093, %v8094
        %v8096 = vrot.slane %v7971, 5
        %v8097 = vsel %vm7778, %v8094, %v8096
        %v8098 = vrot.slane %v7972, 5
        %v8099 = vrot.slane %v7973, 5
        %v8100 = vsel %vm7778, %v8098, %v8099
        %v8101 = vrot.slane %v7974, 5
        %v8102 = vsel %vm7778, %v8099, %v8101
        %v8135 = vadd.f32 %v7891, %v8025
        %v8136 = vadd.f32 %v7892, %v8027
        %v8137 = vadd.f32 %v7893, %v8030
        %v8138 = vadd.f32 %v7894, %v8032
        %v8139 = vadd.f32 %v7895, %v8035
        %v8140 = vadd.f32 %v7896, %v8037
        %v8141 = vadd.f32 %v7897, %v8040
        %v8142 = vadd.f32 %v7898, %v8042
        %v8143 = vadd.f32 %v7899, %v8045
        %v8144 = vadd.f32 %v7900, %v8047
        %v8145 = vadd.f32 %v7901, %v8050
        %v8146 = vadd.f32 %v7902, %v8052
        %v8147 = vadd.f32 %v7903, %v8055
        %v8148 = vadd.f32 %v7904, %v8057
        %v8149 = vadd.f32 %v7905, %v8060
        %v8150 = vadd.f32 %v7906, %v8062
        %v8151 = vadd.f32 %v7907, %v8065
        %v8152 = vadd.f32 %v7908, %v8067
        %v8153 = vadd.f32 %v7909, %v8070
        %v8154 = vadd.f32 %v7910, %v8072
        %v8155 = vadd.f32 %v7911, %v8075
        %v8156 = vadd.f32 %v7912, %v8077
        %v8157 = vadd.f32 %v7913, %v8080
        %v8158 = vadd.f32 %v7914, %v8082
        %v8159 = vadd.f32 %v7915, %v8085
        %v8160 = vadd.f32 %v7916, %v8087
        %v8161 = vadd.f32 %v7917, %v8090
        %v8162 = vadd.f32 %v7918, %v8092
        %v8163 = vadd.f32 %v7919, %v8095
        %v8164 = vadd.f32 %v7920, %v8097
        %v8165 = vadd.f32 %v7921, %v8100
        %v8166 = vadd.f32 %v7922, %v8102
        %v8167 = vlaneseq
        %v8168 = vshrl.u32 %v8167, 7
        %v8169 = vsub.s32 5, %v8168
        %v8170 = vrot.slane %v361, %v8169
        %v8171 = vmul.f32 %v299, %v8170
        %v8172 = vmul.f32 %v300, %v8170
        %v8173 = vmul.f32 %v301, %v8170
        %v8174 = vmul.f32 %v302, %v8170
        %v8175 = vmul.f32 %v303, %v8170
        %v8176 = vmul.f32 %v304, %v8170
        %v8177 = vmul.f32 %v305, %v8170
        %v8178 = vmul.f32 %v306, %v8170
        %v8179 = vmul.f32 %v307, %v8170
        %v8180 = vmul.f32 %v308, %v8170
        %v8181 = vmul.f32 %v309, %v8170
        %v8182 = vmul.f32 %v310, %v8170
        %v8183 = vmul.f32 %v311, %v8170
        %v8184 = vmul.f32 %v312, %v8170
        %v8185 = vmul.f32 %v313, %v8170
        %v8186 = vmul.f32 %v314, %v8170
        %v8187 = vmul.f32 %v315, %v8170
        %v8188 = vmul.f32 %v316, %v8170
        %v8189 = vmul.f32 %v317, %v8170
        %v8190 = vmul.f32 %v318, %v8170
        %v8191 = vmul.f32 %v319, %v8170
        %v8192 = vmul.f32 %v320, %v8170
        %v8193 = vmul.f32 %v321, %v8170
        %v8194 = vmul.f32 %v322, %v8170
        %v8195 = vmul.f32 %v323, %v8170
        %v8196 = vmul.f32 %v324, %v8170
        %v8197 = vmul.f32 %v325, %v8170
        %v8198 = vmul.f32 %v326, %v8170
        %v8199 = vmul.f32 %v327, %v8170
        %v8200 = vmul.f32 %v328, %v8170
        %v8201 = vmul.f32 %v329, %v8170
        %v8202 = vmul.f32 %v330, %v8170
        %v8203 = vmul.f32 %v331, %v8170
        %v8204 = vmul.f32 %v332, %v8170
        %v8205 = vmul.f32 %v333, %v8170
        %v8206 = vmul.f32 %v334, %v8170
        %v8207 = vmul.f32 %v335, %v8170
        %v8208 = vmul.f32 %v336, %v8170
        %v8209 = vmul.f32 %v337, %v8170
        %v8210 = vmul.f32 %v338, %v8170
        %v8211 = vmul.f32 %v339, %v8170
        %v8212 = vmul.f32 %v340, %v8170
        %v8213 = vmul.f32 %v341, %v8170
        %v8214 = vmul.f32 %v342, %v8170
        %v8215 = vmul.f32 %v343, %v8170
        %v8216 = vmul.f32 %v344, %v8170
        %v8217 = vmul.f32 %v345, %v8170
        %v8218 = vmul.f32 %v346, %v8170
        %v8267 = vrot.slane %v8171, 5
        %v8268 = vrot.slane %v8172, 5
        %v8269 = vsel %vm7778, %v8267, %v8268
        %v8270 = vrot.slane %v8173, 5
        %v8271 = vsel %vm7778, %v8268, %v8270
        %v8272 = vrot.slane %v8174, 5
        %v8273 = vrot.slane %v8175, 5
        %v8274 = vsel %vm7778, %v8272, %v8273
        %v8275 = vrot.slane %v8176, 5
        %v8276 = vsel %vm7778, %v8273, %v8275
        %v8277 = vrot.slane %v8177, 5
        %v8278 = vrot.slane %v8178, 5
        %v8279 = vsel %vm7778, %v8277, %v8278
        %v8280 = vrot.slane %v8179, 5
        %v8281 = vsel %vm7778, %v8278, %v8280
        %v8282 = vrot.slane %v8180, 5
        %v8283 = vrot.slane %v8181, 5
        %v8284 = vsel %vm7778, %v8282, %v8283
        %v8285 = vrot.slane %v8182, 5
        %v8286 = vsel %vm7778, %v8283, %v8285
        %v8287 = vrot.slane %v8183, 5
        %v8288 = vrot.slane %v8184, 5
        %v8289 = vsel %vm7778, %v8287, %v8288
        %v8290 = vrot.slane %v8185, 5
        %v8291 = vsel %vm7778, %v8288, %v8290
        %v8292 = vrot.slane %v8186, 5
        %v8293 = vrot.slane %v8187, 5
        %v8294 = vsel %vm7778, %v8292, %v8293
        %v8295 = vrot.slane %v8188, 5
        %v8296 = vsel %vm7778, %v8293, %v8295
        %v8297 = vrot.slane %v8189, 5
        %v8298 = vrot.slane %v8190, 5
        %v8299 = vsel %vm7778, %v8297, %v8298
        %v8300 = vrot.slane %v8191, 5
        %v8301 = vsel %vm7778, %v8298, %v8300
        %v8302 = vrot.slane %v8192, 5
        %v8303 = vrot.slane %v8193, 5
        %v8304 = vsel %vm7778, %v8302, %v8303
        %v8305 = vrot.slane %v8194, 5
        %v8306 = vsel %vm7778, %v8303, %v8305
        %v8307 = vrot.slane %v8195, 5
        %v8308 = vrot.slane %v8196, 5
        %v8309 = vsel %vm7778, %v8307, %v8308
        %v8310 = vrot.slane %v8197, 5
        %v8311 = vsel %vm7778, %v8308, %v8310
        %v8312 = vrot.slane %v8198, 5
        %v8313 = vrot.slane %v8199, 5
        %v8314 = vsel %vm7778, %v8312, %v8313
        %v8315 = vrot.slane %v8200, 5
        %v8316 = vsel %vm7778, %v8313, %v8315
        %v8317 = vrot.slane %v8201, 5
        %v8318 = vrot.slane %v8202, 5
        %v8319 = vsel %vm7778, %v8317, %v8318
        %v8320 = vrot.slane %v8203, 5
        %v8321 = vsel %vm7778, %v8318, %v8320
        %v8322 = vrot.slane %v8204, 5
        %v8323 = vrot.slane %v8205, 5
        %v8324 = vsel %vm7778, %v8322, %v8323
        %v8325 = vrot.slane %v8206, 5
        %v8326 = vsel %vm7778, %v8323, %v8325
        %v8327 = vrot.slane %v8207, 5
        %v8328 = vrot.slane %v8208, 5
        %v8329 = vsel %vm7778, %v8327, %v8328
        %v8330 = vrot.slane %v8209, 5
        %v8331 = vsel %vm7778, %v8328, %v8330
        %v8332 = vrot.slane %v8210, 5
        %v8333 = vrot.slane %v8211, 5
        %v8334 = vsel %vm7778, %v8332, %v8333
        %v8335 = vrot.slane %v8212, 5
        %v8336 = vsel %vm7778, %v8333, %v8335
        %v8337 = vrot.slane %v8213, 5
        %v8338 = vrot.slane %v8214, 5
        %v8339 = vsel %vm7778, %v8337, %v8338
        %v8340 = vrot.slane %v8215, 5
        %v8341 = vsel %vm7778, %v8338, %v8340
        %v8342 = vrot.slane %v8216, 5
        %v8343 = vrot.slane %v8217, 5
        %v8344 = vsel %vm7778, %v8342, %v8343
        %v8345 = vrot.slane %v8218, 5
        %v8346 = vsel %vm7778, %v8343, %v8345
        %v8379 = vadd.f32 %v8135, %v8269
        %v8380 = vadd.f32 %v8136, %v8271
        %v8381 = vadd.f32 %v8137, %v8274
        %v8382 = vadd.f32 %v8138, %v8276
        %v8383 = vadd.f32 %v8139, %v8279
        %v8384 = vadd.f32 %v8140, %v8281
        %v8385 = vadd.f32 %v8141, %v8284
        %v8386 = vadd.f32 %v8142, %v8286
        %v8387 = vadd.f32 %v8143, %v8289
        %v8388 = vadd.f32 %v8144, %v8291
        %v8389 = vadd.f32 %v8145, %v8294
        %v8390 = vadd.f32 %v8146, %v8296
        %v8391 = vadd.f32 %v8147, %v8299
        %v8392 = vadd.f32 %v8148, %v8301
        %v8393 = vadd.f32 %v8149, %v8304
        %v8394 = vadd.f32 %v8150, %v8306
        %v8395 = vadd.f32 %v8151, %v8309
        %v8396 = vadd.f32 %v8152, %v8311
        %v8397 = vadd.f32 %v8153, %v8314
        %v8398 = vadd.f32 %v8154, %v8316
        %v8399 = vadd.f32 %v8155, %v8319
        %v8400 = vadd.f32 %v8156, %v8321
        %v8401 = vadd.f32 %v8157, %v8324
        %v8402 = vadd.f32 %v8158, %v8326
        %v8403 = vadd.f32 %v8159, %v8329
        %v8404 = vadd.f32 %v8160, %v8331
        %v8405 = vadd.f32 %v8161, %v8334
        %v8406 = vadd.f32 %v8162, %v8336
        %v8407 = vadd.f32 %v8163, %v8339
        %v8408 = vadd.f32 %v8164, %v8341
        %v8409 = vadd.f32 %v8165, %v8344
        %v8410 = vadd.f32 %v8166, %v8346
        %v8411 = vlaneseq
        %v8412 = vshrl.u32 %v8411, 7
        %v8413 = vsub.s32 5, %v8412
        %v8414 = vrot.slane %v362, %v8413
        %v8415 = vmul.f32 %v302, %v8414
        %v8416 = vmul.f32 %v303, %v8414
        %v8417 = vmul.f32 %v304, %v8414
        %v8418 = vmul.f32 %v305, %v8414
        %v8419 = vmul.f32 %v306, %v8414
        %v8420 = vmul.f32 %v307, %v8414
        %v8421 = vmul.f32 %v308, %v8414
        %v8422 = vmul.f32 %v309, %v8414
        %v8423 = vmul.f32 %v310, %v8414
        %v8424 = vmul.f32 %v311, %v8414
        %v8425 = vmul.f32 %v312, %v8414
        %v8426 = vmul.f32 %v313, %v8414
        %v8427 = vmul.f32 %v314, %v8414
        %v8428 = vmul.f32 %v315, %v8414
        %v8429 = vmul.f32 %v316, %v8414
        %v8430 = vmul.f32 %v317, %v8414
        %v8431 = vmul.f32 %v318, %v8414
        %v8432 = vmul.f32 %v319, %v8414
        %v8433 = vmul.f32 %v320, %v8414
        %v8434 = vmul.f32 %v321, %v8414
        %v8435 = vmul.f32 %v322, %v8414
        %v8436 = vmul.f32 %v323, %v8414
        %v8437 = vmul.f32 %v324, %v8414
        %v8438 = vmul.f32 %v325, %v8414
        %v8439 = vmul.f32 %v326, %v8414
        %v8440 = vmul.f32 %v327, %v8414
        %v8441 = vmul.f32 %v328, %v8414
        %v8442 = vmul.f32 %v329, %v8414
        %v8443 = vmul.f32 %v330, %v8414
        %v8444 = vmul.f32 %v331, %v8414
        %v8445 = vmul.f32 %v332, %v8414
        %v8446 = vmul.f32 %v333, %v8414
        %v8447 = vmul.f32 %v334, %v8414
        %v8448 = vmul.f32 %v335, %v8414
        %v8449 = vmul.f32 %v336, %v8414
        %v8450 = vmul.f32 %v337, %v8414
        %v8451 = vmul.f32 %v338, %v8414
        %v8452 = vmul.f32 %v339, %v8414
        %v8453 = vmul.f32 %v340, %v8414
        %v8454 = vmul.f32 %v341, %v8414
        %v8455 = vmul.f32 %v342, %v8414
        %v8456 = vmul.f32 %v343, %v8414
        %v8457 = vmul.f32 %v344, %v8414
        %v8458 = vmul.f32 %v345, %v8414
        %v8459 = vmul.f32 %v346, %v8414
        %v8460 = vmul.f32 %v347, %v8414
        %v8461 = vmul.f32 %v348, %v8414
        %v8462 = vmul.f32 %v349, %v8414
        %v8511 = vrot.slane %v8415, 5
        %v8512 = vrot.slane %v8416, 5
        %v8513 = vsel %vm7778, %v8511, %v8512
        %v8514 = vrot.slane %v8417, 5
        %v8515 = vsel %vm7778, %v8512, %v8514
        %v8516 = vrot.slane %v8418, 5
        %v8517 = vrot.slane %v8419, 5
        %v8518 = vsel %vm7778, %v8516, %v8517
        %v8519 = vrot.slane %v8420, 5
        %v8520 = vsel %vm7778, %v8517, %v8519
        %v8521 = vrot.slane %v8421, 5
        %v8522 = vrot.slane %v8422, 5
        %v8523 = vsel %vm7778, %v8521, %v8522
        %v8524 = vrot.slane %v8423, 5
        %v8525 = vsel %vm7778, %v8522, %v8524
        %v8526 = vrot.slane %v8424, 5
        %v8527 = vrot.slane %v8425, 5
        %v8528 = vsel %vm7778, %v8526, %v8527
        %v8529 = vrot.slane %v8426, 5
        %v8530 = vsel %vm7778, %v8527, %v8529
        %v8531 = vrot.slane %v8427, 5
        %v8532 = vrot.slane %v8428, 5
        %v8533 = vsel %vm7778, %v8531, %v8532
        %v8534 = vrot.slane %v8429, 5
        %v8535 = vsel %vm7778, %v8532, %v8534
        %v8536 = vrot.slane %v8430, 5
        %v8537 = vrot.slane %v8431, 5
        %v8538 = vsel %vm7778, %v8536, %v8537
        %v8539 = vrot.slane %v8432, 5
        %v8540 = vsel %vm7778, %v8537, %v8539
        %v8541 = vrot.slane %v8433, 5
        %v8542 = vrot.slane %v8434, 5
        %v8543 = vsel %vm7778, %v8541, %v8542
        %v8544 = vrot.slane %v8435, 5
        %v8545 = vsel %vm7778, %v8542, %v8544
        %v8546 = vrot.slane %v8436, 5
        %v8547 = vrot.slane %v8437, 5
        %v8548 = vsel %vm7778, %v8546, %v8547
        %v8549 = vrot.slane %v8438, 5
        %v8550 = vsel %vm7778, %v8547, %v8549
        %v8551 = vrot.slane %v8439, 5
        %v8552 = vrot.slane %v8440, 5
        %v8553 = vsel %vm7778, %v8551, %v8552
        %v8554 = vrot.slane %v8441, 5
        %v8555 = vsel %vm7778, %v8552, %v8554
        %v8556 = vrot.slane %v8442, 5
        %v8557 = vrot.slane %v8443, 5
        %v8558 = vsel %vm7778, %v8556, %v8557
        %v8559 = vrot.slane %v8444, 5
        %v8560 = vsel %vm7778, %v8557, %v8559
        %v8561 = vrot.slane %v8445, 5
        %v8562 = vrot.slane %v8446, 5
        %v8563 = vsel %vm7778, %v8561, %v8562
        %v8564 = vrot.slane %v8447, 5
        %v8565 = vsel %vm7778, %v8562, %v8564
        %v8566 = vrot.slane %v8448, 5
        %v8567 = vrot.slane %v8449, 5
        %v8568 = vsel %vm7778, %v8566, %v8567
        %v8569 = vrot.slane %v8450, 5
        %v8570 = vsel %vm7778, %v8567, %v8569
        %v8571 = vrot.slane %v8451, 5
        %v8572 = vrot.slane %v8452, 5
        %v8573 = vsel %vm7778, %v8571, %v8572
        %v8574 = vrot.slane %v8453, 5
        %v8575 = vsel %vm7778, %v8572, %v8574
        %v8576 = vrot.slane %v8454, 5
        %v8577 = vrot.slane %v8455, 5
        %v8578 = vsel %vm7778, %v8576, %v8577
        %v8579 = vrot.slane %v8456, 5
        %v8580 = vsel %vm7778, %v8577, %v8579
        %v8581 = vrot.slane %v8457, 5
        %v8582 = vrot.slane %v8458, 5
        %v8583 = vsel %vm7778, %v8581, %v8582
        %v8584 = vrot.slane %v8459, 5
        %v8585 = vsel %vm7778, %v8582, %v8584
        %v8586 = vrot.slane %v8460, 5
        %v8587 = vrot.slane %v8461, 5
        %v8588 = vsel %vm7778, %v8586, %v8587
        %v8589 = vrot.slane %v8462, 5
        %v8590 = vsel %vm7778, %v8587, %v8589
        %v8623 = vadd.f32 %v8379, %v8513
        %v8624 = vadd.f32 %v8380, %v8515
        %v8625 = vadd.f32 %v8381, %v8518
        %v8626 = vadd.f32 %v8382, %v8520
        %v8627 = vadd.f32 %v8383, %v8523
        %v8628 = vadd.f32 %v8384, %v8525
        %v8629 = vadd.f32 %v8385, %v8528
        %v8630 = vadd.f32 %v8386, %v8530
        %v8631 = vadd.f32 %v8387, %v8533
        %v8632 = vadd.f32 %v8388, %v8535
        %v8633 = vadd.f32 %v8389, %v8538
        %v8634 = vadd.f32 %v8390, %v8540
        %v8635 = vadd.f32 %v8391, %v8543
        %v8636 = vadd.f32 %v8392, %v8545
        %v8637 = vadd.f32 %v8393, %v8548
        %v8638 = vadd.f32 %v8394, %v8550
        %v8639 = vadd.f32 %v8395, %v8553
        %v8640 = vadd.f32 %v8396, %v8555
        %v8641 = vadd.f32 %v8397, %v8558
        %v8642 = vadd.f32 %v8398, %v8560
        %v8643 = vadd.f32 %v8399, %v8563
        %v8644 = vadd.f32 %v8400, %v8565
        %v8645 = vadd.f32 %v8401, %v8568
        %v8646 = vadd.f32 %v8402, %v8570
        %v8647 = vadd.f32 %v8403, %v8573
        %v8648 = vadd.f32 %v8404, %v8575
        %v8649 = vadd.f32 %v8405, %v8578
        %v8650 = vadd.f32 %v8406, %v8580
        %v8651 = vadd.f32 %v8407, %v8583
        %v8652 = vadd.f32 %v8408, %v8585
        %v8653 = vadd.f32 %v8409, %v8588
        %v8654 = vadd.f32 %v8410, %v8590
        %v8655 = vlaneseq
        %v8656 = vshrl.u32 %v8655, 7
        %v8657 = vsub.s32 5, %v8656
        %v8658 = vrot.slane %v363, %v8657
        %v8659 = vmul.f32 %v305, %v8658
        %v8660 = vmul.f32 %v306, %v8658
        %v8661 = vmul.f32 %v307, %v8658
        %v8662 = vmul.f32 %v308, %v8658
        %v8663 = vmul.f32 %v309, %v8658
        %v8664 = vmul.f32 %v310, %v8658
        %v8665 = vmul.f32 %v311, %v8658
        %v8666 = vmul.f32 %v312, %v8658
        %v8667 = vmul.f32 %v313, %v8658
        %v8668 = vmul.f32 %v314, %v8658
        %v8669 = vmul.f32 %v315, %v8658
        %v8670 = vmul.f32 %v316, %v8658
        %v8671 = vmul.f32 %v317, %v8658
        %v8672 = vmul.f32 %v318, %v8658
        %v8673 = vmul.f32 %v319, %v8658
        %v8674 = vmul.f32 %v320, %v8658
        %v8675 = vmul.f32 %v321, %v8658
        %v8676 = vmul.f32 %v322, %v8658
        %v8677 = vmul.f32 %v323, %v8658
        %v8678 = vmul.f32 %v324, %v8658
        %v8679 = vmul.f32 %v325, %v8658
        %v8680 = vmul.f32 %v326, %v8658
        %v8681 = vmul.f32 %v327, %v8658
        %v8682 = vmul.f32 %v328, %v8658
        %v8683 = vmul.f32 %v329, %v8658
        %v8684 = vmul.f32 %v330, %v8658
        %v8685 = vmul.f32 %v331, %v8658
        %v8686 = vmul.f32 %v332, %v8658
        %v8687 = vmul.f32 %v333, %v8658
        %v8688 = vmul.f32 %v334, %v8658
        %v8689 = vmul.f32 %v335, %v8658
        %v8690 = vmul.f32 %v336, %v8658
        %v8691 = vmul.f32 %v337, %v8658
        %v8692 = vmul.f32 %v338, %v8658
        %v8693 = vmul.f32 %v339, %v8658
        %v8694 = vmul.f32 %v340, %v8658
        %v8695 = vmul.f32 %v341, %v8658
        %v8696 = vmul.f32 %v342, %v8658
        %v8697 = vmul.f32 %v343, %v8658
        %v8698 = vmul.f32 %v344, %v8658
        %v8699 = vmul.f32 %v345, %v8658
        %v8700 = vmul.f32 %v346, %v8658
        %v8701 = vmul.f32 %v347, %v8658
        %v8702 = vmul.f32 %v348, %v8658
        %v8703 = vmul.f32 %v349, %v8658
        %v8704 = vmul.f32 %v350, %v8658
        %v8705 = vmul.f32 %v351, %v8658
        %v8706 = vmul.f32 %v352, %v8658
        %v8755 = vrot.slane %v8659, 5
        %v8756 = vrot.slane %v8660, 5
        %v8757 = vsel %vm7778, %v8755, %v8756
        %v8758 = vrot.slane %v8661, 5
        %v8759 = vsel %vm7778, %v8756, %v8758
        %v8760 = vrot.slane %v8662, 5
        %v8761 = vrot.slane %v8663, 5
        %v8762 = vsel %vm7778, %v8760, %v8761
        %v8763 = vrot.slane %v8664, 5
        %v8764 = vsel %vm7778, %v8761, %v8763
        %v8765 = vrot.slane %v8665, 5
        %v8766 = vrot.slane %v8666, 5
        %v8767 = vsel %vm7778, %v8765, %v8766
        %v8768 = vrot.slane %v8667, 5
        %v8769 = vsel %vm7778, %v8766, %v8768
        %v8770 = vrot.slane %v8668, 5
        %v8771 = vrot.slane %v8669, 5
        %v8772 = vsel %vm7778, %v8770, %v8771
        %v8773 = vrot.slane %v8670, 5
        %v8774 = vsel %vm7778, %v8771, %v8773
        %v8775 = vrot.slane %v8671, 5
        %v8776 = vrot.slane %v8672, 5
        %v8777 = vsel %vm7778, %v8775, %v8776
        %v8778 = vrot.slane %v8673, 5
        %v8779 = vsel %vm7778, %v8776, %v8778
        %v8780 = vrot.slane %v8674, 5
        %v8781 = vrot.slane %v8675, 5
        %v8782 = vsel %vm7778, %v8780, %v8781
        %v8783 = vrot.slane %v8676, 5
        %v8784 = vsel %vm7778, %v8781, %v8783
        %v8785 = vrot.slane %v8677, 5
        %v8786 = vrot.slane %v8678, 5
        %v8787 = vsel %vm7778, %v8785, %v8786
        %v8788 = vrot.slane %v8679, 5
        %v8789 = vsel %vm7778, %v8786, %v8788
        %v8790 = vrot.slane %v8680, 5
        %v8791 = vrot.slane %v8681, 5
        %v8792 = vsel %vm7778, %v8790, %v8791
        %v8793 = vrot.slane %v8682, 5
        %v8794 = vsel %vm7778, %v8791, %v8793
        %v8795 = vrot.slane %v8683, 5
        %v8796 = vrot.slane %v8684, 5
        %v8797 = vsel %vm7778, %v8795, %v8796
        %v8798 = vrot.slane %v8685, 5
        %v8799 = vsel %vm7778, %v8796, %v8798
        %v8800 = vrot.slane %v8686, 5
        %v8801 = vrot.slane %v8687, 5
        %v8802 = vsel %vm7778, %v8800, %v8801
        %v8803 = vrot.slane %v8688, 5
        %v8804 = vsel %vm7778, %v8801, %v8803
        %v8805 = vrot.slane %v8689, 5
        %v8806 = vrot.slane %v8690, 5
        %v8807 = vsel %vm7778, %v8805, %v8806
        %v8808 = vrot.slane %v8691, 5
        %v8809 = vsel %vm7778, %v8806, %v8808
        %v8810 = vrot.slane %v8692, 5
        %v8811 = vrot.slane %v8693, 5
        %v8812 = vsel %vm7778, %v8810, %v8811
        %v8813 = vrot.slane %v8694, 5
        %v8814 = vsel %vm7778, %v8811, %v8813
        %v8815 = vrot.slane %v8695, 5
        %v8816 = vrot.slane %v8696, 5
        %v8817 = vsel %vm7778, %v8815, %v8816
        %v8818 = vrot.slane %v8697, 5
        %v8819 = vsel %vm7778, %v8816, %v8818
        %v8820 = vrot.slane %v8698, 5
        %v8821 = vrot.slane %v8699, 5
        %v8822 = vsel %vm7778, %v8820, %v8821
        %v8823 = vrot.slane %v8700, 5
        %v8824 = vsel %vm7778, %v8821, %v8823
        %v8825 = vrot.slane %v8701, 5
        %v8826 = vrot.slane %v8702, 5
        %v8827 = vsel %vm7778, %v8825, %v8826
        %v8828 = vrot.slane %v8703, 5
        %v8829 = vsel %vm7778, %v8826, %v8828
        %v8830 = vrot.slane %v8704, 5
        %v8831 = vrot.slane %v8705, 5
        %v8832 = vsel %vm7778, %v8830, %v8831
        %v8833 = vrot.slane %v8706, 5
        %v8834 = vsel %vm7778, %v8831, %v8833
        %v8867 = vadd.f32 %v8623, %v8757
        %v8868 = vadd.f32 %v8624, %v8759
        %v8869 = vadd.f32 %v8625, %v8762
        %v8870 = vadd.f32 %v8626, %v8764
        %v8871 = vadd.f32 %v8627, %v8767
        %v8872 = vadd.f32 %v8628, %v8769
        %v8873 = vadd.f32 %v8629, %v8772
        %v8874 = vadd.f32 %v8630, %v8774
        %v8875 = vadd.f32 %v8631, %v8777
        %v8876 = vadd.f32 %v8632, %v8779
        %v8877 = vadd.f32 %v8633, %v8782
        %v8878 = vadd.f32 %v8634, %v8784
        %v8879 = vadd.f32 %v8635, %v8787
        %v8880 = vadd.f32 %v8636, %v8789
        %v8881 = vadd.f32 %v8637, %v8792
        %v8882 = vadd.f32 %v8638, %v8794
        %v8883 = vadd.f32 %v8639, %v8797
        %v8884 = vadd.f32 %v8640, %v8799
        %v8885 = vadd.f32 %v8641, %v8802
        %v8886 = vadd.f32 %v8642, %v8804
        %v8887 = vadd.f32 %v8643, %v8807
        %v8888 = vadd.f32 %v8644, %v8809
        %v8889 = vadd.f32 %v8645, %v8812
        %v8890 = vadd.f32 %v8646, %v8814
        %v8891 = vadd.f32 %v8647, %v8817
        %v8892 = vadd.f32 %v8648, %v8819
        %v8893 = vadd.f32 %v8649, %v8822
        %v8894 = vadd.f32 %v8650, %v8824
        %v8895 = vadd.f32 %v8651, %v8827
        %v8896 = vadd.f32 %v8652, %v8829
        %v8897 = vadd.f32 %v8653, %v8832
        %v8898 = vadd.f32 %v8654, %v8834
        %v8899 = vlaneseq
        %v8900 = vshrl.u32 %v8899, 7
        %v8901 = vsub.s32 5, %v8900
        %v8902 = vrot.slane %v364, %v8901
        %v8903 = vmul.f32 %v308, %v8902
        %v8904 = vmul.f32 %v309, %v8902
        %v8905 = vmul.f32 %v310, %v8902
        %v8906 = vmul.f32 %v311, %v8902
        %v8907 = vmul.f32 %v312, %v8902
        %v8908 = vmul.f32 %v313, %v8902
        %v8909 = vmul.f32 %v314, %v8902
        %v8910 = vmul.f32 %v315, %v8902
        %v8911 = vmul.f32 %v316, %v8902
        %v8912 = vmul.f32 %v317, %v8902
        %v8913 = vmul.f32 %v318, %v8902
        %v8914 = vmul.f32 %v319, %v8902
        %v8915 = vmul.f32 %v320, %v8902
        %v8916 = vmul.f32 %v321, %v8902
        %v8917 = vmul.f32 %v322, %v8902
        %v8918 = vmul.f32 %v323, %v8902
        %v8919 = vmul.f32 %v324, %v8902
        %v8920 = vmul.f32 %v325, %v8902
        %v8921 = vmul.f32 %v326, %v8902
        %v8922 = vmul.f32 %v327, %v8902
        %v8923 = vmul.f32 %v328, %v8902
        %v8924 = vmul.f32 %v329, %v8902
        %v8925 = vmul.f32 %v330, %v8902
        %v8926 = vmul.f32 %v331, %v8902
        %v8927 = vmul.f32 %v332, %v8902
        %v8928 = vmul.f32 %v333, %v8902
        %v8929 = vmul.f32 %v334, %v8902
        %v8930 = vmul.f32 %v335, %v8902
        %v8931 = vmul.f32 %v336, %v8902
        %v8932 = vmul.f32 %v337, %v8902
        %v8933 = vmul.f32 %v338, %v8902
        %v8934 = vmul.f32 %v339, %v8902
        %v8935 = vmul.f32 %v340, %v8902
        %v8936 = vmul.f32 %v341, %v8902
        %v8937 = vmul.f32 %v342, %v8902
        %v8938 = vmul.f32 %v343, %v8902
        %v8939 = vmul.f32 %v344, %v8902
        %v8940 = vmul.f32 %v345, %v8902
        %v8941 = vmul.f32 %v346, %v8902
        %v8942 = vmul.f32 %v347, %v8902
        %v8943 = vmul.f32 %v348, %v8902
        %v8944 = vmul.f32 %v349, %v8902
        %v8945 = vmul.f32 %v350, %v8902
        %v8946 = vmul.f32 %v351, %v8902
        %v8947 = vmul.f32 %v352, %v8902
        %v8948 = vmul.f32 %v353, %v8902
        %v8949 = vmul.f32 %v354, %v8902
        %v8950 = vmul.f32 %v355, %v8902
        %v8999 = vrot.slane %v8903, 5
        %v9000 = vrot.slane %v8904, 5
        %v9001 = vsel %vm7778, %v8999, %v9000
        %v9002 = vrot.slane %v8905, 5
        %v9003 = vsel %vm7778, %v9000, %v9002
        %v9004 = vrot.slane %v8906, 5
        %v9005 = vrot.slane %v8907, 5
        %v9006 = vsel %vm7778, %v9004, %v9005
        %v9007 = vrot.slane %v8908, 5
        %v9008 = vsel %vm7778, %v9005, %v9007
        %v9009 = vrot.slane %v8909, 5
        %v9010 = vrot.slane %v8910, 5
        %v9011 = vsel %vm7778, %v9009, %v9010
        %v9012 = vrot.slane %v8911, 5
        %v9013 = vsel %vm7778, %v9010, %v9012
        %v9014 = vrot.slane %v8912, 5
        %v9015 = vrot.slane %v8913, 5
        %v9016 = vsel %vm7778, %v9014, %v9015
        %v9017 = vrot.slane %v8914, 5
        %v9018 = vsel %vm7778, %v9015, %v9017
        %v9019 = vrot.slane %v8915, 5
        %v9020 = vrot.slane %v8916, 5
        %v9021 = vsel %vm7778, %v9019, %v9020
        %v9022 = vrot.slane %v8917, 5
        %v9023 = vsel %vm7778, %v9020, %v9022
        %v9024 = vrot.slane %v8918, 5
        %v9025 = vrot.slane %v8919, 5
        %v9026 = vsel %vm7778, %v9024, %v9025
        %v9027 = vrot.slane %v8920, 5
        %v9028 = vsel %vm7778, %v9025, %v9027
        %v9029 = vrot.slane %v8921, 5
        %v9030 = vrot.slane %v8922, 5
        %v9031 = vsel %vm7778, %v9029, %v9030
        %v9032 = vrot.slane %v8923, 5
        %v9033 = vsel %vm7778, %v9030, %v9032
        %v9034 = vrot.slane %v8924, 5
        %v9035 = vrot.slane %v8925, 5
        %v9036 = vsel %vm7778, %v9034, %v9035
        %v9037 = vrot.slane %v8926, 5
        %v9038 = vsel %vm7778, %v9035, %v9037
        %v9039 = vrot.slane %v8927, 5
        %v9040 = vrot.slane %v8928, 5
        %v9041 = vsel %vm7778, %v9039, %v9040
        %v9042 = vrot.slane %v8929, 5
        %v9043 = vsel %vm7778, %v9040, %v9042
        %v9044 = vrot.slane %v8930, 5
        %v9045 = vrot.slane %v8931, 5
        %v9046 = vsel %vm7778, %v9044, %v9045
        %v9047 = vrot.slane %v8932, 5
        %v9048 = vsel %vm7778, %v9045, %v9047
        %v9049 = vrot.slane %v8933, 5
        %v9050 = vrot.slane %v8934, 5
        %v9051 = vsel %vm7778, %v9049, %v9050
        %v9052 = vrot.slane %v8935, 5
        %v9053 = vsel %vm7778, %v9050, %v9052
        %v9054 = vrot.slane %v8936, 5
        %v9055 = vrot.slane %v8937, 5
        %v9056 = vsel %vm7778, %v9054, %v9055
        %v9057 = vrot.slane %v8938, 5
        %v9058 = vsel %vm7778, %v9055, %v9057
        %v9059 = vrot.slane %v8939, 5
        %v9060 = vrot.slane %v8940, 5
        %v9061 = vsel %vm7778, %v9059, %v9060
        %v9062 = vrot.slane %v8941, 5
        %v9063 = vsel %vm7778, %v9060, %v9062
        %v9064 = vrot.slane %v8942, 5
        %v9065 = vrot.slane %v8943, 5
        %v9066 = vsel %vm7778, %v9064, %v9065
        %v9067 = vrot.slane %v8944, 5
        %v9068 = vsel %vm7778, %v9065, %v9067
        %v9069 = vrot.slane %v8945, 5
        %v9070 = vrot.slane %v8946, 5
        %v9071 = vsel %vm7778, %v9069, %v9070
        %v9072 = vrot.slane %v8947, 5
        %v9073 = vsel %vm7778, %v9070, %v9072
        %v9074 = vrot.slane %v8948, 5
        %v9075 = vrot.slane %v8949, 5
        %v9076 = vsel %vm7778, %v9074, %v9075
        %v9077 = vrot.slane %v8950, 5
        %v9078 = vsel %vm7778, %v9075, %v9077
        %v9111 = vadd.f32 %v8867, %v9001
        %v9112 = vadd.f32 %v8868, %v9003
        %v9113 = vadd.f32 %v8869, %v9006
        %v9114 = vadd.f32 %v8870, %v9008
        %v9115 = vadd.f32 %v8871, %v9011
        %v9116 = vadd.f32 %v8872, %v9013
        %v9117 = vadd.f32 %v8873, %v9016
        %v9118 = vadd.f32 %v8874, %v9018
        %v9119 = vadd.f32 %v8875, %v9021
        %v9120 = vadd.f32 %v8876, %v9023
        %v9121 = vadd.f32 %v8877, %v9026
        %v9122 = vadd.f32 %v8878, %v9028
        %v9123 = vadd.f32 %v8879, %v9031
        %v9124 = vadd.f32 %v8880, %v9033
        %v9125 = vadd.f32 %v8881, %v9036
        %v9126 = vadd.f32 %v8882, %v9038
        %v9127 = vadd.f32 %v8883, %v9041
        %v9128 = vadd.f32 %v8884, %v9043
        %v9129 = vadd.f32 %v8885, %v9046
        %v9130 = vadd.f32 %v8886, %v9048
        %v9131 = vadd.f32 %v8887, %v9051
        %v9132 = vadd.f32 %v8888, %v9053
        %v9133 = vadd.f32 %v8889, %v9056
        %v9134 = vadd.f32 %v8890, %v9058
        %v9135 = vadd.f32 %v8891, %v9061
        %v9136 = vadd.f32 %v8892, %v9063
        %v9137 = vadd.f32 %v8893, %v9066
        %v9138 = vadd.f32 %v8894, %v9068
        %v9139 = vadd.f32 %v8895, %v9071
        %v9140 = vadd.f32 %v8896, %v9073
        %v9141 = vadd.f32 %v8897, %v9076
        %v9142 = vadd.f32 %v8898, %v9078
        %v9143 = vlaneseq
        %v9144 = vshrl.u32 %v9143, 7
        %v9145 = vsub.s32 5, %v9144
        %v9146 = vrot.slane %v365, %v9145
        %v9147 = vmul.f32 %v311, %v9146
        %v9148 = vmul.f32 %v312, %v9146
        %v9149 = vmul.f32 %v313, %v9146
        %v9150 = vmul.f32 %v314, %v9146
        %v9151 = vmul.f32 %v315, %v9146
        %v9152 = vmul.f32 %v316, %v9146
        %v9153 = vmul.f32 %v317, %v9146
        %v9154 = vmul.f32 %v318, %v9146
        %v9155 = vmul.f32 %v319, %v9146
        %v9156 = vmul.f32 %v320, %v9146
        %v9157 = vmul.f32 %v321, %v9146
        %v9158 = vmul.f32 %v322, %v9146
        %v9159 = vmul.f32 %v323, %v9146
        %v9160 = vmul.f32 %v324, %v9146
        %v9161 = vmul.f32 %v325, %v9146
        %v9162 = vmul.f32 %v326, %v9146
        %v9163 = vmul.f32 %v327, %v9146
        %v9164 = vmul.f32 %v328, %v9146
        %v9165 = vmul.f32 %v329, %v9146
        %v9166 = vmul.f32 %v330, %v9146
        %v9167 = vmul.f32 %v331, %v9146
        %v9168 = vmul.f32 %v332, %v9146
        %v9169 = vmul.f32 %v333, %v9146
        %v9170 = vmul.f32 %v334, %v9146
        %v9171 = vmul.f32 %v335, %v9146
        %v9172 = vmul.f32 %v336, %v9146
        %v9173 = vmul.f32 %v337, %v9146
        %v9174 = vmul.f32 %v338, %v9146
        %v9175 = vmul.f32 %v339, %v9146
        %v9176 = vmul.f32 %v340, %v9146
        %v9177 = vmul.f32 %v341, %v9146
        %v9178 = vmul.f32 %v342, %v9146
        %v9179 = vmul.f32 %v343, %v9146
        %v9180 = vmul.f32 %v344, %v9146
        %v9181 = vmul.f32 %v345, %v9146
        %v9182 = vmul.f32 %v346, %v9146
        %v9183 = vmul.f32 %v347, %v9146
        %v9184 = vmul.f32 %v348, %v9146
        %v9185 = vmul.f32 %v349, %v9146
        %v9186 = vmul.f32 %v350, %v9146
        %v9187 = vmul.f32 %v351, %v9146
        %v9188 = vmul.f32 %v352, %v9146
        %v9189 = vmul.f32 %v353, %v9146
        %v9190 = vmul.f32 %v354, %v9146
        %v9191 = vmul.f32 %v355, %v9146
        %v9192 = vmul.f32 %v356, %v9146
        %v9193 = vmul.f32 %v357, %v9146
        %v9194 = vmul.f32 %v358, %v9146
        %v9243 = vrot.slane %v9147, 5
        %v9244 = vrot.slane %v9148, 5
        %v9245 = vsel %vm7778, %v9243, %v9244
        %v9246 = vrot.slane %v9149, 5
        %v9247 = vsel %vm7778, %v9244, %v9246
        %v9248 = vrot.slane %v9150, 5
        %v9249 = vrot.slane %v9151, 5
        %v9250 = vsel %vm7778, %v9248, %v9249
        %v9251 = vrot.slane %v9152, 5
        %v9252 = vsel %vm7778, %v9249, %v9251
        %v9253 = vrot.slane %v9153, 5
        %v9254 = vrot.slane %v9154, 5
        %v9255 = vsel %vm7778, %v9253, %v9254
        %v9256 = vrot.slane %v9155, 5
        %v9257 = vsel %vm7778, %v9254, %v9256
        %v9258 = vrot.slane %v9156, 5
        %v9259 = vrot.slane %v9157, 5
        %v9260 = vsel %vm7778, %v9258, %v9259
        %v9261 = vrot.slane %v9158, 5
        %v9262 = vsel %vm7778, %v9259, %v9261
        %v9263 = vrot.slane %v9159, 5
        %v9264 = vrot.slane %v9160, 5
        %v9265 = vsel %vm7778, %v9263, %v9264
        %v9266 = vrot.slane %v9161, 5
        %v9267 = vsel %vm7778, %v9264, %v9266
        %v9268 = vrot.slane %v9162, 5
        %v9269 = vrot.slane %v9163, 5
        %v9270 = vsel %vm7778, %v9268, %v9269
        %v9271 = vrot.slane %v9164, 5
        %v9272 = vsel %vm7778, %v9269, %v9271
        %v9273 = vrot.slane %v9165, 5
        %v9274 = vrot.slane %v9166, 5
        %v9275 = vsel %vm7778, %v9273, %v9274
        %v9276 = vrot.slane %v9167, 5
        %v9277 = vsel %vm7778, %v9274, %v9276
        %v9278 = vrot.slane %v9168, 5
        %v9279 = vrot.slane %v9169, 5
        %v9280 = vsel %vm7778, %v9278, %v9279
        %v9281 = vrot.slane %v9170, 5
        %v9282 = vsel %vm7778, %v9279, %v9281
        %v9283 = vrot.slane %v9171, 5
        %v9284 = vrot.slane %v9172, 5
        %v9285 = vsel %vm7778, %v9283, %v9284
        %v9286 = vrot.slane %v9173, 5
        %v9287 = vsel %vm7778, %v9284, %v9286
        %v9288 = vrot.slane %v9174, 5
        %v9289 = vrot.slane %v9175, 5
        %v9290 = vsel %vm7778, %v9288, %v9289
        %v9291 = vrot.slane %v9176, 5
        %v9292 = vsel %vm7778, %v9289, %v9291
        %v9293 = vrot.slane %v9177, 5
        %v9294 = vrot.slane %v9178, 5
        %v9295 = vsel %vm7778, %v9293, %v9294
        %v9296 = vrot.slane %v9179, 5
        %v9297 = vsel %vm7778, %v9294, %v9296
        %v9298 = vrot.slane %v9180, 5
        %v9299 = vrot.slane %v9181, 5
        %v9300 = vsel %vm7778, %v9298, %v9299
        %v9301 = vrot.slane %v9182, 5
        %v9302 = vsel %vm7778, %v9299, %v9301
        %v9303 = vrot.slane %v9183, 5
        %v9304 = vrot.slane %v9184, 5
        %v9305 = vsel %vm7778, %v9303, %v9304
        %v9306 = vrot.slane %v9185, 5
        %v9307 = vsel %vm7778, %v9304, %v9306
        %v9308 = vrot.slane %v9186, 5
        %v9309 = vrot.slane %v9187, 5
        %v9310 = vsel %vm7778, %v9308, %v9309
        %v9311 = vrot.slane %v9188, 5
        %v9312 = vsel %vm7778, %v9309, %v9311
        %v9313 = vrot.slane %v9189, 5
        %v9314 = vrot.slane %v9190, 5
        %v9315 = vsel %vm7778, %v9313, %v9314
        %v9316 = vrot.slane %v9191, 5
        %v9317 = vsel %vm7778, %v9314, %v9316
        %v9318 = vrot.slane %v9192, 5
        %v9319 = vrot.slane %v9193, 5
        %v9320 = vsel %vm7778, %v9318, %v9319
        %v9321 = vrot.slane %v9194, 5
        %v9322 = vsel %vm7778, %v9319, %v9321
        %v9355 = vadd.f32 %v9111, %v9245
        %v9356 = vadd.f32 %v9112, %v9247
        %v9357 = vadd.f32 %v9113, %v9250
        %v9358 = vadd.f32 %v9114, %v9252
        %v9359 = vadd.f32 %v9115, %v9255
        %v9360 = vadd.f32 %v9116, %v9257
        %v9361 = vadd.f32 %v9117, %v9260
        %v9362 = vadd.f32 %v9118, %v9262
        %v9363 = vadd.f32 %v9119, %v9265
        %v9364 = vadd.f32 %v9120, %v9267
        %v9365 = vadd.f32 %v9121, %v9270
        %v9366 = vadd.f32 %v9122, %v9272
        %v9367 = vadd.f32 %v9123, %v9275
        %v9368 = vadd.f32 %v9124, %v9277
        %v9369 = vadd.f32 %v9125, %v9280
        %v9370 = vadd.f32 %v9126, %v9282
        %v9371 = vadd.f32 %v9127, %v9285
        %v9372 = vadd.f32 %v9128, %v9287
        %v9373 = vadd.f32 %v9129, %v9290
        %v9374 = vadd.f32 %v9130, %v9292
        %v9375 = vadd.f32 %v9131, %v9295
        %v9376 = vadd.f32 %v9132, %v9297
        %v9377 = vadd.f32 %v9133, %v9300
        %v9378 = vadd.f32 %v9134, %v9302
        %v9379 = vadd.f32 %v9135, %v9305
        %v9380 = vadd.f32 %v9136, %v9307
        %v9381 = vadd.f32 %v9137, %v9310
        %v9382 = vadd.f32 %v9138, %v9312
        %v9383 = vadd.f32 %v9139, %v9315
        %v9384 = vadd.f32 %v9140, %v9317
        %v9385 = vadd.f32 %v9141, %v9320
        %v9386 = vadd.f32 %v9142, %v9322
        %v9387 = vlaneseq
        %v9388 = vshrl.u32 %v9387, 7
        %v9389 = vsub.s32 6, %v9388
        %v9390 = vrot.slane %v359, %v9389
        %v9391 = vmul.f32 %v293, %v9390
        %v9392 = vmul.f32 %v294, %v9390
        %v9393 = vmul.f32 %v295, %v9390
        %v9394 = vmul.f32 %v296, %v9390
        %v9395 = vmul.f32 %v297, %v9390
        %v9396 = vmul.f32 %v298, %v9390
        %v9397 = vmul.f32 %v299, %v9390
        %v9398 = vmul.f32 %v300, %v9390
        %v9399 = vmul.f32 %v301, %v9390
        %v9400 = vmul.f32 %v302, %v9390
        %v9401 = vmul.f32 %v303, %v9390
        %v9402 = vmul.f32 %v304, %v9390
        %v9403 = vmul.f32 %v305, %v9390
        %v9404 = vmul.f32 %v306, %v9390
        %v9405 = vmul.f32 %v307, %v9390
        %v9406 = vmul.f32 %v308, %v9390
        %v9407 = vmul.f32 %v309, %v9390
        %v9408 = vmul.f32 %v310, %v9390
        %v9409 = vmul.f32 %v311, %v9390
        %v9410 = vmul.f32 %v312, %v9390
        %v9411 = vmul.f32 %v313, %v9390
        %v9412 = vmul.f32 %v314, %v9390
        %v9413 = vmul.f32 %v315, %v9390
        %v9414 = vmul.f32 %v316, %v9390
        %v9415 = vmul.f32 %v317, %v9390
        %v9416 = vmul.f32 %v318, %v9390
        %v9417 = vmul.f32 %v319, %v9390
        %v9418 = vmul.f32 %v320, %v9390
        %v9419 = vmul.f32 %v321, %v9390
        %v9420 = vmul.f32 %v322, %v9390
        %v9421 = vmul.f32 %v323, %v9390
        %v9422 = vmul.f32 %v324, %v9390
        %v9423 = vmul.f32 %v325, %v9390
        %v9424 = vmul.f32 %v326, %v9390
        %v9425 = vmul.f32 %v327, %v9390
        %v9426 = vmul.f32 %v328, %v9390
        %v9427 = vmul.f32 %v329, %v9390
        %v9428 = vmul.f32 %v330, %v9390
        %v9429 = vmul.f32 %v331, %v9390
        %v9430 = vmul.f32 %v332, %v9390
        %v9431 = vmul.f32 %v333, %v9390
        %v9432 = vmul.f32 %v334, %v9390
        %v9433 = vmul.f32 %v335, %v9390
        %v9434 = vmul.f32 %v336, %v9390
        %v9435 = vmul.f32 %v337, %v9390
        %v9436 = vmul.f32 %v338, %v9390
        %v9437 = vmul.f32 %v339, %v9390
        %v9438 = vmul.f32 %v340, %v9390
        %vm9487 = vcmask 1041408
        %v9488 = vrot.slane %v9391, 6
        %v9489 = vrot.slane %v9392, 6
        %v9490 = vsel %vm9487, %v9488, %v9489
        %v9491 = vrot.slane %v9393, 6
        %v9492 = vsel %vm9487, %v9489, %v9491
        %v9493 = vrot.slane %v9394, 6
        %v9494 = vrot.slane %v9395, 6
        %v9495 = vsel %vm9487, %v9493, %v9494
        %v9496 = vrot.slane %v9396, 6
        %v9497 = vsel %vm9487, %v9494, %v9496
        %v9498 = vrot.slane %v9397, 6
        %v9499 = vrot.slane %v9398, 6
        %v9500 = vsel %vm9487, %v9498, %v9499
        %v9501 = vrot.slane %v9399, 6
        %v9502 = vsel %vm9487, %v9499, %v9501
        %v9503 = vrot.slane %v9400, 6
        %v9504 = vrot.slane %v9401, 6
        %v9505 = vsel %vm9487, %v9503, %v9504
        %v9506 = vrot.slane %v9402, 6
        %v9507 = vsel %vm9487, %v9504, %v9506
        %v9508 = vrot.slane %v9403, 6
        %v9509 = vrot.slane %v9404, 6
        %v9510 = vsel %vm9487, %v9508, %v9509
        %v9511 = vrot.slane %v9405, 6
        %v9512 = vsel %vm9487, %v9509, %v9511
        %v9513 = vrot.slane %v9406, 6
        %v9514 = vrot.slane %v9407, 6
        %v9515 = vsel %vm9487, %v9513, %v9514
        %v9516 = vrot.slane %v9408, 6
        %v9517 = vsel %vm9487, %v9514, %v9516
        %v9518 = vrot.slane %v9409, 6
        %v9519 = vrot.slane %v9410, 6
        %v9520 = vsel %vm9487, %v9518, %v9519
        %v9521 = vrot.slane %v9411, 6
        %v9522 = vsel %vm9487, %v9519, %v9521
        %v9523 = vrot.slane %v9412, 6
        %v9524 = vrot.slane %v9413, 6
        %v9525 = vsel %vm9487, %v9523, %v9524
        %v9526 = vrot.slane %v9414, 6
        %v9527 = vsel %vm9487, %v9524, %v9526
        %v9528 = vrot.slane %v9415, 6
        %v9529 = vrot.slane %v9416, 6
        %v9530 = vsel %vm9487, %v9528, %v9529
        %v9531 = vrot.slane %v9417, 6
        %v9532 = vsel %vm9487, %v9529, %v9531
        %v9533 = vrot.slane %v9418, 6
        %v9534 = vrot.slane %v9419, 6
        %v9535 = vsel %vm9487, %v9533, %v9534
        %v9536 = vrot.slane %v9420, 6
        %v9537 = vsel %vm9487, %v9534, %v9536
        %v9538 = vrot.slane %v9421, 6
        %v9539 = vrot.slane %v9422, 6
        %v9540 = vsel %vm9487, %v9538, %v9539
        %v9541 = vrot.slane %v9423, 6
        %v9542 = vsel %vm9487, %v9539, %v9541
        %v9543 = vrot.slane %v9424, 6
        %v9544 = vrot.slane %v9425, 6
        %v9545 = vsel %vm9487, %v9543, %v9544
        %v9546 = vrot.slane %v9426, 6
        %v9547 = vsel %vm9487, %v9544, %v9546
        %v9548 = vrot.slane %v9427, 6
        %v9549 = vrot.slane %v9428, 6
        %v9550 = vsel %vm9487, %v9548, %v9549
        %v9551 = vrot.slane %v9429, 6
        %v9552 = vsel %vm9487, %v9549, %v9551
        %v9553 = vrot.slane %v9430, 6
        %v9554 = vrot.slane %v9431, 6
        %v9555 = vsel %vm9487, %v9553, %v9554
        %v9556 = vrot.slane %v9432, 6
        %v9557 = vsel %vm9487, %v9554, %v9556
        %v9558 = vrot.slane %v9433, 6
        %v9559 = vrot.slane %v9434, 6
        %v9560 = vsel %vm9487, %v9558, %v9559
        %v9561 = vrot.slane %v9435, 6
        %v9562 = vsel %vm9487, %v9559, %v9561
        %v9563 = vrot.slane %v9436, 6
        %v9564 = vrot.slane %v9437, 6
        %v9565 = vsel %vm9487, %v9563, %v9564
        %v9566 = vrot.slane %v9438, 6
        %v9567 = vsel %vm9487, %v9564, %v9566
        %v9600 = vadd.f32 %v9355, %v9490
        %v9601 = vadd.f32 %v9356, %v9492
        %v9602 = vadd.f32 %v9357, %v9495
        %v9603 = vadd.f32 %v9358, %v9497
        %v9604 = vadd.f32 %v9359, %v9500
        %v9605 = vadd.f32 %v9360, %v9502
        %v9606 = vadd.f32 %v9361, %v9505
        %v9607 = vadd.f32 %v9362, %v9507
        %v9608 = vadd.f32 %v9363, %v9510
        %v9609 = vadd.f32 %v9364, %v9512
        %v9610 = vadd.f32 %v9365, %v9515
        %v9611 = vadd.f32 %v9366, %v9517
        %v9612 = vadd.f32 %v9367, %v9520
        %v9613 = vadd.f32 %v9368, %v9522
        %v9614 = vadd.f32 %v9369, %v9525
        %v9615 = vadd.f32 %v9370, %v9527
        %v9616 = vadd.f32 %v9371, %v9530
        %v9617 = vadd.f32 %v9372, %v9532
        %v9618 = vadd.f32 %v9373, %v9535
        %v9619 = vadd.f32 %v9374, %v9537
        %v9620 = vadd.f32 %v9375, %v9540
        %v9621 = vadd.f32 %v9376, %v9542
        %v9622 = vadd.f32 %v9377, %v9545
        %v9623 = vadd.f32 %v9378, %v9547
        %v9624 = vadd.f32 %v9379, %v9550
        %v9625 = vadd.f32 %v9380, %v9552
        %v9626 = vadd.f32 %v9381, %v9555
        %v9627 = vadd.f32 %v9382, %v9557
        %v9628 = vadd.f32 %v9383, %v9560
        %v9629 = vadd.f32 %v9384, %v9562
        %v9630 = vadd.f32 %v9385, %v9565
        %v9631 = vadd.f32 %v9386, %v9567
        %v9632 = vlaneseq
        %v9633 = vshrl.u32 %v9632, 7
        %v9634 = vsub.s32 6, %v9633
        %v9635 = vrot.slane %v360, %v9634
        %v9636 = vmul.f32 %v296, %v9635
        %v9637 = vmul.f32 %v297, %v9635
        %v9638 = vmul.f32 %v298, %v9635
        %v9639 = vmul.f32 %v299, %v9635
        %v9640 = vmul.f32 %v300, %v9635
        %v9641 = vmul.f32 %v301, %v9635
        %v9642 = vmul.f32 %v302, %v9635
        %v9643 = vmul.f32 %v303, %v9635
        %v9644 = vmul.f32 %v304, %v9635
        %v9645 = vmul.f32 %v305, %v9635
        %v9646 = vmul.f32 %v306, %v9635
        %v9647 = vmul.f32 %v307, %v9635
        %v9648 = vmul.f32 %v308, %v9635
        %v9649 = vmul.f32 %v309, %v9635
        %v9650 = vmul.f32 %v310, %v9635
        %v9651 = vmul.f32 %v311, %v9635
        %v9652 = vmul.f32 %v312, %v9635
        %v9653 = vmul.f32 %v313, %v9635
        %v9654 = vmul.f32 %v314, %v9635
        %v9655 = vmul.f32 %v315, %v9635
        %v9656 = vmul.f32 %v316, %v9635
        %v9657 = vmul.f32 %v317, %v9635
        %v9658 = vmul.f32 %v318, %v9635
        %v9659 = vmul.f32 %v319, %v9635
        %v9660 = vmul.f32 %v320, %v9635
        %v9661 = vmul.f32 %v321, %v9635
        %v9662 = vmul.f32 %v322, %v9635
        %v9663 = vmul.f32 %v323, %v9635
        %v9664 = vmul.f32 %v324, %v9635
        %v9665 = vmul.f32 %v325, %v9635
        %v9666 = vmul.f32 %v326, %v9635
        %v9667 = vmul.f32 %v327, %v9635
        %v9668 = vmul.f32 %v328, %v9635
        %v9669 = vmul.f32 %v329, %v9635
        %v9670 = vmul.f32 %v330, %v9635
        %v9671 = vmul.f32 %v331, %v9635
        %v9672 = vmul.f32 %v332, %v9635
        %v9673 = vmul.f32 %v333, %v9635
        %v9674 = vmul.f32 %v334, %v9635
        %v9675 = vmul.f32 %v335, %v9635
        %v9676 = vmul.f32 %v336, %v9635
        %v9677 = vmul.f32 %v337, %v9635
        %v9678 = vmul.f32 %v338, %v9635
        %v9679 = vmul.f32 %v339, %v9635
        %v9680 = vmul.f32 %v340, %v9635
        %v9681 = vmul.f32 %v341, %v9635
        %v9682 = vmul.f32 %v342, %v9635
        %v9683 = vmul.f32 %v343, %v9635
        %v9732 = vrot.slane %v9636, 6
        %v9733 = vrot.slane %v9637, 6
        %v9734 = vsel %vm9487, %v9732, %v9733
        %v9735 = vrot.slane %v9638, 6
        %v9736 = vsel %vm9487, %v9733, %v9735
        %v9737 = vrot.slane %v9639, 6
        %v9738 = vrot.slane %v9640, 6
        %v9739 = vsel %vm9487, %v9737, %v9738
        %v9740 = vrot.slane %v9641, 6
        %v9741 = vsel %vm9487, %v9738, %v9740
        %v9742 = vrot.slane %v9642, 6
        %v9743 = vrot.slane %v9643, 6
        %v9744 = vsel %vm9487, %v9742, %v9743
        %v9745 = vrot.slane %v9644, 6
        %v9746 = vsel %vm9487, %v9743, %v9745
        %v9747 = vrot.slane %v9645, 6
        %v9748 = vrot.slane %v9646, 6
        %v9749 = vsel %vm9487, %v9747, %v9748
        %v9750 = vrot.slane %v9647, 6
        %v9751 = vsel %vm9487, %v9748, %v9750
        %v9752 = vrot.slane %v9648, 6
        %v9753 = vrot.slane %v9649, 6
        %v9754 = vsel %vm9487, %v9752, %v9753
        %v9755 = vrot.slane %v9650, 6
        %v9756 = vsel %vm9487, %v9753, %v9755
        %v9757 = vrot.slane %v9651, 6
        %v9758 = vrot.slane %v9652, 6
        %v9759 = vsel %vm9487, %v9757, %v9758
        %v9760 = vrot.slane %v9653, 6
        %v9761 = vsel %vm9487, %v9758, %v9760
        %v9762 = vrot.slane %v9654, 6
        %v9763 = vrot.slane %v9655, 6
        %v9764 = vsel %vm9487, %v9762, %v9763
        %v9765 = vrot.slane %v9656, 6
        %v9766 = vsel %vm9487, %v9763, %v9765
        %v9767 = vrot.slane %v9657, 6
        %v9768 = vrot.slane %v9658, 6
        %v9769 = vsel %vm9487, %v9767, %v9768
        %v9770 = vrot.slane %v9659, 6
        %v9771 = vsel %vm9487, %v9768, %v9770
        %v9772 = vrot.slane %v9660, 6
        %v9773 = vrot.slane %v9661, 6
        %v9774 = vsel %vm9487, %v9772, %v9773
        %v9775 = vrot.slane %v9662, 6
        %v9776 = vsel %vm9487, %v9773, %v9775
        %v9777 = vrot.slane %v9663, 6
        %v9778 = vrot.slane %v9664, 6
        %v9779 = vsel %vm9487, %v9777, %v9778
        %v9780 = vrot.slane %v9665, 6
        %v9781 = vsel %vm9487, %v9778, %v9780
        %v9782 = vrot.slane %v9666, 6
        %v9783 = vrot.slane %v9667, 6
        %v9784 = vsel %vm9487, %v9782, %v9783
        %v9785 = vrot.slane %v9668, 6
        %v9786 = vsel %vm9487, %v9783, %v9785
        %v9787 = vrot.slane %v9669, 6
        %v9788 = vrot.slane %v9670, 6
        %v9789 = vsel %vm9487, %v9787, %v9788
        %v9790 = vrot.slane %v9671, 6
        %v9791 = vsel %vm9487, %v9788, %v9790
        %v9792 = vrot.slane %v9672, 6
        %v9793 = vrot.slane %v9673, 6
        %v9794 = vsel %vm9487, %v9792, %v9793
        %v9795 = vrot.slane %v9674, 6
        %v9796 = vsel %vm9487, %v9793, %v9795
        %v9797 = vrot.slane %v9675, 6
        %v9798 = vrot.slane %v9676, 6
        %v9799 = vsel %vm9487, %v9797, %v9798
        %v9800 = vrot.slane %v9677, 6
        %v9801 = vsel %vm9487, %v9798, %v9800
        %v9802 = vrot.slane %v9678, 6
        %v9803 = vrot.slane %v9679, 6
        %v9804 = vsel %vm9487, %v9802, %v9803
        %v9805 = vrot.slane %v9680, 6
        %v9806 = vsel %vm9487, %v9803, %v9805
        %v9807 = vrot.slane %v9681, 6
        %v9808 = vrot.slane %v9682, 6
        %v9809 = vsel %vm9487, %v9807, %v9808
        %v9810 = vrot.slane %v9683, 6
        %v9811 = vsel %vm9487, %v9808, %v9810
        %v9844 = vadd.f32 %v9600, %v9734
        %v9845 = vadd.f32 %v9601, %v9736
        %v9846 = vadd.f32 %v9602, %v9739
        %v9847 = vadd.f32 %v9603, %v9741
        %v9848 = vadd.f32 %v9604, %v9744
        %v9849 = vadd.f32 %v9605, %v9746
        %v9850 = vadd.f32 %v9606, %v9749
        %v9851 = vadd.f32 %v9607, %v9751
        %v9852 = vadd.f32 %v9608, %v9754
        %v9853 = vadd.f32 %v9609, %v9756
        %v9854 = vadd.f32 %v9610, %v9759
        %v9855 = vadd.f32 %v9611, %v9761
        %v9856 = vadd.f32 %v9612, %v9764
        %v9857 = vadd.f32 %v9613, %v9766
        %v9858 = vadd.f32 %v9614, %v9769
        %v9859 = vadd.f32 %v9615, %v9771
        %v9860 = vadd.f32 %v9616, %v9774
        %v9861 = vadd.f32 %v9617, %v9776
        %v9862 = vadd.f32 %v9618, %v9779
        %v9863 = vadd.f32 %v9619, %v9781
        %v9864 = vadd.f32 %v9620, %v9784
        %v9865 = vadd.f32 %v9621, %v9786
        %v9866 = vadd.f32 %v9622, %v9789
        %v9867 = vadd.f32 %v9623, %v9791
        %v9868 = vadd.f32 %v9624, %v9794
        %v9869 = vadd.f32 %v9625, %v9796
        %v9870 = vadd.f32 %v9626, %v9799
        %v9871 = vadd.f32 %v9627, %v9801
        %v9872 = vadd.f32 %v9628, %v9804
        %v9873 = vadd.f32 %v9629, %v9806
        %v9874 = vadd.f32 %v9630, %v9809
        %v9875 = vadd.f32 %v9631, %v9811
        %v9876 = vlaneseq
        %v9877 = vshrl.u32 %v9876, 7
        %v9878 = vsub.s32 6, %v9877
        %v9879 = vrot.slane %v361, %v9878
        %v9880 = vmul.f32 %v299, %v9879
        %v9881 = vmul.f32 %v300, %v9879
        %v9882 = vmul.f32 %v301, %v9879
        %v9883 = vmul.f32 %v302, %v9879
        %v9884 = vmul.f32 %v303, %v9879
        %v9885 = vmul.f32 %v304, %v9879
        %v9886 = vmul.f32 %v305, %v9879
        %v9887 = vmul.f32 %v306, %v9879
        %v9888 = vmul.f32 %v307, %v9879
        %v9889 = vmul.f32 %v308, %v9879
        %v9890 = vmul.f32 %v309, %v9879
        %v9891 = vmul.f32 %v310, %v9879
        %v9892 = vmul.f32 %v311, %v9879
        %v9893 = vmul.f32 %v312, %v9879
        %v9894 = vmul.f32 %v313, %v9879
        %v9895 = vmul.f32 %v314, %v9879
        %v9896 = vmul.f32 %v315, %v9879
        %v9897 = vmul.f32 %v316, %v9879
        %v9898 = vmul.f32 %v317, %v9879
        %v9899 = vmul.f32 %v318, %v9879
        %v9900 = vmul.f32 %v319, %v9879
        %v9901 = vmul.f32 %v320, %v9879
        %v9902 = vmul.f32 %v321, %v9879
        %v9903 = vmul.f32 %v322, %v9879
        %v9904 = vmul.f32 %v323, %v9879
        %v9905 = vmul.f32 %v324, %v9879
        %v9906 = vmul.f32 %v325, %v9879
        %v9907 = vmul.f32 %v326, %v9879
        %v9908 = vmul.f32 %v327, %v9879
        %v9909 = vmul.f32 %v328, %v9879
        %v9910 = vmul.f32 %v329, %v9879
        %v9911 = vmul.f32 %v330, %v9879
        %v9912 = vmul.f32 %v331, %v9879
        %v9913 = vmul.f32 %v332, %v9879
        %v9914 = vmul.f32 %v333, %v9879
        %v9915 = vmul.f32 %v334, %v9879
        %v9916 = vmul.f32 %v335, %v9879
        %v9917 = vmul.f32 %v336, %v9879
        %v9918 = vmul.f32 %v337, %v9879
        %v9919 = vmul.f32 %v338, %v9879
        %v9920 = vmul.f32 %v339, %v9879
        %v9921 = vmul.f32 %v340, %v9879
        %v9922 = vmul.f32 %v341, %v9879
        %v9923 = vmul.f32 %v342, %v9879
        %v9924 = vmul.f32 %v343, %v9879
        %v9925 = vmul.f32 %v344, %v9879
        %v9926 = vmul.f32 %v345, %v9879
        %v9927 = vmul.f32 %v346, %v9879
        %v9976 = vrot.slane %v9880, 6
        %v9977 = vrot.slane %v9881, 6
        %v9978 = vsel %vm9487, %v9976, %v9977
        %v9979 = vrot.slane %v9882, 6
        %v9980 = vsel %vm9487, %v9977, %v9979
        %v9981 = vrot.slane %v9883, 6
        %v9982 = vrot.slane %v9884, 6
        %v9983 = vsel %vm9487, %v9981, %v9982
        %v9984 = vrot.slane %v9885, 6
        %v9985 = vsel %vm9487, %v9982, %v9984
        %v9986 = vrot.slane %v9886, 6
        %v9987 = vrot.slane %v9887, 6
        %v9988 = vsel %vm9487, %v9986, %v9987
        %v9989 = vrot.slane %v9888, 6
        %v9990 = vsel %vm9487, %v9987, %v9989
        %v9991 = vrot.slane %v9889, 6
        %v9992 = vrot.slane %v9890, 6
        %v9993 = vsel %vm9487, %v9991, %v9992
        %v9994 = vrot.slane %v9891, 6
        %v9995 = vsel %vm9487, %v9992, %v9994
        %v9996 = vrot.slane %v9892, 6
        %v9997 = vrot.slane %v9893, 6
        %v9998 = vsel %vm9487, %v9996, %v9997
        %v9999 = vrot.slane %v9894, 6
        %v10000 = vsel %vm9487, %v9997, %v9999
        %v10001 = vrot.slane %v9895, 6
        %v10002 = vrot.slane %v9896, 6
        %v10003 = vsel %vm9487, %v10001, %v10002
        %v10004 = vrot.slane %v9897, 6
        %v10005 = vsel %vm9487, %v10002, %v10004
        %v10006 = vrot.slane %v9898, 6
        %v10007 = vrot.slane %v9899, 6
        %v10008 = vsel %vm9487, %v10006, %v10007
        %v10009 = vrot.slane %v9900, 6
        %v10010 = vsel %vm9487, %v10007, %v10009
        %v10011 = vrot.slane %v9901, 6
        %v10012 = vrot.slane %v9902, 6
        %v10013 = vsel %vm9487, %v10011, %v10012
        %v10014 = vrot.slane %v9903, 6
        %v10015 = vsel %vm9487, %v10012, %v10014
        %v10016 = vrot.slane %v9904, 6
        %v10017 = vrot.slane %v9905, 6
        %v10018 = vsel %vm9487, %v10016, %v10017
        %v10019 = vrot.slane %v9906, 6
        %v10020 = vsel %vm9487, %v10017, %v10019
        %v10021 = vrot.slane %v9907, 6
        %v10022 = vrot.slane %v9908, 6
        %v10023 = vsel %vm9487, %v10021, %v10022
        %v10024 = vrot.slane %v9909, 6
        %v10025 = vsel %vm9487, %v10022, %v10024
        %v10026 = vrot.slane %v9910, 6
        %v10027 = vrot.slane %v9911, 6
        %v10028 = vsel %vm9487, %v10026, %v10027
        %v10029 = vrot.slane %v9912, 6
        %v10030 = vsel %vm9487, %v10027, %v10029
        %v10031 = vrot.slane %v9913, 6
        %v10032 = vrot.slane %v9914, 6
        %v10033 = vsel %vm9487, %v10031, %v10032
        %v10034 = vrot.slane %v9915, 6
        %v10035 = vsel %vm9487, %v10032, %v10034
        %v10036 = vrot.slane %v9916, 6
        %v10037 = vrot.slane %v9917, 6
        %v10038 = vsel %vm9487, %v10036, %v10037
        %v10039 = vrot.slane %v9918, 6
        %v10040 = vsel %vm9487, %v10037, %v10039
        %v10041 = vrot.slane %v9919, 6
        %v10042 = vrot.slane %v9920, 6
        %v10043 = vsel %vm9487, %v10041, %v10042
        %v10044 = vrot.slane %v9921, 6
        %v10045 = vsel %vm9487, %v10042, %v10044
        %v10046 = vrot.slane %v9922, 6
        %v10047 = vrot.slane %v9923, 6
        %v10048 = vsel %vm9487, %v10046, %v10047
        %v10049 = vrot.slane %v9924, 6
        %v10050 = vsel %vm9487, %v10047, %v10049
        %v10051 = vrot.slane %v9925, 6
        %v10052 = vrot.slane %v9926, 6
        %v10053 = vsel %vm9487, %v10051, %v10052
        %v10054 = vrot.slane %v9927, 6
        %v10055 = vsel %vm9487, %v10052, %v10054
        %v10088 = vadd.f32 %v9844, %v9978
        %v10089 = vadd.f32 %v9845, %v9980
        %v10090 = vadd.f32 %v9846, %v9983
        %v10091 = vadd.f32 %v9847, %v9985
        %v10092 = vadd.f32 %v9848, %v9988
        %v10093 = vadd.f32 %v9849, %v9990
        %v10094 = vadd.f32 %v9850, %v9993
        %v10095 = vadd.f32 %v9851, %v9995
        %v10096 = vadd.f32 %v9852, %v9998
        %v10097 = vadd.f32 %v9853, %v10000
        %v10098 = vadd.f32 %v9854, %v10003
        %v10099 = vadd.f32 %v9855, %v10005
        %v10100 = vadd.f32 %v9856, %v10008
        %v10101 = vadd.f32 %v9857, %v10010
        %v10102 = vadd.f32 %v9858, %v10013
        %v10103 = vadd.f32 %v9859, %v10015
        %v10104 = vadd.f32 %v9860, %v10018
        %v10105 = vadd.f32 %v9861, %v10020
        %v10106 = vadd.f32 %v9862, %v10023
        %v10107 = vadd.f32 %v9863, %v10025
        %v10108 = vadd.f32 %v9864, %v10028
        %v10109 = vadd.f32 %v9865, %v10030
        %v10110 = vadd.f32 %v9866, %v10033
        %v10111 = vadd.f32 %v9867, %v10035
        %v10112 = vadd.f32 %v9868, %v10038
        %v10113 = vadd.f32 %v9869, %v10040
        %v10114 = vadd.f32 %v9870, %v10043
        %v10115 = vadd.f32 %v9871, %v10045
        %v10116 = vadd.f32 %v9872, %v10048
        %v10117 = vadd.f32 %v9873, %v10050
        %v10118 = vadd.f32 %v9874, %v10053
        %v10119 = vadd.f32 %v9875, %v10055
        %v10120 = vlaneseq
        %v10121 = vshrl.u32 %v10120, 7
        %v10122 = vsub.s32 6, %v10121
        %v10123 = vrot.slane %v362, %v10122
        %v10124 = vmul.f32 %v302, %v10123
        %v10125 = vmul.f32 %v303, %v10123
        %v10126 = vmul.f32 %v304, %v10123
        %v10127 = vmul.f32 %v305, %v10123
        %v10128 = vmul.f32 %v306, %v10123
        %v10129 = vmul.f32 %v307, %v10123
        %v10130 = vmul.f32 %v308, %v10123
        %v10131 = vmul.f32 %v309, %v10123
        %v10132 = vmul.f32 %v310, %v10123
        %v10133 = vmul.f32 %v311, %v10123
        %v10134 = vmul.f32 %v312, %v10123
        %v10135 = vmul.f32 %v313, %v10123
        %v10136 = vmul.f32 %v314, %v10123
        %v10137 = vmul.f32 %v315, %v10123
        %v10138 = vmul.f32 %v316, %v10123
        %v10139 = vmul.f32 %v317, %v10123
        %v10140 = vmul.f32 %v318, %v10123
        %v10141 = vmul.f32 %v319, %v10123
        %v10142 = vmul.f32 %v320, %v10123
        %v10143 = vmul.f32 %v321, %v10123
        %v10144 = vmul.f32 %v322, %v10123
        %v10145 = vmul.f32 %v323, %v10123
        %v10146 = vmul.f32 %v324, %v10123
        %v10147 = vmul.f32 %v325, %v10123
        %v10148 = vmul.f32 %v326, %v10123
        %v10149 = vmul.f32 %v327, %v10123
        %v10150 = vmul.f32 %v328, %v10123
        %v10151 = vmul.f32 %v329, %v10123
        %v10152 = vmul.f32 %v330, %v10123
        %v10153 = vmul.f32 %v331, %v10123
        %v10154 = vmul.f32 %v332, %v10123
        %v10155 = vmul.f32 %v333, %v10123
        %v10156 = vmul.f32 %v334, %v10123
        %v10157 = vmul.f32 %v335, %v10123
        %v10158 = vmul.f32 %v336, %v10123
        %v10159 = vmul.f32 %v337, %v10123
        %v10160 = vmul.f32 %v338, %v10123
        %v10161 = vmul.f32 %v339, %v10123
        %v10162 = vmul.f32 %v340, %v10123
        %v10163 = vmul.f32 %v341, %v10123
        %v10164 = vmul.f32 %v342, %v10123
        %v10165 = vmul.f32 %v343, %v10123
        %v10166 = vmul.f32 %v344, %v10123
        %v10167 = vmul.f32 %v345, %v10123
        %v10168 = vmul.f32 %v346, %v10123
        %v10169 = vmul.f32 %v347, %v10123
        %v10170 = vmul.f32 %v348, %v10123
        %v10171 = vmul.f32 %v349, %v10123
        %v10220 = vrot.slane %v10124, 6
        %v10221 = vrot.slane %v10125, 6
        %v10222 = vsel %vm9487, %v10220, %v10221
        %v10223 = vrot.slane %v10126, 6
        %v10224 = vsel %vm9487, %v10221, %v10223
        %v10225 = vrot.slane %v10127, 6
        %v10226 = vrot.slane %v10128, 6
        %v10227 = vsel %vm9487, %v10225, %v10226
        %v10228 = vrot.slane %v10129, 6
        %v10229 = vsel %vm9487, %v10226, %v10228
        %v10230 = vrot.slane %v10130, 6
        %v10231 = vrot.slane %v10131, 6
        %v10232 = vsel %vm9487, %v10230, %v10231
        %v10233 = vrot.slane %v10132, 6
        %v10234 = vsel %vm9487, %v10231, %v10233
        %v10235 = vrot.slane %v10133, 6
        %v10236 = vrot.slane %v10134, 6
        %v10237 = vsel %vm9487, %v10235, %v10236
        %v10238 = vrot.slane %v10135, 6
        %v10239 = vsel %vm9487, %v10236, %v10238
        %v10240 = vrot.slane %v10136, 6
        %v10241 = vrot.slane %v10137, 6
        %v10242 = vsel %vm9487, %v10240, %v10241
        %v10243 = vrot.slane %v10138, 6
        %v10244 = vsel %vm9487, %v10241, %v10243
        %v10245 = vrot.slane %v10139, 6
        %v10246 = vrot.slane %v10140, 6
        %v10247 = vsel %vm9487, %v10245, %v10246
        %v10248 = vrot.slane %v10141, 6
        %v10249 = vsel %vm9487, %v10246, %v10248
        %v10250 = vrot.slane %v10142, 6
        %v10251 = vrot.slane %v10143, 6
        %v10252 = vsel %vm9487, %v10250, %v10251
        %v10253 = vrot.slane %v10144, 6
        %v10254 = vsel %vm9487, %v10251, %v10253
        %v10255 = vrot.slane %v10145, 6
        %v10256 = vrot.slane %v10146, 6
        %v10257 = vsel %vm9487, %v10255, %v10256
        %v10258 = vrot.slane %v10147, 6
        %v10259 = vsel %vm9487, %v10256, %v10258
        %v10260 = vrot.slane %v10148, 6
        %v10261 = vrot.slane %v10149, 6
        %v10262 = vsel %vm9487, %v10260, %v10261
        %v10263 = vrot.slane %v10150, 6
        %v10264 = vsel %vm9487, %v10261, %v10263
        %v10265 = vrot.slane %v10151, 6
        %v10266 = vrot.slane %v10152, 6
        %v10267 = vsel %vm9487, %v10265, %v10266
        %v10268 = vrot.slane %v10153, 6
        %v10269 = vsel %vm9487, %v10266, %v10268
        %v10270 = vrot.slane %v10154, 6
        %v10271 = vrot.slane %v10155, 6
        %v10272 = vsel %vm9487, %v10270, %v10271
        %v10273 = vrot.slane %v10156, 6
        %v10274 = vsel %vm9487, %v10271, %v10273
        %v10275 = vrot.slane %v10157, 6
        %v10276 = vrot.slane %v10158, 6
        %v10277 = vsel %vm9487, %v10275, %v10276
        %v10278 = vrot.slane %v10159, 6
        %v10279 = vsel %vm9487, %v10276, %v10278
        %v10280 = vrot.slane %v10160, 6
        %v10281 = vrot.slane %v10161, 6
        %v10282 = vsel %vm9487, %v10280, %v10281
        %v10283 = vrot.slane %v10162, 6
        %v10284 = vsel %vm9487, %v10281, %v10283
        %v10285 = vrot.slane %v10163, 6
        %v10286 = vrot.slane %v10164, 6
        %v10287 = vsel %vm9487, %v10285, %v10286
        %v10288 = vrot.slane %v10165, 6
        %v10289 = vsel %vm9487, %v10286, %v10288
        %v10290 = vrot.slane %v10166, 6
        %v10291 = vrot.slane %v10167, 6
        %v10292 = vsel %vm9487, %v10290, %v10291
        %v10293 = vrot.slane %v10168, 6
        %v10294 = vsel %vm9487, %v10291, %v10293
        %v10295 = vrot.slane %v10169, 6
        %v10296 = vrot.slane %v10170, 6
        %v10297 = vsel %vm9487, %v10295, %v10296
        %v10298 = vrot.slane %v10171, 6
        %v10299 = vsel %vm9487, %v10296, %v10298
        %v10332 = vadd.f32 %v10088, %v10222
        %v10333 = vadd.f32 %v10089, %v10224
        %v10334 = vadd.f32 %v10090, %v10227
        %v10335 = vadd.f32 %v10091, %v10229
        %v10336 = vadd.f32 %v10092, %v10232
        %v10337 = vadd.f32 %v10093, %v10234
        %v10338 = vadd.f32 %v10094, %v10237
        %v10339 = vadd.f32 %v10095, %v10239
        %v10340 = vadd.f32 %v10096, %v10242
        %v10341 = vadd.f32 %v10097, %v10244
        %v10342 = vadd.f32 %v10098, %v10247
        %v10343 = vadd.f32 %v10099, %v10249
        %v10344 = vadd.f32 %v10100, %v10252
        %v10345 = vadd.f32 %v10101, %v10254
        %v10346 = vadd.f32 %v10102, %v10257
        %v10347 = vadd.f32 %v10103, %v10259
        %v10348 = vadd.f32 %v10104, %v10262
        %v10349 = vadd.f32 %v10105, %v10264
        %v10350 = vadd.f32 %v10106, %v10267
        %v10351 = vadd.f32 %v10107, %v10269
        %v10352 = vadd.f32 %v10108, %v10272
        %v10353 = vadd.f32 %v10109, %v10274
        %v10354 = vadd.f32 %v10110, %v10277
        %v10355 = vadd.f32 %v10111, %v10279
        %v10356 = vadd.f32 %v10112, %v10282
        %v10357 = vadd.f32 %v10113, %v10284
        %v10358 = vadd.f32 %v10114, %v10287
        %v10359 = vadd.f32 %v10115, %v10289
        %v10360 = vadd.f32 %v10116, %v10292
        %v10361 = vadd.f32 %v10117, %v10294
        %v10362 = vadd.f32 %v10118, %v10297
        %v10363 = vadd.f32 %v10119, %v10299
        %v10364 = vlaneseq
        %v10365 = vshrl.u32 %v10364, 7
        %v10366 = vsub.s32 6, %v10365
        %v10367 = vrot.slane %v363, %v10366
        %v10368 = vmul.f32 %v305, %v10367
        %v10369 = vmul.f32 %v306, %v10367
        %v10370 = vmul.f32 %v307, %v10367
        %v10371 = vmul.f32 %v308, %v10367
        %v10372 = vmul.f32 %v309, %v10367
        %v10373 = vmul.f32 %v310, %v10367
        %v10374 = vmul.f32 %v311, %v10367
        %v10375 = vmul.f32 %v312, %v10367
        %v10376 = vmul.f32 %v313, %v10367
        %v10377 = vmul.f32 %v314, %v10367
        %v10378 = vmul.f32 %v315, %v10367
        %v10379 = vmul.f32 %v316, %v10367
        %v10380 = vmul.f32 %v317, %v10367
        %v10381 = vmul.f32 %v318, %v10367
        %v10382 = vmul.f32 %v319, %v10367
        %v10383 = vmul.f32 %v320, %v10367
        %v10384 = vmul.f32 %v321, %v10367
        %v10385 = vmul.f32 %v322, %v10367
        %v10386 = vmul.f32 %v323, %v10367
        %v10387 = vmul.f32 %v324, %v10367
        %v10388 = vmul.f32 %v325, %v10367
        %v10389 = vmul.f32 %v326, %v10367
        %v10390 = vmul.f32 %v327, %v10367
        %v10391 = vmul.f32 %v328, %v10367
        %v10392 = vmul.f32 %v329, %v10367
        %v10393 = vmul.f32 %v330, %v10367
        %v10394 = vmul.f32 %v331, %v10367
        %v10395 = vmul.f32 %v332, %v10367
        %v10396 = vmul.f32 %v333, %v10367
        %v10397 = vmul.f32 %v334, %v10367
        %v10398 = vmul.f32 %v335, %v10367
        %v10399 = vmul.f32 %v336, %v10367
        %v10400 = vmul.f32 %v337, %v10367
        %v10401 = vmul.f32 %v338, %v10367
        %v10402 = vmul.f32 %v339, %v10367
        %v10403 = vmul.f32 %v340, %v10367
        %v10404 = vmul.f32 %v341, %v10367
        %v10405 = vmul.f32 %v342, %v10367
        %v10406 = vmul.f32 %v343, %v10367
        %v10407 = vmul.f32 %v344, %v10367
        %v10408 = vmul.f32 %v345, %v10367
        %v10409 = vmul.f32 %v346, %v10367
        %v10410 = vmul.f32 %v347, %v10367
        %v10411 = vmul.f32 %v348, %v10367
        %v10412 = vmul.f32 %v349, %v10367
        %v10413 = vmul.f32 %v350, %v10367
        %v10414 = vmul.f32 %v351, %v10367
        %v10415 = vmul.f32 %v352, %v10367
        %v10464 = vrot.slane %v10368, 6
        %v10465 = vrot.slane %v10369, 6
        %v10466 = vsel %vm9487, %v10464, %v10465
        %v10467 = vrot.slane %v10370, 6
        %v10468 = vsel %vm9487, %v10465, %v10467
        %v10469 = vrot.slane %v10371, 6
        %v10470 = vrot.slane %v10372, 6
        %v10471 = vsel %vm9487, %v10469, %v10470
        %v10472 = vrot.slane %v10373, 6
        %v10473 = vsel %vm9487, %v10470, %v10472
        %v10474 = vrot.slane %v10374, 6
        %v10475 = vrot.slane %v10375, 6
        %v10476 = vsel %vm9487, %v10474, %v10475
        %v10477 = vrot.slane %v10376, 6
        %v10478 = vsel %vm9487, %v10475, %v10477
        %v10479 = vrot.slane %v10377, 6
        %v10480 = vrot.slane %v10378, 6
        %v10481 = vsel %vm9487, %v10479, %v10480
        %v10482 = vrot.slane %v10379, 6
        %v10483 = vsel %vm9487, %v10480, %v10482
        %v10484 = vrot.slane %v10380, 6
        %v10485 = vrot.slane %v10381, 6
        %v10486 = vsel %vm9487, %v10484, %v10485
        %v10487 = vrot.slane %v10382, 6
        %v10488 = vsel %vm9487, %v10485, %v10487
        %v10489 = vrot.slane %v10383, 6
        %v10490 = vrot.slane %v10384, 6
        %v10491 = vsel %vm9487, %v10489, %v10490
        %v10492 = vrot.slane %v10385, 6
        %v10493 = vsel %vm9487, %v10490, %v10492
        %v10494 = vrot.slane %v10386, 6
        %v10495 = vrot.slane %v10387, 6
        %v10496 = vsel %vm9487, %v10494, %v10495
        %v10497 = vrot.slane %v10388, 6
        %v10498 = vsel %vm9487, %v10495, %v10497
        %v10499 = vrot.slane %v10389, 6
        %v10500 = vrot.slane %v10390, 6
        %v10501 = vsel %vm9487, %v10499, %v10500
        %v10502 = vrot.slane %v10391, 6
        %v10503 = vsel %vm9487, %v10500, %v10502
        %v10504 = vrot.slane %v10392, 6
        %v10505 = vrot.slane %v10393, 6
        %v10506 = vsel %vm9487, %v10504, %v10505
        %v10507 = vrot.slane %v10394, 6
        %v10508 = vsel %vm9487, %v10505, %v10507
        %v10509 = vrot.slane %v10395, 6
        %v10510 = vrot.slane %v10396, 6
        %v10511 = vsel %vm9487, %v10509, %v10510
        %v10512 = vrot.slane %v10397, 6
        %v10513 = vsel %vm9487, %v10510, %v10512
        %v10514 = vrot.slane %v10398, 6
        %v10515 = vrot.slane %v10399, 6
        %v10516 = vsel %vm9487, %v10514, %v10515
        %v10517 = vrot.slane %v10400, 6
        %v10518 = vsel %vm9487, %v10515, %v10517
        %v10519 = vrot.slane %v10401, 6
        %v10520 = vrot.slane %v10402, 6
        %v10521 = vsel %vm9487, %v10519, %v10520
        %v10522 = vrot.slane %v10403, 6
        %v10523 = vsel %vm9487, %v10520, %v10522
        %v10524 = vrot.slane %v10404, 6
        %v10525 = vrot.slane %v10405, 6
        %v10526 = vsel %vm9487, %v10524, %v10525
        %v10527 = vrot.slane %v10406, 6
        %v10528 = vsel %vm9487, %v10525, %v10527
        %v10529 = vrot.slane %v10407, 6
        %v10530 = vrot.slane %v10408, 6
        %v10531 = vsel %vm9487, %v10529, %v10530
        %v10532 = vrot.slane %v10409, 6
        %v10533 = vsel %vm9487, %v10530, %v10532
        %v10534 = vrot.slane %v10410, 6
        %v10535 = vrot.slane %v10411, 6
        %v10536 = vsel %vm9487, %v10534, %v10535
        %v10537 = vrot.slane %v10412, 6
        %v10538 = vsel %vm9487, %v10535, %v10537
        %v10539 = vrot.slane %v10413, 6
        %v10540 = vrot.slane %v10414, 6
        %v10541 = vsel %vm9487, %v10539, %v10540
        %v10542 = vrot.slane %v10415, 6
        %v10543 = vsel %vm9487, %v10540, %v10542
        %v10576 = vadd.f32 %v10332, %v10466
        %v10577 = vadd.f32 %v10333, %v10468
        %v10578 = vadd.f32 %v10334, %v10471
        %v10579 = vadd.f32 %v10335, %v10473
        %v10580 = vadd.f32 %v10336, %v10476
        %v10581 = vadd.f32 %v10337, %v10478
        %v10582 = vadd.f32 %v10338, %v10481
        %v10583 = vadd.f32 %v10339, %v10483
        %v10584 = vadd.f32 %v10340, %v10486
        %v10585 = vadd.f32 %v10341, %v10488
        %v10586 = vadd.f32 %v10342, %v10491
        %v10587 = vadd.f32 %v10343, %v10493
        %v10588 = vadd.f32 %v10344, %v10496
        %v10589 = vadd.f32 %v10345, %v10498
        %v10590 = vadd.f32 %v10346, %v10501
        %v10591 = vadd.f32 %v10347, %v10503
        %v10592 = vadd.f32 %v10348, %v10506
        %v10593 = vadd.f32 %v10349, %v10508
        %v10594 = vadd.f32 %v10350, %v10511
        %v10595 = vadd.f32 %v10351, %v10513
        %v10596 = vadd.f32 %v10352, %v10516
        %v10597 = vadd.f32 %v10353, %v10518
        %v10598 = vadd.f32 %v10354, %v10521
        %v10599 = vadd.f32 %v10355, %v10523
        %v10600 = vadd.f32 %v10356, %v10526
        %v10601 = vadd.f32 %v10357, %v10528
        %v10602 = vadd.f32 %v10358, %v10531
        %v10603 = vadd.f32 %v10359, %v10533
        %v10604 = vadd.f32 %v10360, %v10536
        %v10605 = vadd.f32 %v10361, %v10538
        %v10606 = vadd.f32 %v10362, %v10541
        %v10607 = vadd.f32 %v10363, %v10543
        %v10608 = vlaneseq
        %v10609 = vshrl.u32 %v10608, 7
        %v10610 = vsub.s32 6, %v10609
        %v10611 = vrot.slane %v364, %v10610
        %v10612 = vmul.f32 %v308, %v10611
        %v10613 = vmul.f32 %v309, %v10611
        %v10614 = vmul.f32 %v310, %v10611
        %v10615 = vmul.f32 %v311, %v10611
        %v10616 = vmul.f32 %v312, %v10611
        %v10617 = vmul.f32 %v313, %v10611
        %v10618 = vmul.f32 %v314, %v10611
        %v10619 = vmul.f32 %v315, %v10611
        %v10620 = vmul.f32 %v316, %v10611
        %v10621 = vmul.f32 %v317, %v10611
        %v10622 = vmul.f32 %v318, %v10611
        %v10623 = vmul.f32 %v319, %v10611
        %v10624 = vmul.f32 %v320, %v10611
        %v10625 = vmul.f32 %v321, %v10611
        %v10626 = vmul.f32 %v322, %v10611
        %v10627 = vmul.f32 %v323, %v10611
        %v10628 = vmul.f32 %v324, %v10611
        %v10629 = vmul.f32 %v325, %v10611
        %v10630 = vmul.f32 %v326, %v10611
        %v10631 = vmul.f32 %v327, %v10611
        %v10632 = vmul.f32 %v328, %v10611
        %v10633 = vmul.f32 %v329, %v10611
        %v10634 = vmul.f32 %v330, %v10611
        %v10635 = vmul.f32 %v331, %v10611
        %v10636 = vmul.f32 %v332, %v10611
        %v10637 = vmul.f32 %v333, %v10611
        %v10638 = vmul.f32 %v334, %v10611
        %v10639 = vmul.f32 %v335, %v10611
        %v10640 = vmul.f32 %v336, %v10611
        %v10641 = vmul.f32 %v337, %v10611
        %v10642 = vmul.f32 %v338, %v10611
        %v10643 = vmul.f32 %v339, %v10611
        %v10644 = vmul.f32 %v340, %v10611
        %v10645 = vmul.f32 %v341, %v10611
        %v10646 = vmul.f32 %v342, %v10611
        %v10647 = vmul.f32 %v343, %v10611
        %v10648 = vmul.f32 %v344, %v10611
        %v10649 = vmul.f32 %v345, %v10611
        %v10650 = vmul.f32 %v346, %v10611
        %v10651 = vmul.f32 %v347, %v10611
        %v10652 = vmul.f32 %v348, %v10611
        %v10653 = vmul.f32 %v349, %v10611
        %v10654 = vmul.f32 %v350, %v10611
        %v10655 = vmul.f32 %v351, %v10611
        %v10656 = vmul.f32 %v352, %v10611
        %v10657 = vmul.f32 %v353, %v10611
        %v10658 = vmul.f32 %v354, %v10611
        %v10659 = vmul.f32 %v355, %v10611
        %v10708 = vrot.slane %v10612, 6
        %v10709 = vrot.slane %v10613, 6
        %v10710 = vsel %vm9487, %v10708, %v10709
        %v10711 = vrot.slane %v10614, 6
        %v10712 = vsel %vm9487, %v10709, %v10711
        %v10713 = vrot.slane %v10615, 6
        %v10714 = vrot.slane %v10616, 6
        %v10715 = vsel %vm9487, %v10713, %v10714
        %v10716 = vrot.slane %v10617, 6
        %v10717 = vsel %vm9487, %v10714, %v10716
        %v10718 = vrot.slane %v10618, 6
        %v10719 = vrot.slane %v10619, 6
        %v10720 = vsel %vm9487, %v10718, %v10719
        %v10721 = vrot.slane %v10620, 6
        %v10722 = vsel %vm9487, %v10719, %v10721
        %v10723 = vrot.slane %v10621, 6
        %v10724 = vrot.slane %v10622, 6
        %v10725 = vsel %vm9487, %v10723, %v10724
        %v10726 = vrot.slane %v10623, 6
        %v10727 = vsel %vm9487, %v10724, %v10726
        %v10728 = vrot.slane %v10624, 6
        %v10729 = vrot.slane %v10625, 6
        %v10730 = vsel %vm9487, %v10728, %v10729
        %v10731 = vrot.slane %v10626, 6
        %v10732 = vsel %vm9487, %v10729, %v10731
        %v10733 = vrot.slane %v10627, 6
        %v10734 = vrot.slane %v10628, 6
        %v10735 = vsel %vm9487, %v10733, %v10734
        %v10736 = vrot.slane %v10629, 6
        %v10737 = vsel %vm9487, %v10734, %v10736
        %v10738 = vrot.slane %v10630, 6
        %v10739 = vrot.slane %v10631, 6
        %v10740 = vsel %vm9487, %v10738, %v10739
        %v10741 = vrot.slane %v10632, 6
        %v10742 = vsel %vm9487, %v10739, %v10741
        %v10743 = vrot.slane %v10633, 6
        %v10744 = vrot.slane %v10634, 6
        %v10745 = vsel %vm9487, %v10743, %v10744
        %v10746 = vrot.slane %v10635, 6
        %v10747 = vsel %vm9487, %v10744, %v10746
        %v10748 = vrot.slane %v10636, 6
        %v10749 = vrot.slane %v10637, 6
        %v10750 = vsel %vm9487, %v10748, %v10749
        %v10751 = vrot.slane %v10638, 6
        %v10752 = vsel %vm9487, %v10749, %v10751
        %v10753 = vrot.slane %v10639, 6
        %v10754 = vrot.slane %v10640, 6
        %v10755 = vsel %vm9487, %v10753, %v10754
        %v10756 = vrot.slane %v10641, 6
        %v10757 = vsel %vm9487, %v10754, %v10756
        %v10758 = vrot.slane %v10642, 6
        %v10759 = vrot.slane %v10643, 6
        %v10760 = vsel %vm9487, %v10758, %v10759
        %v10761 = vrot.slane %v10644, 6
        %v10762 = vsel %vm9487, %v10759, %v10761
        %v10763 = vrot.slane %v10645, 6
        %v10764 = vrot.slane %v10646, 6
        %v10765 = vsel %vm9487, %v10763, %v10764
        %v10766 = vrot.slane %v10647, 6
        %v10767 = vsel %vm9487, %v10764, %v10766
        %v10768 = vrot.slane %v10648, 6
        %v10769 = vrot.slane %v10649, 6
        %v10770 = vsel %vm9487, %v10768, %v10769
        %v10771 = vrot.slane %v10650, 6
        %v10772 = vsel %vm9487, %v10769, %v10771
        %v10773 = vrot.slane %v10651, 6
        %v10774 = vrot.slane %v10652, 6
        %v10775 = vsel %vm9487, %v10773, %v10774
        %v10776 = vrot.slane %v10653, 6
        %v10777 = vsel %vm9487, %v10774, %v10776
        %v10778 = vrot.slane %v10654, 6
        %v10779 = vrot.slane %v10655, 6
        %v10780 = vsel %vm9487, %v10778, %v10779
        %v10781 = vrot.slane %v10656, 6
        %v10782 = vsel %vm9487, %v10779, %v10781
        %v10783 = vrot.slane %v10657, 6
        %v10784 = vrot.slane %v10658, 6
        %v10785 = vsel %vm9487, %v10783, %v10784
        %v10786 = vrot.slane %v10659, 6
        %v10787 = vsel %vm9487, %v10784, %v10786
        %v10820 = vadd.f32 %v10576, %v10710
        %v10821 = vadd.f32 %v10577, %v10712
        %v10822 = vadd.f32 %v10578, %v10715
        %v10823 = vadd.f32 %v10579, %v10717
        %v10824 = vadd.f32 %v10580, %v10720
        %v10825 = vadd.f32 %v10581, %v10722
        %v10826 = vadd.f32 %v10582, %v10725
        %v10827 = vadd.f32 %v10583, %v10727
        %v10828 = vadd.f32 %v10584, %v10730
        %v10829 = vadd.f32 %v10585, %v10732
        %v10830 = vadd.f32 %v10586, %v10735
        %v10831 = vadd.f32 %v10587, %v10737
        %v10832 = vadd.f32 %v10588, %v10740
        %v10833 = vadd.f32 %v10589, %v10742
        %v10834 = vadd.f32 %v10590, %v10745
        %v10835 = vadd.f32 %v10591, %v10747
        %v10836 = vadd.f32 %v10592, %v10750
        %v10837 = vadd.f32 %v10593, %v10752
        %v10838 = vadd.f32 %v10594, %v10755
        %v10839 = vadd.f32 %v10595, %v10757
        %v10840 = vadd.f32 %v10596, %v10760
        %v10841 = vadd.f32 %v10597, %v10762
        %v10842 = vadd.f32 %v10598, %v10765
        %v10843 = vadd.f32 %v10599, %v10767
        %v10844 = vadd.f32 %v10600, %v10770
        %v10845 = vadd.f32 %v10601, %v10772
        %v10846 = vadd.f32 %v10602, %v10775
        %v10847 = vadd.f32 %v10603, %v10777
        %v10848 = vadd.f32 %v10604, %v10780
        %v10849 = vadd.f32 %v10605, %v10782
        %v10850 = vadd.f32 %v10606, %v10785
        %v10851 = vadd.f32 %v10607, %v10787
        %v10852 = vlaneseq
        %v10853 = vshrl.u32 %v10852, 7
        %v10854 = vsub.s32 6, %v10853
        %v10855 = vrot.slane %v365, %v10854
        %v10856 = vmul.f32 %v311, %v10855
        %v10857 = vmul.f32 %v312, %v10855
        %v10858 = vmul.f32 %v313, %v10855
        %v10859 = vmul.f32 %v314, %v10855
        %v10860 = vmul.f32 %v315, %v10855
        %v10861 = vmul.f32 %v316, %v10855
        %v10862 = vmul.f32 %v317, %v10855
        %v10863 = vmul.f32 %v318, %v10855
        %v10864 = vmul.f32 %v319, %v10855
        %v10865 = vmul.f32 %v320, %v10855
        %v10866 = vmul.f32 %v321, %v10855
        %v10867 = vmul.f32 %v322, %v10855
        %v10868 = vmul.f32 %v323, %v10855
        %v10869 = vmul.f32 %v324, %v10855
        %v10870 = vmul.f32 %v325, %v10855
        %v10871 = vmul.f32 %v326, %v10855
        %v10872 = vmul.f32 %v327, %v10855
        %v10873 = vmul.f32 %v328, %v10855
        %v10874 = vmul.f32 %v329, %v10855
        %v10875 = vmul.f32 %v330, %v10855
        %v10876 = vmul.f32 %v331, %v10855
        %v10877 = vmul.f32 %v332, %v10855
        %v10878 = vmul.f32 %v333, %v10855
        %v10879 = vmul.f32 %v334, %v10855
        %v10880 = vmul.f32 %v335, %v10855
        %v10881 = vmul.f32 %v336, %v10855
        %v10882 = vmul.f32 %v337, %v10855
        %v10883 = vmul.f32 %v338, %v10855
        %v10884 = vmul.f32 %v339, %v10855
        %v10885 = vmul.f32 %v340, %v10855
        %v10886 = vmul.f32 %v341, %v10855
        %v10887 = vmul.f32 %v342, %v10855
        %v10888 = vmul.f32 %v343, %v10855
        %v10889 = vmul.f32 %v344, %v10855
        %v10890 = vmul.f32 %v345, %v10855
        %v10891 = vmul.f32 %v346, %v10855
        %v10892 = vmul.f32 %v347, %v10855
        %v10893 = vmul.f32 %v348, %v10855
        %v10894 = vmul.f32 %v349, %v10855
        %v10895 = vmul.f32 %v350, %v10855
        %v10896 = vmul.f32 %v351, %v10855
        %v10897 = vmul.f32 %v352, %v10855
        %v10898 = vmul.f32 %v353, %v10855
        %v10899 = vmul.f32 %v354, %v10855
        %v10900 = vmul.f32 %v355, %v10855
        %v10901 = vmul.f32 %v356, %v10855
        %v10902 = vmul.f32 %v357, %v10855
        %v10903 = vmul.f32 %v358, %v10855
        %v10952 = vrot.slane %v10856, 6
        %v10953 = vrot.slane %v10857, 6
        %v10954 = vsel %vm9487, %v10952, %v10953
        %v10955 = vrot.slane %v10858, 6
        %v10956 = vsel %vm9487, %v10953, %v10955
        %v10957 = vrot.slane %v10859, 6
        %v10958 = vrot.slane %v10860, 6
        %v10959 = vsel %vm9487, %v10957, %v10958
        %v10960 = vrot.slane %v10861, 6
        %v10961 = vsel %vm9487, %v10958, %v10960
        %v10962 = vrot.slane %v10862, 6
        %v10963 = vrot.slane %v10863, 6
        %v10964 = vsel %vm9487, %v10962, %v10963
        %v10965 = vrot.slane %v10864, 6
        %v10966 = vsel %vm9487, %v10963, %v10965
        %v10967 = vrot.slane %v10865, 6
        %v10968 = vrot.slane %v10866, 6
        %v10969 = vsel %vm9487, %v10967, %v10968
        %v10970 = vrot.slane %v10867, 6
        %v10971 = vsel %vm9487, %v10968, %v10970
        %v10972 = vrot.slane %v10868, 6
        %v10973 = vrot.slane %v10869, 6
        %v10974 = vsel %vm9487, %v10972, %v10973
        %v10975 = vrot.slane %v10870, 6
        %v10976 = vsel %vm9487, %v10973, %v10975
        %v10977 = vrot.slane %v10871, 6
        %v10978 = vrot.slane %v10872, 6
        %v10979 = vsel %vm9487, %v10977, %v10978
        %v10980 = vrot.slane %v10873, 6
        %v10981 = vsel %vm9487, %v10978, %v10980
        %v10982 = vrot.slane %v10874, 6
        %v10983 = vrot.slane %v10875, 6
        %v10984 = vsel %vm9487, %v10982, %v10983
        %v10985 = vrot.slane %v10876, 6
        %v10986 = vsel %vm9487, %v10983, %v10985
        %v10987 = vrot.slane %v10877, 6
        %v10988 = vrot.slane %v10878, 6
        %v10989 = vsel %vm9487, %v10987, %v10988
        %v10990 = vrot.slane %v10879, 6
        %v10991 = vsel %vm9487, %v10988, %v10990
        %v10992 = vrot.slane %v10880, 6
        %v10993 = vrot.slane %v10881, 6
        %v10994 = vsel %vm9487, %v10992, %v10993
        %v10995 = vrot.slane %v10882, 6
        %v10996 = vsel %vm9487, %v10993, %v10995
        %v10997 = vrot.slane %v10883, 6
        %v10998 = vrot.slane %v10884, 6
        %v10999 = vsel %vm9487, %v10997, %v10998
        %v11000 = vrot.slane %v10885, 6
        %v11001 = vsel %vm9487, %v10998, %v11000
        %v11002 = vrot.slane %v10886, 6
        %v11003 = vrot.slane %v10887, 6
        %v11004 = vsel %vm9487, %v11002, %v11003
        %v11005 = vrot.slane %v10888, 6
        %v11006 = vsel %vm9487, %v11003, %v11005
        %v11007 = vrot.slane %v10889, 6
        %v11008 = vrot.slane %v10890, 6
        %v11009 = vsel %vm9487, %v11007, %v11008
        %v11010 = vrot.slane %v10891, 6
        %v11011 = vsel %vm9487, %v11008, %v11010
        %v11012 = vrot.slane %v10892, 6
        %v11013 = vrot.slane %v10893, 6
        %v11014 = vsel %vm9487, %v11012, %v11013
        %v11015 = vrot.slane %v10894, 6
        %v11016 = vsel %vm9487, %v11013, %v11015
        %v11017 = vrot.slane %v10895, 6
        %v11018 = vrot.slane %v10896, 6
        %v11019 = vsel %vm9487, %v11017, %v11018
        %v11020 = vrot.slane %v10897, 6
        %v11021 = vsel %vm9487, %v11018, %v11020
        %v11022 = vrot.slane %v10898, 6
        %v11023 = vrot.slane %v10899, 6
        %v11024 = vsel %vm9487, %v11022, %v11023
        %v11025 = vrot.slane %v10900, 6
        %v11026 = vsel %vm9487, %v11023, %v11025
        %v11027 = vrot.slane %v10901, 6
        %v11028 = vrot.slane %v10902, 6
        %v11029 = vsel %vm9487, %v11027, %v11028
        %v11030 = vrot.slane %v10903, 6
        %v11031 = vsel %vm9487, %v11028, %v11030
        %v11064 = vadd.f32 %v10820, %v10954
        %v11065 = vadd.f32 %v10821, %v10956
        %v11066 = vadd.f32 %v10822, %v10959
        %v11067 = vadd.f32 %v10823, %v10961
        %v11068 = vadd.f32 %v10824, %v10964
        %v11069 = vadd.f32 %v10825, %v10966
        %v11070 = vadd.f32 %v10826, %v10969
        %v11071 = vadd.f32 %v10827, %v10971
        %v11072 = vadd.f32 %v10828, %v10974
        %v11073 = vadd.f32 %v10829, %v10976
        %v11074 = vadd.f32 %v10830, %v10979
        %v11075 = vadd.f32 %v10831, %v10981
        %v11076 = vadd.f32 %v10832, %v10984
        %v11077 = vadd.f32 %v10833, %v10986
        %v11078 = vadd.f32 %v10834, %v10989
        %v11079 = vadd.f32 %v10835, %v10991
        %v11080 = vadd.f32 %v10836, %v10994
        %v11081 = vadd.f32 %v10837, %v10996
        %v11082 = vadd.f32 %v10838, %v10999
        %v11083 = vadd.f32 %v10839, %v11001
        %v11084 = vadd.f32 %v10840, %v11004
        %v11085 = vadd.f32 %v10841, %v11006
        %v11086 = vadd.f32 %v10842, %v11009
        %v11087 = vadd.f32 %v10843, %v11011
        %v11088 = vadd.f32 %v10844, %v11014
        %v11089 = vadd.f32 %v10845, %v11016
        %v11090 = vadd.f32 %v10846, %v11019
        %v11091 = vadd.f32 %v10847, %v11021
        %v11092 = vadd.f32 %v10848, %v11024
        %v11093 = vadd.f32 %v10849, %v11026
        %v11094 = vadd.f32 %v10850, %v11029
        %v11095 = vadd.f32 %v10851, %v11031
        %v11096 = vld [vmem:[%s2] sm:$0x1]
        %v11098 = vlaneseq
        %v11099 = vshrl.u32 %v11098, 7
        %v11100 = vsub.s32 0, %v11099
        %v11101 = vrot.slane %v11096, %v11100
        %v11103 = vadd.f32 %v11064, %v11101
        %v11104 = vadd.f32 %v11065, %v11101
        %v11105 = vadd.f32 %v11066, %v11101
        %v11106 = vadd.f32 %v11067, %v11101
        %v11107 = vadd.f32 %v11068, %v11101
        %v11108 = vadd.f32 %v11069, %v11101
        %v11109 = vadd.f32 %v11070, %v11101
        %v11110 = vadd.f32 %v11071, %v11101
        %v11111 = vadd.f32 %v11072, %v11101
        %v11112 = vadd.f32 %v11073, %v11101
        %v11113 = vadd.f32 %v11074, %v11101
        %v11114 = vadd.f32 %v11075, %v11101
        %v11115 = vadd.f32 %v11076, %v11101
        %v11116 = vadd.f32 %v11077, %v11101
        %v11117 = vadd.f32 %v11078, %v11101
        %v11118 = vadd.f32 %v11079, %v11101
        %v11119 = vadd.f32 %v11080, %v11101
        %v11120 = vadd.f32 %v11081, %v11101
        %v11121 = vadd.f32 %v11082, %v11101
        %v11122 = vadd.f32 %v11083, %v11101
        %v11123 = vadd.f32 %v11084, %v11101
        %v11124 = vadd.f32 %v11085, %v11101
        %v11125 = vadd.f32 %v11086, %v11101
        %v11126 = vadd.f32 %v11087, %v11101
        %v11127 = vadd.f32 %v11088, %v11101
        %v11128 = vadd.f32 %v11089, %v11101
        %v11129 = vadd.f32 %v11090, %v11101
        %v11130 = vadd.f32 %v11091, %v11101
        %v11131 = vadd.f32 %v11092, %v11101
        %v11132 = vadd.f32 %v11093, %v11101
        %v11133 = vadd.f32 %v11094, %v11101
        %v11134 = vadd.f32 %v11095, %v11101
        %vm11135 = vcmask 261120
        %v11136 = vsel %vm11135, %v11103, 0.0
        %11137 = vadd.xlane.f32.xlu0 %v11136
        %v11138 = vpop.xlane.xlu0 %11137
        %v11139 = vsel %vm11135, %v11104, 0.0
        %11140 = vadd.xlane.f32.xlu0 %v11139
        %v11141 = vpop.xlane.xlu0 %11140
        %v11142 = vsel %vm11135, %v11105, 0.0
        %11143 = vadd.xlane.f32.xlu0 %v11142
        %v11144 = vpop.xlane.xlu0 %11143
        %v11145 = vsel %vm11135, %v11106, 0.0
        %11146 = vadd.xlane.f32.xlu0 %v11145
        %v11147 = vpop.xlane.xlu0 %11146
        %v11148 = vsel %vm11135, %v11107, 0.0
        %11149 = vadd.xlane.f32.xlu0 %v11148
        %v11150 = vpop.xlane.xlu0 %11149
        %v11151 = vsel %vm11135, %v11108, 0.0
        %11152 = vadd.xlane.f32.xlu0 %v11151
        %v11153 = vpop.xlane.xlu0 %11152
        %v11154 = vsel %vm11135, %v11109, 0.0
        %11155 = vadd.xlane.f32.xlu0 %v11154
        %v11156 = vpop.xlane.xlu0 %11155
        %v11157 = vsel %vm11135, %v11110, 0.0
        %11158 = vadd.xlane.f32.xlu0 %v11157
        %v11159 = vpop.xlane.xlu0 %11158
        %v11160 = vsel %vm11135, %v11111, 0.0
        %11161 = vadd.xlane.f32.xlu0 %v11160
        %v11162 = vpop.xlane.xlu0 %11161
        %v11163 = vsel %vm11135, %v11112, 0.0
        %11164 = vadd.xlane.f32.xlu0 %v11163
        %v11165 = vpop.xlane.xlu0 %11164
        %v11166 = vsel %vm11135, %v11113, 0.0
        %11167 = vadd.xlane.f32.xlu0 %v11166
        %v11168 = vpop.xlane.xlu0 %11167
        %v11169 = vsel %vm11135, %v11114, 0.0
        %11170 = vadd.xlane.f32.xlu0 %v11169
        %v11171 = vpop.xlane.xlu0 %11170
        %v11172 = vsel %vm11135, %v11115, 0.0
        %11173 = vadd.xlane.f32.xlu0 %v11172
        %v11174 = vpop.xlane.xlu0 %11173
        %v11175 = vsel %vm11135, %v11116, 0.0
        %11176 = vadd.xlane.f32.xlu0 %v11175
        %v11177 = vpop.xlane.xlu0 %11176
        %v11178 = vsel %vm11135, %v11117, 0.0
        %11179 = vadd.xlane.f32.xlu0 %v11178
        %v11180 = vpop.xlane.xlu0 %11179
        %v11181 = vsel %vm11135, %v11118, 0.0
        %11182 = vadd.xlane.f32.xlu0 %v11181
        %v11183 = vpop.xlane.xlu0 %11182
        %v11184 = vsel %vm11135, %v11119, 0.0
        %11185 = vadd.xlane.f32.xlu0 %v11184
        %v11186 = vpop.xlane.xlu0 %11185
        %v11187 = vsel %vm11135, %v11120, 0.0
        %11188 = vadd.xlane.f32.xlu0 %v11187
        %v11189 = vpop.xlane.xlu0 %11188
        %v11190 = vsel %vm11135, %v11121, 0.0
        %11191 = vadd.xlane.f32.xlu0 %v11190
        %v11192 = vpop.xlane.xlu0 %11191
        %v11193 = vsel %vm11135, %v11122, 0.0
        %11194 = vadd.xlane.f32.xlu0 %v11193
        %v11195 = vpop.xlane.xlu0 %11194
        %v11196 = vsel %vm11135, %v11123, 0.0
        %11197 = vadd.xlane.f32.xlu0 %v11196
        %v11198 = vpop.xlane.xlu0 %11197
        %v11199 = vsel %vm11135, %v11124, 0.0
        %11200 = vadd.xlane.f32.xlu0 %v11199
        %v11201 = vpop.xlane.xlu0 %11200
        %v11202 = vsel %vm11135, %v11125, 0.0
        %11203 = vadd.xlane.f32.xlu0 %v11202
        %v11204 = vpop.xlane.xlu0 %11203
        %v11205 = vsel %vm11135, %v11126, 0.0
        %11206 = vadd.xlane.f32.xlu0 %v11205
        %v11207 = vpop.xlane.xlu0 %11206
        %v11208 = vsel %vm11135, %v11127, 0.0
        %11209 = vadd.xlane.f32.xlu0 %v11208
        %v11210 = vpop.xlane.xlu0 %11209
        %v11211 = vsel %vm11135, %v11128, 0.0
        %11212 = vadd.xlane.f32.xlu0 %v11211
        %v11213 = vpop.xlane.xlu0 %11212
        %v11214 = vsel %vm11135, %v11129, 0.0
        %11215 = vadd.xlane.f32.xlu0 %v11214
        %v11216 = vpop.xlane.xlu0 %11215
        %v11217 = vsel %vm11135, %v11130, 0.0
        %11218 = vadd.xlane.f32.xlu0 %v11217
        %v11219 = vpop.xlane.xlu0 %11218
        %v11220 = vsel %vm11135, %v11131, 0.0
        %11221 = vadd.xlane.f32.xlu0 %v11220
        %v11222 = vpop.xlane.xlu0 %11221
        %v11223 = vsel %vm11135, %v11132, 0.0
        %11224 = vadd.xlane.f32.xlu0 %v11223
        %v11225 = vpop.xlane.xlu0 %11224
        %v11226 = vsel %vm11135, %v11133, 0.0
        %11227 = vadd.xlane.f32.xlu0 %v11226
        %v11228 = vpop.xlane.xlu0 %11227
        %v11229 = vsel %vm11135, %v11134, 0.0
        %11230 = vadd.xlane.f32.xlu0 %v11229
        %v11231 = vpop.xlane.xlu0 %11230
        %v11232 = vmul.f32 %v11138, 0.03125
        %v11233 = vmul.f32 %v11141, 0.03125
        %v11234 = vmul.f32 %v11144, 0.03125
        %v11235 = vmul.f32 %v11147, 0.03125
        %v11236 = vmul.f32 %v11150, 0.03125
        %v11237 = vmul.f32 %v11153, 0.03125
        %v11238 = vmul.f32 %v11156, 0.03125
        %v11239 = vmul.f32 %v11159, 0.03125
        %v11240 = vmul.f32 %v11162, 0.03125
        %v11241 = vmul.f32 %v11165, 0.03125
        %v11242 = vmul.f32 %v11168, 0.03125
        %v11243 = vmul.f32 %v11171, 0.03125
        %v11244 = vmul.f32 %v11174, 0.03125
        %v11245 = vmul.f32 %v11177, 0.03125
        %v11246 = vmul.f32 %v11180, 0.03125
        %v11247 = vmul.f32 %v11183, 0.03125
        %v11248 = vmul.f32 %v11186, 0.03125
        %v11249 = vmul.f32 %v11189, 0.03125
        %v11250 = vmul.f32 %v11192, 0.03125
        %v11251 = vmul.f32 %v11195, 0.03125
        %v11252 = vmul.f32 %v11198, 0.03125
        %v11253 = vmul.f32 %v11201, 0.03125
        %v11254 = vmul.f32 %v11204, 0.03125
        %v11255 = vmul.f32 %v11207, 0.03125
        %v11256 = vmul.f32 %v11210, 0.03125
        %v11257 = vmul.f32 %v11213, 0.03125
        %v11258 = vmul.f32 %v11216, 0.03125
        %v11259 = vmul.f32 %v11219, 0.03125
        %v11260 = vmul.f32 %v11222, 0.03125
        %v11261 = vmul.f32 %v11225, 0.03125
        %v11262 = vmul.f32 %v11228, 0.03125
        %v11263 = vmul.f32 %v11231, 0.03125
        %v11264 = vmul.f32 %v11103, %v11103
        %v11265 = vmul.f32 %v11104, %v11104
        %v11266 = vmul.f32 %v11105, %v11105
        %v11267 = vmul.f32 %v11106, %v11106
        %v11268 = vmul.f32 %v11107, %v11107
        %v11269 = vmul.f32 %v11108, %v11108
        %v11270 = vmul.f32 %v11109, %v11109
        %v11271 = vmul.f32 %v11110, %v11110
        %v11272 = vmul.f32 %v11111, %v11111
        %v11273 = vmul.f32 %v11112, %v11112
        %v11274 = vmul.f32 %v11113, %v11113
        %v11275 = vmul.f32 %v11114, %v11114
        %v11276 = vmul.f32 %v11115, %v11115
        %v11277 = vmul.f32 %v11116, %v11116
        %v11278 = vmul.f32 %v11117, %v11117
        %v11279 = vmul.f32 %v11118, %v11118
        %v11280 = vmul.f32 %v11119, %v11119
        %v11281 = vmul.f32 %v11120, %v11120
        %v11282 = vmul.f32 %v11121, %v11121
        %v11283 = vmul.f32 %v11122, %v11122
        %v11284 = vmul.f32 %v11123, %v11123
        %v11285 = vmul.f32 %v11124, %v11124
        %v11286 = vmul.f32 %v11125, %v11125
        %v11287 = vmul.f32 %v11126, %v11126
        %v11288 = vmul.f32 %v11127, %v11127
        %v11289 = vmul.f32 %v11128, %v11128
        %v11290 = vmul.f32 %v11129, %v11129
        %v11291 = vmul.f32 %v11130, %v11130
        %v11292 = vmul.f32 %v11131, %v11131
        %v11293 = vmul.f32 %v11132, %v11132
        %v11294 = vmul.f32 %v11133, %v11133
        %v11295 = vmul.f32 %v11134, %v11134
        %v11296 = vsel %vm11135, %v11264, 0.0
        %11297 = vadd.xlane.f32.xlu0 %v11296
        %v11298 = vpop.xlane.xlu0 %11297
        %v11299 = vsel %vm11135, %v11265, 0.0
        %11300 = vadd.xlane.f32.xlu0 %v11299
        %v11301 = vpop.xlane.xlu0 %11300
        %v11302 = vsel %vm11135, %v11266, 0.0
        %11303 = vadd.xlane.f32.xlu0 %v11302
        %v11304 = vpop.xlane.xlu0 %11303
        %v11305 = vsel %vm11135, %v11267, 0.0
        %11306 = vadd.xlane.f32.xlu0 %v11305
        %v11307 = vpop.xlane.xlu0 %11306
        %v11308 = vsel %vm11135, %v11268, 0.0
        %11309 = vadd.xlane.f32.xlu0 %v11308
        %v11310 = vpop.xlane.xlu0 %11309
        %v11311 = vsel %vm11135, %v11269, 0.0
        %11312 = vadd.xlane.f32.xlu0 %v11311
        %v11313 = vpop.xlane.xlu0 %11312
        %v11314 = vsel %vm11135, %v11270, 0.0
        %11315 = vadd.xlane.f32.xlu0 %v11314
        %v11316 = vpop.xlane.xlu0 %11315
        %v11317 = vsel %vm11135, %v11271, 0.0
        %11318 = vadd.xlane.f32.xlu0 %v11317
        %v11319 = vpop.xlane.xlu0 %11318
        %v11320 = vsel %vm11135, %v11272, 0.0
        %11321 = vadd.xlane.f32.xlu0 %v11320
        %v11322 = vpop.xlane.xlu0 %11321
        %v11323 = vsel %vm11135, %v11273, 0.0
        %11324 = vadd.xlane.f32.xlu0 %v11323
        %v11325 = vpop.xlane.xlu0 %11324
        %v11326 = vsel %vm11135, %v11274, 0.0
        %11327 = vadd.xlane.f32.xlu0 %v11326
        %v11328 = vpop.xlane.xlu0 %11327
        %v11329 = vsel %vm11135, %v11275, 0.0
        %11330 = vadd.xlane.f32.xlu0 %v11329
        %v11331 = vpop.xlane.xlu0 %11330
        %v11332 = vsel %vm11135, %v11276, 0.0
        %11333 = vadd.xlane.f32.xlu0 %v11332
        %v11334 = vpop.xlane.xlu0 %11333
        %v11335 = vsel %vm11135, %v11277, 0.0
        %11336 = vadd.xlane.f32.xlu0 %v11335
        %v11337 = vpop.xlane.xlu0 %11336
        %v11338 = vsel %vm11135, %v11278, 0.0
        %11339 = vadd.xlane.f32.xlu0 %v11338
        %v11340 = vpop.xlane.xlu0 %11339
        %v11341 = vsel %vm11135, %v11279, 0.0
        %11342 = vadd.xlane.f32.xlu0 %v11341
        %v11343 = vpop.xlane.xlu0 %11342
        %v11344 = vsel %vm11135, %v11280, 0.0
        %11345 = vadd.xlane.f32.xlu0 %v11344
        %v11346 = vpop.xlane.xlu0 %11345
        %v11347 = vsel %vm11135, %v11281, 0.0
        %11348 = vadd.xlane.f32.xlu0 %v11347
        %v11349 = vpop.xlane.xlu0 %11348
        %v11350 = vsel %vm11135, %v11282, 0.0
        %11351 = vadd.xlane.f32.xlu0 %v11350
        %v11352 = vpop.xlane.xlu0 %11351
        %v11353 = vsel %vm11135, %v11283, 0.0
        %11354 = vadd.xlane.f32.xlu0 %v11353
        %v11355 = vpop.xlane.xlu0 %11354
        %v11356 = vsel %vm11135, %v11284, 0.0
        %11357 = vadd.xlane.f32.xlu0 %v11356
        %v11358 = vpop.xlane.xlu0 %11357
        %v11359 = vsel %vm11135, %v11285, 0.0
        %11360 = vadd.xlane.f32.xlu0 %v11359
        %v11361 = vpop.xlane.xlu0 %11360
        %v11362 = vsel %vm11135, %v11286, 0.0
        %11363 = vadd.xlane.f32.xlu0 %v11362
        %v11364 = vpop.xlane.xlu0 %11363
        %v11365 = vsel %vm11135, %v11287, 0.0
        %11366 = vadd.xlane.f32.xlu0 %v11365
        %v11367 = vpop.xlane.xlu0 %11366
        %v11368 = vsel %vm11135, %v11288, 0.0
        %11369 = vadd.xlane.f32.xlu0 %v11368
        %v11370 = vpop.xlane.xlu0 %11369
        %v11371 = vsel %vm11135, %v11289, 0.0
        %11372 = vadd.xlane.f32.xlu0 %v11371
        %v11373 = vpop.xlane.xlu0 %11372
        %v11374 = vsel %vm11135, %v11290, 0.0
        %11375 = vadd.xlane.f32.xlu0 %v11374
        %v11376 = vpop.xlane.xlu0 %11375
        %v11377 = vsel %vm11135, %v11291, 0.0
        %11378 = vadd.xlane.f32.xlu0 %v11377
        %v11379 = vpop.xlane.xlu0 %11378
        %v11380 = vsel %vm11135, %v11292, 0.0
        %11381 = vadd.xlane.f32.xlu0 %v11380
        %v11382 = vpop.xlane.xlu0 %11381
        %v11383 = vsel %vm11135, %v11293, 0.0
        %11384 = vadd.xlane.f32.xlu0 %v11383
        %v11385 = vpop.xlane.xlu0 %11384
        %v11386 = vsel %vm11135, %v11294, 0.0
        %11387 = vadd.xlane.f32.xlu0 %v11386
        %v11388 = vpop.xlane.xlu0 %11387
        %v11389 = vsel %vm11135, %v11295, 0.0
        %11390 = vadd.xlane.f32.xlu0 %v11389
        %v11391 = vpop.xlane.xlu0 %11390
        %v11392 = vmul.f32 %v11298, 0.03125
        %v11393 = vmul.f32 %v11301, 0.03125
        %v11394 = vmul.f32 %v11304, 0.03125
        %v11395 = vmul.f32 %v11307, 0.03125
        %v11396 = vmul.f32 %v11310, 0.03125
        %v11397 = vmul.f32 %v11313, 0.03125
        %v11398 = vmul.f32 %v11316, 0.03125
        %v11399 = vmul.f32 %v11319, 0.03125
        %v11400 = vmul.f32 %v11322, 0.03125
        %v11401 = vmul.f32 %v11325, 0.03125
        %v11402 = vmul.f32 %v11328, 0.03125
        %v11403 = vmul.f32 %v11331, 0.03125
        %v11404 = vmul.f32 %v11334, 0.03125
        %v11405 = vmul.f32 %v11337, 0.03125
        %v11406 = vmul.f32 %v11340, 0.03125
        %v11407 = vmul.f32 %v11343, 0.03125
        %v11408 = vmul.f32 %v11346, 0.03125
        %v11409 = vmul.f32 %v11349, 0.03125
        %v11410 = vmul.f32 %v11352, 0.03125
        %v11411 = vmul.f32 %v11355, 0.03125
        %v11412 = vmul.f32 %v11358, 0.03125
        %v11413 = vmul.f32 %v11361, 0.03125
        %v11414 = vmul.f32 %v11364, 0.03125
        %v11415 = vmul.f32 %v11367, 0.03125
        %v11416 = vmul.f32 %v11370, 0.03125
        %v11417 = vmul.f32 %v11373, 0.03125
        %v11418 = vmul.f32 %v11376, 0.03125
        %v11419 = vmul.f32 %v11379, 0.03125
        %v11420 = vmul.f32 %v11382, 0.03125
        %v11421 = vmul.f32 %v11385, 0.03125
        %v11422 = vmul.f32 %v11388, 0.03125
        %v11423 = vmul.f32 %v11391, 0.03125
        %v11424 = vmul.f32 %v11232, %v11232
        %v11425 = vmul.f32 %v11233, %v11233
        %v11426 = vmul.f32 %v11234, %v11234
        %v11427 = vmul.f32 %v11235, %v11235
        %v11428 = vmul.f32 %v11236, %v11236
        %v11429 = vmul.f32 %v11237, %v11237
        %v11430 = vmul.f32 %v11238, %v11238
        %v11431 = vmul.f32 %v11239, %v11239
        %v11432 = vmul.f32 %v11240, %v11240
        %v11433 = vmul.f32 %v11241, %v11241
        %v11434 = vmul.f32 %v11242, %v11242
        %v11435 = vmul.f32 %v11243, %v11243
        %v11436 = vmul.f32 %v11244, %v11244
        %v11437 = vmul.f32 %v11245, %v11245
        %v11438 = vmul.f32 %v11246, %v11246
        %v11439 = vmul.f32 %v11247, %v11247
        %v11440 = vmul.f32 %v11248, %v11248
        %v11441 = vmul.f32 %v11249, %v11249
        %v11442 = vmul.f32 %v11250, %v11250
        %v11443 = vmul.f32 %v11251, %v11251
        %v11444 = vmul.f32 %v11252, %v11252
        %v11445 = vmul.f32 %v11253, %v11253
        %v11446 = vmul.f32 %v11254, %v11254
        %v11447 = vmul.f32 %v11255, %v11255
        %v11448 = vmul.f32 %v11256, %v11256
        %v11449 = vmul.f32 %v11257, %v11257
        %v11450 = vmul.f32 %v11258, %v11258
        %v11451 = vmul.f32 %v11259, %v11259
        %v11452 = vmul.f32 %v11260, %v11260
        %v11453 = vmul.f32 %v11261, %v11261
        %v11454 = vmul.f32 %v11262, %v11262
        %v11455 = vmul.f32 %v11263, %v11263
        %v11456 = vsub.f32 %v11392, %v11424
        %v11457 = vsub.f32 %v11393, %v11425
        %v11458 = vsub.f32 %v11394, %v11426
        %v11459 = vsub.f32 %v11395, %v11427
        %v11460 = vsub.f32 %v11396, %v11428
        %v11461 = vsub.f32 %v11397, %v11429
        %v11462 = vsub.f32 %v11398, %v11430
        %v11463 = vsub.f32 %v11399, %v11431
        %v11464 = vsub.f32 %v11400, %v11432
        %v11465 = vsub.f32 %v11401, %v11433
        %v11466 = vsub.f32 %v11402, %v11434
        %v11467 = vsub.f32 %v11403, %v11435
        %v11468 = vsub.f32 %v11404, %v11436
        %v11469 = vsub.f32 %v11405, %v11437
        %v11470 = vsub.f32 %v11406, %v11438
        %v11471 = vsub.f32 %v11407, %v11439
        %v11472 = vsub.f32 %v11408, %v11440
        %v11473 = vsub.f32 %v11409, %v11441
        %v11474 = vsub.f32 %v11410, %v11442
        %v11475 = vsub.f32 %v11411, %v11443
        %v11476 = vsub.f32 %v11412, %v11444
        %v11477 = vsub.f32 %v11413, %v11445
        %v11478 = vsub.f32 %v11414, %v11446
        %v11479 = vsub.f32 %v11415, %v11447
        %v11480 = vsub.f32 %v11416, %v11448
        %v11481 = vsub.f32 %v11417, %v11449
        %v11482 = vsub.f32 %v11418, %v11450
        %v11483 = vsub.f32 %v11419, %v11451
        %v11484 = vsub.f32 %v11420, %v11452
        %v11485 = vsub.f32 %v11421, %v11453
        %v11486 = vsub.f32 %v11422, %v11454
        %v11487 = vsub.f32 %v11423, %v11455
        %v11488 = vsub.f32 %v11103, %v11232
        %v11489 = vsub.f32 %v11104, %v11233
        %v11490 = vsub.f32 %v11105, %v11234
        %v11491 = vsub.f32 %v11106, %v11235
        %v11492 = vsub.f32 %v11107, %v11236
        %v11493 = vsub.f32 %v11108, %v11237
        %v11494 = vsub.f32 %v11109, %v11238
        %v11495 = vsub.f32 %v11110, %v11239
        %v11496 = vsub.f32 %v11111, %v11240
        %v11497 = vsub.f32 %v11112, %v11241
        %v11498 = vsub.f32 %v11113, %v11242
        %v11499 = vsub.f32 %v11114, %v11243
        %v11500 = vsub.f32 %v11115, %v11244
        %v11501 = vsub.f32 %v11116, %v11245
        %v11502 = vsub.f32 %v11117, %v11246
        %v11503 = vsub.f32 %v11118, %v11247
        %v11504 = vsub.f32 %v11119, %v11248
        %v11505 = vsub.f32 %v11120, %v11249
        %v11506 = vsub.f32 %v11121, %v11250
        %v11507 = vsub.f32 %v11122, %v11251
        %v11508 = vsub.f32 %v11123, %v11252
        %v11509 = vsub.f32 %v11124, %v11253
        %v11510 = vsub.f32 %v11125, %v11254
        %v11511 = vsub.f32 %v11126, %v11255
        %v11512 = vsub.f32 %v11127, %v11256
        %v11513 = vsub.f32 %v11128, %v11257
        %v11514 = vsub.f32 %v11129, %v11258
        %v11515 = vsub.f32 %v11130, %v11259
        %v11516 = vsub.f32 %v11131, %v11260
        %v11517 = vsub.f32 %v11132, %v11261
        %v11518 = vsub.f32 %v11133, %v11262
        %v11519 = vsub.f32 %v11134, %v11263
        %v11520 = vadd.f32 %v11456, 1e-06
        %v11521 = vadd.f32 %v11457, 1e-06
        %v11522 = vadd.f32 %v11458, 1e-06
        %v11523 = vadd.f32 %v11459, 1e-06
        %v11524 = vadd.f32 %v11460, 1e-06
        %v11525 = vadd.f32 %v11461, 1e-06
        %v11526 = vadd.f32 %v11462, 1e-06
        %v11527 = vadd.f32 %v11463, 1e-06
        %v11528 = vadd.f32 %v11464, 1e-06
        %v11529 = vadd.f32 %v11465, 1e-06
        %v11530 = vadd.f32 %v11466, 1e-06
        %v11531 = vadd.f32 %v11467, 1e-06
        %v11532 = vadd.f32 %v11468, 1e-06
        %v11533 = vadd.f32 %v11469, 1e-06
        %v11534 = vadd.f32 %v11470, 1e-06
        %v11535 = vadd.f32 %v11471, 1e-06
        %v11536 = vadd.f32 %v11472, 1e-06
        %v11537 = vadd.f32 %v11473, 1e-06
        %v11538 = vadd.f32 %v11474, 1e-06
        %v11539 = vadd.f32 %v11475, 1e-06
        %v11540 = vadd.f32 %v11476, 1e-06
        %v11541 = vadd.f32 %v11477, 1e-06
        %v11542 = vadd.f32 %v11478, 1e-06
        %v11543 = vadd.f32 %v11479, 1e-06
        %v11544 = vadd.f32 %v11480, 1e-06
        %v11545 = vadd.f32 %v11481, 1e-06
        %v11546 = vadd.f32 %v11482, 1e-06
        %v11547 = vadd.f32 %v11483, 1e-06
        %v11548 = vadd.f32 %v11484, 1e-06
        %v11549 = vadd.f32 %v11485, 1e-06
        %v11550 = vadd.f32 %v11486, 1e-06
        %v11551 = vadd.f32 %v11487, 1e-06
        %v11552 = vrsqrt.pop %v11520
        %v11553 = vrsqrt.pop %v11521
        %v11554 = vrsqrt.pop %v11522
        %v11555 = vrsqrt.pop %v11523
        %v11556 = vrsqrt.pop %v11524
        %v11557 = vrsqrt.pop %v11525
        %v11558 = vrsqrt.pop %v11526
        %v11559 = vrsqrt.pop %v11527
        %v11560 = vrsqrt.pop %v11528
        %v11561 = vrsqrt.pop %v11529
        %v11562 = vrsqrt.pop %v11530
        %v11563 = vrsqrt.pop %v11531
        %v11564 = vrsqrt.pop %v11532
        %v11565 = vrsqrt.pop %v11533
        %v11566 = vrsqrt.pop %v11534
        %v11567 = vrsqrt.pop %v11535
        %v11568 = vrsqrt.pop %v11536
        %v11569 = vrsqrt.pop %v11537
        %v11570 = vrsqrt.pop %v11538
        %v11571 = vrsqrt.pop %v11539
        %v11572 = vrsqrt.pop %v11540
        %v11573 = vrsqrt.pop %v11541
        %v11574 = vrsqrt.pop %v11542
        %v11575 = vrsqrt.pop %v11543
        %v11576 = vrsqrt.pop %v11544
        %v11577 = vrsqrt.pop %v11545
        %v11578 = vrsqrt.pop %v11546
        %v11579 = vrsqrt.pop %v11547
        %v11580 = vrsqrt.pop %v11548
        %v11581 = vrsqrt.pop %v11549
        %v11582 = vrsqrt.pop %v11550
        %v11583 = vrsqrt.pop %v11551
        %v11584 = vmul.f32 %v11488, %v11552
        %v11585 = vmul.f32 %v11489, %v11553
        %v11586 = vmul.f32 %v11490, %v11554
        %v11587 = vmul.f32 %v11491, %v11555
        %v11588 = vmul.f32 %v11492, %v11556
        %v11589 = vmul.f32 %v11493, %v11557
        %v11590 = vmul.f32 %v11494, %v11558
        %v11591 = vmul.f32 %v11495, %v11559
        %v11592 = vmul.f32 %v11496, %v11560
        %v11593 = vmul.f32 %v11497, %v11561
        %v11594 = vmul.f32 %v11498, %v11562
        %v11595 = vmul.f32 %v11499, %v11563
        %v11596 = vmul.f32 %v11500, %v11564
        %v11597 = vmul.f32 %v11501, %v11565
        %v11598 = vmul.f32 %v11502, %v11566
        %v11599 = vmul.f32 %v11503, %v11567
        %v11600 = vmul.f32 %v11504, %v11568
        %v11601 = vmul.f32 %v11505, %v11569
        %v11602 = vmul.f32 %v11506, %v11570
        %v11603 = vmul.f32 %v11507, %v11571
        %v11604 = vmul.f32 %v11508, %v11572
        %v11605 = vmul.f32 %v11509, %v11573
        %v11606 = vmul.f32 %v11510, %v11574
        %v11607 = vmul.f32 %v11511, %v11575
        %v11608 = vmul.f32 %v11512, %v11576
        %v11609 = vmul.f32 %v11513, %v11577
        %v11610 = vmul.f32 %v11514, %v11578
        %v11611 = vmul.f32 %v11515, %v11579
        %v11612 = vmul.f32 %v11516, %v11580
        %v11613 = vmul.f32 %v11517, %v11581
        %v11614 = vmul.f32 %v11518, %v11582
        %v11615 = vmul.f32 %v11519, %v11583
        %v11616 = vpack.c.bf16 %v11585, %v11584
        %v11617 = vpack.c.bf16 %v11587, %v11586
        %v11618 = vpack.c.bf16 %v11589, %v11588
        %v11619 = vpack.c.bf16 %v11591, %v11590
        %v11620 = vpack.c.bf16 %v11593, %v11592
        %v11621 = vpack.c.bf16 %v11595, %v11594
        %v11622 = vpack.c.bf16 %v11597, %v11596
        %v11623 = vpack.c.bf16 %v11599, %v11598
        %v11624 = vpack.c.bf16 %v11601, %v11600
        %v11625 = vpack.c.bf16 %v11603, %v11602
        %v11626 = vpack.c.bf16 %v11605, %v11604
        %v11627 = vpack.c.bf16 %v11607, %v11606
        %v11628 = vpack.c.bf16 %v11609, %v11608
        %v11629 = vpack.c.bf16 %v11611, %v11610
        %v11630 = vpack.c.bf16 %v11613, %v11612
        %v11631 = vpack.c.bf16 %v11615, %v11614
        %v11632 = vld [vmem:[%s3] sm:$0xf]
        %v11633 = vld [vmem:[%s3 + $0x4] sm:$0xf]
        %v11634 = vld [vmem:[%s3 + $0x8] sm:$0xf]
        %v11635 = vld [vmem:[%s3 + $0xc] sm:$0xf]
        %v11636 = vld [vmem:[%s4] sm:$0x1]
        %v11638 = vlaneseq
        %v11639 = vshrl.u32 %v11638, 7
        %v11640 = vsub.s32 0, %v11639
        %v11641 = vrot.slane %v11636, %v11640
        %v11647 = vunpack.c.l.b16 %v11632
        %v11648 = vunpack.c.l.b16 %v11633
        %v11649 = vunpack.c.l.b16 %v11634
        %v11650 = vunpack.c.l.b16 %v11635
        %v11651 = vpack.c.b16 %v11648, %v11647
        %v11652 = vpack.c.b16 %v11650, %v11649
        %v11656 = vsel %vm11135, %v11616, 0
        %v11659 = vsel %vm11135, %v11617, 0
        %v11662 = vsel %vm11135, %v11618, 0
        %v11665 = vsel %vm11135, %v11619, 0
        %v11668 = vsel %vm11135, %v11620, 0
        %v11671 = vsel %vm11135, %v11621, 0
        %v11674 = vsel %vm11135, %v11622, 0
        %v11677 = vsel %vm11135, %v11623, 0
        %v11680 = vsel %vm11135, %v11624, 0
        %v11683 = vsel %vm11135, %v11625, 0
        %v11686 = vsel %vm11135, %v11626, 0
        %v11689 = vsel %vm11135, %v11627, 0
        %v11692 = vsel %vm11135, %v11628, 0
        %v11695 = vsel %vm11135, %v11629, 0
        %v11698 = vsel %vm11135, %v11630, 0
        %v11701 = vsel %vm11135, %v11631, 0
        %11703 = vmatprep.subr.bf16.mxu0 0
        %11704 = vmatpush1.bf16.msra.mxu0 %v11651
        %11705 = vmatprep.subr.bf16.mxu0 0
        %11706 = vmatpush1.bf16.msra.mxu0 %v11652
        %11707 = vmatprep.subr.bf16.mxu0 0
        %11708 = vmatpush1.bf16.msra.mxu0 0
        %11709 = vmatprep.subr.bf16.mxu0 0
        %11710 = vmatpush1.bf16.msra.mxu0 0
        %11711 = vmatprep.subr.bf16.mxu0 0
        %11712 = vmatpush1.bf16.msra.mxu0 0
        %11713 = vmatprep.subr.bf16.mxu0 0
        %11714 = vmatpush1.bf16.msra.mxu0 0
        %11715 = vmatprep.subr.bf16.mxu0 0
        %11716 = vmatpush1.bf16.msra.mxu0 0
        %11717 = vmatprep.subr.bf16.mxu0 0
        %11718 = vmatpush1.bf16.msra.mxu0 0
        %11719 = vmatprep.subr.bf16.mxu0 0
        %11720 = vmatpush1.bf16.msra.mxu0 0
        %11721 = vmatprep.subr.bf16.mxu0 0
        %11722 = vmatpush1.bf16.msra.mxu0 0
        %11723 = vmatprep.subr.bf16.mxu0 0
        %11724 = vmatpush1.bf16.msra.mxu0 0
        %11725 = vmatprep.subr.bf16.mxu0 0
        %11726 = vmatpush1.bf16.msra.mxu0 0
        %11727 = vmatprep.subr.bf16.mxu0 0
        %11728 = vmatpush1.bf16.msra.mxu0 0
        %11729 = vmatprep.subr.bf16.mxu0 0
        %11730 = vmatpush1.bf16.msra.mxu0 0
        %11731 = vmatprep.subr.bf16.mxu0 0
        %11732 = vmatpush1.bf16.msra.mxu0 0
        %11733 = vmatprep.subr.bf16.mxu0 0
        %11734 = vmatpush1.bf16.msra.mxu0 0
        %11735 = vmatprep.mubr.bf16.mxu0 0
        %11736 = vmatmul.mubr.bf16.gmra.mrb[0].mxu0 %v11656
        %v11737 = vpop.f32.mrb[0].mxu0
        %v11738 = vadd.f32 %v11641, %v11737
        %v11739 = vpop.f32.mrb[0].mxu0
        %v11740 = vpop.f32.mrb[0].mxu0
        %v11741 = vadd.f32 %v11641, %v11740
        %v11742 = vpop.f32.mrb[0].mxu0
        %11743 = vmatprep.mubr.bf16.mxu0 0
        %11744 = vmatmul.mubr.bf16.gmra.mrb[0].mxu0 %v11659
        %v11745 = vpop.f32.mrb[0].mxu0
        %v11746 = vadd.f32 %v11641, %v11745
        %v11747 = vpop.f32.mrb[0].mxu0
        %v11748 = vpop.f32.mrb[0].mxu0
        %v11749 = vadd.f32 %v11641, %v11748
        %v11750 = vpop.f32.mrb[0].mxu0
        %11751 = vmatprep.mubr.bf16.mxu0 0
        %11752 = vmatmul.mubr.bf16.gmra.mrb[0].mxu0 %v11662
        %v11753 = vpop.f32.mrb[0].mxu0
        %v11754 = vadd.f32 %v11641, %v11753
        %v11755 = vpop.f32.mrb[0].mxu0
        %v11756 = vpop.f32.mrb[0].mxu0
        %v11757 = vadd.f32 %v11641, %v11756
        %v11758 = vpop.f32.mrb[0].mxu0
        %11759 = vmatprep.mubr.bf16.mxu0 0
        %11760 = vmatmul.mubr.bf16.gmra.mrb[0].mxu0 %v11665
        %v11761 = vpop.f32.mrb[0].mxu0
        %v11762 = vadd.f32 %v11641, %v11761
        %v11763 = vpop.f32.mrb[0].mxu0
        %v11764 = vpop.f32.mrb[0].mxu0
        %v11765 = vadd.f32 %v11641, %v11764
        %v11766 = vpop.f32.mrb[0].mxu0
        %11767 = vmatprep.mubr.bf16.mxu0 0
        %11768 = vmatmul.mubr.bf16.gmra.mrb[0].mxu0 %v11668
        %v11769 = vpop.f32.mrb[0].mxu0
        %v11770 = vadd.f32 %v11641, %v11769
        %v11771 = vpop.f32.mrb[0].mxu0
        %v11772 = vpop.f32.mrb[0].mxu0
        %v11773 = vadd.f32 %v11641, %v11772
        %v11774 = vpop.f32.mrb[0].mxu0
        %11775 = vmatprep.mubr.bf16.mxu0 0
        %11776 = vmatmul.mubr.bf16.gmra.mrb[0].mxu0 %v11671
        %v11777 = vpop.f32.mrb[0].mxu0
        %v11778 = vadd.f32 %v11641, %v11777
        %v11779 = vpop.f32.mrb[0].mxu0
        %v11780 = vpop.f32.mrb[0].mxu0
        %v11781 = vadd.f32 %v11641, %v11780
        %v11782 = vpop.f32.mrb[0].mxu0
        %11783 = vmatprep.mubr.bf16.mxu0 0
        %11784 = vmatmul.mubr.bf16.gmra.mrb[0].mxu0 %v11674
        %v11785 = vpop.f32.mrb[0].mxu0
        %v11786 = vadd.f32 %v11641, %v11785
        %v11787 = vpop.f32.mrb[0].mxu0
        %v11788 = vpop.f32.mrb[0].mxu0
        %v11789 = vadd.f32 %v11641, %v11788
        %v11790 = vpop.f32.mrb[0].mxu0
        %11791 = vmatprep.mubr.bf16.mxu0 0
        %11792 = vmatmul.mubr.bf16.gmra.mrb[0].mxu0 %v11677
        %v11793 = vpop.f32.mrb[0].mxu0
        %v11794 = vadd.f32 %v11641, %v11793
        %v11795 = vpop.f32.mrb[0].mxu0
        %v11796 = vpop.f32.mrb[0].mxu0
        %v11797 = vadd.f32 %v11641, %v11796
        %v11798 = vpop.f32.mrb[0].mxu0
        %11799 = vmatprep.mubr.bf16.mxu0 0
        %11800 = vmatmul.mubr.bf16.gmra.mrb[0].mxu0 %v11680
        %v11801 = vpop.f32.mrb[0].mxu0
        %v11802 = vadd.f32 %v11641, %v11801
        %v11803 = vpop.f32.mrb[0].mxu0
        %v11804 = vpop.f32.mrb[0].mxu0
        %v11805 = vadd.f32 %v11641, %v11804
        %v11806 = vpop.f32.mrb[0].mxu0
        %11807 = vmatprep.mubr.bf16.mxu0 0
        %11808 = vmatmul.mubr.bf16.gmra.mrb[0].mxu0 %v11683
        %v11809 = vpop.f32.mrb[0].mxu0
        %v11810 = vadd.f32 %v11641, %v11809
        %v11811 = vpop.f32.mrb[0].mxu0
        %v11812 = vpop.f32.mrb[0].mxu0
        %v11813 = vadd.f32 %v11641, %v11812
        %v11814 = vpop.f32.mrb[0].mxu0
        %11815 = vmatprep.mubr.bf16.mxu0 0
        %11816 = vmatmul.mubr.bf16.gmra.mrb[0].mxu0 %v11686
        %v11817 = vpop.f32.mrb[0].mxu0
        %v11818 = vadd.f32 %v11641, %v11817
        %v11819 = vpop.f32.mrb[0].mxu0
        %v11820 = vpop.f32.mrb[0].mxu0
        %v11821 = vadd.f32 %v11641, %v11820
        %v11822 = vpop.f32.mrb[0].mxu0
        %11823 = vmatprep.mubr.bf16.mxu0 0
        %11824 = vmatmul.mubr.bf16.gmra.mrb[0].mxu0 %v11689
        %v11825 = vpop.f32.mrb[0].mxu0
        %v11826 = vadd.f32 %v11641, %v11825
        %v11827 = vpop.f32.mrb[0].mxu0
        %v11828 = vpop.f32.mrb[0].mxu0
        %v11829 = vadd.f32 %v11641, %v11828
        %v11830 = vpop.f32.mrb[0].mxu0
        %11831 = vmatprep.mubr.bf16.mxu0 0
        %11832 = vmatmul.mubr.bf16.gmra.mrb[0].mxu0 %v11692
        %v11833 = vpop.f32.mrb[0].mxu0
        %v11834 = vadd.f32 %v11641, %v11833
        %v11835 = vpop.f32.mrb[0].mxu0
        %v11836 = vpop.f32.mrb[0].mxu0
        %v11837 = vadd.f32 %v11641, %v11836
        %v11838 = vpop.f32.mrb[0].mxu0
        %11839 = vmatprep.mubr.bf16.mxu0 0
        %11840 = vmatmul.mubr.bf16.gmra.mrb[0].mxu0 %v11695
        %v11841 = vpop.f32.mrb[0].mxu0
        %v11842 = vadd.f32 %v11641, %v11841
        %v11843 = vpop.f32.mrb[0].mxu0
        %v11844 = vpop.f32.mrb[0].mxu0
        %v11845 = vadd.f32 %v11641, %v11844
        %v11846 = vpop.f32.mrb[0].mxu0
        %11847 = vmatprep.mubr.bf16.mxu0 0
        %11848 = vmatmul.mubr.bf16.gmra.mrb[0].mxu0 %v11698
        %v11849 = vpop.f32.mrb[0].mxu0
        %v11850 = vadd.f32 %v11641, %v11849
        %v11851 = vpop.f32.mrb[0].mxu0
        %v11852 = vpop.f32.mrb[0].mxu0
        %v11853 = vadd.f32 %v11641, %v11852
        %v11854 = vpop.f32.mrb[0].mxu0
        %11855 = vmatprep.mubr.bf16.mxu0 0
        %11856 = vmatmul.mubr.bf16.gmra.mrb[0].mxu0 %v11701
        %v11857 = vpop.f32.mrb[0].mxu0
        %v11858 = vadd.f32 %v11641, %v11857
        %v11859 = vpop.f32.mrb[0].mxu0
        %v11860 = vpop.f32.mrb[0].mxu0
        %v11861 = vadd.f32 %v11641, %v11860
        %v11862 = vpop.f32.mrb[0].mxu0
        %11863 = vdwg.mxu0
        %v11864 = vmul.f32 %v11738, 0.5
        %v11865 = vmul.f32 %v11741, 0.5
        %v11866 = vmul.f32 %v11746, 0.5
        %v11867 = vmul.f32 %v11749, 0.5
        %v11868 = vmul.f32 %v11754, 0.5
        %v11869 = vmul.f32 %v11757, 0.5
        %v11870 = vmul.f32 %v11762, 0.5
        %v11871 = vmul.f32 %v11765, 0.5
        %v11872 = vmul.f32 %v11770, 0.5
        %v11873 = vmul.f32 %v11773, 0.5
        %v11874 = vmul.f32 %v11778, 0.5
        %v11875 = vmul.f32 %v11781, 0.5
        %v11876 = vmul.f32 %v11786, 0.5
        %v11877 = vmul.f32 %v11789, 0.5
        %v11878 = vmul.f32 %v11794, 0.5
        %v11879 = vmul.f32 %v11797, 0.5
        %v11880 = vmul.f32 %v11802, 0.5
        %v11881 = vmul.f32 %v11805, 0.5
        %v11882 = vmul.f32 %v11810, 0.5
        %v11883 = vmul.f32 %v11813, 0.5
        %v11884 = vmul.f32 %v11818, 0.5
        %v11885 = vmul.f32 %v11821, 0.5
        %v11886 = vmul.f32 %v11826, 0.5
        %v11887 = vmul.f32 %v11829, 0.5
        %v11888 = vmul.f32 %v11834, 0.5
        %v11889 = vmul.f32 %v11837, 0.5
        %v11890 = vmul.f32 %v11842, 0.5
        %v11891 = vmul.f32 %v11845, 0.5
        %v11892 = vmul.f32 %v11850, 0.5
        %v11893 = vmul.f32 %v11853, 0.5
        %v11894 = vmul.f32 %v11858, 0.5
        %v11895 = vmul.f32 %v11861, 0.5
        %v11896 = vmul.f32 %v11738, 0.70710677
        %v11897 = vmul.f32 %v11741, 0.70710677
        %v11898 = vmul.f32 %v11746, 0.70710677
        %v11899 = vmul.f32 %v11749, 0.70710677
        %v11900 = vmul.f32 %v11754, 0.70710677
        %v11901 = vmul.f32 %v11757, 0.70710677
        %v11902 = vmul.f32 %v11762, 0.70710677
        %v11903 = vmul.f32 %v11765, 0.70710677
        %v11904 = vmul.f32 %v11770, 0.70710677
        %v11905 = vmul.f32 %v11773, 0.70710677
        %v11906 = vmul.f32 %v11778, 0.70710677
        %v11907 = vmul.f32 %v11781, 0.70710677
        %v11908 = vmul.f32 %v11786, 0.70710677
        %v11909 = vmul.f32 %v11789, 0.70710677
        %v11910 = vmul.f32 %v11794, 0.70710677
        %v11911 = vmul.f32 %v11797, 0.70710677
        %v11912 = vmul.f32 %v11802, 0.70710677
        %v11913 = vmul.f32 %v11805, 0.70710677
        %v11914 = vmul.f32 %v11810, 0.70710677
        %v11915 = vmul.f32 %v11813, 0.70710677
        %v11916 = vmul.f32 %v11818, 0.70710677
        %v11917 = vmul.f32 %v11821, 0.70710677
        %v11918 = vmul.f32 %v11826, 0.70710677
        %v11919 = vmul.f32 %v11829, 0.70710677
        %v11920 = vmul.f32 %v11834, 0.70710677
        %v11921 = vmul.f32 %v11837, 0.70710677
        %v11922 = vmul.f32 %v11842, 0.70710677
        %v11923 = vmul.f32 %v11845, 0.70710677
        %v11924 = vmul.f32 %v11850, 0.70710677
        %v11925 = vmul.f32 %v11853, 0.70710677
        %v11926 = vmul.f32 %v11858, 0.70710677
        %v11927 = vmul.f32 %v11861, 0.70710677
        %v11928 = verf.f32.pop %v11896
        %v11929 = verf.f32.pop %v11897
        %v11930 = verf.f32.pop %v11898
        %v11931 = verf.f32.pop %v11899
        %v11932 = verf.f32.pop %v11900
        %v11933 = verf.f32.pop %v11901
        %v11934 = verf.f32.pop %v11902
        %v11935 = verf.f32.pop %v11903
        %v11936 = verf.f32.pop %v11904
        %v11937 = verf.f32.pop %v11905
        %v11938 = verf.f32.pop %v11906
        %v11939 = verf.f32.pop %v11907
        %v11940 = verf.f32.pop %v11908
        %v11941 = verf.f32.pop %v11909
        %v11942 = verf.f32.pop %v11910
        %v11943 = verf.f32.pop %v11911
        %v11944 = verf.f32.pop %v11912
        %v11945 = verf.f32.pop %v11913
        %v11946 = verf.f32.pop %v11914
        %v11947 = verf.f32.pop %v11915
        %v11948 = verf.f32.pop %v11916
        %v11949 = verf.f32.pop %v11917
        %v11950 = verf.f32.pop %v11918
        %v11951 = verf.f32.pop %v11919
        %v11952 = verf.f32.pop %v11920
        %v11953 = verf.f32.pop %v11921
        %v11954 = verf.f32.pop %v11922
        %v11955 = verf.f32.pop %v11923
        %v11956 = verf.f32.pop %v11924
        %v11957 = verf.f32.pop %v11925
        %v11958 = verf.f32.pop %v11926
        %v11959 = verf.f32.pop %v11927
        %v11960 = vadd.f32 %v11928, 1.0
        %v11961 = vadd.f32 %v11929, 1.0
        %v11962 = vadd.f32 %v11930, 1.0
        %v11963 = vadd.f32 %v11931, 1.0
        %v11964 = vadd.f32 %v11932, 1.0
        %v11965 = vadd.f32 %v11933, 1.0
        %v11966 = vadd.f32 %v11934, 1.0
        %v11967 = vadd.f32 %v11935, 1.0
        %v11968 = vadd.f32 %v11936, 1.0
        %v11969 = vadd.f32 %v11937, 1.0
        %v11970 = vadd.f32 %v11938, 1.0
        %v11971 = vadd.f32 %v11939, 1.0
        %v11972 = vadd.f32 %v11940, 1.0
        %v11973 = vadd.f32 %v11941, 1.0
        %v11974 = vadd.f32 %v11942, 1.0
        %v11975 = vadd.f32 %v11943, 1.0
        %v11976 = vadd.f32 %v11944, 1.0
        %v11977 = vadd.f32 %v11945, 1.0
        %v11978 = vadd.f32 %v11946, 1.0
        %v11979 = vadd.f32 %v11947, 1.0
        %v11980 = vadd.f32 %v11948, 1.0
        %v11981 = vadd.f32 %v11949, 1.0
        %v11982 = vadd.f32 %v11950, 1.0
        %v11983 = vadd.f32 %v11951, 1.0
        %v11984 = vadd.f32 %v11952, 1.0
        %v11985 = vadd.f32 %v11953, 1.0
        %v11986 = vadd.f32 %v11954, 1.0
        %v11987 = vadd.f32 %v11955, 1.0
        %v11988 = vadd.f32 %v11956, 1.0
        %v11989 = vadd.f32 %v11957, 1.0
        %v11990 = vadd.f32 %v11958, 1.0
        %v11991 = vadd.f32 %v11959, 1.0
        %v11992 = vmul.f32 %v11864, %v11960
        %v11993 = vmul.f32 %v11865, %v11961
        %v11994 = vmul.f32 %v11866, %v11962
        %v11995 = vmul.f32 %v11867, %v11963
        %v11996 = vmul.f32 %v11868, %v11964
        %v11997 = vmul.f32 %v11869, %v11965
        %v11998 = vmul.f32 %v11870, %v11966
        %v11999 = vmul.f32 %v11871, %v11967
        %v12000 = vmul.f32 %v11872, %v11968
        %v12001 = vmul.f32 %v11873, %v11969
        %v12002 = vmul.f32 %v11874, %v11970
        %v12003 = vmul.f32 %v11875, %v11971
        %v12004 = vmul.f32 %v11876, %v11972
        %v12005 = vmul.f32 %v11877, %v11973
        %v12006 = vmul.f32 %v11878, %v11974
        %v12007 = vmul.f32 %v11879, %v11975
        %v12008 = vmul.f32 %v11880, %v11976
        %v12009 = vmul.f32 %v11881, %v11977
        %v12010 = vmul.f32 %v11882, %v11978
        %v12011 = vmul.f32 %v11883, %v11979
        %v12012 = vmul.f32 %v11884, %v11980
        %v12013 = vmul.f32 %v11885, %v11981
        %v12014 = vmul.f32 %v11886, %v11982
        %v12015 = vmul.f32 %v11887, %v11983
        %v12016 = vmul.f32 %v11888, %v11984
        %v12017 = vmul.f32 %v11889, %v11985
        %v12018 = vmul.f32 %v11890, %v11986
        %v12019 = vmul.f32 %v11891, %v11987
        %v12020 = vmul.f32 %v11892, %v11988
        %v12021 = vmul.f32 %v11893, %v11989
        %v12022 = vmul.f32 %v11894, %v11990
        %v12023 = vmul.f32 %v11895, %v11991
        %v12024 = vpack.c.bf16 %v11993, %v11992
        %v12025 = vpack.c.bf16 %v11995, %v11994
        %v12026 = vpack.c.bf16 %v11997, %v11996
        %v12027 = vpack.c.bf16 %v11999, %v11998
        %v12028 = vpack.c.bf16 %v12001, %v12000
        %v12029 = vpack.c.bf16 %v12003, %v12002
        %v12030 = vpack.c.bf16 %v12005, %v12004
        %v12031 = vpack.c.bf16 %v12007, %v12006
        %v12032 = vpack.c.bf16 %v12009, %v12008
        %v12033 = vpack.c.bf16 %v12011, %v12010
        %v12034 = vpack.c.bf16 %v12013, %v12012
        %v12035 = vpack.c.bf16 %v12015, %v12014
        %v12036 = vpack.c.bf16 %v12017, %v12016
        %v12037 = vpack.c.bf16 %v12019, %v12018
        %v12038 = vpack.c.bf16 %v12021, %v12020
        %v12039 = vpack.c.bf16 %v12023, %v12022
        %v12040 = vld [vmem:[%s5] sm:$0xf]
        %v12041 = vld [vmem:[%s5 + $0x4] sm:$0xf]
        %v12042 = vld [vmem:[%s5 + $0x8] sm:$0xf]
        %v12043 = vld [vmem:[%s5 + $0xc] sm:$0xf]
        %v12044 = vld [vmem:[%s5 + $0x10] sm:$0xf]
        %v12045 = vld [vmem:[%s5 + $0x14] sm:$0xf]
        %v12046 = vld [vmem:[%s5 + $0x18] sm:$0xf]
        %v12047 = vld [vmem:[%s5 + $0x1c] sm:$0xf]
        %v12048 = vld [vmem:[%s5 + $0x20] sm:$0xf]
        %v12049 = vld [vmem:[%s5 + $0x24] sm:$0xf]
        %v12050 = vld [vmem:[%s5 + $0x28] sm:$0xf]
        %v12051 = vld [vmem:[%s5 + $0x2c] sm:$0xf]
        %v12052 = vld [vmem:[%s5 + $0x30] sm:$0xf]
        %v12053 = vld [vmem:[%s5 + $0x34] sm:$0xf]
        %v12054 = vld [vmem:[%s5 + $0x38] sm:$0xf]
        %v12055 = vld [vmem:[%s5 + $0x3c] sm:$0xf]
        %v12056 = vld [vmem:[%s6] sm:$0x1]
        %v12058 = vlaneseq
        %v12059 = vshrl.u32 %v12058, 7
        %v12060 = vsub.s32 0, %v12059
        %v12061 = vrot.slane %v12056, %v12060
        %v12079 = vunpack.c.l.b16 %v12040
        %v12080 = vunpack.c.l.b16 %v12041
        %v12081 = vunpack.c.l.b16 %v12042
        %v12082 = vunpack.c.l.b16 %v12043
        %v12083 = vunpack.c.l.b16 %v12044
        %v12084 = vunpack.c.l.b16 %v12045
        %v12085 = vunpack.c.l.b16 %v12046
        %v12086 = vunpack.c.l.b16 %v12047
        %v12087 = vunpack.c.l.b16 %v12048
        %v12088 = vunpack.c.l.b16 %v12049
        %v12089 = vunpack.c.l.b16 %v12050
        %v12090 = vunpack.c.l.b16 %v12051
        %v12091 = vunpack.c.l.b16 %v12052
        %v12092 = vunpack.c.l.b16 %v12053
        %v12093 = vunpack.c.l.b16 %v12054
        %v12094 = vunpack.c.l.b16 %v12055
        %v12095 = vpack.c.b16 %v12080, %v12079
        %v12096 = vpack.c.b16 %v12082, %v12081
        %v12097 = vpack.c.b16 %v12084, %v12083
        %v12098 = vpack.c.b16 %v12086, %v12085
        %v12099 = vpack.c.b16 %v12088, %v12087
        %v12100 = vpack.c.b16 %v12090, %v12089
        %v12101 = vpack.c.b16 %v12092, %v12091
        %v12102 = vpack.c.b16 %v12094, %v12093
        %12111 = vmatprep.subr.bf16.mxu0 0
        %12112 = vmatpush1.bf16.msra.mxu0 %v12095
        %12113 = vmatprep.subr.bf16.mxu0 0
        %12114 = vmatpush1.bf16.msra.mxu0 %v12096
        %12115 = vmatprep.subr.bf16.mxu0 0
        %12116 = vmatpush1.bf16.msra.mxu0 %v12097
        %12117 = vmatprep.subr.bf16.mxu0 0
        %12118 = vmatpush1.bf16.msra.mxu0 %v12098
        %12119 = vmatprep.subr.bf16.mxu0 0
        %12120 = vmatpush1.bf16.msra.mxu0 %v12099
        %12121 = vmatprep.subr.bf16.mxu0 0
        %12122 = vmatpush1.bf16.msra.mxu0 %v12100
        %12123 = vmatprep.subr.bf16.mxu0 0
        %12124 = vmatpush1.bf16.msra.mxu0 %v12101
        %12125 = vmatprep.subr.bf16.mxu0 0
        %12126 = vmatpush1.bf16.msra.mxu0 %v12102
        %12127 = vmatprep.subr.bf16.mxu0 0
        %12128 = vmatpush1.bf16.msra.mxu0 0
        %12129 = vmatprep.subr.bf16.mxu0 0
        %12130 = vmatpush1.bf16.msra.mxu0 0
        %12131 = vmatprep.subr.bf16.mxu0 0
        %12132 = vmatpush1.bf16.msra.mxu0 0
        %12133 = vmatprep.subr.bf16.mxu0 0
        %12134 = vmatpush1.bf16.msra.mxu0 0
        %12135 = vmatprep.subr.bf16.mxu0 0
        %12136 = vmatpush1.bf16.msra.mxu0 0
        %12137 = vmatprep.subr.bf16.mxu0 0
        %12138 = vmatpush1.bf16.msra.mxu0 0
        %12139 = vmatprep.subr.bf16.mxu0 0
        %12140 = vmatpush1.bf16.msra.mxu0 0
        %12141 = vmatprep.subr.bf16.mxu0 0
        %12142 = vmatpush1.bf16.msra.mxu0 0
        %12143 = vmatprep.mubr.bf16.mxu0 0
        %12144 = vmatmul.mubr.bf16.gmra.mrb[0].mxu0 %v12024
        %v12145 = vpop.f32.mrb[0].mxu0
        %v12146 = vadd.f32 %v12061, %v12145
        %v12147 = vpop.f32.mrb[0].mxu0
        %v12148 = vpop.f32.mrb[0].mxu0
        %v12149 = vadd.f32 %v12061, %v12148
        %v12150 = vpop.f32.mrb[0].mxu0
        %12151 = vmatprep.mubr.bf16.mxu0 0
        %12152 = vmatmul.mubr.bf16.gmra.mrb[0].mxu0 %v12025
        %v12153 = vpop.f32.mrb[0].mxu0
        %v12154 = vadd.f32 %v12061, %v12153
        %v12155 = vpop.f32.mrb[0].mxu0
        %v12156 = vpop.f32.mrb[0].mxu0
        %v12157 = vadd.f32 %v12061, %v12156
        %v12158 = vpop.f32.mrb[0].mxu0
        %12159 = vmatprep.mubr.bf16.mxu0 0
        %12160 = vmatmul.mubr.bf16.gmra.mrb[0].mxu0 %v12026
        %v12161 = vpop.f32.mrb[0].mxu0
        %v12162 = vadd.f32 %v12061, %v12161
        %v12163 = vpop.f32.mrb[0].mxu0
        %v12164 = vpop.f32.mrb[0].mxu0
        %v12165 = vadd.f32 %v12061, %v12164
        %v12166 = vpop.f32.mrb[0].mxu0
        %12167 = vmatprep.mubr.bf16.mxu0 0
        %12168 = vmatmul.mubr.bf16.gmra.mrb[0].mxu0 %v12027
        %v12169 = vpop.f32.mrb[0].mxu0
        %v12170 = vadd.f32 %v12061, %v12169
        %v12171 = vpop.f32.mrb[0].mxu0
        %v12172 = vpop.f32.mrb[0].mxu0
        %v12173 = vadd.f32 %v12061, %v12172
        %v12174 = vpop.f32.mrb[0].mxu0
        %12175 = vmatprep.mubr.bf16.mxu0 0
        %12176 = vmatmul.mubr.bf16.gmra.mrb[0].mxu0 %v12028
        %v12177 = vpop.f32.mrb[0].mxu0
        %v12178 = vadd.f32 %v12061, %v12177
        %v12179 = vpop.f32.mrb[0].mxu0
        %v12180 = vpop.f32.mrb[0].mxu0
        %v12181 = vadd.f32 %v12061, %v12180
        %v12182 = vpop.f32.mrb[0].mxu0
        %12183 = vmatprep.mubr.bf16.mxu0 0
        %12184 = vmatmul.mubr.bf16.gmra.mrb[0].mxu0 %v12029
        %v12185 = vpop.f32.mrb[0].mxu0
        %v12186 = vadd.f32 %v12061, %v12185
        %v12187 = vpop.f32.mrb[0].mxu0
        %v12188 = vpop.f32.mrb[0].mxu0
        %v12189 = vadd.f32 %v12061, %v12188
        %v12190 = vpop.f32.mrb[0].mxu0
        %12191 = vmatprep.mubr.bf16.mxu0 0
        %12192 = vmatmul.mubr.bf16.gmra.mrb[0].mxu0 %v12030
        %v12193 = vpop.f32.mrb[0].mxu0
        %v12194 = vadd.f32 %v12061, %v12193
        %v12195 = vpop.f32.mrb[0].mxu0
        %v12196 = vpop.f32.mrb[0].mxu0
        %v12197 = vadd.f32 %v12061, %v12196
        %v12198 = vpop.f32.mrb[0].mxu0
        %12199 = vmatprep.mubr.bf16.mxu0 0
        %12200 = vmatmul.mubr.bf16.gmra.mrb[0].mxu0 %v12031
        %v12201 = vpop.f32.mrb[0].mxu0
        %v12202 = vadd.f32 %v12061, %v12201
        %v12203 = vpop.f32.mrb[0].mxu0
        %v12204 = vpop.f32.mrb[0].mxu0
        %v12205 = vadd.f32 %v12061, %v12204
        %v12206 = vpop.f32.mrb[0].mxu0
        %12207 = vmatprep.mubr.bf16.mxu0 0
        %12208 = vmatmul.mubr.bf16.gmra.mrb[0].mxu0 %v12032
        %v12209 = vpop.f32.mrb[0].mxu0
        %v12210 = vadd.f32 %v12061, %v12209
        %v12211 = vpop.f32.mrb[0].mxu0
        %v12212 = vpop.f32.mrb[0].mxu0
        %v12213 = vadd.f32 %v12061, %v12212
        %v12214 = vpop.f32.mrb[0].mxu0
        %12215 = vmatprep.mubr.bf16.mxu0 0
        %12216 = vmatmul.mubr.bf16.gmra.mrb[0].mxu0 %v12033
        %v12217 = vpop.f32.mrb[0].mxu0
        %v12218 = vadd.f32 %v12061, %v12217
        %v12219 = vpop.f32.mrb[0].mxu0
        %v12220 = vpop.f32.mrb[0].mxu0
        %v12221 = vadd.f32 %v12061, %v12220
        %v12222 = vpop.f32.mrb[0].mxu0
        %12223 = vmatprep.mubr.bf16.mxu0 0
        %12224 = vmatmul.mubr.bf16.gmra.mrb[0].mxu0 %v12034
        %v12225 = vpop.f32.mrb[0].mxu0
        %v12226 = vadd.f32 %v12061, %v12225
        %v12227 = vpop.f32.mrb[0].mxu0
        %v12228 = vpop.f32.mrb[0].mxu0
        %v12229 = vadd.f32 %v12061, %v12228
        %v12230 = vpop.f32.mrb[0].mxu0
        %12231 = vmatprep.mubr.bf16.mxu0 0
        %12232 = vmatmul.mubr.bf16.gmra.mrb[0].mxu0 %v12035
        %v12233 = vpop.f32.mrb[0].mxu0
        %v12234 = vadd.f32 %v12061, %v12233
        %v12235 = vpop.f32.mrb[0].mxu0
        %v12236 = vpop.f32.mrb[0].mxu0
        %v12237 = vadd.f32 %v12061, %v12236
        %v12238 = vpop.f32.mrb[0].mxu0
        %12239 = vmatprep.mubr.bf16.mxu0 0
        %12240 = vmatmul.mubr.bf16.gmra.mrb[0].mxu0 %v12036
        %v12241 = vpop.f32.mrb[0].mxu0
        %v12242 = vadd.f32 %v12061, %v12241
        %v12243 = vpop.f32.mrb[0].mxu0
        %v12244 = vpop.f32.mrb[0].mxu0
        %v12245 = vadd.f32 %v12061, %v12244
        %v12246 = vpop.f32.mrb[0].mxu0
        %12247 = vmatprep.mubr.bf16.mxu0 0
        %12248 = vmatmul.mubr.bf16.gmra.mrb[0].mxu0 %v12037
        %v12249 = vpop.f32.mrb[0].mxu0
        %v12250 = vadd.f32 %v12061, %v12249
        %v12251 = vpop.f32.mrb[0].mxu0
        %v12252 = vpop.f32.mrb[0].mxu0
        %v12253 = vadd.f32 %v12061, %v12252
        %v12254 = vpop.f32.mrb[0].mxu0
        %12255 = vmatprep.mubr.bf16.mxu0 0
        %12256 = vmatmul.mubr.bf16.gmra.mrb[0].mxu0 %v12038
        %v12257 = vpop.f32.mrb[0].mxu0
        %v12258 = vadd.f32 %v12061, %v12257
        %v12259 = vpop.f32.mrb[0].mxu0
        %v12260 = vpop.f32.mrb[0].mxu0
        %v12261 = vadd.f32 %v12061, %v12260
        %v12262 = vpop.f32.mrb[0].mxu0
        %12263 = vmatprep.mubr.bf16.mxu0 0
        %12264 = vmatmul.mubr.bf16.gmra.mrb[0].mxu0 %v12039
        %v12265 = vpop.f32.mrb[0].mxu0
        %v12266 = vadd.f32 %v12061, %v12265
        %v12267 = vpop.f32.mrb[0].mxu0
        %v12268 = vpop.f32.mrb[0].mxu0
        %v12269 = vadd.f32 %v12061, %v12268
        %v12270 = vpop.f32.mrb[0].mxu0
        %12271 = vdwg.mxu0
        %v12320 = vrot.slane %v302, 3
        %v12321 = vrot.slane %v303, 3
        %v12322 = vsel %vm4360, %v12320, %v12321
        %v12323 = vrot.slane %v304, 3
        %v12324 = vsel %vm4360, %v12321, %v12323
        %v12325 = vrot.slane %v305, 3
        %v12326 = vrot.slane %v306, 3
        %v12327 = vsel %vm4360, %v12325, %v12326
        %v12328 = vrot.slane %v307, 3
        %v12329 = vsel %vm4360, %v12326, %v12328
        %v12330 = vrot.slane %v308, 3
        %v12331 = vrot.slane %v309, 3
        %v12332 = vsel %vm4360, %v12330, %v12331
        %v12333 = vrot.slane %v310, 3
        %v12334 = vsel %vm4360, %v12331, %v12333
        %v12335 = vrot.slane %v311, 3
        %v12336 = vrot.slane %v312, 3
        %v12337 = vsel %vm4360, %v12335, %v12336
        %v12338 = vrot.slane %v313, 3
        %v12339 = vsel %vm4360, %v12336, %v12338
        %v12340 = vrot.slane %v314, 3
        %v12341 = vrot.slane %v315, 3
        %v12342 = vsel %vm4360, %v12340, %v12341
        %v12343 = vrot.slane %v316, 3
        %v12344 = vsel %vm4360, %v12341, %v12343
        %v12345 = vrot.slane %v317, 3
        %v12346 = vrot.slane %v318, 3
        %v12347 = vsel %vm4360, %v12345, %v12346
        %v12348 = vrot.slane %v319, 3
        %v12349 = vsel %vm4360, %v12346, %v12348
        %v12350 = vrot.slane %v320, 3
        %v12351 = vrot.slane %v321, 3
        %v12352 = vsel %vm4360, %v12350, %v12351
        %v12353 = vrot.slane %v322, 3
        %v12354 = vsel %vm4360, %v12351, %v12353
        %v12355 = vrot.slane %v323, 3
        %v12356 = vrot.slane %v324, 3
        %v12357 = vsel %vm4360, %v12355, %v12356
        %v12358 = vrot.slane %v325, 3
        %v12359 = vsel %vm4360, %v12356, %v12358
        %v12360 = vrot.slane %v326, 3
        %v12361 = vrot.slane %v327, 3
        %v12362 = vsel %vm4360, %v12360, %v12361
        %v12363 = vrot.slane %v328, 3
        %v12364 = vsel %vm4360, %v12361, %v12363
        %v12365 = vrot.slane %v329, 3
        %v12366 = vrot.slane %v330, 3
        %v12367 = vsel %vm4360, %v12365, %v12366
        %v12368 = vrot.slane %v331, 3
        %v12369 = vsel %vm4360, %v12366, %v12368
        %v12370 = vrot.slane %v332, 3
        %v12371 = vrot.slane %v333, 3
        %v12372 = vsel %vm4360, %v12370, %v12371
        %v12373 = vrot.slane %v334, 3
        %v12374 = vsel %vm4360, %v12371, %v12373
        %v12375 = vrot.slane %v335, 3
        %v12376 = vrot.slane %v336, 3
        %v12377 = vsel %vm4360, %v12375, %v12376
        %v12378 = vrot.slane %v337, 3
        %v12379 = vsel %vm4360, %v12376, %v12378
        %v12380 = vrot.slane %v338, 3
        %v12381 = vrot.slane %v339, 3
        %v12382 = vsel %vm4360, %v12380, %v12381
        %v12383 = vrot.slane %v340, 3
        %v12384 = vsel %vm4360, %v12381, %v12383
        %v12385 = vrot.slane %v341, 3
        %v12386 = vrot.slane %v342, 3
        %v12387 = vsel %vm4360, %v12385, %v12386
        %v12388 = vrot.slane %v343, 3
        %v12389 = vsel %vm4360, %v12386, %v12388
        %v12390 = vrot.slane %v344, 3
        %v12391 = vrot.slane %v345, 3
        %v12392 = vsel %vm4360, %v12390, %v12391
        %v12393 = vrot.slane %v346, 3
        %v12394 = vsel %vm4360, %v12391, %v12393
        %v12395 = vrot.slane %v347, 3
        %v12396 = vrot.slane %v348, 3
        %v12397 = vsel %vm4360, %v12395, %v12396
        %v12398 = vrot.slane %v349, 3
        %v12399 = vsel %vm4360, %v12396, %v12398
        %v12432 = vadd.f32 %v12146, %v12322
        %v12433 = vadd.f32 %v12149, %v12324
        %v12434 = vadd.f32 %v12154, %v12327
        %v12435 = vadd.f32 %v12157, %v12329
        %v12436 = vadd.f32 %v12162, %v12332
        %v12437 = vadd.f32 %v12165, %v12334
        %v12438 = vadd.f32 %v12170, %v12337
        %v12439 = vadd.f32 %v12173, %v12339
        %v12440 = vadd.f32 %v12178, %v12342
        %v12441 = vadd.f32 %v12181, %v12344
        %v12442 = vadd.f32 %v12186, %v12347
        %v12443 = vadd.f32 %v12189, %v12349
        %v12444 = vadd.f32 %v12194, %v12352
        %v12445 = vadd.f32 %v12197, %v12354
        %v12446 = vadd.f32 %v12202, %v12357
        %v12447 = vadd.f32 %v12205, %v12359
        %v12448 = vadd.f32 %v12210, %v12362
        %v12449 = vadd.f32 %v12213, %v12364
        %v12450 = vadd.f32 %v12218, %v12367
        %v12451 = vadd.f32 %v12221, %v12369
        %v12452 = vadd.f32 %v12226, %v12372
        %v12453 = vadd.f32 %v12229, %v12374
        %v12454 = vadd.f32 %v12234, %v12377
        %v12455 = vadd.f32 %v12237, %v12379
        %v12456 = vadd.f32 %v12242, %v12382
        %v12457 = vadd.f32 %v12245, %v12384
        %v12458 = vadd.f32 %v12250, %v12387
        %v12459 = vadd.f32 %v12253, %v12389
        %v12460 = vadd.f32 %v12258, %v12392
        %v12461 = vadd.f32 %v12261, %v12394
        %v12462 = vadd.f32 %v12266, %v12397
        %v12463 = vadd.f32 %v12269, %v12399
        %12464 = vst.msk [vmem:[%s285] sm:$0xff] %vm11135, %v12432
        %12465 = vst.msk [vmem:[%s285 + $0x8] sm:$0xff] %vm11135, %v12433
        %12466 = vst.msk [vmem:[%s285 + $0x10] sm:$0xff] %vm11135, %v12434
        %12467 = vst.msk [vmem:[%s285 + $0x18] sm:$0xff] %vm11135, %v12435
        %12468 = vst.msk [vmem:[%s285 + $0x20] sm:$0xff] %vm11135, %v12436
        %12469 = vst.msk [vmem:[%s285 + $0x28] sm:$0xff] %vm11135, %v12437
        %12470 = vst.msk [vmem:[%s285 + $0x30] sm:$0xff] %vm11135, %v12438
        %12471 = vst.msk [vmem:[%s285 + $0x38] sm:$0xff] %vm11135, %v12439
        %12472 = vst.msk [vmem:[%s285 + $0x40] sm:$0xff] %vm11135, %v12440
        %12473 = vst.msk [vmem:[%s285 + $0x48] sm:$0xff] %vm11135, %v12441
        %12474 = vst.msk [vmem:[%s285 + $0x50] sm:$0xff] %vm11135, %v12442
        %12475 = vst.msk [vmem:[%s285 + $0x58] sm:$0xff] %vm11135, %v12443
        %12476 = vst.msk [vmem:[%s285 + $0x60] sm:$0xff] %vm11135, %v12444
        %12477 = vst.msk [vmem:[%s285 + $0x68] sm:$0xff] %vm11135, %v12445
        %12478 = vst.msk [vmem:[%s285 + $0x70] sm:$0xff] %vm11135, %v12446
        %12479 = vst.msk [vmem:[%s285 + $0x78] sm:$0xff] %vm11135, %v12447
        %12480 = vst.msk [vmem:[%s285 + $0x80] sm:$0xff] %vm11135, %v12448
        %12481 = vst.msk [vmem:[%s285 + $0x88] sm:$0xff] %vm11135, %v12449
        %12482 = vst.msk [vmem:[%s285 + $0x90] sm:$0xff] %vm11135, %v12450
        %12483 = vst.msk [vmem:[%s285 + $0x98] sm:$0xff] %vm11135, %v12451
        %12484 = vst.msk [vmem:[%s285 + $0xa0] sm:$0xff] %vm11135, %v12452
        %12485 = vst.msk [vmem:[%s285 + $0xa8] sm:$0xff] %vm11135, %v12453
        %12486 = vst.msk [vmem:[%s285 + $0xb0] sm:$0xff] %vm11135, %v12454
        %12487 = vst.msk [vmem:[%s285 + $0xb8] sm:$0xff] %vm11135, %v12455
        %12488 = vst.msk [vmem:[%s285 + $0xc0] sm:$0xff] %vm11135, %v12456
        %12489 = vst.msk [vmem:[%s285 + $0xc8] sm:$0xff] %vm11135, %v12457
        %12490 = vst.msk [vmem:[%s285 + $0xd0] sm:$0xff] %vm11135, %v12458
        %12491 = vst.msk [vmem:[%s285 + $0xd8] sm:$0xff] %vm11135, %v12459
        %12492 = vst.msk [vmem:[%s285 + $0xe0] sm:$0xff] %vm11135, %v12460
        %12493 = vst.msk [vmem:[%s285 + $0xe8] sm:$0xff] %vm11135, %v12461
        %12494 = vst.msk [vmem:[%s285 + $0xf0] sm:$0xff] %vm11135, %v12462
        %12495 = vst.msk [vmem:[%s285 + $0xf8] sm:$0xff] %vm11135, %v12463
        %s12496 = sand.u32 %s195, 1
        %s12497 = scalar_lea.sflag [#allocation3], %s12496
        %s12498 = sand.u32 %s195, 1
        %s12499 = smul.addr %s12498, 256
        %s12500 = scalar_lea.vmem [#allocation2], %s12499
        // Predicated region
        $region49: #{tpu_custom_call.1} parent=47 // pred_check
          %p12501 = pneg %p205
        $region50: #{tpu_custom_call.1} parent=47 // pred_check_branch
          %12503 = sbr.rel (%p12501) target = $region52
        $region51: #{tpu_custom_call.1} parent=47 // pred_region
          %s12504 = smul.u32 16, %s26
          %s12506 = ssub.s32 4096, 4096
          %12507 = vsyncadd %s12497, %s12506
          %s12508 = smul.addr %s12504, 2
          %s12509 = smul.addr %s25, 32
          %s12510 = sadd.s32 %s12508, %s12509
          %s12511 = smul.addr %s12510, 128
          %s12512 = scalar_lea.hbm %s7, %s12511
          %s12513 = sshll.u32 %s12500, 4
          %s12514 = int_to_ptr.vmem [resolvable:$true] %s12513
          %12519 = dma.vmem_to_hbm [thread:$0]  %s12514, 4096, %s12512, %s12497, 128, 128, 8
        $region52: #{tpu_custom_call.1} parent=47 // pred_fallthru
          _
      $region48: #{tpu_custom_call.1} parent=5 // pred_fallthru
        _
      %p12520 = scmp.le.s32.totalorder 2, %s16
      // Predicated region
      $region53: #{tpu_custom_call.1} parent=5 // pred_check
        %p12521 = pneg %p12520
      $region54: #{tpu_custom_call.1} parent=5 // pred_check_branch
        %12523 = sbr.rel (%p12521) target = $region56
      $region55: #{tpu_custom_call.1} parent=5 // pred_region
        %s12524 = ssub.s32 %s16, 2
        // Predicated region
        $region57: #{tpu_custom_call.1} parent=55 // pred_check
          %p12525 = pneg %p211
        $region58: #{tpu_custom_call.1} parent=55 // pred_check_branch
          %12527 = sbr.rel (%p12525) target = $region60
        $region59: #{tpu_custom_call.1} parent=55 // pred_region
          %s12528 = sand.u32 %s196, 1
          %s12529 = scalar_lea.sflag [#allocation3], %s12528
          %s12530 = sand.u32 %s196, 1
          %s12531 = smul.addr %s12530, 256
          %s12532 = scalar_lea.vmem [#allocation2], %s12531
          %12533 = dma.done %s12529, 4096
        $region60: #{tpu_custom_call.1} parent=55 // pred_fallthru
          _
      $region56: #{tpu_custom_call.1} parent=5 // pred_fallthru
        _
    $region6: #{tpu_custom_call.1} parent=1 // loop_footer
      %s20 = sadd.s32 1, %s16
    $region7: #{tpu_custom_call.1} parent=1 // loop_footer_branch
      %15 = sbr.rel target = $region3
    $region8: #{tpu_custom_call.1} parent=1 // loop_exit
      _
    %12534 = vsyncpa [#allocation3], 1
    %s12535 = scalar_lea.sflag [#allocation3], 1
    %12536 = vsyncpa %s12535, 1

</llo_original>
